<compile_context>
chip_gen: v7x
topology: tpu7x:2x2x1
jax: 0.10.0
libtpu: 0.0.40
codegen_flags: <defaults>
</compile_context>

<pallas_src>
import functools

import jax
import jax.numpy as jnp
from jax.experimental import pallas as pl
from jax.experimental.pallas import tpu as pltpu


def _fused_cnn_kernel(*refs, W, channels):
    """refs = (x, masks, w0, b0, ..., wL-1, bL-1, out, patch_scratch).

    x      : (1, N*HW)      f32   all batch images flattened along lanes
    masks  : (9, N*HW)      f32   per-tap border-validity mask (tiled per image)
    w0     : (C1, 9)        f32   first layer (cin=1), tap-major columns
    wl     : (Cout, 9*Cin)  bf16  middle layers, im2col weights (tap-major)
    wL-1   : (Cin, 9)       f32   last layer (cout=1), tap-major columns
    bl     : (Cout, 1)      f32
    out    : (1, N*HW)      f32
    patch  : (9*Cmax, N*HW) bf16  VMEM scratch for the im2col patch matrix
    """
    n_layers = len(channels) - 1
    x_ref, mask_ref = refs[0], refs[1]
    wb = refs[2:2 + 2 * n_layers]
    o_ref = refs[2 + 2 * n_layers]
    patch_ref = refs[3 + 2 * n_layers]

    NHW = x_ref.shape[1]
    # Hoist the nine (1, N*HW) masks out of the per-layer loops.
    masks = [mask_ref[t:t + 1, :] for t in range(9)]
    # Tap t = ky*3 + kx reads input pixel (y+ky-1, x+kx-1): a rotation by
    # -(dy*W + dx) on the flattened axis; wrapped / out-of-image / cross-image
    # positions are zeroed by masks[t].
    shifts = [(-(dy * W + dx)) % NHW
              for dy in (-1, 0, 1) for dx in (-1, 0, 1)]

    def tap(act, t):
        """Masked f32 roll of `act` for tap t (center tap: no roll, no mask)."""
        s = shifts[t]
        r = act if s == 0 else pltpu.roll(act, shift=s, axis=1)
        return r if t == 4 else r * masks[t]

    # ---- Layer 0 (cin == 1): direct 9-tap conv on the VPU ------------------
    # (a K=9 matmul is the worst MXU shape and the patch rows would be
    #  sublane-misaligned; 9 outer-product FMAs are cheaper.)
    w0, b0 = wb[0], wb[1]
    x = x_ref[...]                                     # (1, N*HW) f32
    acc = w0[:, 0:1] * tap(x, 0)
    for t in range(1, 9):
        acc = acc + w0[:, t:t + 1] * tap(x, t)
    act = jnp.maximum(acc + b0[...], 0.0)              # (C1, N*HW) f32

    # ---- Middle layers: one bf16 im2col MXU matmul each ---------------------
    # Mask multiply stays f32 (VPU); the only f32->bf16 cast is fused into the
    # scatter store, so the bf16 scratch halves vst/vld traffic vs f32.
    for l in range(1, n_layers - 1):
        cin = channels[l]
        w_ref, b_ref = wb[2 * l], wb[2 * l + 1]
        for t in range(9):
            patch_ref[t * cin:(t + 1) * cin, :] = tap(act, t).astype(jnp.bfloat16)
        acc = jnp.dot(w_ref[...], patch_ref[0:9 * cin, :],
                      preferred_element_type=jnp.float32)
        act = jnp.maximum(acc + b_ref[...], 0.0)       # (Cout, N*HW) f32

    # ---- Last layer (cout == 1): VPU FMAs + channel (sublane) reduction ----
    wL, bL = wb[2 * (n_layers - 1)], wb[2 * (n_layers - 1) + 1]
    acc = wL[:, 0:1] * tap(act, 0)
    for t in range(1, 9):
        acc = acc + wL[:, t:t + 1] * tap(act, t)       # (Cin, N*HW) f32
    out = jnp.sum(acc, axis=0, keepdims=True) + bL[...]
    o_ref[...] = out.astype(o_ref.dtype)


def _tap_masks(H, W):
    """(9, H*W) f32: 1 where the 3x3 tap reads inside the image, 0 at borders."""
    f = jnp.arange(H * W, dtype=jnp.int32)
    y, x = f // W, f % W
    rows = []
    for dy in (-1, 0, 1):
        for dx in (-1, 0, 1):
            ok = (y + dy >= 0) & (y + dy < H) & (x + dx >= 0) & (x + dx < W)
            rows.append(ok.astype(jnp.float32))
    return jnp.stack(rows, axis=0)


def noise_reduction_cnn_forward(x_nchw, params):
    """Forward pass of NoiseReductionCNN. Input/output are NCHW like PyTorch."""
    N, Cin0, H, W = x_nchw.shape
    assert Cin0 == 1, "module expects a single input channel"
    n_layers = len(params)
    channels = (Cin0,) + tuple(int(w.shape[0]) for (w, _) in params)
    assert channels[-1] == 1, "module expects a single output channel"
    HW = H * W
    NHW = N * HW

    # Batch folded into lanes -> a single pallas_call grid step.
    x_flat = x_nchw.astype(jnp.float32).reshape(1, NHW)
    masks = jnp.tile(_tap_masks(H, W), (1, N))          # (9, N*HW)

    flat_args = [x_flat, masks]
    in_specs = [
        pl.BlockSpec((1, NHW), lambda i: (0, 0)),       # folded image row
        pl.BlockSpec((9, NHW), lambda i: (0, 0)),       # masks (resident)
    ]
    for l, (w, b) in enumerate(params):
        cout, cin = int(w.shape[0]), int(w.shape[1])
        if l == 0:
            # (C1, 1, 3, 3) -> (C1, 9), column t = ky*3 + kx, f32 (VPU path).
            w2d = w.reshape(cout, 9).astype(jnp.float32)
        elif l == n_layers - 1:
            # (1, Cin, 3, 3) -> (Cin, 9), column t = ky*3 + kx, f32 (VPU path).
            w2d = w.reshape(cin, 9).astype(jnp.float32)
        else:
            # (Cout, Cin, 3, 3) -> (Cout, 9*Cin), column = (ky*3+kx)*Cin + ci,
            # matching the tap-major patch rows.  bf16 for the MXU.
            w2d = jnp.transpose(w, (0, 2, 3, 1)).reshape(cout, 9 * cin)
            w2d = w2d.astype(jnp.bfloat16)
        flat_args.append(w2d)
        flat_args.append(b.reshape(cout, 1).astype(jnp.float32))
        in_specs.append(pl.BlockSpec(tuple(w2d.shape), lambda i: (0, 0)))
        in_specs.append(pl.BlockSpec((cout, 1), lambda i: (0, 0)))

    # Scratch only needs to hold the im2col patch of the middle (MXU) layers.
    mid_cins = channels[1:n_layers - 1] or (2,)
    patch_rows = 9 * max(mid_cins)
    # NOTE: at realistic resolutions, tile the N*HW axis (multiple of 128) as a
    # second grid axis before the bf16 scratch outgrows v7x's 64 MiB VMEM.

    kernel = functools.partial(_fused_cnn_kernel, W=W, channels=channels)

    out_flat = pl.pallas_call(
        kernel,
        out_shape=jax.ShapeDtypeStruct((1, NHW), jnp.float32),
        grid=(1,),
        in_specs=in_specs,
        out_specs=pl.BlockSpec((1, NHW), lambda i: (0, 0)),
        scratch_shapes=[pltpu.VMEM((patch_rows, NHW), jnp.bfloat16)],
        compiler_params=pltpu.CompilerParams(
            dimension_semantics=("arbitrary",)),
    )(*flat_args)
    return out_flat.reshape(N, 1, H, W)


def init_conv_params(key, cin, cout):
    """torch.nn.Conv2d default init: U(-1/sqrt(fan_in), 1/sqrt(fan_in))."""
    fan_in = cin * 3 * 3
    bound = 1.0 / (fan_in ** 0.5)
    kw, kb = jax.random.split(key)
    w = jax.random.uniform(kw, (cout, cin, 3, 3), jnp.float32, -bound, bound)
    b = jax.random.uniform(kb, (cout,), jnp.float32, -bound, bound)
    return w, b


def _reference_forward(x, params):
    """Pure-XLA f32 reference (PyTorch semantics) for validation."""
    act = x.astype(jnp.float32)
    n = len(params)
    for i, (w, b) in enumerate(params):
        act = jax.lax.conv_general_dilated(
            act, w.astype(jnp.float32), window_strides=(1, 1), padding="SAME",
            dimension_numbers=("NCHW", "OIHW", "NCHW"))
        act = act + b.reshape(1, -1, 1, 1)
        if i < n - 1:
            act = jnp.maximum(act, 0.0)
    return act


if __name__ == "__main__":
    key = jax.random.PRNGKey(0)
    keys = jax.random.split(key, 7)

    # Small deterministic input: batch=2, 1 channel, 16x16 spatial (NCHW).
    x = jax.random.normal(keys[0], (2, 1, 16, 16), dtype=jnp.float32)

    channels = (1, 16, 32, 64, 32, 16, 1)
    params = [init_conv_params(keys[i + 1], channels[i], channels[i + 1])
              for i in range(6)]

    fwd = jax.jit(noise_reduction_cnn_forward)
    out = fwd(x, params)
    jax.block_until_ready(out)

    assert out.shape == (2, 1, 16, 16), out.shape
    assert out.dtype == jnp.float32

    # Validate against the f32 XLA reference (bf16 is used only on the 4
    # middle-layer matmul operands, with f32 accumulation).
    ref = _reference_forward(x, params)
    err = float(jnp.max(jnp.abs(out - ref)))
    scale = float(jnp.max(jnp.abs(ref))) + 1e-6
    assert err <= 5e-2 * scale + 1e-3, (err, scale)

    print("KERNEL_OK")
</pallas_src>

<mosaic_0001>
module attributes {stable_mosaic.version = 11 : i64} {
  func.func @_fused_cnn_kernel(%arg0: i32, %arg1: memref<1x512xf32, #tpu.memory_space<vmem>>, %arg2: memref<9x512xf32, #tpu.memory_space<vmem>>, %arg3: memref<16x9xf32, #tpu.memory_space<vmem>>, %arg4: memref<16x1xf32, #tpu.memory_space<vmem>>, %arg5: memref<32x144xbf16, #tpu.memory_space<vmem>>, %arg6: memref<32x1xf32, #tpu.memory_space<vmem>>, %arg7: memref<64x288xbf16, #tpu.memory_space<vmem>>, %arg8: memref<64x1xf32, #tpu.memory_space<vmem>>, %arg9: memref<32x576xbf16, #tpu.memory_space<vmem>>, %arg10: memref<32x1xf32, #tpu.memory_space<vmem>>, %arg11: memref<16x288xbf16, #tpu.memory_space<vmem>>, %arg12: memref<16x1xf32, #tpu.memory_space<vmem>>, %arg13: memref<16x9xf32, #tpu.memory_space<vmem>>, %arg14: memref<1x1xf32, #tpu.memory_space<vmem>>, %arg15: memref<1x512xf32, #tpu.memory_space<vmem>>, %arg16: memref<576x512xbf16, #tpu.memory_space<vmem>>) attributes {dimension_semantics = [#tpu.dimension_semantics<arbitrary>], iteration_bounds = array<i64: 1>, scalar_prefetch = 0 : i64, scratch_operands = 1 : i64, tpu.core_type = #tpu.core_type<tc>, window_params = [{pipeline_mode = #tpu.pipeline_mode<synchronous>, transform_indices = @transform_0, window_bounds = array<i64: 1, 512>}, {pipeline_mode = #tpu.pipeline_mode<synchronous>, transform_indices = @transform_1, window_bounds = array<i64: 9, 512>}, {pipeline_mode = #tpu.pipeline_mode<synchronous>, transform_indices = @transform_2, window_bounds = array<i64: 16, 9>}, {pipeline_mode = #tpu.pipeline_mode<synchronous>, transform_indices = @transform_3, window_bounds = array<i64: 16, 1>}, {pipeline_mode = #tpu.pipeline_mode<synchronous>, transform_indices = @transform_4, window_bounds = array<i64: 32, 144>}, {pipeline_mode = #tpu.pipeline_mode<synchronous>, transform_indices = @transform_5, window_bounds = array<i64: 32, 1>}, {pipeline_mode = #tpu.pipeline_mode<synchronous>, transform_indices = @transform_6, window_bounds = array<i64: 64, 288>}, {pipeline_mode = #tpu.pipeline_mode<synchronous>, transform_indices = @transform_7, window_bounds = array<i64: 64, 1>}, {pipeline_mode = #tpu.pipeline_mode<synchronous>, transform_indices = @transform_8, window_bounds = array<i64: 32, 576>}, {pipeline_mode = #tpu.pipeline_mode<synchronous>, transform_indices = @transform_9, window_bounds = array<i64: 32, 1>}, {pipeline_mode = #tpu.pipeline_mode<synchronous>, transform_indices = @transform_10, window_bounds = array<i64: 16, 288>}, {pipeline_mode = #tpu.pipeline_mode<synchronous>, transform_indices = @transform_11, window_bounds = array<i64: 16, 1>}, {pipeline_mode = #tpu.pipeline_mode<synchronous>, transform_indices = @transform_12, window_bounds = array<i64: 16, 9>}, {pipeline_mode = #tpu.pipeline_mode<synchronous>, transform_indices = @transform_13, window_bounds = array<i64: 1, 1>}, {pipeline_mode = #tpu.pipeline_mode<synchronous>, transform_indices = @transform_14, window_bounds = array<i64: 1, 512>}]} {
    %c0 = arith.constant 0 : index
    %c0_0 = arith.constant 0 : index
    %0 = vector.load %arg2[%c0, %c0_0] : memref<9x512xf32, #tpu.memory_space<vmem>>, vector<1x512xf32>
    %c1 = arith.constant 1 : index
    %c0_1 = arith.constant 0 : index
    %1 = vector.load %arg2[%c1, %c0_1] : memref<9x512xf32, #tpu.memory_space<vmem>>, vector<1x512xf32>
    %c2 = arith.constant 2 : index
    %c0_2 = arith.constant 0 : index
    %2 = vector.load %arg2[%c2, %c0_2] : memref<9x512xf32, #tpu.memory_space<vmem>>, vector<1x512xf32>
    %c3 = arith.constant 3 : index
    %c0_3 = arith.constant 0 : index
    %3 = vector.load %arg2[%c3, %c0_3] : memref<9x512xf32, #tpu.memory_space<vmem>>, vector<1x512xf32>
    %c5 = arith.constant 5 : index
    %c0_4 = arith.constant 0 : index
    %4 = vector.load %arg2[%c5, %c0_4] : memref<9x512xf32, #tpu.memory_space<vmem>>, vector<1x512xf32>
    %c6 = arith.constant 6 : index
    %c0_5 = arith.constant 0 : index
    %5 = vector.load %arg2[%c6, %c0_5] : memref<9x512xf32, #tpu.memory_space<vmem>>, vector<1x512xf32>
    %c7 = arith.constant 7 : index
    %c0_6 = arith.constant 0 : index
    %6 = vector.load %arg2[%c7, %c0_6] : memref<9x512xf32, #tpu.memory_space<vmem>>, vector<1x512xf32>
    %c8 = arith.constant 8 : index
    %c0_7 = arith.constant 0 : index
    %7 = vector.load %arg2[%c8, %c0_7] : memref<9x512xf32, #tpu.memory_space<vmem>>, vector<1x512xf32>
    %c0_8 = arith.constant 0 : index
    %c0_9 = arith.constant 0 : index
    %8 = vector.load %arg1[%c0_8, %c0_9] : memref<1x512xf32, #tpu.memory_space<vmem>>, vector<1x512xf32>
    %c0_10 = arith.constant 0 : index
    %c0_11 = arith.constant 0 : index
    %9 = vector.load %arg3[%c0_10, %c0_11] : memref<16x9xf32, #tpu.memory_space<vmem>>, vector<16x1xf32>
    %c17_i32 = arith.constant 17 : i32
    %10 = tpu.dynamic_rotate %8 by %c17_i32 dim 1 : vector<1x512xf32>, i32 -> vector<1x512xf32>
    %11 = arith.mulf %10, %0 : vector<1x512xf32>
    %12 = vector.broadcast %9 : vector<16x1xf32> to vector<16x512xf32>
    %13 = vector.broadcast %11 : vector<1x512xf32> to vector<16x512xf32>
    %14 = arith.mulf %12, %13 : vector<16x512xf32>
    %c0_12 = arith.constant 0 : index
    %c1_13 = arith.constant 1 : index
    %15 = vector.load %arg3[%c0_12, %c1_13] : memref<16x9xf32, #tpu.memory_space<vmem>>, vector<16x1xf32>
    %c16_i32 = arith.constant 16 : i32
    %16 = tpu.dynamic_rotate %8 by %c16_i32 dim 1 : vector<1x512xf32>, i32 -> vector<1x512xf32>
    %17 = arith.mulf %16, %1 : vector<1x512xf32>
    %18 = vector.broadcast %15 : vector<16x1xf32> to vector<16x512xf32>
    %19 = vector.broadcast %17 : vector<1x512xf32> to vector<16x512xf32>
    %20 = arith.mulf %18, %19 : vector<16x512xf32>
    %21 = arith.addf %14, %20 : vector<16x512xf32>
    %c0_14 = arith.constant 0 : index
    %c2_15 = arith.constant 2 : index
    %22 = vector.load %arg3[%c0_14, %c2_15] : memref<16x9xf32, #tpu.memory_space<vmem>>, vector<16x1xf32>
    %c15_i32 = arith.constant 15 : i32
    %23 = tpu.dynamic_rotate %8 by %c15_i32 dim 1 : vector<1x512xf32>, i32 -> vector<1x512xf32>
    %24 = arith.mulf %23, %2 : vector<1x512xf32>
    %25 = vector.broadcast %22 : vector<16x1xf32> to vector<16x512xf32>
    %26 = vector.broadcast %24 : vector<1x512xf32> to vector<16x512xf32>
    %27 = arith.mulf %25, %26 : vector<16x512xf32>
    %28 = arith.addf %21, %27 : vector<16x512xf32>
    %c0_16 = arith.constant 0 : index
    %c3_17 = arith.constant 3 : index
    %29 = vector.load %arg3[%c0_16, %c3_17] : memref<16x9xf32, #tpu.memory_space<vmem>>, vector<16x1xf32>
    %c1_i32 = arith.constant 1 : i32
    %30 = tpu.dynamic_rotate %8 by %c1_i32 dim 1 : vector<1x512xf32>, i32 -> vector<1x512xf32>
    %31 = arith.mulf %30, %3 : vector<1x512xf32>
    %32 = vector.broadcast %29 : vector<16x1xf32> to vector<16x512xf32>
    %33 = vector.broadcast %31 : vector<1x512xf32> to vector<16x512xf32>
    %34 = arith.mulf %32, %33 : vector<16x512xf32>
    %35 = arith.addf %28, %34 : vector<16x512xf32>
    %c0_18 = arith.constant 0 : index
    %c4 = arith.constant 4 : index
    %36 = vector.load %arg3[%c0_18, %c4] : memref<16x9xf32, #tpu.memory_space<vmem>>, vector<16x1xf32>
    %37 = vector.broadcast %36 : vector<16x1xf32> to vector<16x512xf32>
    %38 = vector.broadcast %8 : vector<1x512xf32> to vector<16x512xf32>
    %39 = arith.mulf %37, %38 : vector<16x512xf32>
    %40 = arith.addf %35, %39 : vector<16x512xf32>
    %c0_19 = arith.constant 0 : index
    %c5_20 = arith.constant 5 : index
    %41 = vector.load %arg3[%c0_19, %c5_20] : memref<16x9xf32, #tpu.memory_space<vmem>>, vector<16x1xf32>
    %c511_i32 = arith.constant 511 : i32
    %42 = tpu.dynamic_rotate %8 by %c511_i32 dim 1 : vector<1x512xf32>, i32 -> vector<1x512xf32>
    %43 = arith.mulf %42, %4 : vector<1x512xf32>
    %44 = vector.broadcast %41 : vector<16x1xf32> to vector<16x512xf32>
    %45 = vector.broadcast %43 : vector<1x512xf32> to vector<16x512xf32>
    %46 = arith.mulf %44, %45 : vector<16x512xf32>
    %47 = arith.addf %40, %46 : vector<16x512xf32>
    %c0_21 = arith.constant 0 : index
    %c6_22 = arith.constant 6 : index
    %48 = vector.load %arg3[%c0_21, %c6_22] : memref<16x9xf32, #tpu.memory_space<vmem>>, vector<16x1xf32>
    %c497_i32 = arith.constant 497 : i32
    %49 = tpu.dynamic_rotate %8 by %c497_i32 dim 1 : vector<1x512xf32>, i32 -> vector<1x512xf32>
    %50 = arith.mulf %49, %5 : vector<1x512xf32>
    %51 = vector.broadcast %48 : vector<16x1xf32> to vector<16x512xf32>
    %52 = vector.broadcast %50 : vector<1x512xf32> to vector<16x512xf32>
    %53 = arith.mulf %51, %52 : vector<16x512xf32>
    %54 = arith.addf %47, %53 : vector<16x512xf32>
    %c0_23 = arith.constant 0 : index
    %c7_24 = arith.constant 7 : index
    %55 = vector.load %arg3[%c0_23, %c7_24] : memref<16x9xf32, #tpu.memory_space<vmem>>, vector<16x1xf32>
    %c496_i32 = arith.constant 496 : i32
    %56 = tpu.dynamic_rotate %8 by %c496_i32 dim 1 : vector<1x512xf32>, i32 -> vector<1x512xf32>
    %57 = arith.mulf %56, %6 : vector<1x512xf32>
    %58 = vector.broadcast %55 : vector<16x1xf32> to vector<16x512xf32>
    %59 = vector.broadcast %57 : vector<1x512xf32> to vector<16x512xf32>
    %60 = arith.mulf %58, %59 : vector<16x512xf32>
    %61 = arith.addf %54, %60 : vector<16x512xf32>
    %c0_25 = arith.constant 0 : index
    %c8_26 = arith.constant 8 : index
    %62 = vector.load %arg3[%c0_25, %c8_26] : memref<16x9xf32, #tpu.memory_space<vmem>>, vector<16x1xf32>
    %c495_i32 = arith.constant 495 : i32
    %63 = tpu.dynamic_rotate %8 by %c495_i32 dim 1 : vector<1x512xf32>, i32 -> vector<1x512xf32>
    %64 = arith.mulf %63, %7 : vector<1x512xf32>
    %65 = vector.broadcast %62 : vector<16x1xf32> to vector<16x512xf32>
    %66 = vector.broadcast %64 : vector<1x512xf32> to vector<16x512xf32>
    %67 = arith.mulf %65, %66 : vector<16x512xf32>
    %68 = arith.addf %61, %67 : vector<16x512xf32>
    %c0_27 = arith.constant 0 : index
    %c0_28 = arith.constant 0 : index
    %69 = vector.load %arg4[%c0_27, %c0_28] : memref<16x1xf32, #tpu.memory_space<vmem>>, vector<16x1xf32>
    %70 = vector.broadcast %69 : vector<16x1xf32> to vector<16x512xf32>
    %71 = arith.addf %68, %70 : vector<16x512xf32>
    %cst = arith.constant 0.000000e+00 : f32
    %72 = vector.broadcast %cst : f32 to vector<16x512xf32>
    %73 = arith.maximumf %71, %72 : vector<16x512xf32>
    %c17_i32_29 = arith.constant 17 : i32
    %74 = tpu.dynamic_rotate %73 by %c17_i32_29 dim 1 : vector<16x512xf32>, i32 -> vector<16x512xf32>
    %75 = vector.broadcast %0 : vector<1x512xf32> to vector<16x512xf32>
    %76 = arith.mulf %74, %75 : vector<16x512xf32>
    %77 = arith.truncf %76 : vector<16x512xf32> to vector<16x512xbf16>
    %c0_30 = arith.constant 0 : index
    %c0_31 = arith.constant 0 : index
    %78 = vector.load %arg16[%c0_30, %c0_31] : memref<576x512xbf16, #tpu.memory_space<vmem>>, vector<16x512xbf16>
    tpu.vector_store %arg16[%c0_30, %c0_31], %77 {strides = array<i32>} : memref<576x512xbf16, #tpu.memory_space<vmem>>, vector<16x512xbf16>,
    %c16_i32_32 = arith.constant 16 : i32
    %79 = tpu.dynamic_rotate %73 by %c16_i32_32 dim 1 : vector<16x512xf32>, i32 -> vector<16x512xf32>
    %80 = vector.broadcast %1 : vector<1x512xf32> to vector<16x512xf32>
    %81 = arith.mulf %79, %80 : vector<16x512xf32>
    %82 = arith.truncf %81 : vector<16x512xf32> to vector<16x512xbf16>
    %c16 = arith.constant 16 : index
    %c0_33 = arith.constant 0 : index
    %83 = vector.load %arg16[%c16, %c0_33] : memref<576x512xbf16, #tpu.memory_space<vmem>>, vector<16x512xbf16>
    tpu.vector_store %arg16[%c16, %c0_33], %82 {strides = array<i32>} : memref<576x512xbf16, #tpu.memory_space<vmem>>, vector<16x512xbf16>,
    %c15_i32_34 = arith.constant 15 : i32
    %84 = tpu.dynamic_rotate %73 by %c15_i32_34 dim 1 : vector<16x512xf32>, i32 -> vector<16x512xf32>
    %85 = vector.broadcast %2 : vector<1x512xf32> to vector<16x512xf32>
    %86 = arith.mulf %84, %85 : vector<16x512xf32>
    %87 = arith.truncf %86 : vector<16x512xf32> to vector<16x512xbf16>
    %c32 = arith.constant 32 : index
    %c0_35 = arith.constant 0 : index
    %88 = vector.load %arg16[%c32, %c0_35] : memref<576x512xbf16, #tpu.memory_space<vmem>>, vector<16x512xbf16>
    tpu.vector_store %arg16[%c32, %c0_35], %87 {strides = array<i32>} : memref<576x512xbf16, #tpu.memory_space<vmem>>, vector<16x512xbf16>,
    %c1_i32_36 = arith.constant 1 : i32
    %89 = tpu.dynamic_rotate %73 by %c1_i32_36 dim 1 : vector<16x512xf32>, i32 -> vector<16x512xf32>
    %90 = vector.broadcast %3 : vector<1x512xf32> to vector<16x512xf32>
    %91 = arith.mulf %89, %90 : vector<16x512xf32>
    %92 = arith.truncf %91 : vector<16x512xf32> to vector<16x512xbf16>
    %c48 = arith.constant 48 : index
    %c0_37 = arith.constant 0 : index
    %93 = vector.load %arg16[%c48, %c0_37] : memref<576x512xbf16, #tpu.memory_space<vmem>>, vector<16x512xbf16>
    tpu.vector_store %arg16[%c48, %c0_37], %92 {strides = array<i32>} : memref<576x512xbf16, #tpu.memory_space<vmem>>, vector<16x512xbf16>,
    %94 = arith.truncf %73 : vector<16x512xf32> to vector<16x512xbf16>
    %c64 = arith.constant 64 : index
    %c0_38 = arith.constant 0 : index
    %95 = vector.load %arg16[%c64, %c0_38] : memref<576x512xbf16, #tpu.memory_space<vmem>>, vector<16x512xbf16>
    tpu.vector_store %arg16[%c64, %c0_38], %94 {strides = array<i32>} : memref<576x512xbf16, #tpu.memory_space<vmem>>, vector<16x512xbf16>,
    %c511_i32_39 = arith.constant 511 : i32
    %96 = tpu.dynamic_rotate %73 by %c511_i32_39 dim 1 : vector<16x512xf32>, i32 -> vector<16x512xf32>
    %97 = vector.broadcast %4 : vector<1x512xf32> to vector<16x512xf32>
    %98 = arith.mulf %96, %97 : vector<16x512xf32>
    %99 = arith.truncf %98 : vector<16x512xf32> to vector<16x512xbf16>
    %c80 = arith.constant 80 : index
    %c0_40 = arith.constant 0 : index
    %100 = vector.load %arg16[%c80, %c0_40] : memref<576x512xbf16, #tpu.memory_space<vmem>>, vector<16x512xbf16>
    tpu.vector_store %arg16[%c80, %c0_40], %99 {strides = array<i32>} : memref<576x512xbf16, #tpu.memory_space<vmem>>, vector<16x512xbf16>,
    %c497_i32_41 = arith.constant 497 : i32
    %101 = tpu.dynamic_rotate %73 by %c497_i32_41 dim 1 : vector<16x512xf32>, i32 -> vector<16x512xf32>
    %102 = vector.broadcast %5 : vector<1x512xf32> to vector<16x512xf32>
    %103 = arith.mulf %101, %102 : vector<16x512xf32>
    %104 = arith.truncf %103 : vector<16x512xf32> to vector<16x512xbf16>
    %c96 = arith.constant 96 : index
    %c0_42 = arith.constant 0 : index
    %105 = vector.load %arg16[%c96, %c0_42] : memref<576x512xbf16, #tpu.memory_space<vmem>>, vector<16x512xbf16>
    tpu.vector_store %arg16[%c96, %c0_42], %104 {strides = array<i32>} : memref<576x512xbf16, #tpu.memory_space<vmem>>, vector<16x512xbf16>,
    %c496_i32_43 = arith.constant 496 : i32
    %106 = tpu.dynamic_rotate %73 by %c496_i32_43 dim 1 : vector<16x512xf32>, i32 -> vector<16x512xf32>
    %107 = vector.broadcast %6 : vector<1x512xf32> to vector<16x512xf32>
    %108 = arith.mulf %106, %107 : vector<16x512xf32>
    %109 = arith.truncf %108 : vector<16x512xf32> to vector<16x512xbf16>
    %c112 = arith.constant 112 : index
    %c0_44 = arith.constant 0 : index
    %110 = vector.load %arg16[%c112, %c0_44] : memref<576x512xbf16, #tpu.memory_space<vmem>>, vector<16x512xbf16>
    tpu.vector_store %arg16[%c112, %c0_44], %109 {strides = array<i32>} : memref<576x512xbf16, #tpu.memory_space<vmem>>, vector<16x512xbf16>,
    %c495_i32_45 = arith.constant 495 : i32
    %111 = tpu.dynamic_rotate %73 by %c495_i32_45 dim 1 : vector<16x512xf32>, i32 -> vector<16x512xf32>
    %112 = vector.broadcast %7 : vector<1x512xf32> to vector<16x512xf32>
    %113 = arith.mulf %111, %112 : vector<16x512xf32>
    %114 = arith.truncf %113 : vector<16x512xf32> to vector<16x512xbf16>
    %c128 = arith.constant 128 : index
    %c0_46 = arith.constant 0 : index
    %115 = vector.load %arg16[%c128, %c0_46] : memref<576x512xbf16, #tpu.memory_space<vmem>>, vector<16x512xbf16>
    tpu.vector_store %arg16[%c128, %c0_46], %114 {strides = array<i32>} : memref<576x512xbf16, #tpu.memory_space<vmem>>, vector<16x512xbf16>,
    %c0_47 = arith.constant 0 : index
    %c0_48 = arith.constant 0 : index
    %116 = vector.load %arg5[%c0_47, %c0_48] : memref<32x144xbf16, #tpu.memory_space<vmem>>, vector<32x144xbf16>
    %c0_49 = arith.constant 0 : index
    %c0_50 = arith.constant 0 : index
    %117 = vector.load %arg16[%c0_49, %c0_50] : memref<576x512xbf16, #tpu.memory_space<vmem>>, vector<144x512xbf16>
    %cst_51 = arith.constant dense<0.000000e+00> : vector<32x512xf32>
    %118 = tpu.matmul %116, %117, %cst_51 {dimension_numbers = #tpu.dot_dimension_numbers<[1], [0], [0], [1], [0, 0, 1, 1], [], []>} : vector<32x144xbf16>, vector<144x512xbf16>, vector<32x512xf32> -> vector<32x512xf32>
    %c0_52 = arith.constant 0 : index
    %c0_53 = arith.constant 0 : index
    %119 = vector.load %arg6[%c0_52, %c0_53] : memref<32x1xf32, #tpu.memory_space<vmem>>, vector<32x1xf32>
    %120 = vector.broadcast %119 : vector<32x1xf32> to vector<32x512xf32>
    %121 = arith.addf %118, %120 : vector<32x512xf32>
    %cst_54 = arith.constant 0.000000e+00 : f32
    %122 = vector.broadcast %cst_54 : f32 to vector<32x512xf32>
    %123 = arith.maximumf %121, %122 : vector<32x512xf32>
    %c17_i32_55 = arith.constant 17 : i32
    %124 = tpu.dynamic_rotate %123 by %c17_i32_55 dim 1 : vector<32x512xf32>, i32 -> vector<32x512xf32>
    %125 = vector.broadcast %0 : vector<1x512xf32> to vector<32x512xf32>
    %126 = arith.mulf %124, %125 : vector<32x512xf32>
    %127 = arith.truncf %126 : vector<32x512xf32> to vector<32x512xbf16>
    %c0_56 = arith.constant 0 : index
    %c0_57 = arith.constant 0 : index
    %128 = vector.load %arg16[%c0_56, %c0_57] : memref<576x512xbf16, #tpu.memory_space<vmem>>, vector<32x512xbf16>
    tpu.vector_store %arg16[%c0_56, %c0_57], %127 {strides = array<i32>} : memref<576x512xbf16, #tpu.memory_space<vmem>>, vector<32x512xbf16>,
    %c16_i32_58 = arith.constant 16 : i32
    %129 = tpu.dynamic_rotate %123 by %c16_i32_58 dim 1 : vector<32x512xf32>, i32 -> vector<32x512xf32>
    %130 = vector.broadcast %1 : vector<1x512xf32> to vector<32x512xf32>
    %131 = arith.mulf %129, %130 : vector<32x512xf32>
    %132 = arith.truncf %131 : vector<32x512xf32> to vector<32x512xbf16>
    %c32_59 = arith.constant 32 : index
    %c0_60 = arith.constant 0 : index
    %133 = vector.load %arg16[%c32_59, %c0_60] : memref<576x512xbf16, #tpu.memory_space<vmem>>, vector<32x512xbf16>
    tpu.vector_store %arg16[%c32_59, %c0_60], %132 {strides = array<i32>} : memref<576x512xbf16, #tpu.memory_space<vmem>>, vector<32x512xbf16>,
    %c15_i32_61 = arith.constant 15 : i32
    %134 = tpu.dynamic_rotate %123 by %c15_i32_61 dim 1 : vector<32x512xf32>, i32 -> vector<32x512xf32>
    %135 = vector.broadcast %2 : vector<1x512xf32> to vector<32x512xf32>
    %136 = arith.mulf %134, %135 : vector<32x512xf32>
    %137 = arith.truncf %136 : vector<32x512xf32> to vector<32x512xbf16>
    %c64_62 = arith.constant 64 : index
    %c0_63 = arith.constant 0 : index
    %138 = vector.load %arg16[%c64_62, %c0_63] : memref<576x512xbf16, #tpu.memory_space<vmem>>, vector<32x512xbf16>
    tpu.vector_store %arg16[%c64_62, %c0_63], %137 {strides = array<i32>} : memref<576x512xbf16, #tpu.memory_space<vmem>>, vector<32x512xbf16>,
    %c1_i32_64 = arith.constant 1 : i32
    %139 = tpu.dynamic_rotate %123 by %c1_i32_64 dim 1 : vector<32x512xf32>, i32 -> vector<32x512xf32>
    %140 = vector.broadcast %3 : vector<1x512xf32> to vector<32x512xf32>
    %141 = arith.mulf %139, %140 : vector<32x512xf32>
    %142 = arith.truncf %141 : vector<32x512xf32> to vector<32x512xbf16>
    %c96_65 = arith.constant 96 : index
    %c0_66 = arith.constant 0 : index
    %143 = vector.load %arg16[%c96_65, %c0_66] : memref<576x512xbf16, #tpu.memory_space<vmem>>, vector<32x512xbf16>
    tpu.vector_store %arg16[%c96_65, %c0_66], %142 {strides = array<i32>} : memref<576x512xbf16, #tpu.memory_space<vmem>>, vector<32x512xbf16>,
    %144 = arith.truncf %123 : vector<32x512xf32> to vector<32x512xbf16>
    %c128_67 = arith.constant 128 : index
    %c0_68 = arith.constant 0 : index
    %145 = vector.load %arg16[%c128_67, %c0_68] : memref<576x512xbf16, #tpu.memory_space<vmem>>, vector<32x512xbf16>
    tpu.vector_store %arg16[%c128_67, %c0_68], %144 {strides = array<i32>} : memref<576x512xbf16, #tpu.memory_space<vmem>>, vector<32x512xbf16>,
    %c511_i32_69 = arith.constant 511 : i32
    %146 = tpu.dynamic_rotate %123 by %c511_i32_69 dim 1 : vector<32x512xf32>, i32 -> vector<32x512xf32>
    %147 = vector.broadcast %4 : vector<1x512xf32> to vector<32x512xf32>
    %148 = arith.mulf %146, %147 : vector<32x512xf32>
    %149 = arith.truncf %148 : vector<32x512xf32> to vector<32x512xbf16>
    %c160 = arith.constant 160 : index
    %c0_70 = arith.constant 0 : index
    %150 = vector.load %arg16[%c160, %c0_70] : memref<576x512xbf16, #tpu.memory_space<vmem>>, vector<32x512xbf16>
    tpu.vector_store %arg16[%c160, %c0_70], %149 {strides = array<i32>} : memref<576x512xbf16, #tpu.memory_space<vmem>>, vector<32x512xbf16>,
    %c497_i32_71 = arith.constant 497 : i32
    %151 = tpu.dynamic_rotate %123 by %c497_i32_71 dim 1 : vector<32x512xf32>, i32 -> vector<32x512xf32>
    %152 = vector.broadcast %5 : vector<1x512xf32> to vector<32x512xf32>
    %153 = arith.mulf %151, %152 : vector<32x512xf32>
    %154 = arith.truncf %153 : vector<32x512xf32> to vector<32x512xbf16>
    %c192 = arith.constant 192 : index
    %c0_72 = arith.constant 0 : index
    %155 = vector.load %arg16[%c192, %c0_72] : memref<576x512xbf16, #tpu.memory_space<vmem>>, vector<32x512xbf16>
    tpu.vector_store %arg16[%c192, %c0_72], %154 {strides = array<i32>} : memref<576x512xbf16, #tpu.memory_space<vmem>>, vector<32x512xbf16>,
    %c496_i32_73 = arith.constant 496 : i32
    %156 = tpu.dynamic_rotate %123 by %c496_i32_73 dim 1 : vector<32x512xf32>, i32 -> vector<32x512xf32>
    %157 = vector.broadcast %6 : vector<1x512xf32> to vector<32x512xf32>
    %158 = arith.mulf %156, %157 : vector<32x512xf32>
    %159 = arith.truncf %158 : vector<32x512xf32> to vector<32x512xbf16>
    %c224 = arith.constant 224 : index
    %c0_74 = arith.constant 0 : index
    %160 = vector.load %arg16[%c224, %c0_74] : memref<576x512xbf16, #tpu.memory_space<vmem>>, vector<32x512xbf16>
    tpu.vector_store %arg16[%c224, %c0_74], %159 {strides = array<i32>} : memref<576x512xbf16, #tpu.memory_space<vmem>>, vector<32x512xbf16>,
    %c495_i32_75 = arith.constant 495 : i32
    %161 = tpu.dynamic_rotate %123 by %c495_i32_75 dim 1 : vector<32x512xf32>, i32 -> vector<32x512xf32>
    %162 = vector.broadcast %7 : vector<1x512xf32> to vector<32x512xf32>
    %163 = arith.mulf %161, %162 : vector<32x512xf32>
    %164 = arith.truncf %163 : vector<32x512xf32> to vector<32x512xbf16>
    %c256 = arith.constant 256 : index
    %c0_76 = arith.constant 0 : index
    %165 = vector.load %arg16[%c256, %c0_76] : memref<576x512xbf16, #tpu.memory_space<vmem>>, vector<32x512xbf16>
    tpu.vector_store %arg16[%c256, %c0_76], %164 {strides = array<i32>} : memref<576x512xbf16, #tpu.memory_space<vmem>>, vector<32x512xbf16>,
    %c0_77 = arith.constant 0 : index
    %c0_78 = arith.constant 0 : index
    %166 = vector.load %arg7[%c0_77, %c0_78] : memref<64x288xbf16, #tpu.memory_space<vmem>>, vector<64x288xbf16>
    %c0_79 = arith.constant 0 : index
    %c0_80 = arith.constant 0 : index
    %167 = vector.load %arg16[%c0_79, %c0_80] : memref<576x512xbf16, #tpu.memory_space<vmem>>, vector<288x512xbf16>
    %cst_81 = arith.constant dense<0.000000e+00> : vector<64x512xf32>
    %168 = tpu.matmul %166, %167, %cst_81 {dimension_numbers = #tpu.dot_dimension_numbers<[1], [0], [0], [1], [0, 0, 1, 1], [], []>} : vector<64x288xbf16>, vector<288x512xbf16>, vector<64x512xf32> -> vector<64x512xf32>
    %c0_82 = arith.constant 0 : index
    %c0_83 = arith.constant 0 : index
    %169 = vector.load %arg8[%c0_82, %c0_83] : memref<64x1xf32, #tpu.memory_space<vmem>>, vector<64x1xf32>
    %170 = vector.broadcast %169 : vector<64x1xf32> to vector<64x512xf32>
    %171 = arith.addf %168, %170 : vector<64x512xf32>
    %cst_84 = arith.constant 0.000000e+00 : f32
    %172 = vector.broadcast %cst_84 : f32 to vector<64x512xf32>
    %173 = arith.maximumf %171, %172 : vector<64x512xf32>
    %c17_i32_85 = arith.constant 17 : i32
    %174 = tpu.dynamic_rotate %173 by %c17_i32_85 dim 1 : vector<64x512xf32>, i32 -> vector<64x512xf32>
    %175 = vector.broadcast %0 : vector<1x512xf32> to vector<64x512xf32>
    %176 = arith.mulf %174, %175 : vector<64x512xf32>
    %177 = arith.truncf %176 : vector<64x512xf32> to vector<64x512xbf16>
    %c0_86 = arith.constant 0 : index
    %c0_87 = arith.constant 0 : index
    %178 = vector.load %arg16[%c0_86, %c0_87] : memref<576x512xbf16, #tpu.memory_space<vmem>>, vector<64x512xbf16>
    tpu.vector_store %arg16[%c0_86, %c0_87], %177 {strides = array<i32>} : memref<576x512xbf16, #tpu.memory_space<vmem>>, vector<64x512xbf16>,
    %c16_i32_88 = arith.constant 16 : i32
    %179 = tpu.dynamic_rotate %173 by %c16_i32_88 dim 1 : vector<64x512xf32>, i32 -> vector<64x512xf32>
    %180 = vector.broadcast %1 : vector<1x512xf32> to vector<64x512xf32>
    %181 = arith.mulf %179, %180 : vector<64x512xf32>
    %182 = arith.truncf %181 : vector<64x512xf32> to vector<64x512xbf16>
    %c64_89 = arith.constant 64 : index
    %c0_90 = arith.constant 0 : index
    %183 = vector.load %arg16[%c64_89, %c0_90] : memref<576x512xbf16, #tpu.memory_space<vmem>>, vector<64x512xbf16>
    tpu.vector_store %arg16[%c64_89, %c0_90], %182 {strides = array<i32>} : memref<576x512xbf16, #tpu.memory_space<vmem>>, vector<64x512xbf16>,
    %c15_i32_91 = arith.constant 15 : i32
    %184 = tpu.dynamic_rotate %173 by %c15_i32_91 dim 1 : vector<64x512xf32>, i32 -> vector<64x512xf32>
    %185 = vector.broadcast %2 : vector<1x512xf32> to vector<64x512xf32>
    %186 = arith.mulf %184, %185 : vector<64x512xf32>
    %187 = arith.truncf %186 : vector<64x512xf32> to vector<64x512xbf16>
    %c128_92 = arith.constant 128 : index
    %c0_93 = arith.constant 0 : index
    %188 = vector.load %arg16[%c128_92, %c0_93] : memref<576x512xbf16, #tpu.memory_space<vmem>>, vector<64x512xbf16>
    tpu.vector_store %arg16[%c128_92, %c0_93], %187 {strides = array<i32>} : memref<576x512xbf16, #tpu.memory_space<vmem>>, vector<64x512xbf16>,
    %c1_i32_94 = arith.constant 1 : i32
    %189 = tpu.dynamic_rotate %173 by %c1_i32_94 dim 1 : vector<64x512xf32>, i32 -> vector<64x512xf32>
    %190 = vector.broadcast %3 : vector<1x512xf32> to vector<64x512xf32>
    %191 = arith.mulf %189, %190 : vector<64x512xf32>
    %192 = arith.truncf %191 : vector<64x512xf32> to vector<64x512xbf16>
    %c192_95 = arith.constant 192 : index
    %c0_96 = arith.constant 0 : index
    %193 = vector.load %arg16[%c192_95, %c0_96] : memref<576x512xbf16, #tpu.memory_space<vmem>>, vector<64x512xbf16>
    tpu.vector_store %arg16[%c192_95, %c0_96], %192 {strides = array<i32>} : memref<576x512xbf16, #tpu.memory_space<vmem>>, vector<64x512xbf16>,
    %194 = arith.truncf %173 : vector<64x512xf32> to vector<64x512xbf16>
    %c256_97 = arith.constant 256 : index
    %c0_98 = arith.constant 0 : index
    %195 = vector.load %arg16[%c256_97, %c0_98] : memref<576x512xbf16, #tpu.memory_space<vmem>>, vector<64x512xbf16>
    tpu.vector_store %arg16[%c256_97, %c0_98], %194 {strides = array<i32>} : memref<576x512xbf16, #tpu.memory_space<vmem>>, vector<64x512xbf16>,
    %c511_i32_99 = arith.constant 511 : i32
    %196 = tpu.dynamic_rotate %173 by %c511_i32_99 dim 1 : vector<64x512xf32>, i32 -> vector<64x512xf32>
    %197 = vector.broadcast %4 : vector<1x512xf32> to vector<64x512xf32>
    %198 = arith.mulf %196, %197 : vector<64x512xf32>
    %199 = arith.truncf %198 : vector<64x512xf32> to vector<64x512xbf16>
    %c320 = arith.constant 320 : index
    %c0_100 = arith.constant 0 : index
    %200 = vector.load %arg16[%c320, %c0_100] : memref<576x512xbf16, #tpu.memory_space<vmem>>, vector<64x512xbf16>
    tpu.vector_store %arg16[%c320, %c0_100], %199 {strides = array<i32>} : memref<576x512xbf16, #tpu.memory_space<vmem>>, vector<64x512xbf16>,
    %c497_i32_101 = arith.constant 497 : i32
    %201 = tpu.dynamic_rotate %173 by %c497_i32_101 dim 1 : vector<64x512xf32>, i32 -> vector<64x512xf32>
    %202 = vector.broadcast %5 : vector<1x512xf32> to vector<64x512xf32>
    %203 = arith.mulf %201, %202 : vector<64x512xf32>
    %204 = arith.truncf %203 : vector<64x512xf32> to vector<64x512xbf16>
    %c384 = arith.constant 384 : index
    %c0_102 = arith.constant 0 : index
    %205 = vector.load %arg16[%c384, %c0_102] : memref<576x512xbf16, #tpu.memory_space<vmem>>, vector<64x512xbf16>
    tpu.vector_store %arg16[%c384, %c0_102], %204 {strides = array<i32>} : memref<576x512xbf16, #tpu.memory_space<vmem>>, vector<64x512xbf16>,
    %c496_i32_103 = arith.constant 496 : i32
    %206 = tpu.dynamic_rotate %173 by %c496_i32_103 dim 1 : vector<64x512xf32>, i32 -> vector<64x512xf32>
    %207 = vector.broadcast %6 : vector<1x512xf32> to vector<64x512xf32>
    %208 = arith.mulf %206, %207 : vector<64x512xf32>
    %209 = arith.truncf %208 : vector<64x512xf32> to vector<64x512xbf16>
    %c448 = arith.constant 448 : index
    %c0_104 = arith.constant 0 : index
    %210 = vector.load %arg16[%c448, %c0_104] : memref<576x512xbf16, #tpu.memory_space<vmem>>, vector<64x512xbf16>
    tpu.vector_store %arg16[%c448, %c0_104], %209 {strides = array<i32>} : memref<576x512xbf16, #tpu.memory_space<vmem>>, vector<64x512xbf16>,
    %c495_i32_105 = arith.constant 495 : i32
    %211 = tpu.dynamic_rotate %173 by %c495_i32_105 dim 1 : vector<64x512xf32>, i32 -> vector<64x512xf32>
    %212 = vector.broadcast %7 : vector<1x512xf32> to vector<64x512xf32>
    %213 = arith.mulf %211, %212 : vector<64x512xf32>
    %214 = arith.truncf %213 : vector<64x512xf32> to vector<64x512xbf16>
    %c512 = arith.constant 512 : index
    %c0_106 = arith.constant 0 : index
    %215 = vector.load %arg16[%c512, %c0_106] : memref<576x512xbf16, #tpu.memory_space<vmem>>, vector<64x512xbf16>
    tpu.vector_store %arg16[%c512, %c0_106], %214 {strides = array<i32>} : memref<576x512xbf16, #tpu.memory_space<vmem>>, vector<64x512xbf16>,
    %c0_107 = arith.constant 0 : index
    %c0_108 = arith.constant 0 : index
    %216 = vector.load %arg9[%c0_107, %c0_108] : memref<32x576xbf16, #tpu.memory_space<vmem>>, vector<32x576xbf16>
    %c0_109 = arith.constant 0 : index
    %c0_110 = arith.constant 0 : index
    %217 = vector.load %arg16[%c0_109, %c0_110] : memref<576x512xbf16, #tpu.memory_space<vmem>>, vector<576x512xbf16>
    %cst_111 = arith.constant dense<0.000000e+00> : vector<32x512xf32>
    %218 = tpu.matmul %216, %217, %cst_111 {dimension_numbers = #tpu.dot_dimension_numbers<[1], [0], [0], [1], [0, 0, 1, 1], [], []>} : vector<32x576xbf16>, vector<576x512xbf16>, vector<32x512xf32> -> vector<32x512xf32>
    %c0_112 = arith.constant 0 : index
    %c0_113 = arith.constant 0 : index
    %219 = vector.load %arg10[%c0_112, %c0_113] : memref<32x1xf32, #tpu.memory_space<vmem>>, vector<32x1xf32>
    %220 = vector.broadcast %219 : vector<32x1xf32> to vector<32x512xf32>
    %221 = arith.addf %218, %220 : vector<32x512xf32>
    %cst_114 = arith.constant 0.000000e+00 : f32
    %222 = vector.broadcast %cst_114 : f32 to vector<32x512xf32>
    %223 = arith.maximumf %221, %222 : vector<32x512xf32>
    %c17_i32_115 = arith.constant 17 : i32
    %224 = tpu.dynamic_rotate %223 by %c17_i32_115 dim 1 : vector<32x512xf32>, i32 -> vector<32x512xf32>
    %225 = vector.broadcast %0 : vector<1x512xf32> to vector<32x512xf32>
    %226 = arith.mulf %224, %225 : vector<32x512xf32>
    %227 = arith.truncf %226 : vector<32x512xf32> to vector<32x512xbf16>
    %c0_116 = arith.constant 0 : index
    %c0_117 = arith.constant 0 : index
    %228 = vector.load %arg16[%c0_116, %c0_117] : memref<576x512xbf16, #tpu.memory_space<vmem>>, vector<32x512xbf16>
    tpu.vector_store %arg16[%c0_116, %c0_117], %227 {strides = array<i32>} : memref<576x512xbf16, #tpu.memory_space<vmem>>, vector<32x512xbf16>,
    %c16_i32_118 = arith.constant 16 : i32
    %229 = tpu.dynamic_rotate %223 by %c16_i32_118 dim 1 : vector<32x512xf32>, i32 -> vector<32x512xf32>
    %230 = vector.broadcast %1 : vector<1x512xf32> to vector<32x512xf32>
    %231 = arith.mulf %229, %230 : vector<32x512xf32>
    %232 = arith.truncf %231 : vector<32x512xf32> to vector<32x512xbf16>
    %c32_119 = arith.constant 32 : index
    %c0_120 = arith.constant 0 : index
    %233 = vector.load %arg16[%c32_119, %c0_120] : memref<576x512xbf16, #tpu.memory_space<vmem>>, vector<32x512xbf16>
    tpu.vector_store %arg16[%c32_119, %c0_120], %232 {strides = array<i32>} : memref<576x512xbf16, #tpu.memory_space<vmem>>, vector<32x512xbf16>,
    %c15_i32_121 = arith.constant 15 : i32
    %234 = tpu.dynamic_rotate %223 by %c15_i32_121 dim 1 : vector<32x512xf32>, i32 -> vector<32x512xf32>
    %235 = vector.broadcast %2 : vector<1x512xf32> to vector<32x512xf32>
    %236 = arith.mulf %234, %235 : vector<32x512xf32>
    %237 = arith.truncf %236 : vector<32x512xf32> to vector<32x512xbf16>
    %c64_122 = arith.constant 64 : index
    %c0_123 = arith.constant 0 : index
    %238 = vector.load %arg16[%c64_122, %c0_123] : memref<576x512xbf16, #tpu.memory_space<vmem>>, vector<32x512xbf16>
    tpu.vector_store %arg16[%c64_122, %c0_123], %237 {strides = array<i32>} : memref<576x512xbf16, #tpu.memory_space<vmem>>, vector<32x512xbf16>,
    %c1_i32_124 = arith.constant 1 : i32
    %239 = tpu.dynamic_rotate %223 by %c1_i32_124 dim 1 : vector<32x512xf32>, i32 -> vector<32x512xf32>
    %240 = vector.broadcast %3 : vector<1x512xf32> to vector<32x512xf32>
    %241 = arith.mulf %239, %240 : vector<32x512xf32>
    %242 = arith.truncf %241 : vector<32x512xf32> to vector<32x512xbf16>
    %c96_125 = arith.constant 96 : index
    %c0_126 = arith.constant 0 : index
    %243 = vector.load %arg16[%c96_125, %c0_126] : memref<576x512xbf16, #tpu.memory_space<vmem>>, vector<32x512xbf16>
    tpu.vector_store %arg16[%c96_125, %c0_126], %242 {strides = array<i32>} : memref<576x512xbf16, #tpu.memory_space<vmem>>, vector<32x512xbf16>,
    %244 = arith.truncf %223 : vector<32x512xf32> to vector<32x512xbf16>
    %c128_127 = arith.constant 128 : index
    %c0_128 = arith.constant 0 : index
    %245 = vector.load %arg16[%c128_127, %c0_128] : memref<576x512xbf16, #tpu.memory_space<vmem>>, vector<32x512xbf16>
    tpu.vector_store %arg16[%c128_127, %c0_128], %244 {strides = array<i32>} : memref<576x512xbf16, #tpu.memory_space<vmem>>, vector<32x512xbf16>,
    %c511_i32_129 = arith.constant 511 : i32
    %246 = tpu.dynamic_rotate %223 by %c511_i32_129 dim 1 : vector<32x512xf32>, i32 -> vector<32x512xf32>
    %247 = vector.broadcast %4 : vector<1x512xf32> to vector<32x512xf32>
    %248 = arith.mulf %246, %247 : vector<32x512xf32>
    %249 = arith.truncf %248 : vector<32x512xf32> to vector<32x512xbf16>
    %c160_130 = arith.constant 160 : index
    %c0_131 = arith.constant 0 : index
    %250 = vector.load %arg16[%c160_130, %c0_131] : memref<576x512xbf16, #tpu.memory_space<vmem>>, vector<32x512xbf16>
    tpu.vector_store %arg16[%c160_130, %c0_131], %249 {strides = array<i32>} : memref<576x512xbf16, #tpu.memory_space<vmem>>, vector<32x512xbf16>,
    %c497_i32_132 = arith.constant 497 : i32
    %251 = tpu.dynamic_rotate %223 by %c497_i32_132 dim 1 : vector<32x512xf32>, i32 -> vector<32x512xf32>
    %252 = vector.broadcast %5 : vector<1x512xf32> to vector<32x512xf32>
    %253 = arith.mulf %251, %252 : vector<32x512xf32>
    %254 = arith.truncf %253 : vector<32x512xf32> to vector<32x512xbf16>
    %c192_133 = arith.constant 192 : index
    %c0_134 = arith.constant 0 : index
    %255 = vector.load %arg16[%c192_133, %c0_134] : memref<576x512xbf16, #tpu.memory_space<vmem>>, vector<32x512xbf16>
    tpu.vector_store %arg16[%c192_133, %c0_134], %254 {strides = array<i32>} : memref<576x512xbf16, #tpu.memory_space<vmem>>, vector<32x512xbf16>,
    %c496_i32_135 = arith.constant 496 : i32
    %256 = tpu.dynamic_rotate %223 by %c496_i32_135 dim 1 : vector<32x512xf32>, i32 -> vector<32x512xf32>
    %257 = vector.broadcast %6 : vector<1x512xf32> to vector<32x512xf32>
    %258 = arith.mulf %256, %257 : vector<32x512xf32>
    %259 = arith.truncf %258 : vector<32x512xf32> to vector<32x512xbf16>
    %c224_136 = arith.constant 224 : index
    %c0_137 = arith.constant 0 : index
    %260 = vector.load %arg16[%c224_136, %c0_137] : memref<576x512xbf16, #tpu.memory_space<vmem>>, vector<32x512xbf16>
    tpu.vector_store %arg16[%c224_136, %c0_137], %259 {strides = array<i32>} : memref<576x512xbf16, #tpu.memory_space<vmem>>, vector<32x512xbf16>,
    %c495_i32_138 = arith.constant 495 : i32
    %261 = tpu.dynamic_rotate %223 by %c495_i32_138 dim 1 : vector<32x512xf32>, i32 -> vector<32x512xf32>
    %262 = vector.broadcast %7 : vector<1x512xf32> to vector<32x512xf32>
    %263 = arith.mulf %261, %262 : vector<32x512xf32>
    %264 = arith.truncf %263 : vector<32x512xf32> to vector<32x512xbf16>
    %c256_139 = arith.constant 256 : index
    %c0_140 = arith.constant 0 : index
    %265 = vector.load %arg16[%c256_139, %c0_140] : memref<576x512xbf16, #tpu.memory_space<vmem>>, vector<32x512xbf16>
    tpu.vector_store %arg16[%c256_139, %c0_140], %264 {strides = array<i32>} : memref<576x512xbf16, #tpu.memory_space<vmem>>, vector<32x512xbf16>,
    %c0_141 = arith.constant 0 : index
    %c0_142 = arith.constant 0 : index
    %266 = vector.load %arg11[%c0_141, %c0_142] : memref<16x288xbf16, #tpu.memory_space<vmem>>, vector<16x288xbf16>
    %c0_143 = arith.constant 0 : index
    %c0_144 = arith.constant 0 : index
    %267 = vector.load %arg16[%c0_143, %c0_144] : memref<576x512xbf16, #tpu.memory_space<vmem>>, vector<288x512xbf16>
    %cst_145 = arith.constant dense<0.000000e+00> : vector<16x512xf32>
    %268 = tpu.matmul %266, %267, %cst_145 {dimension_numbers = #tpu.dot_dimension_numbers<[1], [0], [0], [1], [0, 0, 1, 1], [], []>} : vector<16x288xbf16>, vector<288x512xbf16>, vector<16x512xf32> -> vector<16x512xf32>
    %c0_146 = arith.constant 0 : index
    %c0_147 = arith.constant 0 : index
    %269 = vector.load %arg12[%c0_146, %c0_147] : memref<16x1xf32, #tpu.memory_space<vmem>>, vector<16x1xf32>
    %270 = vector.broadcast %269 : vector<16x1xf32> to vector<16x512xf32>
    %271 = arith.addf %268, %270 : vector<16x512xf32>
    %cst_148 = arith.constant 0.000000e+00 : f32
    %272 = vector.broadcast %cst_148 : f32 to vector<16x512xf32>
    %273 = arith.maximumf %271, %272 : vector<16x512xf32>
    %c0_149 = arith.constant 0 : index
    %c0_150 = arith.constant 0 : index
    %274 = vector.load %arg13[%c0_149, %c0_150] : memref<16x9xf32, #tpu.memory_space<vmem>>, vector<16x1xf32>
    %c17_i32_151 = arith.constant 17 : i32
    %275 = tpu.dynamic_rotate %273 by %c17_i32_151 dim 1 : vector<16x512xf32>, i32 -> vector<16x512xf32>
    %276 = vector.broadcast %0 : vector<1x512xf32> to vector<16x512xf32>
    %277 = arith.mulf %275, %276 : vector<16x512xf32>
    %278 = vector.broadcast %274 : vector<16x1xf32> to vector<16x512xf32>
    %279 = arith.mulf %278, %277 : vector<16x512xf32>
    %c0_152 = arith.constant 0 : index
    %c1_153 = arith.constant 1 : index
    %280 = vector.load %arg13[%c0_152, %c1_153] : memref<16x9xf32, #tpu.memory_space<vmem>>, vector<16x1xf32>
    %c16_i32_154 = arith.constant 16 : i32
    %281 = tpu.dynamic_rotate %273 by %c16_i32_154 dim 1 : vector<16x512xf32>, i32 -> vector<16x512xf32>
    %282 = vector.broadcast %1 : vector<1x512xf32> to vector<16x512xf32>
    %283 = arith.mulf %281, %282 : vector<16x512xf32>
    %284 = vector.broadcast %280 : vector<16x1xf32> to vector<16x512xf32>
    %285 = arith.mulf %284, %283 : vector<16x512xf32>
    %286 = arith.addf %279, %285 : vector<16x512xf32>
    %c0_155 = arith.constant 0 : index
    %c2_156 = arith.constant 2 : index
    %287 = vector.load %arg13[%c0_155, %c2_156] : memref<16x9xf32, #tpu.memory_space<vmem>>, vector<16x1xf32>
    %c15_i32_157 = arith.constant 15 : i32
    %288 = tpu.dynamic_rotate %273 by %c15_i32_157 dim 1 : vector<16x512xf32>, i32 -> vector<16x512xf32>
    %289 = vector.broadcast %2 : vector<1x512xf32> to vector<16x512xf32>
    %290 = arith.mulf %288, %289 : vector<16x512xf32>
    %291 = vector.broadcast %287 : vector<16x1xf32> to vector<16x512xf32>
    %292 = arith.mulf %291, %290 : vector<16x512xf32>
    %293 = arith.addf %286, %292 : vector<16x512xf32>
    %c0_158 = arith.constant 0 : index
    %c3_159 = arith.constant 3 : index
    %294 = vector.load %arg13[%c0_158, %c3_159] : memref<16x9xf32, #tpu.memory_space<vmem>>, vector<16x1xf32>
    %c1_i32_160 = arith.constant 1 : i32
    %295 = tpu.dynamic_rotate %273 by %c1_i32_160 dim 1 : vector<16x512xf32>, i32 -> vector<16x512xf32>
    %296 = vector.broadcast %3 : vector<1x512xf32> to vector<16x512xf32>
    %297 = arith.mulf %295, %296 : vector<16x512xf32>
    %298 = vector.broadcast %294 : vector<16x1xf32> to vector<16x512xf32>
    %299 = arith.mulf %298, %297 : vector<16x512xf32>
    %300 = arith.addf %293, %299 : vector<16x512xf32>
    %c0_161 = arith.constant 0 : index
    %c4_162 = arith.constant 4 : index
    %301 = vector.load %arg13[%c0_161, %c4_162] : memref<16x9xf32, #tpu.memory_space<vmem>>, vector<16x1xf32>
    %302 = vector.broadcast %301 : vector<16x1xf32> to vector<16x512xf32>
    %303 = arith.mulf %302, %273 : vector<16x512xf32>
    %304 = arith.addf %300, %303 : vector<16x512xf32>
    %c0_163 = arith.constant 0 : index
    %c5_164 = arith.constant 5 : index
    %305 = vector.load %arg13[%c0_163, %c5_164] : memref<16x9xf32, #tpu.memory_space<vmem>>, vector<16x1xf32>
    %c511_i32_165 = arith.constant 511 : i32
    %306 = tpu.dynamic_rotate %273 by %c511_i32_165 dim 1 : vector<16x512xf32>, i32 -> vector<16x512xf32>
    %307 = vector.broadcast %4 : vector<1x512xf32> to vector<16x512xf32>
    %308 = arith.mulf %306, %307 : vector<16x512xf32>
    %309 = vector.broadcast %305 : vector<16x1xf32> to vector<16x512xf32>
    %310 = arith.mulf %309, %308 : vector<16x512xf32>
    %311 = arith.addf %304, %310 : vector<16x512xf32>
    %c0_166 = arith.constant 0 : index
    %c6_167 = arith.constant 6 : index
    %312 = vector.load %arg13[%c0_166, %c6_167] : memref<16x9xf32, #tpu.memory_space<vmem>>, vector<16x1xf32>
    %c497_i32_168 = arith.constant 497 : i32
    %313 = tpu.dynamic_rotate %273 by %c497_i32_168 dim 1 : vector<16x512xf32>, i32 -> vector<16x512xf32>
    %314 = vector.broadcast %5 : vector<1x512xf32> to vector<16x512xf32>
    %315 = arith.mulf %313, %314 : vector<16x512xf32>
    %316 = vector.broadcast %312 : vector<16x1xf32> to vector<16x512xf32>
    %317 = arith.mulf %316, %315 : vector<16x512xf32>
    %318 = arith.addf %311, %317 : vector<16x512xf32>
    %c0_169 = arith.constant 0 : index
    %c7_170 = arith.constant 7 : index
    %319 = vector.load %arg13[%c0_169, %c7_170] : memref<16x9xf32, #tpu.memory_space<vmem>>, vector<16x1xf32>
    %c496_i32_171 = arith.constant 496 : i32
    %320 = tpu.dynamic_rotate %273 by %c496_i32_171 dim 1 : vector<16x512xf32>, i32 -> vector<16x512xf32>
    %321 = vector.broadcast %6 : vector<1x512xf32> to vector<16x512xf32>
    %322 = arith.mulf %320, %321 : vector<16x512xf32>
    %323 = vector.broadcast %319 : vector<16x1xf32> to vector<16x512xf32>
    %324 = arith.mulf %323, %322 : vector<16x512xf32>
    %325 = arith.addf %318, %324 : vector<16x512xf32>
    %c0_172 = arith.constant 0 : index
    %c8_173 = arith.constant 8 : index
    %326 = vector.load %arg13[%c0_172, %c8_173] : memref<16x9xf32, #tpu.memory_space<vmem>>, vector<16x1xf32>
    %c495_i32_174 = arith.constant 495 : i32
    %327 = tpu.dynamic_rotate %273 by %c495_i32_174 dim 1 : vector<16x512xf32>, i32 -> vector<16x512xf32>
    %328 = vector.broadcast %7 : vector<1x512xf32> to vector<16x512xf32>
    %329 = arith.mulf %327, %328 : vector<16x512xf32>
    %330 = vector.broadcast %326 : vector<16x1xf32> to vector<16x512xf32>
    %331 = arith.mulf %330, %329 : vector<16x512xf32>
    %332 = arith.addf %325, %331 : vector<16x512xf32>
    %cst_175 = arith.constant dense<0.000000e+00> : vector<512xf32>
    %333 = vector.multi_reduction <add>, %332, %cst_175 [0] : vector<16x512xf32> to vector<512xf32>
    %334 = vector.shape_cast %333 : vector<512xf32> to vector<1x512xf32>
    %c0_176 = arith.constant 0 : index
    %c0_177 = arith.constant 0 : index
    %335 = vector.load %arg14[%c0_176, %c0_177] : memref<1x1xf32, #tpu.memory_space<vmem>>, vector<1x1xf32>
    %336 = vector.broadcast %335 : vector<1x1xf32> to vector<1x512xf32>
    %337 = arith.addf %334, %336 : vector<1x512xf32>
    %c0_178 = arith.constant 0 : index
    %c0_179 = arith.constant 0 : index
    %338 = vector.load %arg15[%c0_178, %c0_179] : memref<1x512xf32, #tpu.memory_space<vmem>>, vector<1x512xf32>
    tpu.vector_store %arg15[%c0_178, %c0_179], %337 {strides = array<i32>} : memref<1x512xf32, #tpu.memory_space<vmem>>, vector<1x512xf32>,
    return
  }
  func.func @transform_0(%arg0: i32) -> (i32, i32) {
    %c0_i32 = arith.constant 0 : i32
    %c0_i32_0 = arith.constant 0 : i32
    %c0_i32_1 = arith.constant 0 : i32
    return %c0_i32, %c0_i32_0 : i32, i32
  }
  func.func @transform_1(%arg0: i32) -> (i32, i32) {
    %c0_i32 = arith.constant 0 : i32
    %c0_i32_0 = arith.constant 0 : i32
    %c0_i32_1 = arith.constant 0 : i32
    return %c0_i32, %c0_i32_0 : i32, i32
  }
  func.func @transform_2(%arg0: i32) -> (i32, i32) {
    %c0_i32 = arith.constant 0 : i32
    %c0_i32_0 = arith.constant 0 : i32
    %c0_i32_1 = arith.constant 0 : i32
    return %c0_i32, %c0_i32_0 : i32, i32
  }
  func.func @transform_3(%arg0: i32) -> (i32, i32) {
    %c0_i32 = arith.constant 0 : i32
    %c0_i32_0 = arith.constant 0 : i32
    %c0_i32_1 = arith.constant 0 : i32
    return %c0_i32, %c0_i32_0 : i32, i32
  }
  func.func @transform_4(%arg0: i32) -> (i32, i32) {
    %c0_i32 = arith.constant 0 : i32
    %c0_i32_0 = arith.constant 0 : i32
    %c0_i32_1 = arith.constant 0 : i32
    return %c0_i32, %c0_i32_0 : i32, i32
  }
  func.func @transform_5(%arg0: i32) -> (i32, i32) {
    %c0_i32 = arith.constant 0 : i32
    %c0_i32_0 = arith.constant 0 : i32
    %c0_i32_1 = arith.constant 0 : i32
    return %c0_i32, %c0_i32_0 : i32, i32
  }
  func.func @transform_6(%arg0: i32) -> (i32, i32) {
    %c0_i32 = arith.constant 0 : i32
    %c0_i32_0 = arith.constant 0 : i32
    %c0_i32_1 = arith.constant 0 : i32
    return %c0_i32, %c0_i32_0 : i32, i32
  }
  func.func @transform_7(%arg0: i32) -> (i32, i32) {
    %c0_i32 = arith.constant 0 : i32
    %c0_i32_0 = arith.constant 0 : i32
    %c0_i32_1 = arith.constant 0 : i32
    return %c0_i32, %c0_i32_0 : i32, i32
  }
  func.func @transform_8(%arg0: i32) -> (i32, i32) {
    %c0_i32 = arith.constant 0 : i32
    %c0_i32_0 = arith.constant 0 : i32
    %c0_i32_1 = arith.constant 0 : i32
    return %c0_i32, %c0_i32_0 : i32, i32
  }
  func.func @transform_9(%arg0: i32) -> (i32, i32) {
    %c0_i32 = arith.constant 0 : i32
    %c0_i32_0 = arith.constant 0 : i32
    %c0_i32_1 = arith.constant 0 : i32
    return %c0_i32, %c0_i32_0 : i32, i32
  }
  func.func @transform_10(%arg0: i32) -> (i32, i32) {
    %c0_i32 = arith.constant 0 : i32
    %c0_i32_0 = arith.constant 0 : i32
    %c0_i32_1 = arith.constant 0 : i32
    return %c0_i32, %c0_i32_0 : i32, i32
  }
  func.func @transform_11(%arg0: i32) -> (i32, i32) {
    %c0_i32 = arith.constant 0 : i32
    %c0_i32_0 = arith.constant 0 : i32
    %c0_i32_1 = arith.constant 0 : i32
    return %c0_i32, %c0_i32_0 : i32, i32
  }
  func.func @transform_12(%arg0: i32) -> (i32, i32) {
    %c0_i32 = arith.constant 0 : i32
    %c0_i32_0 = arith.constant 0 : i32
    %c0_i32_1 = arith.constant 0 : i32
    return %c0_i32, %c0_i32_0 : i32, i32
  }
  func.func @transform_13(%arg0: i32) -> (i32, i32) {
    %c0_i32 = arith.constant 0 : i32
    %c0_i32_0 = arith.constant 0 : i32
    %c0_i32_1 = arith.constant 0 : i32
    return %c0_i32, %c0_i32_0 : i32, i32
  }
  func.func @transform_14(%arg0: i32) -> (i32, i32) {
    %c0_i32 = arith.constant 0 : i32
    %c0_i32_0 = arith.constant 0 : i32
    %c0_i32_1 = arith.constant 0 : i32
    return %c0_i32, %c0_i32_0 : i32, i32
  }
}

</mosaic_0001>

<llo_original>
// kernel: noise_reduction_cnn_forward.1
$region0: #{noise_reduction_cnn_forward.1}
  #allocation0 [shape = 'u32[]', space=smem, size = 0x4, offset = 0x4, fixed_abs, tag = 'smem constant byte address 0x4 - core index']
  #allocation1 [shape = 'u32[144,128]{1,0:T(1,128)}', space=vmem, size = 0x12000, scoped, tag = 'internal scratch']
  #allocation2 [shape = 'bf16[576,512]{1,0:T(16,128)(2,1)}', space=vmem, size = 0x90000, scoped, tag = 'scratch operand']
  #allocation3 [shape = 'f32[1,1]{1,0:T(1,128)S(1)}', space=vmem, size = 0x200, scoped, tag = 'scoped memory for noise_reduction_cnn_forward.1']
  %s0 = inlined_call_operand.vmem [shape: f32[1,512], index: 0, kind: input, shape index: {}]
  %s1 = inlined_call_operand.vmem [shape: f32[9,512], index: 1, kind: input, shape index: {}]
  %s2 = inlined_call_operand.vmem [shape: f32[16,9], index: 2, kind: input, shape index: {}]
  %s3 = inlined_call_operand.vmem [shape: f32[16,1], index: 3, kind: input, shape index: {}]
  %s4 = inlined_call_operand.vmem [shape: bf16[32,144], index: 4, kind: input, shape index: {}]
  %s5 = inlined_call_operand.vmem [shape: f32[32,1], index: 5, kind: input, shape index: {}]
  %s6 = inlined_call_operand.vmem [shape: bf16[64,288], index: 6, kind: input, shape index: {}]
  %s7 = inlined_call_operand.vmem [shape: f32[64,1], index: 7, kind: input, shape index: {}]
  %s8 = inlined_call_operand.vmem [shape: bf16[32,576], index: 8, kind: input, shape index: {}]
  %s9 = inlined_call_operand.vmem [shape: f32[32,1], index: 9, kind: input, shape index: {}]
  %s10 = inlined_call_operand.vmem [shape: bf16[16,288], index: 10, kind: input, shape index: {}]
  %s11 = inlined_call_operand.vmem [shape: f32[16,1], index: 11, kind: input, shape index: {}]
  %s12 = inlined_call_operand.vmem [shape: f32[16,9], index: 12, kind: input, shape index: {}]
  %s13 = inlined_call_operand.<no memory space> [shape: f32[1,1], index: 13, kind: input, shape index: {}]
  %s14 = inlined_call_operand.vmem [shape: f32[1,512], index: 14, kind: output, shape index: {}]
  %s15 = sld [smem:[#allocation0]]
  $region66: #{noise_reduction_cnn_forward.1} parent=0
    _
  %s17 = ssub.s32 1, %s15
  %s18 = scalar_select 0, %s17, %s15
  %v19 = vstv %s13
  %20 = vst [vmem:[#allocation3] sm:$0x1] %v19
  // Predicated region
  $region2: #{noise_reduction_cnn_forward.1} parent=0 // pred_check
    _
  $region3: #{noise_reduction_cnn_forward.1} parent=0 // pred_check_branch
    %22 = sbr.rel (0) target = $region5
  $region4: #{noise_reduction_cnn_forward.1} parent=0 // pred_region
    _
  $region5: #{noise_reduction_cnn_forward.1} parent=0 // pred_fallthru
    _
  // Predicated region
  $region6: #{noise_reduction_cnn_forward.1} parent=0 // pred_check
    _
  $region7: #{noise_reduction_cnn_forward.1} parent=0 // pred_check_branch
    %24 = sbr.rel (0) target = $region9
  $region8: #{noise_reduction_cnn_forward.1} parent=0 // pred_region
    _
  $region9: #{noise_reduction_cnn_forward.1} parent=0 // pred_fallthru
    _
  // Predicated region
  $region10: #{noise_reduction_cnn_forward.1} parent=0 // pred_check
    _
  $region11: #{noise_reduction_cnn_forward.1} parent=0 // pred_check_branch
    %26 = sbr.rel (0) target = $region13
  $region12: #{noise_reduction_cnn_forward.1} parent=0 // pred_region
    _
  $region13: #{noise_reduction_cnn_forward.1} parent=0 // pred_fallthru
    _
  // Predicated region
  $region14: #{noise_reduction_cnn_forward.1} parent=0 // pred_check
    _
  $region15: #{noise_reduction_cnn_forward.1} parent=0 // pred_check_branch
    %28 = sbr.rel (0) target = $region17
  $region16: #{noise_reduction_cnn_forward.1} parent=0 // pred_region
    _
  $region17: #{noise_reduction_cnn_forward.1} parent=0 // pred_fallthru
    _
  // Predicated region
  $region18: #{noise_reduction_cnn_forward.1} parent=0 // pred_check
    _
  $region19: #{noise_reduction_cnn_forward.1} parent=0 // pred_check_branch
    %30 = sbr.rel (0) target = $region21
  $region20: #{noise_reduction_cnn_forward.1} parent=0 // pred_region
    _
  $region21: #{noise_reduction_cnn_forward.1} parent=0 // pred_fallthru
    _
  // Predicated region
  $region22: #{noise_reduction_cnn_forward.1} parent=0 // pred_check
    _
  $region23: #{noise_reduction_cnn_forward.1} parent=0 // pred_check_branch
    %32 = sbr.rel (0) target = $region25
  $region24: #{noise_reduction_cnn_forward.1} parent=0 // pred_region
    _
  $region25: #{noise_reduction_cnn_forward.1} parent=0 // pred_fallthru
    _
  // Predicated region
  $region26: #{noise_reduction_cnn_forward.1} parent=0 // pred_check
    _
  $region27: #{noise_reduction_cnn_forward.1} parent=0 // pred_check_branch
    %34 = sbr.rel (0) target = $region29
  $region28: #{noise_reduction_cnn_forward.1} parent=0 // pred_region
    _
  $region29: #{noise_reduction_cnn_forward.1} parent=0 // pred_fallthru
    _
  // Predicated region
  $region30: #{noise_reduction_cnn_forward.1} parent=0 // pred_check
    _
  $region31: #{noise_reduction_cnn_forward.1} parent=0 // pred_check_branch
    %36 = sbr.rel (0) target = $region33
  $region32: #{noise_reduction_cnn_forward.1} parent=0 // pred_region
    _
  $region33: #{noise_reduction_cnn_forward.1} parent=0 // pred_fallthru
    _
  // Predicated region
  $region34: #{noise_reduction_cnn_forward.1} parent=0 // pred_check
    _
  $region35: #{noise_reduction_cnn_forward.1} parent=0 // pred_check_branch
    %38 = sbr.rel (0) target = $region37
  $region36: #{noise_reduction_cnn_forward.1} parent=0 // pred_region
    _
  $region37: #{noise_reduction_cnn_forward.1} parent=0 // pred_fallthru
    _
  // Predicated region
  $region38: #{noise_reduction_cnn_forward.1} parent=0 // pred_check
    _
  $region39: #{noise_reduction_cnn_forward.1} parent=0 // pred_check_branch
    %40 = sbr.rel (0) target = $region41
  $region40: #{noise_reduction_cnn_forward.1} parent=0 // pred_region
    _
  $region41: #{noise_reduction_cnn_forward.1} parent=0 // pred_fallthru
    _
  // Predicated region
  $region42: #{noise_reduction_cnn_forward.1} parent=0 // pred_check
    _
  $region43: #{noise_reduction_cnn_forward.1} parent=0 // pred_check_branch
    %42 = sbr.rel (0) target = $region45
  $region44: #{noise_reduction_cnn_forward.1} parent=0 // pred_region
    _
  $region45: #{noise_reduction_cnn_forward.1} parent=0 // pred_fallthru
    _
  // Predicated region
  $region46: #{noise_reduction_cnn_forward.1} parent=0 // pred_check
    _
  $region47: #{noise_reduction_cnn_forward.1} parent=0 // pred_check_branch
    %44 = sbr.rel (0) target = $region49
  $region48: #{noise_reduction_cnn_forward.1} parent=0 // pred_region
    _
  $region49: #{noise_reduction_cnn_forward.1} parent=0 // pred_fallthru
    _
  // Predicated region
  $region50: #{noise_reduction_cnn_forward.1} parent=0 // pred_check
    _
  $region51: #{noise_reduction_cnn_forward.1} parent=0 // pred_check_branch
    %46 = sbr.rel (0) target = $region53
  $region52: #{noise_reduction_cnn_forward.1} parent=0 // pred_region
    _
  $region53: #{noise_reduction_cnn_forward.1} parent=0 // pred_fallthru
    _
  // Predicated region
  $region54: #{noise_reduction_cnn_forward.1} parent=0 // pred_check
    _
  $region55: #{noise_reduction_cnn_forward.1} parent=0 // pred_check_branch
    %48 = sbr.rel (0) target = $region57
  $region56: #{noise_reduction_cnn_forward.1} parent=0 // pred_region
    _
  $region57: #{noise_reduction_cnn_forward.1} parent=0 // pred_fallthru
    _
  %v50 = vld [vmem:[%s1] ss:$8 sm:$0xf]
  %s51 = scalar_lea.vmem %s1, 1
  %v52 = vld [vmem:[%s51] ss:$8 sm:$0xf]
  %s53 = scalar_lea.vmem %s1, 2
  %v54 = vld [vmem:[%s53] ss:$8 sm:$0xf]
  %s55 = scalar_lea.vmem %s1, 3
  %v56 = vld [vmem:[%s55] ss:$8 sm:$0xf]
  %s57 = scalar_lea.vmem %s1, 5
  %v58 = vld [vmem:[%s57] ss:$8 sm:$0xf]
  %s59 = scalar_lea.vmem %s1, 6
  %v60 = vld [vmem:[%s59] ss:$8 sm:$0xf]
  %s61 = scalar_lea.vmem %s1, 7
  %v62 = vld [vmem:[%s61] ss:$8 sm:$0xf]
  %s63 = scalar_lea.vmem %s1, 32
  %v64 = vld [vmem:[%s63] ss:$8 sm:$0xf]
  %v65 = vld [vmem:[%s0] sm:$0xf]
  %v66 = vld [vmem:[%s2] sm:$0xff]
  %v67 = vld [vmem:[%s2 + $0x8] sm:$0xff]
  %v69 = vlaneseq
  %v70 = vshrl.u32 %v69, 7
  %v71 = vsub.s32 0, %v70
  %v72 = vrot.slane %v65, %v71
  %v73 = vlaneseq
  %v74 = vshrl.u32 %v73, 7
  %v75 = vsub.s32 1, %v74
  %v76 = vrot.slane %v65, %v75
  %v77 = vlaneseq
  %v78 = vshrl.u32 %v77, 7
  %v79 = vsub.s32 2, %v78
  %v80 = vrot.slane %v65, %v79
  %v81 = vlaneseq
  %v82 = vshrl.u32 %v81, 7
  %v83 = vsub.s32 3, %v82
  %v84 = vrot.slane %v65, %v83
  %89 = vrot.lane.b32.xlu0 %v72, 17
  %v90 = vpop.permute.xlu0 %89
  %91 = vrot.lane.b32.xlu0 %v76, 17
  %v92 = vpop.permute.xlu0 %91
  %93 = vrot.lane.b32.xlu0 %v80, 17
  %v94 = vpop.permute.xlu0 %93
  %95 = vrot.lane.b32.xlu0 %v84, 17
  %v96 = vpop.permute.xlu0 %95
  %v97 = vlaneseq
  %v98 = vand.u32 %v97, 127
  %vm99 = vcmp.lt.s32.totalorder %v98, 17
  %v100 = vsel %vm99, %v94, %v96
  %v101 = vsel %vm99, %v92, %v94
  %v102 = vsel %vm99, %v90, %v92
  %v103 = vsel %vm99, %v96, %v90
  %v105 = vlaneseq
  %v106 = vshrl.u32 %v105, 7
  %v107 = vsub.s32 0, %v106
  %v108 = vrot.slane %v50, %v107
  %v109 = vlaneseq
  %v110 = vshrl.u32 %v109, 7
  %v111 = vsub.s32 1, %v110
  %v112 = vrot.slane %v50, %v111
  %v113 = vlaneseq
  %v114 = vshrl.u32 %v113, 7
  %v115 = vsub.s32 2, %v114
  %v116 = vrot.slane %v50, %v115
  %v117 = vlaneseq
  %v118 = vshrl.u32 %v117, 7
  %v119 = vsub.s32 3, %v118
  %v120 = vrot.slane %v50, %v119
  %v125 = vmul.f32 %v103, %v108
  %v126 = vmul.f32 %v102, %v112
  %v127 = vmul.f32 %v101, %v116
  %v128 = vmul.f32 %v100, %v120
  %130 = vset.pattern.permute.xlu0 0
  %131 = vperm.xlu0 %130, %v66
  %v132 = vpop.permute.xlu0 %131
  %135 = vset.pattern.permute.xlu0 0
  %136 = vperm.xlu0 %135, %v67
  %v137 = vpop.permute.xlu0 %136
  %v139 = vlaneseq
  %v140 = vshrl.u32 %v139, 7
  %v141 = vsub.s32 0, %v140
  %v142 = vrot.slane %v125, %v141
  %v143 = vlaneseq
  %v144 = vshrl.u32 %v143, 7
  %v145 = vsub.s32 0, %v144
  %v146 = vrot.slane %v126, %v145
  %v147 = vlaneseq
  %v148 = vshrl.u32 %v147, 7
  %v149 = vsub.s32 0, %v148
  %v150 = vrot.slane %v127, %v149
  %v151 = vlaneseq
  %v152 = vshrl.u32 %v151, 7
  %v153 = vsub.s32 0, %v152
  %v154 = vrot.slane %v128, %v153
  %v155 = vmul.f32 %v132, %v142
  %v156 = vmul.f32 %v132, %v146
  %v157 = vmul.f32 %v132, %v150
  %v158 = vmul.f32 %v132, %v154
  %v159 = vmul.f32 %v137, %v142
  %v160 = vmul.f32 %v137, %v146
  %v161 = vmul.f32 %v137, %v150
  %v162 = vmul.f32 %v137, %v154
  %163 = vrot.lane.b32.xlu0 %v72, 16
  %v164 = vpop.permute.xlu0 %163
  %165 = vrot.lane.b32.xlu0 %v76, 16
  %v166 = vpop.permute.xlu0 %165
  %167 = vrot.lane.b32.xlu0 %v80, 16
  %v168 = vpop.permute.xlu0 %167
  %169 = vrot.lane.b32.xlu0 %v84, 16
  %v170 = vpop.permute.xlu0 %169
  %vm171 = vcmp.lt.s32.totalorder %v98, 16
  %v172 = vsel %vm171, %v168, %v170
  %v173 = vsel %vm171, %v166, %v168
  %v174 = vsel %vm171, %v164, %v166
  %v175 = vsel %vm171, %v170, %v164
  %v177 = vlaneseq
  %v178 = vshrl.u32 %v177, 7
  %v179 = vsub.s32 0, %v178
  %v180 = vrot.slane %v52, %v179
  %v181 = vlaneseq
  %v182 = vshrl.u32 %v181, 7
  %v183 = vsub.s32 1, %v182
  %v184 = vrot.slane %v52, %v183
  %v185 = vlaneseq
  %v186 = vshrl.u32 %v185, 7
  %v187 = vsub.s32 2, %v186
  %v188 = vrot.slane %v52, %v187
  %v189 = vlaneseq
  %v190 = vshrl.u32 %v189, 7
  %v191 = vsub.s32 3, %v190
  %v192 = vrot.slane %v52, %v191
  %v197 = vmul.f32 %v175, %v180
  %v198 = vmul.f32 %v174, %v184
  %v199 = vmul.f32 %v173, %v188
  %v200 = vmul.f32 %v172, %v192
  %201 = vset.pattern.permute.xlu0 1
  %202 = vperm.xlu0 %201, %v66
  %v203 = vpop.permute.xlu0 %202
  %205 = vset.pattern.permute.xlu0 1
  %206 = vperm.xlu0 %205, %v67
  %v207 = vpop.permute.xlu0 %206
  %v209 = vlaneseq
  %v210 = vshrl.u32 %v209, 7
  %v211 = vsub.s32 0, %v210
  %v212 = vrot.slane %v197, %v211
  %v213 = vlaneseq
  %v214 = vshrl.u32 %v213, 7
  %v215 = vsub.s32 0, %v214
  %v216 = vrot.slane %v198, %v215
  %v217 = vlaneseq
  %v218 = vshrl.u32 %v217, 7
  %v219 = vsub.s32 0, %v218
  %v220 = vrot.slane %v199, %v219
  %v221 = vlaneseq
  %v222 = vshrl.u32 %v221, 7
  %v223 = vsub.s32 0, %v222
  %v224 = vrot.slane %v200, %v223
  %v225 = vmul.f32 %v203, %v212
  %v226 = vmul.f32 %v203, %v216
  %v227 = vmul.f32 %v203, %v220
  %v228 = vmul.f32 %v203, %v224
  %v229 = vmul.f32 %v207, %v212
  %v230 = vmul.f32 %v207, %v216
  %v231 = vmul.f32 %v207, %v220
  %v232 = vmul.f32 %v207, %v224
  %v233 = vadd.f32 %v155, %v225
  %v234 = vadd.f32 %v156, %v226
  %v235 = vadd.f32 %v157, %v227
  %v236 = vadd.f32 %v158, %v228
  %v237 = vadd.f32 %v159, %v229
  %v238 = vadd.f32 %v160, %v230
  %v239 = vadd.f32 %v161, %v231
  %v240 = vadd.f32 %v162, %v232
  %241 = vrot.lane.b32.xlu0 %v72, 15
  %v242 = vpop.permute.xlu0 %241
  %243 = vrot.lane.b32.xlu0 %v76, 15
  %v244 = vpop.permute.xlu0 %243
  %245 = vrot.lane.b32.xlu0 %v80, 15
  %v246 = vpop.permute.xlu0 %245
  %247 = vrot.lane.b32.xlu0 %v84, 15
  %v248 = vpop.permute.xlu0 %247
  %vm249 = vcmp.lt.s32.totalorder %v98, 15
  %v250 = vsel %vm249, %v246, %v248
  %v251 = vsel %vm249, %v244, %v246
  %v252 = vsel %vm249, %v242, %v244
  %v253 = vsel %vm249, %v248, %v242
  %v255 = vlaneseq
  %v256 = vshrl.u32 %v255, 7
  %v257 = vsub.s32 0, %v256
  %v258 = vrot.slane %v54, %v257
  %v259 = vlaneseq
  %v260 = vshrl.u32 %v259, 7
  %v261 = vsub.s32 1, %v260
  %v262 = vrot.slane %v54, %v261
  %v263 = vlaneseq
  %v264 = vshrl.u32 %v263, 7
  %v265 = vsub.s32 2, %v264
  %v266 = vrot.slane %v54, %v265
  %v267 = vlaneseq
  %v268 = vshrl.u32 %v267, 7
  %v269 = vsub.s32 3, %v268
  %v270 = vrot.slane %v54, %v269
  %v275 = vmul.f32 %v253, %v258
  %v276 = vmul.f32 %v252, %v262
  %v277 = vmul.f32 %v251, %v266
  %v278 = vmul.f32 %v250, %v270
  %279 = vset.pattern.permute.xlu0 2
  %280 = vperm.xlu0 %279, %v66
  %v281 = vpop.permute.xlu0 %280
  %283 = vset.pattern.permute.xlu0 2
  %284 = vperm.xlu0 %283, %v67
  %v285 = vpop.permute.xlu0 %284
  %v287 = vlaneseq
  %v288 = vshrl.u32 %v287, 7
  %v289 = vsub.s32 0, %v288
  %v290 = vrot.slane %v275, %v289
  %v291 = vlaneseq
  %v292 = vshrl.u32 %v291, 7
  %v293 = vsub.s32 0, %v292
  %v294 = vrot.slane %v276, %v293
  %v295 = vlaneseq
  %v296 = vshrl.u32 %v295, 7
  %v297 = vsub.s32 0, %v296
  %v298 = vrot.slane %v277, %v297
  %v299 = vlaneseq
  %v300 = vshrl.u32 %v299, 7
  %v301 = vsub.s32 0, %v300
  %v302 = vrot.slane %v278, %v301
  %v303 = vmul.f32 %v281, %v290
  %v304 = vmul.f32 %v281, %v294
  %v305 = vmul.f32 %v281, %v298
  %v306 = vmul.f32 %v281, %v302
  %v307 = vmul.f32 %v285, %v290
  %v308 = vmul.f32 %v285, %v294
  %v309 = vmul.f32 %v285, %v298
  %v310 = vmul.f32 %v285, %v302
  %v311 = vadd.f32 %v233, %v303
  %v312 = vadd.f32 %v234, %v304
  %v313 = vadd.f32 %v235, %v305
  %v314 = vadd.f32 %v236, %v306
  %v315 = vadd.f32 %v237, %v307
  %v316 = vadd.f32 %v238, %v308
  %v317 = vadd.f32 %v239, %v309
  %v318 = vadd.f32 %v240, %v310
  %319 = vrot.lane.b32.xlu0 %v72, 1
  %v320 = vpop.permute.xlu0 %319
  %321 = vrot.lane.b32.xlu0 %v76, 1
  %v322 = vpop.permute.xlu0 %321
  %323 = vrot.lane.b32.xlu0 %v80, 1
  %v324 = vpop.permute.xlu0 %323
  %325 = vrot.lane.b32.xlu0 %v84, 1
  %v326 = vpop.permute.xlu0 %325
  %vm327 = vcmp.lt.s32.totalorder %v98, 1
  %v328 = vsel %vm327, %v324, %v326
  %v329 = vsel %vm327, %v322, %v324
  %v330 = vsel %vm327, %v320, %v322
  %v331 = vsel %vm327, %v326, %v320
  %v333 = vlaneseq
  %v334 = vshrl.u32 %v333, 7
  %v335 = vsub.s32 0, %v334
  %v336 = vrot.slane %v56, %v335
  %v337 = vlaneseq
  %v338 = vshrl.u32 %v337, 7
  %v339 = vsub.s32 1, %v338
  %v340 = vrot.slane %v56, %v339
  %v341 = vlaneseq
  %v342 = vshrl.u32 %v341, 7
  %v343 = vsub.s32 2, %v342
  %v344 = vrot.slane %v56, %v343
  %v345 = vlaneseq
  %v346 = vshrl.u32 %v345, 7
  %v347 = vsub.s32 3, %v346
  %v348 = vrot.slane %v56, %v347
  %v353 = vmul.f32 %v331, %v336
  %v354 = vmul.f32 %v330, %v340
  %v355 = vmul.f32 %v329, %v344
  %v356 = vmul.f32 %v328, %v348
  %357 = vset.pattern.permute.xlu0 3
  %358 = vperm.xlu0 %357, %v66
  %v359 = vpop.permute.xlu0 %358
  %361 = vset.pattern.permute.xlu0 3
  %362 = vperm.xlu0 %361, %v67
  %v363 = vpop.permute.xlu0 %362
  %v365 = vlaneseq
  %v366 = vshrl.u32 %v365, 7
  %v367 = vsub.s32 0, %v366
  %v368 = vrot.slane %v353, %v367
  %v369 = vlaneseq
  %v370 = vshrl.u32 %v369, 7
  %v371 = vsub.s32 0, %v370
  %v372 = vrot.slane %v354, %v371
  %v373 = vlaneseq
  %v374 = vshrl.u32 %v373, 7
  %v375 = vsub.s32 0, %v374
  %v376 = vrot.slane %v355, %v375
  %v377 = vlaneseq
  %v378 = vshrl.u32 %v377, 7
  %v379 = vsub.s32 0, %v378
  %v380 = vrot.slane %v356, %v379
  %v381 = vmul.f32 %v359, %v368
  %v382 = vmul.f32 %v359, %v372
  %v383 = vmul.f32 %v359, %v376
  %v384 = vmul.f32 %v359, %v380
  %v385 = vmul.f32 %v363, %v368
  %v386 = vmul.f32 %v363, %v372
  %v387 = vmul.f32 %v363, %v376
  %v388 = vmul.f32 %v363, %v380
  %v389 = vadd.f32 %v311, %v381
  %v390 = vadd.f32 %v312, %v382
  %v391 = vadd.f32 %v313, %v383
  %v392 = vadd.f32 %v314, %v384
  %v393 = vadd.f32 %v315, %v385
  %v394 = vadd.f32 %v316, %v386
  %v395 = vadd.f32 %v317, %v387
  %v396 = vadd.f32 %v318, %v388
  %397 = vset.pattern.permute.xlu0 4
  %398 = vperm.xlu0 %397, %v66
  %v399 = vpop.permute.xlu0 %398
  %401 = vset.pattern.permute.xlu0 4
  %402 = vperm.xlu0 %401, %v67
  %v403 = vpop.permute.xlu0 %402
  %v405 = vmul.f32 %v399, %v72
  %v406 = vmul.f32 %v399, %v76
  %v407 = vmul.f32 %v399, %v80
  %v408 = vmul.f32 %v399, %v84
  %v409 = vmul.f32 %v403, %v72
  %v410 = vmul.f32 %v403, %v76
  %v411 = vmul.f32 %v403, %v80
  %v412 = vmul.f32 %v403, %v84
  %v413 = vadd.f32 %v389, %v405
  %v414 = vadd.f32 %v390, %v406
  %v415 = vadd.f32 %v391, %v407
  %v416 = vadd.f32 %v392, %v408
  %v417 = vadd.f32 %v393, %v409
  %v418 = vadd.f32 %v394, %v410
  %v419 = vadd.f32 %v395, %v411
  %v420 = vadd.f32 %v396, %v412
  %421 = vrot.lane.b32.xlu0 %v72, 127
  %v422 = vpop.permute.xlu0 %421
  %423 = vrot.lane.b32.xlu0 %v76, 127
  %v424 = vpop.permute.xlu0 %423
  %425 = vrot.lane.b32.xlu0 %v80, 127
  %v426 = vpop.permute.xlu0 %425
  %427 = vrot.lane.b32.xlu0 %v84, 127
  %v428 = vpop.permute.xlu0 %427
  %vm429 = vcmp.lt.s32.totalorder %v98, 127
  %v430 = vsel %vm429, %v426, %v428
  %v431 = vsel %vm429, %v424, %v426
  %v432 = vsel %vm429, %v422, %v424
  %v433 = vsel %vm429, %v428, %v422
  %v435 = vlaneseq
  %v436 = vshrl.u32 %v435, 7
  %v437 = vsub.s32 0, %v436
  %v438 = vrot.slane %v58, %v437
  %v439 = vlaneseq
  %v440 = vshrl.u32 %v439, 7
  %v441 = vsub.s32 1, %v440
  %v442 = vrot.slane %v58, %v441
  %v443 = vlaneseq
  %v444 = vshrl.u32 %v443, 7
  %v445 = vsub.s32 2, %v444
  %v446 = vrot.slane %v58, %v445
  %v447 = vlaneseq
  %v448 = vshrl.u32 %v447, 7
  %v449 = vsub.s32 3, %v448
  %v450 = vrot.slane %v58, %v449
  %v455 = vmul.f32 %v432, %v438
  %v456 = vmul.f32 %v431, %v442
  %v457 = vmul.f32 %v430, %v446
  %v458 = vmul.f32 %v433, %v450
  %459 = vset.pattern.permute.xlu0 5
  %460 = vperm.xlu0 %459, %v66
  %v461 = vpop.permute.xlu0 %460
  %463 = vset.pattern.permute.xlu0 5
  %464 = vperm.xlu0 %463, %v67
  %v465 = vpop.permute.xlu0 %464
  %v467 = vlaneseq
  %v468 = vshrl.u32 %v467, 7
  %v469 = vsub.s32 0, %v468
  %v470 = vrot.slane %v455, %v469
  %v471 = vlaneseq
  %v472 = vshrl.u32 %v471, 7
  %v473 = vsub.s32 0, %v472
  %v474 = vrot.slane %v456, %v473
  %v475 = vlaneseq
  %v476 = vshrl.u32 %v475, 7
  %v477 = vsub.s32 0, %v476
  %v478 = vrot.slane %v457, %v477
  %v479 = vlaneseq
  %v480 = vshrl.u32 %v479, 7
  %v481 = vsub.s32 0, %v480
  %v482 = vrot.slane %v458, %v481
  %v483 = vmul.f32 %v461, %v470
  %v484 = vmul.f32 %v461, %v474
  %v485 = vmul.f32 %v461, %v478
  %v486 = vmul.f32 %v461, %v482
  %v487 = vmul.f32 %v465, %v470
  %v488 = vmul.f32 %v465, %v474
  %v489 = vmul.f32 %v465, %v478
  %v490 = vmul.f32 %v465, %v482
  %v491 = vadd.f32 %v413, %v483
  %v492 = vadd.f32 %v414, %v484
  %v493 = vadd.f32 %v415, %v485
  %v494 = vadd.f32 %v416, %v486
  %v495 = vadd.f32 %v417, %v487
  %v496 = vadd.f32 %v418, %v488
  %v497 = vadd.f32 %v419, %v489
  %v498 = vadd.f32 %v420, %v490
  %499 = vrot.lane.b32.xlu0 %v72, 113
  %v500 = vpop.permute.xlu0 %499
  %501 = vrot.lane.b32.xlu0 %v76, 113
  %v502 = vpop.permute.xlu0 %501
  %503 = vrot.lane.b32.xlu0 %v80, 113
  %v504 = vpop.permute.xlu0 %503
  %505 = vrot.lane.b32.xlu0 %v84, 113
  %v506 = vpop.permute.xlu0 %505
  %vm507 = vcmp.lt.s32.totalorder %v98, 113
  %v508 = vsel %vm507, %v504, %v506
  %v509 = vsel %vm507, %v502, %v504
  %v510 = vsel %vm507, %v500, %v502
  %v511 = vsel %vm507, %v506, %v500
  %v513 = vlaneseq
  %v514 = vshrl.u32 %v513, 7
  %v515 = vsub.s32 0, %v514
  %v516 = vrot.slane %v60, %v515
  %v517 = vlaneseq
  %v518 = vshrl.u32 %v517, 7
  %v519 = vsub.s32 1, %v518
  %v520 = vrot.slane %v60, %v519
  %v521 = vlaneseq
  %v522 = vshrl.u32 %v521, 7
  %v523 = vsub.s32 2, %v522
  %v524 = vrot.slane %v60, %v523
  %v525 = vlaneseq
  %v526 = vshrl.u32 %v525, 7
  %v527 = vsub.s32 3, %v526
  %v528 = vrot.slane %v60, %v527
  %v533 = vmul.f32 %v510, %v516
  %v534 = vmul.f32 %v509, %v520
  %v535 = vmul.f32 %v508, %v524
  %v536 = vmul.f32 %v511, %v528
  %537 = vset.pattern.permute.xlu0 6
  %538 = vperm.xlu0 %537, %v66
  %v539 = vpop.permute.xlu0 %538
  %541 = vset.pattern.permute.xlu0 6
  %542 = vperm.xlu0 %541, %v67
  %v543 = vpop.permute.xlu0 %542
  %v545 = vlaneseq
  %v546 = vshrl.u32 %v545, 7
  %v547 = vsub.s32 0, %v546
  %v548 = vrot.slane %v533, %v547
  %v549 = vlaneseq
  %v550 = vshrl.u32 %v549, 7
  %v551 = vsub.s32 0, %v550
  %v552 = vrot.slane %v534, %v551
  %v553 = vlaneseq
  %v554 = vshrl.u32 %v553, 7
  %v555 = vsub.s32 0, %v554
  %v556 = vrot.slane %v535, %v555
  %v557 = vlaneseq
  %v558 = vshrl.u32 %v557, 7
  %v559 = vsub.s32 0, %v558
  %v560 = vrot.slane %v536, %v559
  %v561 = vmul.f32 %v539, %v548
  %v562 = vmul.f32 %v539, %v552
  %v563 = vmul.f32 %v539, %v556
  %v564 = vmul.f32 %v539, %v560
  %v565 = vmul.f32 %v543, %v548
  %v566 = vmul.f32 %v543, %v552
  %v567 = vmul.f32 %v543, %v556
  %v568 = vmul.f32 %v543, %v560
  %v569 = vadd.f32 %v491, %v561
  %v570 = vadd.f32 %v492, %v562
  %v571 = vadd.f32 %v493, %v563
  %v572 = vadd.f32 %v494, %v564
  %v573 = vadd.f32 %v495, %v565
  %v574 = vadd.f32 %v496, %v566
  %v575 = vadd.f32 %v497, %v567
  %v576 = vadd.f32 %v498, %v568
  %577 = vrot.lane.b32.xlu0 %v72, 112
  %v578 = vpop.permute.xlu0 %577
  %579 = vrot.lane.b32.xlu0 %v76, 112
  %v580 = vpop.permute.xlu0 %579
  %581 = vrot.lane.b32.xlu0 %v80, 112
  %v582 = vpop.permute.xlu0 %581
  %583 = vrot.lane.b32.xlu0 %v84, 112
  %v584 = vpop.permute.xlu0 %583
  %vm585 = vcmp.lt.s32.totalorder %v98, 112
  %v586 = vsel %vm585, %v582, %v584
  %v587 = vsel %vm585, %v580, %v582
  %v588 = vsel %vm585, %v578, %v580
  %v589 = vsel %vm585, %v584, %v578
  %v591 = vlaneseq
  %v592 = vshrl.u32 %v591, 7
  %v593 = vsub.s32 0, %v592
  %v594 = vrot.slane %v62, %v593
  %v595 = vlaneseq
  %v596 = vshrl.u32 %v595, 7
  %v597 = vsub.s32 1, %v596
  %v598 = vrot.slane %v62, %v597
  %v599 = vlaneseq
  %v600 = vshrl.u32 %v599, 7
  %v601 = vsub.s32 2, %v600
  %v602 = vrot.slane %v62, %v601
  %v603 = vlaneseq
  %v604 = vshrl.u32 %v603, 7
  %v605 = vsub.s32 3, %v604
  %v606 = vrot.slane %v62, %v605
  %v611 = vmul.f32 %v588, %v594
  %v612 = vmul.f32 %v587, %v598
  %v613 = vmul.f32 %v586, %v602
  %v614 = vmul.f32 %v589, %v606
  %615 = vset.pattern.permute.xlu0 7
  %616 = vperm.xlu0 %615, %v66
  %v617 = vpop.permute.xlu0 %616
  %619 = vset.pattern.permute.xlu0 7
  %620 = vperm.xlu0 %619, %v67
  %v621 = vpop.permute.xlu0 %620
  %v623 = vlaneseq
  %v624 = vshrl.u32 %v623, 7
  %v625 = vsub.s32 0, %v624
  %v626 = vrot.slane %v611, %v625
  %v627 = vlaneseq
  %v628 = vshrl.u32 %v627, 7
  %v629 = vsub.s32 0, %v628
  %v630 = vrot.slane %v612, %v629
  %v631 = vlaneseq
  %v632 = vshrl.u32 %v631, 7
  %v633 = vsub.s32 0, %v632
  %v634 = vrot.slane %v613, %v633
  %v635 = vlaneseq
  %v636 = vshrl.u32 %v635, 7
  %v637 = vsub.s32 0, %v636
  %v638 = vrot.slane %v614, %v637
  %v639 = vmul.f32 %v617, %v626
  %v640 = vmul.f32 %v617, %v630
  %v641 = vmul.f32 %v617, %v634
  %v642 = vmul.f32 %v617, %v638
  %v643 = vmul.f32 %v621, %v626
  %v644 = vmul.f32 %v621, %v630
  %v645 = vmul.f32 %v621, %v634
  %v646 = vmul.f32 %v621, %v638
  %v647 = vadd.f32 %v569, %v639
  %v648 = vadd.f32 %v570, %v640
  %v649 = vadd.f32 %v571, %v641
  %v650 = vadd.f32 %v572, %v642
  %v651 = vadd.f32 %v573, %v643
  %v652 = vadd.f32 %v574, %v644
  %v653 = vadd.f32 %v575, %v645
  %v654 = vadd.f32 %v576, %v646
  %655 = vrot.lane.b32.xlu0 %v72, 111
  %v656 = vpop.permute.xlu0 %655
  %657 = vrot.lane.b32.xlu0 %v76, 111
  %v658 = vpop.permute.xlu0 %657
  %659 = vrot.lane.b32.xlu0 %v80, 111
  %v660 = vpop.permute.xlu0 %659
  %661 = vrot.lane.b32.xlu0 %v84, 111
  %v662 = vpop.permute.xlu0 %661
  %vm663 = vcmp.lt.s32.totalorder %v98, 111
  %v664 = vsel %vm663, %v660, %v662
  %v665 = vsel %vm663, %v658, %v660
  %v666 = vsel %vm663, %v656, %v658
  %v667 = vsel %vm663, %v662, %v656
  %v669 = vlaneseq
  %v670 = vshrl.u32 %v669, 7
  %v671 = vsub.s32 0, %v670
  %v672 = vrot.slane %v64, %v671
  %v673 = vlaneseq
  %v674 = vshrl.u32 %v673, 7
  %v675 = vsub.s32 1, %v674
  %v676 = vrot.slane %v64, %v675
  %v677 = vlaneseq
  %v678 = vshrl.u32 %v677, 7
  %v679 = vsub.s32 2, %v678
  %v680 = vrot.slane %v64, %v679
  %v681 = vlaneseq
  %v682 = vshrl.u32 %v681, 7
  %v683 = vsub.s32 3, %v682
  %v684 = vrot.slane %v64, %v683
  %v689 = vmul.f32 %v666, %v672
  %v690 = vmul.f32 %v665, %v676
  %v691 = vmul.f32 %v664, %v680
  %v692 = vmul.f32 %v667, %v684
  %693 = vset.pattern.permute.xlu0 8
  %694 = vperm.xlu0 %693, %v66
  %v695 = vpop.permute.xlu0 %694
  %697 = vset.pattern.permute.xlu0 8
  %698 = vperm.xlu0 %697, %v67
  %v699 = vpop.permute.xlu0 %698
  %v701 = vlaneseq
  %v702 = vshrl.u32 %v701, 7
  %v703 = vsub.s32 0, %v702
  %v704 = vrot.slane %v689, %v703
  %v705 = vlaneseq
  %v706 = vshrl.u32 %v705, 7
  %v707 = vsub.s32 0, %v706
  %v708 = vrot.slane %v690, %v707
  %v709 = vlaneseq
  %v710 = vshrl.u32 %v709, 7
  %v711 = vsub.s32 0, %v710
  %v712 = vrot.slane %v691, %v711
  %v713 = vlaneseq
  %v714 = vshrl.u32 %v713, 7
  %v715 = vsub.s32 0, %v714
  %v716 = vrot.slane %v692, %v715
  %v717 = vmul.f32 %v695, %v704
  %v718 = vmul.f32 %v695, %v708
  %v719 = vmul.f32 %v695, %v712
  %v720 = vmul.f32 %v695, %v716
  %v721 = vmul.f32 %v699, %v704
  %v722 = vmul.f32 %v699, %v708
  %v723 = vmul.f32 %v699, %v712
  %v724 = vmul.f32 %v699, %v716
  %v725 = vadd.f32 %v647, %v717
  %v726 = vadd.f32 %v648, %v718
  %v727 = vadd.f32 %v649, %v719
  %v728 = vadd.f32 %v650, %v720
  %v729 = vadd.f32 %v651, %v721
  %v730 = vadd.f32 %v652, %v722
  %v731 = vadd.f32 %v653, %v723
  %v732 = vadd.f32 %v654, %v724
  %v733 = vld [vmem:[%s3] sm:$0xff]
  %v734 = vld [vmem:[%s3 + $0x8] sm:$0xff]
  %736 = vset.pattern.permute.xlu0 0
  %737 = vperm.xlu0 %736, %v733
  %v738 = vpop.permute.xlu0 %737
  %741 = vset.pattern.permute.xlu0 0
  %742 = vperm.xlu0 %741, %v734
  %v743 = vpop.permute.xlu0 %742
  %v745 = vadd.f32 %v725, %v738
  %v746 = vadd.f32 %v726, %v738
  %v747 = vadd.f32 %v727, %v738
  %v748 = vadd.f32 %v728, %v738
  %v749 = vadd.f32 %v729, %v743
  %v750 = vadd.f32 %v730, %v743
  %v751 = vadd.f32 %v731, %v743
  %v752 = vadd.f32 %v732, %v743
  %v753 = vmax.f32 %v745, 0.0
  %v754 = vmax.f32 %v746, 0.0
  %v755 = vmax.f32 %v747, 0.0
  %v756 = vmax.f32 %v748, 0.0
  %v757 = vmax.f32 %v749, 0.0
  %v758 = vmax.f32 %v750, 0.0
  %v759 = vmax.f32 %v751, 0.0
  %v760 = vmax.f32 %v752, 0.0
  %761 = vrot.lane.b32.xlu0 %v753, 17
  %v762 = vpop.permute.xlu0 %761
  %763 = vrot.lane.b32.xlu0 %v757, 17
  %v764 = vpop.permute.xlu0 %763
  %765 = vrot.lane.b32.xlu0 %v754, 17
  %v766 = vpop.permute.xlu0 %765
  %767 = vrot.lane.b32.xlu0 %v758, 17
  %v768 = vpop.permute.xlu0 %767
  %769 = vrot.lane.b32.xlu0 %v755, 17
  %v770 = vpop.permute.xlu0 %769
  %771 = vrot.lane.b32.xlu0 %v759, 17
  %v772 = vpop.permute.xlu0 %771
  %773 = vrot.lane.b32.xlu0 %v756, 17
  %v774 = vpop.permute.xlu0 %773
  %775 = vrot.lane.b32.xlu0 %v760, 17
  %v776 = vpop.permute.xlu0 %775
  %v777 = vsel %vm99, %v770, %v774
  %v778 = vsel %vm99, %v772, %v776
  %v779 = vsel %vm99, %v766, %v770
  %v780 = vsel %vm99, %v768, %v772
  %v781 = vsel %vm99, %v762, %v766
  %v782 = vsel %vm99, %v764, %v768
  %v783 = vsel %vm99, %v774, %v762
  %v784 = vsel %vm99, %v776, %v764
  %v785 = vmul.f32 %v783, %v108
  %v786 = vmul.f32 %v781, %v112
  %v787 = vmul.f32 %v779, %v116
  %v788 = vmul.f32 %v777, %v120
  %v789 = vmul.f32 %v784, %v108
  %v790 = vmul.f32 %v782, %v112
  %v791 = vmul.f32 %v780, %v116
  %v792 = vmul.f32 %v778, %v120
  %v793 = vpack.c.bf16 %v789, %v785
  %v794 = vpack.c.bf16 %v790, %v786
  %v795 = vpack.c.bf16 %v791, %v787
  %v796 = vpack.c.bf16 %v792, %v788
  %797 = vst [vmem:[#allocation2] sm:$0xff] %v793
  %798 = vst [vmem:[#allocation2 + $0x8] sm:$0xff] %v794
  %799 = vst [vmem:[#allocation2 + $0x10] sm:$0xff] %v795
  %800 = vst [vmem:[#allocation2 + $0x18] sm:$0xff] %v796
  %801 = vrot.lane.b32.xlu0 %v753, 16
  %v802 = vpop.permute.xlu0 %801
  %803 = vrot.lane.b32.xlu0 %v757, 16
  %v804 = vpop.permute.xlu0 %803
  %805 = vrot.lane.b32.xlu0 %v754, 16
  %v806 = vpop.permute.xlu0 %805
  %807 = vrot.lane.b32.xlu0 %v758, 16
  %v808 = vpop.permute.xlu0 %807
  %809 = vrot.lane.b32.xlu0 %v755, 16
  %v810 = vpop.permute.xlu0 %809
  %811 = vrot.lane.b32.xlu0 %v759, 16
  %v812 = vpop.permute.xlu0 %811
  %813 = vrot.lane.b32.xlu0 %v756, 16
  %v814 = vpop.permute.xlu0 %813
  %815 = vrot.lane.b32.xlu0 %v760, 16
  %v816 = vpop.permute.xlu0 %815
  %v817 = vsel %vm171, %v810, %v814
  %v818 = vsel %vm171, %v812, %v816
  %v819 = vsel %vm171, %v806, %v810
  %v820 = vsel %vm171, %v808, %v812
  %v821 = vsel %vm171, %v802, %v806
  %v822 = vsel %vm171, %v804, %v808
  %v823 = vsel %vm171, %v814, %v802
  %v824 = vsel %vm171, %v816, %v804
  %v825 = vmul.f32 %v823, %v180
  %v826 = vmul.f32 %v821, %v184
  %v827 = vmul.f32 %v819, %v188
  %v828 = vmul.f32 %v817, %v192
  %v829 = vmul.f32 %v824, %v180
  %v830 = vmul.f32 %v822, %v184
  %v831 = vmul.f32 %v820, %v188
  %v832 = vmul.f32 %v818, %v192
  %v833 = vpack.c.bf16 %v829, %v825
  %v834 = vpack.c.bf16 %v830, %v826
  %v835 = vpack.c.bf16 %v831, %v827
  %v836 = vpack.c.bf16 %v832, %v828
  %837 = vst [vmem:[#allocation2 + $0x20] sm:$0xff] %v833
  %838 = vst [vmem:[#allocation2 + $0x28] sm:$0xff] %v834
  %839 = vst [vmem:[#allocation2 + $0x30] sm:$0xff] %v835
  %840 = vst [vmem:[#allocation2 + $0x38] sm:$0xff] %v836
  %841 = vrot.lane.b32.xlu0 %v753, 15
  %v842 = vpop.permute.xlu0 %841
  %843 = vrot.lane.b32.xlu0 %v757, 15
  %v844 = vpop.permute.xlu0 %843
  %845 = vrot.lane.b32.xlu0 %v754, 15
  %v846 = vpop.permute.xlu0 %845
  %847 = vrot.lane.b32.xlu0 %v758, 15
  %v848 = vpop.permute.xlu0 %847
  %849 = vrot.lane.b32.xlu0 %v755, 15
  %v850 = vpop.permute.xlu0 %849
  %851 = vrot.lane.b32.xlu0 %v759, 15
  %v852 = vpop.permute.xlu0 %851
  %853 = vrot.lane.b32.xlu0 %v756, 15
  %v854 = vpop.permute.xlu0 %853
  %855 = vrot.lane.b32.xlu0 %v760, 15
  %v856 = vpop.permute.xlu0 %855
  %v857 = vsel %vm249, %v850, %v854
  %v858 = vsel %vm249, %v852, %v856
  %v859 = vsel %vm249, %v846, %v850
  %v860 = vsel %vm249, %v848, %v852
  %v861 = vsel %vm249, %v842, %v846
  %v862 = vsel %vm249, %v844, %v848
  %v863 = vsel %vm249, %v854, %v842
  %v864 = vsel %vm249, %v856, %v844
  %v865 = vmul.f32 %v863, %v258
  %v866 = vmul.f32 %v861, %v262
  %v867 = vmul.f32 %v859, %v266
  %v868 = vmul.f32 %v857, %v270
  %v869 = vmul.f32 %v864, %v258
  %v870 = vmul.f32 %v862, %v262
  %v871 = vmul.f32 %v860, %v266
  %v872 = vmul.f32 %v858, %v270
  %v873 = vpack.c.bf16 %v869, %v865
  %v874 = vpack.c.bf16 %v870, %v866
  %v875 = vpack.c.bf16 %v871, %v867
  %v876 = vpack.c.bf16 %v872, %v868
  %877 = vst [vmem:[#allocation2 + $0x40] sm:$0xff] %v873
  %878 = vst [vmem:[#allocation2 + $0x48] sm:$0xff] %v874
  %879 = vst [vmem:[#allocation2 + $0x50] sm:$0xff] %v875
  %880 = vst [vmem:[#allocation2 + $0x58] sm:$0xff] %v876
  %881 = vrot.lane.b32.xlu0 %v753, 1
  %v882 = vpop.permute.xlu0 %881
  %883 = vrot.lane.b32.xlu0 %v757, 1
  %v884 = vpop.permute.xlu0 %883
  %885 = vrot.lane.b32.xlu0 %v754, 1
  %v886 = vpop.permute.xlu0 %885
  %887 = vrot.lane.b32.xlu0 %v758, 1
  %v888 = vpop.permute.xlu0 %887
  %889 = vrot.lane.b32.xlu0 %v755, 1
  %v890 = vpop.permute.xlu0 %889
  %891 = vrot.lane.b32.xlu0 %v759, 1
  %v892 = vpop.permute.xlu0 %891
  %893 = vrot.lane.b32.xlu0 %v756, 1
  %v894 = vpop.permute.xlu0 %893
  %895 = vrot.lane.b32.xlu0 %v760, 1
  %v896 = vpop.permute.xlu0 %895
  %v897 = vsel %vm327, %v890, %v894
  %v898 = vsel %vm327, %v892, %v896
  %v899 = vsel %vm327, %v886, %v890
  %v900 = vsel %vm327, %v888, %v892
  %v901 = vsel %vm327, %v882, %v886
  %v902 = vsel %vm327, %v884, %v888
  %v903 = vsel %vm327, %v894, %v882
  %v904 = vsel %vm327, %v896, %v884
  %v905 = vmul.f32 %v903, %v336
  %v906 = vmul.f32 %v901, %v340
  %v907 = vmul.f32 %v899, %v344
  %v908 = vmul.f32 %v897, %v348
  %v909 = vmul.f32 %v904, %v336
  %v910 = vmul.f32 %v902, %v340
  %v911 = vmul.f32 %v900, %v344
  %v912 = vmul.f32 %v898, %v348
  %v913 = vpack.c.bf16 %v909, %v905
  %v914 = vpack.c.bf16 %v910, %v906
  %v915 = vpack.c.bf16 %v911, %v907
  %v916 = vpack.c.bf16 %v912, %v908
  %917 = vst [vmem:[#allocation2 + $0x60] sm:$0xff] %v913
  %918 = vst [vmem:[#allocation2 + $0x68] sm:$0xff] %v914
  %919 = vst [vmem:[#allocation2 + $0x70] sm:$0xff] %v915
  %920 = vst [vmem:[#allocation2 + $0x78] sm:$0xff] %v916
  %v921 = vpack.c.bf16 %v757, %v753
  %v922 = vpack.c.bf16 %v758, %v754
  %v923 = vpack.c.bf16 %v759, %v755
  %v924 = vpack.c.bf16 %v760, %v756
  %925 = vst [vmem:[#allocation2 + $0x80] sm:$0xff] %v921
  %926 = vst [vmem:[#allocation2 + $0x88] sm:$0xff] %v922
  %927 = vst [vmem:[#allocation2 + $0x90] sm:$0xff] %v923
  %928 = vst [vmem:[#allocation2 + $0x98] sm:$0xff] %v924
  %929 = vrot.lane.b32.xlu0 %v753, 127
  %v930 = vpop.permute.xlu0 %929
  %931 = vrot.lane.b32.xlu0 %v757, 127
  %v932 = vpop.permute.xlu0 %931
  %933 = vrot.lane.b32.xlu0 %v754, 127
  %v934 = vpop.permute.xlu0 %933
  %935 = vrot.lane.b32.xlu0 %v758, 127
  %v936 = vpop.permute.xlu0 %935
  %937 = vrot.lane.b32.xlu0 %v755, 127
  %v938 = vpop.permute.xlu0 %937
  %939 = vrot.lane.b32.xlu0 %v759, 127
  %v940 = vpop.permute.xlu0 %939
  %941 = vrot.lane.b32.xlu0 %v756, 127
  %v942 = vpop.permute.xlu0 %941
  %943 = vrot.lane.b32.xlu0 %v760, 127
  %v944 = vpop.permute.xlu0 %943
  %v945 = vsel %vm429, %v938, %v942
  %v946 = vsel %vm429, %v940, %v944
  %v947 = vsel %vm429, %v934, %v938
  %v948 = vsel %vm429, %v936, %v940
  %v949 = vsel %vm429, %v930, %v934
  %v950 = vsel %vm429, %v932, %v936
  %v951 = vsel %vm429, %v942, %v930
  %v952 = vsel %vm429, %v944, %v932
  %v953 = vmul.f32 %v949, %v438
  %v954 = vmul.f32 %v947, %v442
  %v955 = vmul.f32 %v945, %v446
  %v956 = vmul.f32 %v951, %v450
  %v957 = vmul.f32 %v950, %v438
  %v958 = vmul.f32 %v948, %v442
  %v959 = vmul.f32 %v946, %v446
  %v960 = vmul.f32 %v952, %v450
  %v961 = vpack.c.bf16 %v957, %v953
  %v962 = vpack.c.bf16 %v958, %v954
  %v963 = vpack.c.bf16 %v959, %v955
  %v964 = vpack.c.bf16 %v960, %v956
  %965 = vst [vmem:[#allocation2 + $0xa0] sm:$0xff] %v961
  %966 = vst [vmem:[#allocation2 + $0xa8] sm:$0xff] %v962
  %967 = vst [vmem:[#allocation2 + $0xb0] sm:$0xff] %v963
  %968 = vst [vmem:[#allocation2 + $0xb8] sm:$0xff] %v964
  %969 = vrot.lane.b32.xlu0 %v753, 113
  %v970 = vpop.permute.xlu0 %969
  %971 = vrot.lane.b32.xlu0 %v757, 113
  %v972 = vpop.permute.xlu0 %971
  %973 = vrot.lane.b32.xlu0 %v754, 113
  %v974 = vpop.permute.xlu0 %973
  %975 = vrot.lane.b32.xlu0 %v758, 113
  %v976 = vpop.permute.xlu0 %975
  %977 = vrot.lane.b32.xlu0 %v755, 113
  %v978 = vpop.permute.xlu0 %977
  %979 = vrot.lane.b32.xlu0 %v759, 113
  %v980 = vpop.permute.xlu0 %979
  %981 = vrot.lane.b32.xlu0 %v756, 113
  %v982 = vpop.permute.xlu0 %981
  %983 = vrot.lane.b32.xlu0 %v760, 113
  %v984 = vpop.permute.xlu0 %983
  %v985 = vsel %vm507, %v978, %v982
  %v986 = vsel %vm507, %v980, %v984
  %v987 = vsel %vm507, %v974, %v978
  %v988 = vsel %vm507, %v976, %v980
  %v989 = vsel %vm507, %v970, %v974
  %v990 = vsel %vm507, %v972, %v976
  %v991 = vsel %vm507, %v982, %v970
  %v992 = vsel %vm507, %v984, %v972
  %v993 = vmul.f32 %v989, %v516
  %v994 = vmul.f32 %v987, %v520
  %v995 = vmul.f32 %v985, %v524
  %v996 = vmul.f32 %v991, %v528
  %v997 = vmul.f32 %v990, %v516
  %v998 = vmul.f32 %v988, %v520
  %v999 = vmul.f32 %v986, %v524
  %v1000 = vmul.f32 %v992, %v528
  %v1001 = vpack.c.bf16 %v997, %v993
  %v1002 = vpack.c.bf16 %v998, %v994
  %v1003 = vpack.c.bf16 %v999, %v995
  %v1004 = vpack.c.bf16 %v1000, %v996
  %1005 = vst [vmem:[#allocation2 + $0xc0] sm:$0xff] %v1001
  %1006 = vst [vmem:[#allocation2 + $0xc8] sm:$0xff] %v1002
  %1007 = vst [vmem:[#allocation2 + $0xd0] sm:$0xff] %v1003
  %1008 = vst [vmem:[#allocation2 + $0xd8] sm:$0xff] %v1004
  %1009 = vrot.lane.b32.xlu0 %v753, 112
  %v1010 = vpop.permute.xlu0 %1009
  %1011 = vrot.lane.b32.xlu0 %v757, 112
  %v1012 = vpop.permute.xlu0 %1011
  %1013 = vrot.lane.b32.xlu0 %v754, 112
  %v1014 = vpop.permute.xlu0 %1013
  %1015 = vrot.lane.b32.xlu0 %v758, 112
  %v1016 = vpop.permute.xlu0 %1015
  %1017 = vrot.lane.b32.xlu0 %v755, 112
  %v1018 = vpop.permute.xlu0 %1017
  %1019 = vrot.lane.b32.xlu0 %v759, 112
  %v1020 = vpop.permute.xlu0 %1019
  %1021 = vrot.lane.b32.xlu0 %v756, 112
  %v1022 = vpop.permute.xlu0 %1021
  %1023 = vrot.lane.b32.xlu0 %v760, 112
  %v1024 = vpop.permute.xlu0 %1023
  %v1025 = vsel %vm585, %v1018, %v1022
  %v1026 = vsel %vm585, %v1020, %v1024
  %v1027 = vsel %vm585, %v1014, %v1018
  %v1028 = vsel %vm585, %v1016, %v1020
  %v1029 = vsel %vm585, %v1010, %v1014
  %v1030 = vsel %vm585, %v1012, %v1016
  %v1031 = vsel %vm585, %v1022, %v1010
  %v1032 = vsel %vm585, %v1024, %v1012
  %v1033 = vmul.f32 %v1029, %v594
  %v1034 = vmul.f32 %v1027, %v598
  %v1035 = vmul.f32 %v1025, %v602
  %v1036 = vmul.f32 %v1031, %v606
  %v1037 = vmul.f32 %v1030, %v594
  %v1038 = vmul.f32 %v1028, %v598
  %v1039 = vmul.f32 %v1026, %v602
  %v1040 = vmul.f32 %v1032, %v606
  %v1041 = vpack.c.bf16 %v1037, %v1033
  %v1042 = vpack.c.bf16 %v1038, %v1034
  %v1043 = vpack.c.bf16 %v1039, %v1035
  %v1044 = vpack.c.bf16 %v1040, %v1036
  %1045 = vst [vmem:[#allocation2 + $0xe0] sm:$0xff] %v1041
  %1046 = vst [vmem:[#allocation2 + $0xe8] sm:$0xff] %v1042
  %1047 = vst [vmem:[#allocation2 + $0xf0] sm:$0xff] %v1043
  %1048 = vst [vmem:[#allocation2 + $0xf8] sm:$0xff] %v1044
  %1049 = vrot.lane.b32.xlu0 %v753, 111
  %v1050 = vpop.permute.xlu0 %1049
  %1051 = vrot.lane.b32.xlu0 %v757, 111
  %v1052 = vpop.permute.xlu0 %1051
  %1053 = vrot.lane.b32.xlu0 %v754, 111
  %v1054 = vpop.permute.xlu0 %1053
  %1055 = vrot.lane.b32.xlu0 %v758, 111
  %v1056 = vpop.permute.xlu0 %1055
  %1057 = vrot.lane.b32.xlu0 %v755, 111
  %v1058 = vpop.permute.xlu0 %1057
  %1059 = vrot.lane.b32.xlu0 %v759, 111
  %v1060 = vpop.permute.xlu0 %1059
  %1061 = vrot.lane.b32.xlu0 %v756, 111
  %v1062 = vpop.permute.xlu0 %1061
  %1063 = vrot.lane.b32.xlu0 %v760, 111
  %v1064 = vpop.permute.xlu0 %1063
  %v1065 = vsel %vm663, %v1058, %v1062
  %v1066 = vsel %vm663, %v1060, %v1064
  %v1067 = vsel %vm663, %v1054, %v1058
  %v1068 = vsel %vm663, %v1056, %v1060
  %v1069 = vsel %vm663, %v1050, %v1054
  %v1070 = vsel %vm663, %v1052, %v1056
  %v1071 = vsel %vm663, %v1062, %v1050
  %v1072 = vsel %vm663, %v1064, %v1052
  %v1073 = vmul.f32 %v1069, %v672
  %v1074 = vmul.f32 %v1067, %v676
  %v1075 = vmul.f32 %v1065, %v680
  %v1076 = vmul.f32 %v1071, %v684
  %v1077 = vmul.f32 %v1070, %v672
  %v1078 = vmul.f32 %v1068, %v676
  %v1079 = vmul.f32 %v1066, %v680
  %v1080 = vmul.f32 %v1072, %v684
  %v1081 = vpack.c.bf16 %v1077, %v1073
  %v1082 = vpack.c.bf16 %v1078, %v1074
  %v1083 = vpack.c.bf16 %v1079, %v1075
  %v1084 = vpack.c.bf16 %v1080, %v1076
  %1085 = vst [vmem:[#allocation2 + $0x100] sm:$0xff] %v1081
  %1086 = vst [vmem:[#allocation2 + $0x108] sm:$0xff] %v1082
  %1087 = vst [vmem:[#allocation2 + $0x110] sm:$0xff] %v1083
  %1088 = vst [vmem:[#allocation2 + $0x118] sm:$0xff] %v1084
  %v1089 = vld [vmem:[%s4] sm:$0xff]
  %v1090 = vld [vmem:[%s4 + $0x8] sm:$0xff]
  %v1091 = vld [vmem:[%s4 + $0x10] sm:$0xff]
  %v1092 = vld [vmem:[%s4 + $0x18] sm:$0xff]
  %v1093 = vld [vmem:[#allocation2] sm:$0xff]
  %v1094 = vld [vmem:[#allocation2 + $0x8] sm:$0xff]
  %v1095 = vld [vmem:[#allocation2 + $0x10] sm:$0xff]
  %v1096 = vld [vmem:[#allocation2 + $0x18] sm:$0xff]
  %v1097 = vld [vmem:[#allocation2 + $0x20] sm:$0xff]
  %v1098 = vld [vmem:[#allocation2 + $0x28] sm:$0xff]
  %v1099 = vld [vmem:[#allocation2 + $0x30] sm:$0xff]
  %v1100 = vld [vmem:[#allocation2 + $0x38] sm:$0xff]
  %v1101 = vld [vmem:[#allocation2 + $0x40] sm:$0xff]
  %v1102 = vld [vmem:[#allocation2 + $0x48] sm:$0xff]
  %v1103 = vld [vmem:[#allocation2 + $0x50] sm:$0xff]
  %v1104 = vld [vmem:[#allocation2 + $0x58] sm:$0xff]
  %v1105 = vld [vmem:[#allocation2 + $0x60] sm:$0xff]
  %v1106 = vld [vmem:[#allocation2 + $0x68] sm:$0xff]
  %v1107 = vld [vmem:[#allocation2 + $0x70] sm:$0xff]
  %v1108 = vld [vmem:[#allocation2 + $0x78] sm:$0xff]
  %v1109 = vld [vmem:[#allocation2 + $0x80] sm:$0xff]
  %v1110 = vld [vmem:[#allocation2 + $0x88] sm:$0xff]
  %v1111 = vld [vmem:[#allocation2 + $0x90] sm:$0xff]
  %v1112 = vld [vmem:[#allocation2 + $0x98] sm:$0xff]
  %v1113 = vld [vmem:[#allocation2 + $0xa0] sm:$0xff]
  %v1114 = vld [vmem:[#allocation2 + $0xa8] sm:$0xff]
  %v1115 = vld [vmem:[#allocation2 + $0xb0] sm:$0xff]
  %v1116 = vld [vmem:[#allocation2 + $0xb8] sm:$0xff]
  %v1117 = vld [vmem:[#allocation2 + $0xc0] sm:$0xff]
  %v1118 = vld [vmem:[#allocation2 + $0xc8] sm:$0xff]
  %v1119 = vld [vmem:[#allocation2 + $0xd0] sm:$0xff]
  %v1120 = vld [vmem:[#allocation2 + $0xd8] sm:$0xff]
  %v1121 = vld [vmem:[#allocation2 + $0xe0] sm:$0xff]
  %v1122 = vld [vmem:[#allocation2 + $0xe8] sm:$0xff]
  %v1123 = vld [vmem:[#allocation2 + $0xf0] sm:$0xff]
  %v1124 = vld [vmem:[#allocation2 + $0xf8] sm:$0xff]
  %v1125 = vld [vmem:[#allocation2 + $0x100] sm:$0xff]
  %v1126 = vld [vmem:[#allocation2 + $0x108] sm:$0xff]
  %v1127 = vld [vmem:[#allocation2 + $0x110] sm:$0xff]
  %v1128 = vld [vmem:[#allocation2 + $0x118] sm:$0xff]
  %v1129 = vld [vmem:[%s5] sm:$0xff]
  %v1130 = vld [vmem:[%s5 + $0x8] sm:$0xff]
  %v1131 = vld [vmem:[%s5 + $0x10] sm:$0xff]
  %v1132 = vld [vmem:[%s5 + $0x18] sm:$0xff]
  %1134 = vset.pattern.permute.xlu0 0
  %1135 = vperm.xlu0 %1134, %v1129
  %v1136 = vpop.permute.xlu0 %1135
  %1139 = vset.pattern.permute.xlu0 0
  %1140 = vperm.xlu0 %1139, %v1130
  %v1141 = vpop.permute.xlu0 %1140
  %1144 = vset.pattern.permute.xlu0 0
  %1145 = vperm.xlu0 %1144, %v1131
  %v1146 = vpop.permute.xlu0 %1145
  %1149 = vset.pattern.permute.xlu0 0
  %1150 = vperm.xlu0 %1149, %v1132
  %v1151 = vpop.permute.xlu0 %1150
  %v1157 = vunpack.c.l.b16 %v1089
  %v1158 = vunpack.c.h.b16 %v1089
  %v1159 = vunpack.c.l.b16 %v1090
  %v1160 = vunpack.c.h.b16 %v1090
  %v1161 = vunpack.c.l.b16 %v1091
  %v1162 = vunpack.c.h.b16 %v1091
  %v1163 = vunpack.c.l.b16 %v1092
  %v1164 = vunpack.c.h.b16 %v1092
  %v1165 = vpack.c.b16 %v1159, %v1157
  %v1166 = vpack.c.b16 %v1160, %v1158
  %v1167 = vpack.c.b16 %v1163, %v1161
  %v1168 = vpack.c.b16 %v1164, %v1162
  %vm1171 = vcmask 130048
  %v1173 = vsel %vm1171, %v1166, 0
  %v1176 = vsel %vm1171, %v1168, 0
  %1178 = vmatprep.subr.bf16.mxu0 %v1094
  %1179 = vmatpush1.bf16.msra.mxu0 %v1093
  %1180 = vmatprep.subr.bf16.mxu0 %v1098
  %1181 = vmatpush1.bf16.msra.mxu0 %v1097
  %1182 = vmatprep.subr.bf16.mxu0 %v1102
  %1183 = vmatpush1.bf16.msra.mxu0 %v1101
  %1184 = vmatprep.subr.bf16.mxu0 %v1106
  %1185 = vmatpush1.bf16.msra.mxu0 %v1105
  %1186 = vmatprep.subr.bf16.mxu0 %v1110
  %1187 = vmatpush1.bf16.msra.mxu0 %v1109
  %1188 = vmatprep.subr.bf16.mxu0 %v1114
  %1189 = vmatpush1.bf16.msra.mxu0 %v1113
  %1190 = vmatprep.subr.bf16.mxu0 %v1118
  %1191 = vmatpush1.bf16.msra.mxu0 %v1117
  %1192 = vmatprep.subr.bf16.mxu0 %v1122
  %1193 = vmatpush1.bf16.msra.mxu0 %v1121
  %1194 = vmatprep.subr.bf16.mxu0 %v1126
  %1195 = vmatpush1.bf16.msra.mxu0 %v1125
  %1196 = vmatprep.subr.bf16.mxu0 0
  %1197 = vmatpush1.bf16.msra.mxu0 0
  %1198 = vmatprep.subr.bf16.mxu0 0
  %1199 = vmatpush1.bf16.msra.mxu0 0
  %1200 = vmatprep.subr.bf16.mxu0 0
  %1201 = vmatpush1.bf16.msra.mxu0 0
  %1202 = vmatprep.subr.bf16.mxu0 0
  %1203 = vmatpush1.bf16.msra.mxu0 0
  %1204 = vmatprep.subr.bf16.mxu0 0
  %1205 = vmatpush1.bf16.msra.mxu0 0
  %1206 = vmatprep.subr.bf16.mxu0 0
  %1207 = vmatpush1.bf16.msra.mxu0 0
  %1208 = vmatprep.subr.bf16.mxu0 0
  %1209 = vmatpush1.bf16.msra.mxu0 0
  %1210 = vmatprep.mubr.bf16.mxu0 %v1173
  %1211 = vmatmul.mubr.bf16.gmra.mrb[0].mxu0 %v1165
  %v1212 = vpop.f32.mrb[0].mxu0
  %v1213 = vadd.f32 %v1136, %v1212
  %v1214 = vpop.f32.mrb[0].mxu0
  %v1215 = vadd.f32 %v1136, %v1214
  %v1216 = vpop.f32.mrb[0].mxu0
  %v1217 = vadd.f32 %v1141, %v1216
  %v1218 = vpop.f32.mrb[0].mxu0
  %v1219 = vadd.f32 %v1141, %v1218
  %1220 = vmatprep.mubr.bf16.mxu0 %v1176
  %1221 = vmatmul.mubr.bf16.gmra.mrb[0].mxu0 %v1167
  %v1222 = vpop.f32.mrb[0].mxu0
  %v1223 = vadd.f32 %v1146, %v1222
  %v1224 = vpop.f32.mrb[0].mxu0
  %v1225 = vadd.f32 %v1146, %v1224
  %v1226 = vpop.f32.mrb[0].mxu0
  %v1227 = vadd.f32 %v1151, %v1226
  %v1228 = vpop.f32.mrb[0].mxu0
  %v1229 = vadd.f32 %v1151, %v1228
  %1230 = vdwg.mxu0
  %1231 = vmatprep.subr.bf16.mxu0 %v1096
  %1232 = vmatpush1.bf16.msra.mxu0 %v1095
  %1233 = vmatprep.subr.bf16.mxu0 %v1100
  %1234 = vmatpush1.bf16.msra.mxu0 %v1099
  %1235 = vmatprep.subr.bf16.mxu0 %v1104
  %1236 = vmatpush1.bf16.msra.mxu0 %v1103
  %1237 = vmatprep.subr.bf16.mxu0 %v1108
  %1238 = vmatpush1.bf16.msra.mxu0 %v1107
  %1239 = vmatprep.subr.bf16.mxu0 %v1112
  %1240 = vmatpush1.bf16.msra.mxu0 %v1111
  %1241 = vmatprep.subr.bf16.mxu0 %v1116
  %1242 = vmatpush1.bf16.msra.mxu0 %v1115
  %1243 = vmatprep.subr.bf16.mxu0 %v1120
  %1244 = vmatpush1.bf16.msra.mxu0 %v1119
  %1245 = vmatprep.subr.bf16.mxu0 %v1124
  %1246 = vmatpush1.bf16.msra.mxu0 %v1123
  %1247 = vmatprep.subr.bf16.mxu0 %v1128
  %1248 = vmatpush1.bf16.msra.mxu0 %v1127
  %1249 = vmatprep.subr.bf16.mxu0 0
  %1250 = vmatpush1.bf16.msra.mxu0 0
  %1251 = vmatprep.subr.bf16.mxu0 0
  %1252 = vmatpush1.bf16.msra.mxu0 0
  %1253 = vmatprep.subr.bf16.mxu0 0
  %1254 = vmatpush1.bf16.msra.mxu0 0
  %1255 = vmatprep.subr.bf16.mxu0 0
  %1256 = vmatpush1.bf16.msra.mxu0 0
  %1257 = vmatprep.subr.bf16.mxu0 0
  %1258 = vmatpush1.bf16.msra.mxu0 0
  %1259 = vmatprep.subr.bf16.mxu0 0
  %1260 = vmatpush1.bf16.msra.mxu0 0
  %1261 = vmatprep.subr.bf16.mxu0 0
  %1262 = vmatpush1.bf16.msra.mxu0 0
  %1263 = vmatprep.mubr.bf16.mxu0 %v1173
  %1264 = vmatmul.mubr.bf16.gmra.mrb[0].mxu0 %v1165
  %v1265 = vpop.f32.mrb[0].mxu0
  %v1266 = vadd.f32 %v1136, %v1265
  %v1267 = vpop.f32.mrb[0].mxu0
  %v1268 = vadd.f32 %v1136, %v1267
  %v1269 = vpop.f32.mrb[0].mxu0
  %v1270 = vadd.f32 %v1141, %v1269
  %v1271 = vpop.f32.mrb[0].mxu0
  %v1272 = vadd.f32 %v1141, %v1271
  %1273 = vmatprep.mubr.bf16.mxu0 %v1176
  %1274 = vmatmul.mubr.bf16.gmra.mrb[0].mxu0 %v1167
  %v1275 = vpop.f32.mrb[0].mxu0
  %v1276 = vadd.f32 %v1146, %v1275
  %v1277 = vpop.f32.mrb[0].mxu0
  %v1278 = vadd.f32 %v1146, %v1277
  %v1279 = vpop.f32.mrb[0].mxu0
  %v1280 = vadd.f32 %v1151, %v1279
  %v1281 = vpop.f32.mrb[0].mxu0
  %v1282 = vadd.f32 %v1151, %v1281
  %1283 = vdwg.mxu0
  %v1284 = vmax.f32 %v1213, 0.0
  %v1285 = vmax.f32 %v1215, 0.0
  %v1286 = vmax.f32 %v1266, 0.0
  %v1287 = vmax.f32 %v1268, 0.0
  %v1288 = vmax.f32 %v1217, 0.0
  %v1289 = vmax.f32 %v1219, 0.0
  %v1290 = vmax.f32 %v1270, 0.0
  %v1291 = vmax.f32 %v1272, 0.0
  %v1292 = vmax.f32 %v1223, 0.0
  %v1293 = vmax.f32 %v1225, 0.0
  %v1294 = vmax.f32 %v1276, 0.0
  %v1295 = vmax.f32 %v1278, 0.0
  %v1296 = vmax.f32 %v1227, 0.0
  %v1297 = vmax.f32 %v1229, 0.0
  %v1298 = vmax.f32 %v1280, 0.0
  %v1299 = vmax.f32 %v1282, 0.0
  %1300 = vrot.lane.b32.xlu0 %v1284, 17
  %v1301 = vpop.permute.xlu0 %1300
  %1302 = vrot.lane.b32.xlu0 %v1288, 17
  %v1303 = vpop.permute.xlu0 %1302
  %1304 = vrot.lane.b32.xlu0 %v1292, 17
  %v1305 = vpop.permute.xlu0 %1304
  %1306 = vrot.lane.b32.xlu0 %v1296, 17
  %v1307 = vpop.permute.xlu0 %1306
  %1308 = vrot.lane.b32.xlu0 %v1285, 17
  %v1309 = vpop.permute.xlu0 %1308
  %1310 = vrot.lane.b32.xlu0 %v1289, 17
  %v1311 = vpop.permute.xlu0 %1310
  %1312 = vrot.lane.b32.xlu0 %v1293, 17
  %v1313 = vpop.permute.xlu0 %1312
  %1314 = vrot.lane.b32.xlu0 %v1297, 17
  %v1315 = vpop.permute.xlu0 %1314
  %1316 = vrot.lane.b32.xlu0 %v1286, 17
  %v1317 = vpop.permute.xlu0 %1316
  %1318 = vrot.lane.b32.xlu0 %v1290, 17
  %v1319 = vpop.permute.xlu0 %1318
  %1320 = vrot.lane.b32.xlu0 %v1294, 17
  %v1321 = vpop.permute.xlu0 %1320
  %1322 = vrot.lane.b32.xlu0 %v1298, 17
  %v1323 = vpop.permute.xlu0 %1322
  %1324 = vrot.lane.b32.xlu0 %v1287, 17
  %v1325 = vpop.permute.xlu0 %1324
  %1326 = vrot.lane.b32.xlu0 %v1291, 17
  %v1327 = vpop.permute.xlu0 %1326
  %1328 = vrot.lane.b32.xlu0 %v1295, 17
  %v1329 = vpop.permute.xlu0 %1328
  %1330 = vrot.lane.b32.xlu0 %v1299, 17
  %v1331 = vpop.permute.xlu0 %1330
  %v1332 = vsel %vm99, %v1317, %v1325
  %v1333 = vsel %vm99, %v1319, %v1327
  %v1334 = vsel %vm99, %v1321, %v1329
  %v1335 = vsel %vm99, %v1323, %v1331
  %v1336 = vsel %vm99, %v1309, %v1317
  %v1337 = vsel %vm99, %v1311, %v1319
  %v1338 = vsel %vm99, %v1313, %v1321
  %v1339 = vsel %vm99, %v1315, %v1323
  %v1340 = vsel %vm99, %v1301, %v1309
  %v1341 = vsel %vm99, %v1303, %v1311
  %v1342 = vsel %vm99, %v1305, %v1313
  %v1343 = vsel %vm99, %v1307, %v1315
  %v1344 = vsel %vm99, %v1325, %v1301
  %v1345 = vsel %vm99, %v1327, %v1303
  %v1346 = vsel %vm99, %v1329, %v1305
  %v1347 = vsel %vm99, %v1331, %v1307
  %v1348 = vmul.f32 %v1344, %v108
  %v1349 = vmul.f32 %v1340, %v112
  %v1350 = vmul.f32 %v1336, %v116
  %v1351 = vmul.f32 %v1332, %v120
  %v1352 = vmul.f32 %v1345, %v108
  %v1353 = vmul.f32 %v1341, %v112
  %v1354 = vmul.f32 %v1337, %v116
  %v1355 = vmul.f32 %v1333, %v120
  %v1356 = vmul.f32 %v1346, %v108
  %v1357 = vmul.f32 %v1342, %v112
  %v1358 = vmul.f32 %v1338, %v116
  %v1359 = vmul.f32 %v1334, %v120
  %v1360 = vmul.f32 %v1347, %v108
  %v1361 = vmul.f32 %v1343, %v112
  %v1362 = vmul.f32 %v1339, %v116
  %v1363 = vmul.f32 %v1335, %v120
  %v1364 = vpack.c.bf16 %v1352, %v1348
  %v1365 = vpack.c.bf16 %v1353, %v1349
  %v1366 = vpack.c.bf16 %v1354, %v1350
  %v1367 = vpack.c.bf16 %v1355, %v1351
  %v1368 = vpack.c.bf16 %v1360, %v1356
  %v1369 = vpack.c.bf16 %v1361, %v1357
  %v1370 = vpack.c.bf16 %v1362, %v1358
  %v1371 = vpack.c.bf16 %v1363, %v1359
  %1372 = vst [vmem:[#allocation2] sm:$0xff] %v1364
  %1373 = vst [vmem:[#allocation2 + $0x8] sm:$0xff] %v1365
  %1374 = vst [vmem:[#allocation2 + $0x10] sm:$0xff] %v1366
  %1375 = vst [vmem:[#allocation2 + $0x18] sm:$0xff] %v1367
  %1376 = vst [vmem:[#allocation2 + $0x20] sm:$0xff] %v1368
  %1377 = vst [vmem:[#allocation2 + $0x28] sm:$0xff] %v1369
  %1378 = vst [vmem:[#allocation2 + $0x30] sm:$0xff] %v1370
  %1379 = vst [vmem:[#allocation2 + $0x38] sm:$0xff] %v1371
  %1380 = vrot.lane.b32.xlu0 %v1284, 16
  %v1381 = vpop.permute.xlu0 %1380
  %1382 = vrot.lane.b32.xlu0 %v1288, 16
  %v1383 = vpop.permute.xlu0 %1382
  %1384 = vrot.lane.b32.xlu0 %v1292, 16
  %v1385 = vpop.permute.xlu0 %1384
  %1386 = vrot.lane.b32.xlu0 %v1296, 16
  %v1387 = vpop.permute.xlu0 %1386
  %1388 = vrot.lane.b32.xlu0 %v1285, 16
  %v1389 = vpop.permute.xlu0 %1388
  %1390 = vrot.lane.b32.xlu0 %v1289, 16
  %v1391 = vpop.permute.xlu0 %1390
  %1392 = vrot.lane.b32.xlu0 %v1293, 16
  %v1393 = vpop.permute.xlu0 %1392
  %1394 = vrot.lane.b32.xlu0 %v1297, 16
  %v1395 = vpop.permute.xlu0 %1394
  %1396 = vrot.lane.b32.xlu0 %v1286, 16
  %v1397 = vpop.permute.xlu0 %1396
  %1398 = vrot.lane.b32.xlu0 %v1290, 16
  %v1399 = vpop.permute.xlu0 %1398
  %1400 = vrot.lane.b32.xlu0 %v1294, 16
  %v1401 = vpop.permute.xlu0 %1400
  %1402 = vrot.lane.b32.xlu0 %v1298, 16
  %v1403 = vpop.permute.xlu0 %1402
  %1404 = vrot.lane.b32.xlu0 %v1287, 16
  %v1405 = vpop.permute.xlu0 %1404
  %1406 = vrot.lane.b32.xlu0 %v1291, 16
  %v1407 = vpop.permute.xlu0 %1406
  %1408 = vrot.lane.b32.xlu0 %v1295, 16
  %v1409 = vpop.permute.xlu0 %1408
  %1410 = vrot.lane.b32.xlu0 %v1299, 16
  %v1411 = vpop.permute.xlu0 %1410
  %v1412 = vsel %vm171, %v1397, %v1405
  %v1413 = vsel %vm171, %v1399, %v1407
  %v1414 = vsel %vm171, %v1401, %v1409
  %v1415 = vsel %vm171, %v1403, %v1411
  %v1416 = vsel %vm171, %v1389, %v1397
  %v1417 = vsel %vm171, %v1391, %v1399
  %v1418 = vsel %vm171, %v1393, %v1401
  %v1419 = vsel %vm171, %v1395, %v1403
  %v1420 = vsel %vm171, %v1381, %v1389
  %v1421 = vsel %vm171, %v1383, %v1391
  %v1422 = vsel %vm171, %v1385, %v1393
  %v1423 = vsel %vm171, %v1387, %v1395
  %v1424 = vsel %vm171, %v1405, %v1381
  %v1425 = vsel %vm171, %v1407, %v1383
  %v1426 = vsel %vm171, %v1409, %v1385
  %v1427 = vsel %vm171, %v1411, %v1387
  %v1428 = vmul.f32 %v1424, %v180
  %v1429 = vmul.f32 %v1420, %v184
  %v1430 = vmul.f32 %v1416, %v188
  %v1431 = vmul.f32 %v1412, %v192
  %v1432 = vmul.f32 %v1425, %v180
  %v1433 = vmul.f32 %v1421, %v184
  %v1434 = vmul.f32 %v1417, %v188
  %v1435 = vmul.f32 %v1413, %v192
  %v1436 = vmul.f32 %v1426, %v180
  %v1437 = vmul.f32 %v1422, %v184
  %v1438 = vmul.f32 %v1418, %v188
  %v1439 = vmul.f32 %v1414, %v192
  %v1440 = vmul.f32 %v1427, %v180
  %v1441 = vmul.f32 %v1423, %v184
  %v1442 = vmul.f32 %v1419, %v188
  %v1443 = vmul.f32 %v1415, %v192
  %v1444 = vpack.c.bf16 %v1432, %v1428
  %v1445 = vpack.c.bf16 %v1433, %v1429
  %v1446 = vpack.c.bf16 %v1434, %v1430
  %v1447 = vpack.c.bf16 %v1435, %v1431
  %v1448 = vpack.c.bf16 %v1440, %v1436
  %v1449 = vpack.c.bf16 %v1441, %v1437
  %v1450 = vpack.c.bf16 %v1442, %v1438
  %v1451 = vpack.c.bf16 %v1443, %v1439
  %1452 = vst [vmem:[#allocation2 + $0x40] sm:$0xff] %v1444
  %1453 = vst [vmem:[#allocation2 + $0x48] sm:$0xff] %v1445
  %1454 = vst [vmem:[#allocation2 + $0x50] sm:$0xff] %v1446
  %1455 = vst [vmem:[#allocation2 + $0x58] sm:$0xff] %v1447
  %1456 = vst [vmem:[#allocation2 + $0x60] sm:$0xff] %v1448
  %1457 = vst [vmem:[#allocation2 + $0x68] sm:$0xff] %v1449
  %1458 = vst [vmem:[#allocation2 + $0x70] sm:$0xff] %v1450
  %1459 = vst [vmem:[#allocation2 + $0x78] sm:$0xff] %v1451
  %1460 = vrot.lane.b32.xlu0 %v1284, 15
  %v1461 = vpop.permute.xlu0 %1460
  %1462 = vrot.lane.b32.xlu0 %v1288, 15
  %v1463 = vpop.permute.xlu0 %1462
  %1464 = vrot.lane.b32.xlu0 %v1292, 15
  %v1465 = vpop.permute.xlu0 %1464
  %1466 = vrot.lane.b32.xlu0 %v1296, 15
  %v1467 = vpop.permute.xlu0 %1466
  %1468 = vrot.lane.b32.xlu0 %v1285, 15
  %v1469 = vpop.permute.xlu0 %1468
  %1470 = vrot.lane.b32.xlu0 %v1289, 15
  %v1471 = vpop.permute.xlu0 %1470
  %1472 = vrot.lane.b32.xlu0 %v1293, 15
  %v1473 = vpop.permute.xlu0 %1472
  %1474 = vrot.lane.b32.xlu0 %v1297, 15
  %v1475 = vpop.permute.xlu0 %1474
  %1476 = vrot.lane.b32.xlu0 %v1286, 15
  %v1477 = vpop.permute.xlu0 %1476
  %1478 = vrot.lane.b32.xlu0 %v1290, 15
  %v1479 = vpop.permute.xlu0 %1478
  %1480 = vrot.lane.b32.xlu0 %v1294, 15
  %v1481 = vpop.permute.xlu0 %1480
  %1482 = vrot.lane.b32.xlu0 %v1298, 15
  %v1483 = vpop.permute.xlu0 %1482
  %1484 = vrot.lane.b32.xlu0 %v1287, 15
  %v1485 = vpop.permute.xlu0 %1484
  %1486 = vrot.lane.b32.xlu0 %v1291, 15
  %v1487 = vpop.permute.xlu0 %1486
  %1488 = vrot.lane.b32.xlu0 %v1295, 15
  %v1489 = vpop.permute.xlu0 %1488
  %1490 = vrot.lane.b32.xlu0 %v1299, 15
  %v1491 = vpop.permute.xlu0 %1490
  %v1492 = vsel %vm249, %v1477, %v1485
  %v1493 = vsel %vm249, %v1479, %v1487
  %v1494 = vsel %vm249, %v1481, %v1489
  %v1495 = vsel %vm249, %v1483, %v1491
  %v1496 = vsel %vm249, %v1469, %v1477
  %v1497 = vsel %vm249, %v1471, %v1479
  %v1498 = vsel %vm249, %v1473, %v1481
  %v1499 = vsel %vm249, %v1475, %v1483
  %v1500 = vsel %vm249, %v1461, %v1469
  %v1501 = vsel %vm249, %v1463, %v1471
  %v1502 = vsel %vm249, %v1465, %v1473
  %v1503 = vsel %vm249, %v1467, %v1475
  %v1504 = vsel %vm249, %v1485, %v1461
  %v1505 = vsel %vm249, %v1487, %v1463
  %v1506 = vsel %vm249, %v1489, %v1465
  %v1507 = vsel %vm249, %v1491, %v1467
  %v1508 = vmul.f32 %v1504, %v258
  %v1509 = vmul.f32 %v1500, %v262
  %v1510 = vmul.f32 %v1496, %v266
  %v1511 = vmul.f32 %v1492, %v270
  %v1512 = vmul.f32 %v1505, %v258
  %v1513 = vmul.f32 %v1501, %v262
  %v1514 = vmul.f32 %v1497, %v266
  %v1515 = vmul.f32 %v1493, %v270
  %v1516 = vmul.f32 %v1506, %v258
  %v1517 = vmul.f32 %v1502, %v262
  %v1518 = vmul.f32 %v1498, %v266
  %v1519 = vmul.f32 %v1494, %v270
  %v1520 = vmul.f32 %v1507, %v258
  %v1521 = vmul.f32 %v1503, %v262
  %v1522 = vmul.f32 %v1499, %v266
  %v1523 = vmul.f32 %v1495, %v270
  %v1524 = vpack.c.bf16 %v1512, %v1508
  %v1525 = vpack.c.bf16 %v1513, %v1509
  %v1526 = vpack.c.bf16 %v1514, %v1510
  %v1527 = vpack.c.bf16 %v1515, %v1511
  %v1528 = vpack.c.bf16 %v1520, %v1516
  %v1529 = vpack.c.bf16 %v1521, %v1517
  %v1530 = vpack.c.bf16 %v1522, %v1518
  %v1531 = vpack.c.bf16 %v1523, %v1519
  %1532 = vst [vmem:[#allocation2 + $0x80] sm:$0xff] %v1524
  %1533 = vst [vmem:[#allocation2 + $0x88] sm:$0xff] %v1525
  %1534 = vst [vmem:[#allocation2 + $0x90] sm:$0xff] %v1526
  %1535 = vst [vmem:[#allocation2 + $0x98] sm:$0xff] %v1527
  %1536 = vst [vmem:[#allocation2 + $0xa0] sm:$0xff] %v1528
  %1537 = vst [vmem:[#allocation2 + $0xa8] sm:$0xff] %v1529
  %1538 = vst [vmem:[#allocation2 + $0xb0] sm:$0xff] %v1530
  %1539 = vst [vmem:[#allocation2 + $0xb8] sm:$0xff] %v1531
  %1540 = vrot.lane.b32.xlu0 %v1284, 1
  %v1541 = vpop.permute.xlu0 %1540
  %1542 = vrot.lane.b32.xlu0 %v1288, 1
  %v1543 = vpop.permute.xlu0 %1542
  %1544 = vrot.lane.b32.xlu0 %v1292, 1
  %v1545 = vpop.permute.xlu0 %1544
  %1546 = vrot.lane.b32.xlu0 %v1296, 1
  %v1547 = vpop.permute.xlu0 %1546
  %1548 = vrot.lane.b32.xlu0 %v1285, 1
  %v1549 = vpop.permute.xlu0 %1548
  %1550 = vrot.lane.b32.xlu0 %v1289, 1
  %v1551 = vpop.permute.xlu0 %1550
  %1552 = vrot.lane.b32.xlu0 %v1293, 1
  %v1553 = vpop.permute.xlu0 %1552
  %1554 = vrot.lane.b32.xlu0 %v1297, 1
  %v1555 = vpop.permute.xlu0 %1554
  %1556 = vrot.lane.b32.xlu0 %v1286, 1
  %v1557 = vpop.permute.xlu0 %1556
  %1558 = vrot.lane.b32.xlu0 %v1290, 1
  %v1559 = vpop.permute.xlu0 %1558
  %1560 = vrot.lane.b32.xlu0 %v1294, 1
  %v1561 = vpop.permute.xlu0 %1560
  %1562 = vrot.lane.b32.xlu0 %v1298, 1
  %v1563 = vpop.permute.xlu0 %1562
  %1564 = vrot.lane.b32.xlu0 %v1287, 1
  %v1565 = vpop.permute.xlu0 %1564
  %1566 = vrot.lane.b32.xlu0 %v1291, 1
  %v1567 = vpop.permute.xlu0 %1566
  %1568 = vrot.lane.b32.xlu0 %v1295, 1
  %v1569 = vpop.permute.xlu0 %1568
  %1570 = vrot.lane.b32.xlu0 %v1299, 1
  %v1571 = vpop.permute.xlu0 %1570
  %v1572 = vsel %vm327, %v1557, %v1565
  %v1573 = vsel %vm327, %v1559, %v1567
  %v1574 = vsel %vm327, %v1561, %v1569
  %v1575 = vsel %vm327, %v1563, %v1571
  %v1576 = vsel %vm327, %v1549, %v1557
  %v1577 = vsel %vm327, %v1551, %v1559
  %v1578 = vsel %vm327, %v1553, %v1561
  %v1579 = vsel %vm327, %v1555, %v1563
  %v1580 = vsel %vm327, %v1541, %v1549
  %v1581 = vsel %vm327, %v1543, %v1551
  %v1582 = vsel %vm327, %v1545, %v1553
  %v1583 = vsel %vm327, %v1547, %v1555
  %v1584 = vsel %vm327, %v1565, %v1541
  %v1585 = vsel %vm327, %v1567, %v1543
  %v1586 = vsel %vm327, %v1569, %v1545
  %v1587 = vsel %vm327, %v1571, %v1547
  %v1588 = vmul.f32 %v1584, %v336
  %v1589 = vmul.f32 %v1580, %v340
  %v1590 = vmul.f32 %v1576, %v344
  %v1591 = vmul.f32 %v1572, %v348
  %v1592 = vmul.f32 %v1585, %v336
  %v1593 = vmul.f32 %v1581, %v340
  %v1594 = vmul.f32 %v1577, %v344
  %v1595 = vmul.f32 %v1573, %v348
  %v1596 = vmul.f32 %v1586, %v336
  %v1597 = vmul.f32 %v1582, %v340
  %v1598 = vmul.f32 %v1578, %v344
  %v1599 = vmul.f32 %v1574, %v348
  %v1600 = vmul.f32 %v1587, %v336
  %v1601 = vmul.f32 %v1583, %v340
  %v1602 = vmul.f32 %v1579, %v344
  %v1603 = vmul.f32 %v1575, %v348
  %v1604 = vpack.c.bf16 %v1592, %v1588
  %v1605 = vpack.c.bf16 %v1593, %v1589
  %v1606 = vpack.c.bf16 %v1594, %v1590
  %v1607 = vpack.c.bf16 %v1595, %v1591
  %v1608 = vpack.c.bf16 %v1600, %v1596
  %v1609 = vpack.c.bf16 %v1601, %v1597
  %v1610 = vpack.c.bf16 %v1602, %v1598
  %v1611 = vpack.c.bf16 %v1603, %v1599
  %1612 = vst [vmem:[#allocation2 + $0xc0] sm:$0xff] %v1604
  %1613 = vst [vmem:[#allocation2 + $0xc8] sm:$0xff] %v1605
  %1614 = vst [vmem:[#allocation2 + $0xd0] sm:$0xff] %v1606
  %1615 = vst [vmem:[#allocation2 + $0xd8] sm:$0xff] %v1607
  %1616 = vst [vmem:[#allocation2 + $0xe0] sm:$0xff] %v1608
  %1617 = vst [vmem:[#allocation2 + $0xe8] sm:$0xff] %v1609
  %1618 = vst [vmem:[#allocation2 + $0xf0] sm:$0xff] %v1610
  %1619 = vst [vmem:[#allocation2 + $0xf8] sm:$0xff] %v1611
  %v1620 = vpack.c.bf16 %v1288, %v1284
  %v1621 = vpack.c.bf16 %v1289, %v1285
  %v1622 = vpack.c.bf16 %v1290, %v1286
  %v1623 = vpack.c.bf16 %v1291, %v1287
  %v1624 = vpack.c.bf16 %v1296, %v1292
  %v1625 = vpack.c.bf16 %v1297, %v1293
  %v1626 = vpack.c.bf16 %v1298, %v1294
  %v1627 = vpack.c.bf16 %v1299, %v1295
  %1628 = vst [vmem:[#allocation2 + $0x100] sm:$0xff] %v1620
  %1629 = vst [vmem:[#allocation2 + $0x108] sm:$0xff] %v1621
  %1630 = vst [vmem:[#allocation2 + $0x110] sm:$0xff] %v1622
  %1631 = vst [vmem:[#allocation2 + $0x118] sm:$0xff] %v1623
  %1632 = vst [vmem:[#allocation2 + $0x120] sm:$0xff] %v1624
  %1633 = vst [vmem:[#allocation2 + $0x128] sm:$0xff] %v1625
  %1634 = vst [vmem:[#allocation2 + $0x130] sm:$0xff] %v1626
  %1635 = vst [vmem:[#allocation2 + $0x138] sm:$0xff] %v1627
  %1636 = vrot.lane.b32.xlu0 %v1284, 127
  %v1637 = vpop.permute.xlu0 %1636
  %1638 = vrot.lane.b32.xlu0 %v1288, 127
  %v1639 = vpop.permute.xlu0 %1638
  %1640 = vrot.lane.b32.xlu0 %v1292, 127
  %v1641 = vpop.permute.xlu0 %1640
  %1642 = vrot.lane.b32.xlu0 %v1296, 127
  %v1643 = vpop.permute.xlu0 %1642
  %1644 = vrot.lane.b32.xlu0 %v1285, 127
  %v1645 = vpop.permute.xlu0 %1644
  %1646 = vrot.lane.b32.xlu0 %v1289, 127
  %v1647 = vpop.permute.xlu0 %1646
  %1648 = vrot.lane.b32.xlu0 %v1293, 127
  %v1649 = vpop.permute.xlu0 %1648
  %1650 = vrot.lane.b32.xlu0 %v1297, 127
  %v1651 = vpop.permute.xlu0 %1650
  %1652 = vrot.lane.b32.xlu0 %v1286, 127
  %v1653 = vpop.permute.xlu0 %1652
  %1654 = vrot.lane.b32.xlu0 %v1290, 127
  %v1655 = vpop.permute.xlu0 %1654
  %1656 = vrot.lane.b32.xlu0 %v1294, 127
  %v1657 = vpop.permute.xlu0 %1656
  %1658 = vrot.lane.b32.xlu0 %v1298, 127
  %v1659 = vpop.permute.xlu0 %1658
  %1660 = vrot.lane.b32.xlu0 %v1287, 127
  %v1661 = vpop.permute.xlu0 %1660
  %1662 = vrot.lane.b32.xlu0 %v1291, 127
  %v1663 = vpop.permute.xlu0 %1662
  %1664 = vrot.lane.b32.xlu0 %v1295, 127
  %v1665 = vpop.permute.xlu0 %1664
  %1666 = vrot.lane.b32.xlu0 %v1299, 127
  %v1667 = vpop.permute.xlu0 %1666
  %v1668 = vsel %vm429, %v1653, %v1661
  %v1669 = vsel %vm429, %v1655, %v1663
  %v1670 = vsel %vm429, %v1657, %v1665
  %v1671 = vsel %vm429, %v1659, %v1667
  %v1672 = vsel %vm429, %v1645, %v1653
  %v1673 = vsel %vm429, %v1647, %v1655
  %v1674 = vsel %vm429, %v1649, %v1657
  %v1675 = vsel %vm429, %v1651, %v1659
  %v1676 = vsel %vm429, %v1637, %v1645
  %v1677 = vsel %vm429, %v1639, %v1647
  %v1678 = vsel %vm429, %v1641, %v1649
  %v1679 = vsel %vm429, %v1643, %v1651
  %v1680 = vsel %vm429, %v1661, %v1637
  %v1681 = vsel %vm429, %v1663, %v1639
  %v1682 = vsel %vm429, %v1665, %v1641
  %v1683 = vsel %vm429, %v1667, %v1643
  %v1684 = vmul.f32 %v1676, %v438
  %v1685 = vmul.f32 %v1672, %v442
  %v1686 = vmul.f32 %v1668, %v446
  %v1687 = vmul.f32 %v1680, %v450
  %v1688 = vmul.f32 %v1677, %v438
  %v1689 = vmul.f32 %v1673, %v442
  %v1690 = vmul.f32 %v1669, %v446
  %v1691 = vmul.f32 %v1681, %v450
  %v1692 = vmul.f32 %v1678, %v438
  %v1693 = vmul.f32 %v1674, %v442
  %v1694 = vmul.f32 %v1670, %v446
  %v1695 = vmul.f32 %v1682, %v450
  %v1696 = vmul.f32 %v1679, %v438
  %v1697 = vmul.f32 %v1675, %v442
  %v1698 = vmul.f32 %v1671, %v446
  %v1699 = vmul.f32 %v1683, %v450
  %v1700 = vpack.c.bf16 %v1688, %v1684
  %v1701 = vpack.c.bf16 %v1689, %v1685
  %v1702 = vpack.c.bf16 %v1690, %v1686
  %v1703 = vpack.c.bf16 %v1691, %v1687
  %v1704 = vpack.c.bf16 %v1696, %v1692
  %v1705 = vpack.c.bf16 %v1697, %v1693
  %v1706 = vpack.c.bf16 %v1698, %v1694
  %v1707 = vpack.c.bf16 %v1699, %v1695
  %1708 = vst [vmem:[#allocation2 + $0x140] sm:$0xff] %v1700
  %1709 = vst [vmem:[#allocation2 + $0x148] sm:$0xff] %v1701
  %1710 = vst [vmem:[#allocation2 + $0x150] sm:$0xff] %v1702
  %1711 = vst [vmem:[#allocation2 + $0x158] sm:$0xff] %v1703
  %1712 = vst [vmem:[#allocation2 + $0x160] sm:$0xff] %v1704
  %1713 = vst [vmem:[#allocation2 + $0x168] sm:$0xff] %v1705
  %1714 = vst [vmem:[#allocation2 + $0x170] sm:$0xff] %v1706
  %1715 = vst [vmem:[#allocation2 + $0x178] sm:$0xff] %v1707
  %1716 = vrot.lane.b32.xlu0 %v1284, 113
  %v1717 = vpop.permute.xlu0 %1716
  %1718 = vrot.lane.b32.xlu0 %v1288, 113
  %v1719 = vpop.permute.xlu0 %1718
  %1720 = vrot.lane.b32.xlu0 %v1292, 113
  %v1721 = vpop.permute.xlu0 %1720
  %1722 = vrot.lane.b32.xlu0 %v1296, 113
  %v1723 = vpop.permute.xlu0 %1722
  %1724 = vrot.lane.b32.xlu0 %v1285, 113
  %v1725 = vpop.permute.xlu0 %1724
  %1726 = vrot.lane.b32.xlu0 %v1289, 113
  %v1727 = vpop.permute.xlu0 %1726
  %1728 = vrot.lane.b32.xlu0 %v1293, 113
  %v1729 = vpop.permute.xlu0 %1728
  %1730 = vrot.lane.b32.xlu0 %v1297, 113
  %v1731 = vpop.permute.xlu0 %1730
  %1732 = vrot.lane.b32.xlu0 %v1286, 113
  %v1733 = vpop.permute.xlu0 %1732
  %1734 = vrot.lane.b32.xlu0 %v1290, 113
  %v1735 = vpop.permute.xlu0 %1734
  %1736 = vrot.lane.b32.xlu0 %v1294, 113
  %v1737 = vpop.permute.xlu0 %1736
  %1738 = vrot.lane.b32.xlu0 %v1298, 113
  %v1739 = vpop.permute.xlu0 %1738
  %1740 = vrot.lane.b32.xlu0 %v1287, 113
  %v1741 = vpop.permute.xlu0 %1740
  %1742 = vrot.lane.b32.xlu0 %v1291, 113
  %v1743 = vpop.permute.xlu0 %1742
  %1744 = vrot.lane.b32.xlu0 %v1295, 113
  %v1745 = vpop.permute.xlu0 %1744
  %1746 = vrot.lane.b32.xlu0 %v1299, 113
  %v1747 = vpop.permute.xlu0 %1746
  %v1748 = vsel %vm507, %v1733, %v1741
  %v1749 = vsel %vm507, %v1735, %v1743
  %v1750 = vsel %vm507, %v1737, %v1745
  %v1751 = vsel %vm507, %v1739, %v1747
  %v1752 = vsel %vm507, %v1725, %v1733
  %v1753 = vsel %vm507, %v1727, %v1735
  %v1754 = vsel %vm507, %v1729, %v1737
  %v1755 = vsel %vm507, %v1731, %v1739
  %v1756 = vsel %vm507, %v1717, %v1725
  %v1757 = vsel %vm507, %v1719, %v1727
  %v1758 = vsel %vm507, %v1721, %v1729
  %v1759 = vsel %vm507, %v1723, %v1731
  %v1760 = vsel %vm507, %v1741, %v1717
  %v1761 = vsel %vm507, %v1743, %v1719
  %v1762 = vsel %vm507, %v1745, %v1721
  %v1763 = vsel %vm507, %v1747, %v1723
  %v1764 = vmul.f32 %v1756, %v516
  %v1765 = vmul.f32 %v1752, %v520
  %v1766 = vmul.f32 %v1748, %v524
  %v1767 = vmul.f32 %v1760, %v528
  %v1768 = vmul.f32 %v1757, %v516
  %v1769 = vmul.f32 %v1753, %v520
  %v1770 = vmul.f32 %v1749, %v524
  %v1771 = vmul.f32 %v1761, %v528
  %v1772 = vmul.f32 %v1758, %v516
  %v1773 = vmul.f32 %v1754, %v520
  %v1774 = vmul.f32 %v1750, %v524
  %v1775 = vmul.f32 %v1762, %v528
  %v1776 = vmul.f32 %v1759, %v516
  %v1777 = vmul.f32 %v1755, %v520
  %v1778 = vmul.f32 %v1751, %v524
  %v1779 = vmul.f32 %v1763, %v528
  %v1780 = vpack.c.bf16 %v1768, %v1764
  %v1781 = vpack.c.bf16 %v1769, %v1765
  %v1782 = vpack.c.bf16 %v1770, %v1766
  %v1783 = vpack.c.bf16 %v1771, %v1767
  %v1784 = vpack.c.bf16 %v1776, %v1772
  %v1785 = vpack.c.bf16 %v1777, %v1773
  %v1786 = vpack.c.bf16 %v1778, %v1774
  %v1787 = vpack.c.bf16 %v1779, %v1775
  %1788 = vst [vmem:[#allocation2 + $0x180] sm:$0xff] %v1780
  %1789 = vst [vmem:[#allocation2 + $0x188] sm:$0xff] %v1781
  %1790 = vst [vmem:[#allocation2 + $0x190] sm:$0xff] %v1782
  %1791 = vst [vmem:[#allocation2 + $0x198] sm:$0xff] %v1783
  %1792 = vst [vmem:[#allocation2 + $0x1a0] sm:$0xff] %v1784
  %1793 = vst [vmem:[#allocation2 + $0x1a8] sm:$0xff] %v1785
  %1794 = vst [vmem:[#allocation2 + $0x1b0] sm:$0xff] %v1786
  %1795 = vst [vmem:[#allocation2 + $0x1b8] sm:$0xff] %v1787
  %1796 = vrot.lane.b32.xlu0 %v1284, 112
  %v1797 = vpop.permute.xlu0 %1796
  %1798 = vrot.lane.b32.xlu0 %v1288, 112
  %v1799 = vpop.permute.xlu0 %1798
  %1800 = vrot.lane.b32.xlu0 %v1292, 112
  %v1801 = vpop.permute.xlu0 %1800
  %1802 = vrot.lane.b32.xlu0 %v1296, 112
  %v1803 = vpop.permute.xlu0 %1802
  %1804 = vrot.lane.b32.xlu0 %v1285, 112
  %v1805 = vpop.permute.xlu0 %1804
  %1806 = vrot.lane.b32.xlu0 %v1289, 112
  %v1807 = vpop.permute.xlu0 %1806
  %1808 = vrot.lane.b32.xlu0 %v1293, 112
  %v1809 = vpop.permute.xlu0 %1808
  %1810 = vrot.lane.b32.xlu0 %v1297, 112
  %v1811 = vpop.permute.xlu0 %1810
  %1812 = vrot.lane.b32.xlu0 %v1286, 112
  %v1813 = vpop.permute.xlu0 %1812
  %1814 = vrot.lane.b32.xlu0 %v1290, 112
  %v1815 = vpop.permute.xlu0 %1814
  %1816 = vrot.lane.b32.xlu0 %v1294, 112
  %v1817 = vpop.permute.xlu0 %1816
  %1818 = vrot.lane.b32.xlu0 %v1298, 112
  %v1819 = vpop.permute.xlu0 %1818
  %1820 = vrot.lane.b32.xlu0 %v1287, 112
  %v1821 = vpop.permute.xlu0 %1820
  %1822 = vrot.lane.b32.xlu0 %v1291, 112
  %v1823 = vpop.permute.xlu0 %1822
  %1824 = vrot.lane.b32.xlu0 %v1295, 112
  %v1825 = vpop.permute.xlu0 %1824
  %1826 = vrot.lane.b32.xlu0 %v1299, 112
  %v1827 = vpop.permute.xlu0 %1826
  %v1828 = vsel %vm585, %v1813, %v1821
  %v1829 = vsel %vm585, %v1815, %v1823
  %v1830 = vsel %vm585, %v1817, %v1825
  %v1831 = vsel %vm585, %v1819, %v1827
  %v1832 = vsel %vm585, %v1805, %v1813
  %v1833 = vsel %vm585, %v1807, %v1815
  %v1834 = vsel %vm585, %v1809, %v1817
  %v1835 = vsel %vm585, %v1811, %v1819
  %v1836 = vsel %vm585, %v1797, %v1805
  %v1837 = vsel %vm585, %v1799, %v1807
  %v1838 = vsel %vm585, %v1801, %v1809
  %v1839 = vsel %vm585, %v1803, %v1811
  %v1840 = vsel %vm585, %v1821, %v1797
  %v1841 = vsel %vm585, %v1823, %v1799
  %v1842 = vsel %vm585, %v1825, %v1801
  %v1843 = vsel %vm585, %v1827, %v1803
  %v1844 = vmul.f32 %v1836, %v594
  %v1845 = vmul.f32 %v1832, %v598
  %v1846 = vmul.f32 %v1828, %v602
  %v1847 = vmul.f32 %v1840, %v606
  %v1848 = vmul.f32 %v1837, %v594
  %v1849 = vmul.f32 %v1833, %v598
  %v1850 = vmul.f32 %v1829, %v602
  %v1851 = vmul.f32 %v1841, %v606
  %v1852 = vmul.f32 %v1838, %v594
  %v1853 = vmul.f32 %v1834, %v598
  %v1854 = vmul.f32 %v1830, %v602
  %v1855 = vmul.f32 %v1842, %v606
  %v1856 = vmul.f32 %v1839, %v594
  %v1857 = vmul.f32 %v1835, %v598
  %v1858 = vmul.f32 %v1831, %v602
  %v1859 = vmul.f32 %v1843, %v606
  %v1860 = vpack.c.bf16 %v1848, %v1844
  %v1861 = vpack.c.bf16 %v1849, %v1845
  %v1862 = vpack.c.bf16 %v1850, %v1846
  %v1863 = vpack.c.bf16 %v1851, %v1847
  %v1864 = vpack.c.bf16 %v1856, %v1852
  %v1865 = vpack.c.bf16 %v1857, %v1853
  %v1866 = vpack.c.bf16 %v1858, %v1854
  %v1867 = vpack.c.bf16 %v1859, %v1855
  %1868 = vst [vmem:[#allocation2 + $0x1c0] sm:$0xff] %v1860
  %1869 = vst [vmem:[#allocation2 + $0x1c8] sm:$0xff] %v1861
  %1870 = vst [vmem:[#allocation2 + $0x1d0] sm:$0xff] %v1862
  %1871 = vst [vmem:[#allocation2 + $0x1d8] sm:$0xff] %v1863
  %1872 = vst [vmem:[#allocation2 + $0x1e0] sm:$0xff] %v1864
  %1873 = vst [vmem:[#allocation2 + $0x1e8] sm:$0xff] %v1865
  %1874 = vst [vmem:[#allocation2 + $0x1f0] sm:$0xff] %v1866
  %1875 = vst [vmem:[#allocation2 + $0x1f8] sm:$0xff] %v1867
  %1876 = vrot.lane.b32.xlu0 %v1284, 111
  %v1877 = vpop.permute.xlu0 %1876
  %1878 = vrot.lane.b32.xlu0 %v1288, 111
  %v1879 = vpop.permute.xlu0 %1878
  %1880 = vrot.lane.b32.xlu0 %v1292, 111
  %v1881 = vpop.permute.xlu0 %1880
  %1882 = vrot.lane.b32.xlu0 %v1296, 111
  %v1883 = vpop.permute.xlu0 %1882
  %1884 = vrot.lane.b32.xlu0 %v1285, 111
  %v1885 = vpop.permute.xlu0 %1884
  %1886 = vrot.lane.b32.xlu0 %v1289, 111
  %v1887 = vpop.permute.xlu0 %1886
  %1888 = vrot.lane.b32.xlu0 %v1293, 111
  %v1889 = vpop.permute.xlu0 %1888
  %1890 = vrot.lane.b32.xlu0 %v1297, 111
  %v1891 = vpop.permute.xlu0 %1890
  %1892 = vrot.lane.b32.xlu0 %v1286, 111
  %v1893 = vpop.permute.xlu0 %1892
  %1894 = vrot.lane.b32.xlu0 %v1290, 111
  %v1895 = vpop.permute.xlu0 %1894
  %1896 = vrot.lane.b32.xlu0 %v1294, 111
  %v1897 = vpop.permute.xlu0 %1896
  %1898 = vrot.lane.b32.xlu0 %v1298, 111
  %v1899 = vpop.permute.xlu0 %1898
  %1900 = vrot.lane.b32.xlu0 %v1287, 111
  %v1901 = vpop.permute.xlu0 %1900
  %1902 = vrot.lane.b32.xlu0 %v1291, 111
  %v1903 = vpop.permute.xlu0 %1902
  %1904 = vrot.lane.b32.xlu0 %v1295, 111
  %v1905 = vpop.permute.xlu0 %1904
  %1906 = vrot.lane.b32.xlu0 %v1299, 111
  %v1907 = vpop.permute.xlu0 %1906
  %v1908 = vsel %vm663, %v1893, %v1901
  %v1909 = vsel %vm663, %v1895, %v1903
  %v1910 = vsel %vm663, %v1897, %v1905
  %v1911 = vsel %vm663, %v1899, %v1907
  %v1912 = vsel %vm663, %v1885, %v1893
  %v1913 = vsel %vm663, %v1887, %v1895
  %v1914 = vsel %vm663, %v1889, %v1897
  %v1915 = vsel %vm663, %v1891, %v1899
  %v1916 = vsel %vm663, %v1877, %v1885
  %v1917 = vsel %vm663, %v1879, %v1887
  %v1918 = vsel %vm663, %v1881, %v1889
  %v1919 = vsel %vm663, %v1883, %v1891
  %v1920 = vsel %vm663, %v1901, %v1877
  %v1921 = vsel %vm663, %v1903, %v1879
  %v1922 = vsel %vm663, %v1905, %v1881
  %v1923 = vsel %vm663, %v1907, %v1883
  %v1924 = vmul.f32 %v1916, %v672
  %v1925 = vmul.f32 %v1912, %v676
  %v1926 = vmul.f32 %v1908, %v680
  %v1927 = vmul.f32 %v1920, %v684
  %v1928 = vmul.f32 %v1917, %v672
  %v1929 = vmul.f32 %v1913, %v676
  %v1930 = vmul.f32 %v1909, %v680
  %v1931 = vmul.f32 %v1921, %v684
  %v1932 = vmul.f32 %v1918, %v672
  %v1933 = vmul.f32 %v1914, %v676
  %v1934 = vmul.f32 %v1910, %v680
  %v1935 = vmul.f32 %v1922, %v684
  %v1936 = vmul.f32 %v1919, %v672
  %v1937 = vmul.f32 %v1915, %v676
  %v1938 = vmul.f32 %v1911, %v680
  %v1939 = vmul.f32 %v1923, %v684
  %v1940 = vpack.c.bf16 %v1928, %v1924
  %v1941 = vpack.c.bf16 %v1929, %v1925
  %v1942 = vpack.c.bf16 %v1930, %v1926
  %v1943 = vpack.c.bf16 %v1931, %v1927
  %v1944 = vpack.c.bf16 %v1936, %v1932
  %v1945 = vpack.c.bf16 %v1937, %v1933
  %v1946 = vpack.c.bf16 %v1938, %v1934
  %v1947 = vpack.c.bf16 %v1939, %v1935
  %1948 = vst [vmem:[#allocation2 + $0x200] sm:$0xff] %v1940
  %1949 = vst [vmem:[#allocation2 + $0x208] sm:$0xff] %v1941
  %1950 = vst [vmem:[#allocation2 + $0x210] sm:$0xff] %v1942
  %1951 = vst [vmem:[#allocation2 + $0x218] sm:$0xff] %v1943
  %1952 = vst [vmem:[#allocation2 + $0x220] sm:$0xff] %v1944
  %1953 = vst [vmem:[#allocation2 + $0x228] sm:$0xff] %v1945
  %1954 = vst [vmem:[#allocation2 + $0x230] sm:$0xff] %v1946
  %1955 = vst [vmem:[#allocation2 + $0x238] sm:$0xff] %v1947
  %v1956 = vld [vmem:[%s6] sm:$0xff]
  %v1957 = vld [vmem:[%s6 + $0x8] sm:$0xf]
  %v1958 = vld [vmem:[%s6 + $0xc] sm:$0xff]
  %v1959 = vld [vmem:[%s6 + $0x14] sm:$0xf]
  %v1960 = vld [vmem:[%s6 + $0x18] sm:$0xff]
  %v1961 = vld [vmem:[%s6 + $0x20] sm:$0xf]
  %v1962 = vld [vmem:[%s6 + $0x24] sm:$0xff]
  %v1963 = vld [vmem:[%s6 + $0x2c] sm:$0xf]
  %v1964 = vld [vmem:[%s6 + $0x30] sm:$0xff]
  %v1965 = vld [vmem:[%s6 + $0x38] sm:$0xf]
  %v1966 = vld [vmem:[%s6 + $0x3c] sm:$0xff]
  %v1967 = vld [vmem:[%s6 + $0x44] sm:$0xf]
  %v1968 = vld [vmem:[%s6 + $0x48] sm:$0xff]
  %v1969 = vld [vmem:[%s6 + $0x50] sm:$0xf]
  %v1970 = vld [vmem:[%s6 + $0x54] sm:$0xff]
  %v1971 = vld [vmem:[%s6 + $0x5c] sm:$0xf]
  %v1972 = vld [vmem:[#allocation2] sm:$0xff]
  %v1973 = vld [vmem:[#allocation2 + $0x8] sm:$0xff]
  %v1974 = vld [vmem:[#allocation2 + $0x10] sm:$0xff]
  %v1975 = vld [vmem:[#allocation2 + $0x18] sm:$0xff]
  %v1976 = vld [vmem:[#allocation2 + $0x20] sm:$0xff]
  %v1977 = vld [vmem:[#allocation2 + $0x28] sm:$0xff]
  %v1978 = vld [vmem:[#allocation2 + $0x30] sm:$0xff]
  %v1979 = vld [vmem:[#allocation2 + $0x38] sm:$0xff]
  %v1980 = vld [vmem:[#allocation2 + $0x40] sm:$0xff]
  %v1981 = vld [vmem:[#allocation2 + $0x48] sm:$0xff]
  %v1982 = vld [vmem:[#allocation2 + $0x50] sm:$0xff]
  %v1983 = vld [vmem:[#allocation2 + $0x58] sm:$0xff]
  %v1984 = vld [vmem:[#allocation2 + $0x60] sm:$0xff]
  %v1985 = vld [vmem:[#allocation2 + $0x68] sm:$0xff]
  %v1986 = vld [vmem:[#allocation2 + $0x70] sm:$0xff]
  %v1987 = vld [vmem:[#allocation2 + $0x78] sm:$0xff]
  %v1988 = vld [vmem:[#allocation2 + $0x80] sm:$0xff]
  %v1989 = vld [vmem:[#allocation2 + $0x88] sm:$0xff]
  %v1990 = vld [vmem:[#allocation2 + $0x90] sm:$0xff]
  %v1991 = vld [vmem:[#allocation2 + $0x98] sm:$0xff]
  %v1992 = vld [vmem:[#allocation2 + $0xa0] sm:$0xff]
  %v1993 = vld [vmem:[#allocation2 + $0xa8] sm:$0xff]
  %v1994 = vld [vmem:[#allocation2 + $0xb0] sm:$0xff]
  %v1995 = vld [vmem:[#allocation2 + $0xb8] sm:$0xff]
  %v1996 = vld [vmem:[#allocation2 + $0xc0] sm:$0xff]
  %v1997 = vld [vmem:[#allocation2 + $0xc8] sm:$0xff]
  %v1998 = vld [vmem:[#allocation2 + $0xd0] sm:$0xff]
  %v1999 = vld [vmem:[#allocation2 + $0xd8] sm:$0xff]
  %v2000 = vld [vmem:[#allocation2 + $0xe0] sm:$0xff]
  %v2001 = vld [vmem:[#allocation2 + $0xe8] sm:$0xff]
  %v2002 = vld [vmem:[#allocation2 + $0xf0] sm:$0xff]
  %v2003 = vld [vmem:[#allocation2 + $0xf8] sm:$0xff]
  %v2004 = vld [vmem:[#allocation2 + $0x100] sm:$0xff]
  %v2005 = vld [vmem:[#allocation2 + $0x108] sm:$0xff]
  %v2006 = vld [vmem:[#allocation2 + $0x110] sm:$0xff]
  %v2007 = vld [vmem:[#allocation2 + $0x118] sm:$0xff]
  %v2008 = vld [vmem:[#allocation2 + $0x120] sm:$0xff]
  %v2009 = vld [vmem:[#allocation2 + $0x128] sm:$0xff]
  %v2010 = vld [vmem:[#allocation2 + $0x130] sm:$0xff]
  %v2011 = vld [vmem:[#allocation2 + $0x138] sm:$0xff]
  %v2012 = vld [vmem:[#allocation2 + $0x140] sm:$0xff]
  %v2013 = vld [vmem:[#allocation2 + $0x148] sm:$0xff]
  %v2014 = vld [vmem:[#allocation2 + $0x150] sm:$0xff]
  %v2015 = vld [vmem:[#allocation2 + $0x158] sm:$0xff]
  %v2016 = vld [vmem:[#allocation2 + $0x160] sm:$0xff]
  %v2017 = vld [vmem:[#allocation2 + $0x168] sm:$0xff]
  %v2018 = vld [vmem:[#allocation2 + $0x170] sm:$0xff]
  %v2019 = vld [vmem:[#allocation2 + $0x178] sm:$0xff]
  %v2020 = vld [vmem:[#allocation2 + $0x180] sm:$0xff]
  %v2021 = vld [vmem:[#allocation2 + $0x188] sm:$0xff]
  %v2022 = vld [vmem:[#allocation2 + $0x190] sm:$0xff]
  %v2023 = vld [vmem:[#allocation2 + $0x198] sm:$0xff]
  %v2024 = vld [vmem:[#allocation2 + $0x1a0] sm:$0xff]
  %v2025 = vld [vmem:[#allocation2 + $0x1a8] sm:$0xff]
  %v2026 = vld [vmem:[#allocation2 + $0x1b0] sm:$0xff]
  %v2027 = vld [vmem:[#allocation2 + $0x1b8] sm:$0xff]
  %v2028 = vld [vmem:[#allocation2 + $0x1c0] sm:$0xff]
  %v2029 = vld [vmem:[#allocation2 + $0x1c8] sm:$0xff]
  %v2030 = vld [vmem:[#allocation2 + $0x1d0] sm:$0xff]
  %v2031 = vld [vmem:[#allocation2 + $0x1d8] sm:$0xff]
  %v2032 = vld [vmem:[#allocation2 + $0x1e0] sm:$0xff]
  %v2033 = vld [vmem:[#allocation2 + $0x1e8] sm:$0xff]
  %v2034 = vld [vmem:[#allocation2 + $0x1f0] sm:$0xff]
  %v2035 = vld [vmem:[#allocation2 + $0x1f8] sm:$0xff]
  %v2036 = vld [vmem:[#allocation2 + $0x200] sm:$0xff]
  %v2037 = vld [vmem:[#allocation2 + $0x208] sm:$0xff]
  %v2038 = vld [vmem:[#allocation2 + $0x210] sm:$0xff]
  %v2039 = vld [vmem:[#allocation2 + $0x218] sm:$0xff]
  %v2040 = vld [vmem:[#allocation2 + $0x220] sm:$0xff]
  %v2041 = vld [vmem:[#allocation2 + $0x228] sm:$0xff]
  %v2042 = vld [vmem:[#allocation2 + $0x230] sm:$0xff]
  %v2043 = vld [vmem:[#allocation2 + $0x238] sm:$0xff]
  %v2044 = vld [vmem:[%s7] sm:$0xff]
  %v2045 = vld [vmem:[%s7 + $0x8] sm:$0xff]
  %v2046 = vld [vmem:[%s7 + $0x10] sm:$0xff]
  %v2047 = vld [vmem:[%s7 + $0x18] sm:$0xff]
  %v2048 = vld [vmem:[%s7 + $0x20] sm:$0xff]
  %v2049 = vld [vmem:[%s7 + $0x28] sm:$0xff]
  %v2050 = vld [vmem:[%s7 + $0x30] sm:$0xff]
  %v2051 = vld [vmem:[%s7 + $0x38] sm:$0xff]
  %2053 = vset.pattern.permute.xlu0 0
  %2054 = vperm.xlu0 %2053, %v2044
  %v2055 = vpop.permute.xlu0 %2054
  %2058 = vset.pattern.permute.xlu0 0
  %2059 = vperm.xlu0 %2058, %v2045
  %v2060 = vpop.permute.xlu0 %2059
  %2063 = vset.pattern.permute.xlu0 0
  %2064 = vperm.xlu0 %2063, %v2046
  %v2065 = vpop.permute.xlu0 %2064
  %2068 = vset.pattern.permute.xlu0 0
  %2069 = vperm.xlu0 %2068, %v2047
  %v2070 = vpop.permute.xlu0 %2069
  %2073 = vset.pattern.permute.xlu0 0
  %2074 = vperm.xlu0 %2073, %v2048
  %v2075 = vpop.permute.xlu0 %2074
  %2078 = vset.pattern.permute.xlu0 0
  %2079 = vperm.xlu0 %2078, %v2049
  %v2080 = vpop.permute.xlu0 %2079
  %2083 = vset.pattern.permute.xlu0 0
  %2084 = vperm.xlu0 %2083, %v2050
  %v2085 = vpop.permute.xlu0 %2084
  %2088 = vset.pattern.permute.xlu0 0
  %2089 = vperm.xlu0 %2088, %v2051
  %v2090 = vpop.permute.xlu0 %2089
  %v2108 = vunpack.c.l.b16 %v1956
  %v2109 = vunpack.c.h.b16 %v1956
  %v2110 = vunpack.c.l.b16 %v1957
  %v2111 = vunpack.c.l.b16 %v1958
  %v2112 = vunpack.c.h.b16 %v1958
  %v2113 = vunpack.c.l.b16 %v1959
  %v2114 = vunpack.c.l.b16 %v1960
  %v2115 = vunpack.c.h.b16 %v1960
  %v2116 = vunpack.c.l.b16 %v1961
  %v2117 = vunpack.c.l.b16 %v1962
  %v2118 = vunpack.c.h.b16 %v1962
  %v2119 = vunpack.c.l.b16 %v1963
  %v2120 = vunpack.c.l.b16 %v1964
  %v2121 = vunpack.c.h.b16 %v1964
  %v2122 = vunpack.c.l.b16 %v1965
  %v2123 = vunpack.c.l.b16 %v1966
  %v2124 = vunpack.c.h.b16 %v1966
  %v2125 = vunpack.c.l.b16 %v1967
  %v2126 = vunpack.c.l.b16 %v1968
  %v2127 = vunpack.c.h.b16 %v1968
  %v2128 = vunpack.c.l.b16 %v1969
  %v2129 = vunpack.c.l.b16 %v1970
  %v2130 = vunpack.c.h.b16 %v1970
  %v2131 = vunpack.c.l.b16 %v1971
  %v2132 = vpack.c.b16 %v2111, %v2108
  %v2133 = vpack.c.b16 %v2112, %v2109
  %v2134 = vpack.c.b16 %v2113, %v2110
  %v2135 = vpack.c.b16 %v2117, %v2114
  %v2136 = vpack.c.b16 %v2118, %v2115
  %v2137 = vpack.c.b16 %v2119, %v2116
  %v2138 = vpack.c.b16 %v2123, %v2120
  %v2139 = vpack.c.b16 %v2124, %v2121
  %v2140 = vpack.c.b16 %v2125, %v2122
  %v2141 = vpack.c.b16 %v2129, %v2126
  %v2142 = vpack.c.b16 %v2130, %v2127
  %v2143 = vpack.c.b16 %v2131, %v2128
  %vm2152 = vcmask 261120
  %v2154 = vsel %vm2152, %v2134, 0
  %v2157 = vsel %vm2152, %v2137, 0
  %v2160 = vsel %vm2152, %v2140, 0
  %v2163 = vsel %vm2152, %v2143, 0
  %2165 = vmatprep.subr.bf16.mxu0 %v1973
  %2166 = vmatpush1.bf16.msra.mxu0 %v1972
  %2167 = vmatprep.subr.bf16.mxu0 %v1977
  %2168 = vmatpush1.bf16.msra.mxu0 %v1976
  %2169 = vmatprep.subr.bf16.mxu0 %v1981
  %2170 = vmatpush1.bf16.msra.mxu0 %v1980
  %2171 = vmatprep.subr.bf16.mxu0 %v1985
  %2172 = vmatpush1.bf16.msra.mxu0 %v1984
  %2173 = vmatprep.subr.bf16.mxu0 %v1989
  %2174 = vmatpush1.bf16.msra.mxu0 %v1988
  %2175 = vmatprep.subr.bf16.mxu0 %v1993
  %2176 = vmatpush1.bf16.msra.mxu0 %v1992
  %2177 = vmatprep.subr.bf16.mxu0 %v1997
  %2178 = vmatpush1.bf16.msra.mxu0 %v1996
  %2179 = vmatprep.subr.bf16.mxu0 %v2001
  %2180 = vmatpush1.bf16.msra.mxu0 %v2000
  %2181 = vmatprep.subr.bf16.mxu0 %v2005
  %2182 = vmatpush1.bf16.msra.mxu0 %v2004
  %2183 = vmatprep.subr.bf16.mxu0 %v2009
  %2184 = vmatpush1.bf16.msra.mxu0 %v2008
  %2185 = vmatprep.subr.bf16.mxu0 %v2013
  %2186 = vmatpush1.bf16.msra.mxu0 %v2012
  %2187 = vmatprep.subr.bf16.mxu0 %v2017
  %2188 = vmatpush1.bf16.msra.mxu0 %v2016
  %2189 = vmatprep.subr.bf16.mxu0 %v2021
  %2190 = vmatpush1.bf16.msra.mxu0 %v2020
  %2191 = vmatprep.subr.bf16.mxu0 %v2025
  %2192 = vmatpush1.bf16.msra.mxu0 %v2024
  %2193 = vmatprep.subr.bf16.mxu0 %v2029
  %2194 = vmatpush1.bf16.msra.mxu0 %v2028
  %2195 = vmatprep.subr.bf16.mxu0 %v2033
  %2196 = vmatpush1.bf16.msra.mxu0 %v2032
  %2197 = vmatprep.mubr.bf16.mxu0 %v2133
  %2198 = vmatmul.mubr.bf16.gmra.mrb[0].mxu0 %v2132
  %v2199 = vpop.f32.mrb[0].mxu0
  %v2200 = vadd.f32 %v2055, %v2199
  %v2201 = vpop.f32.mrb[0].mxu0
  %v2202 = vadd.f32 %v2055, %v2201
  %v2203 = vpop.f32.mrb[0].mxu0
  %v2204 = vadd.f32 %v2060, %v2203
  %v2205 = vpop.f32.mrb[0].mxu0
  %v2206 = vadd.f32 %v2060, %v2205
  %2207 = vmatprep.mubr.bf16.mxu0 %v2136
  %2208 = vmatmul.mubr.bf16.gmra.mrb[0].mxu0 %v2135
  %v2209 = vpop.f32.mrb[0].mxu0
  %v2210 = vadd.f32 %v2065, %v2209
  %v2211 = vpop.f32.mrb[0].mxu0
  %v2212 = vadd.f32 %v2065, %v2211
  %v2213 = vpop.f32.mrb[0].mxu0
  %v2214 = vadd.f32 %v2070, %v2213
  %v2215 = vpop.f32.mrb[0].mxu0
  %v2216 = vadd.f32 %v2070, %v2215
  %2217 = vmatprep.mubr.bf16.mxu0 %v2139
  %2218 = vmatmul.mubr.bf16.gmra.mrb[0].mxu0 %v2138
  %v2219 = vpop.f32.mrb[0].mxu0
  %v2220 = vadd.f32 %v2075, %v2219
  %v2221 = vpop.f32.mrb[0].mxu0
  %v2222 = vadd.f32 %v2075, %v2221
  %v2223 = vpop.f32.mrb[0].mxu0
  %v2224 = vadd.f32 %v2080, %v2223
  %v2225 = vpop.f32.mrb[0].mxu0
  %v2226 = vadd.f32 %v2080, %v2225
  %2227 = vmatprep.mubr.bf16.mxu0 %v2142
  %2228 = vmatmul.mubr.bf16.gmra.mrb[0].mxu0 %v2141
  %v2229 = vpop.f32.mrb[0].mxu0
  %v2230 = vadd.f32 %v2085, %v2229
  %v2231 = vpop.f32.mrb[0].mxu0
  %v2232 = vadd.f32 %v2085, %v2231
  %v2233 = vpop.f32.mrb[0].mxu0
  %v2234 = vadd.f32 %v2090, %v2233
  %v2235 = vpop.f32.mrb[0].mxu0
  %v2236 = vadd.f32 %v2090, %v2235
  %2237 = vdwg.mxu0
  %2238 = vmatprep.subr.bf16.mxu0 %v2037
  %2239 = vmatpush1.bf16.msra.mxu0 %v2036
  %2240 = vmatprep.subr.bf16.mxu0 %v2041
  %2241 = vmatpush1.bf16.msra.mxu0 %v2040
  %2242 = vmatprep.subr.bf16.mxu0 0
  %2243 = vmatpush1.bf16.msra.mxu0 0
  %2244 = vmatprep.subr.bf16.mxu0 0
  %2245 = vmatpush1.bf16.msra.mxu0 0
  %2246 = vmatprep.subr.bf16.mxu0 0
  %2247 = vmatpush1.bf16.msra.mxu0 0
  %2248 = vmatprep.subr.bf16.mxu0 0
  %2249 = vmatpush1.bf16.msra.mxu0 0
  %2250 = vmatprep.subr.bf16.mxu0 0
  %2251 = vmatpush1.bf16.msra.mxu0 0
  %2252 = vmatprep.subr.bf16.mxu0 0
  %2253 = vmatpush1.bf16.msra.mxu0 0
  %2254 = vmatprep.subr.bf16.mxu0 0
  %2255 = vmatpush1.bf16.msra.mxu0 0
  %2256 = vmatprep.subr.bf16.mxu0 0
  %2257 = vmatpush1.bf16.msra.mxu0 0
  %2258 = vmatprep.subr.bf16.mxu0 0
  %2259 = vmatpush1.bf16.msra.mxu0 0
  %2260 = vmatprep.subr.bf16.mxu0 0
  %2261 = vmatpush1.bf16.msra.mxu0 0
  %2262 = vmatprep.subr.bf16.mxu0 0
  %2263 = vmatpush1.bf16.msra.mxu0 0
  %2264 = vmatprep.subr.bf16.mxu0 0
  %2265 = vmatpush1.bf16.msra.mxu0 0
  %2266 = vmatprep.subr.bf16.mxu0 0
  %2267 = vmatpush1.bf16.msra.mxu0 0
  %2268 = vmatprep.subr.bf16.mxu0 0
  %2269 = vmatpush1.bf16.msra.mxu0 0
  %2270 = vmatprep.mubr.bf16.mxu0 0
  %2271 = vmatmul.mubr.bf16.gmra.mrb[0].mxu0 %v2154
  %v2272 = vpop.f32.mrb[0].mxu0
  %v2273 = vadd.f32 %v2200, %v2272
  %v2274 = vpop.f32.mrb[0].mxu0
  %v2275 = vadd.f32 %v2202, %v2274
  %v2276 = vpop.f32.mrb[0].mxu0
  %v2277 = vadd.f32 %v2204, %v2276
  %v2278 = vpop.f32.mrb[0].mxu0
  %v2279 = vadd.f32 %v2206, %v2278
  %2280 = vmatprep.mubr.bf16.mxu0 0
  %2281 = vmatmul.mubr.bf16.gmra.mrb[0].mxu0 %v2157
  %v2282 = vpop.f32.mrb[0].mxu0
  %v2283 = vadd.f32 %v2210, %v2282
  %v2284 = vpop.f32.mrb[0].mxu0
  %v2285 = vadd.f32 %v2212, %v2284
  %v2286 = vpop.f32.mrb[0].mxu0
  %v2287 = vadd.f32 %v2214, %v2286
  %v2288 = vpop.f32.mrb[0].mxu0
  %v2289 = vadd.f32 %v2216, %v2288
  %2290 = vmatprep.mubr.bf16.mxu0 0
  %2291 = vmatmul.mubr.bf16.gmra.mrb[0].mxu0 %v2160
  %v2292 = vpop.f32.mrb[0].mxu0
  %v2293 = vadd.f32 %v2220, %v2292
  %v2294 = vpop.f32.mrb[0].mxu0
  %v2295 = vadd.f32 %v2222, %v2294
  %v2296 = vpop.f32.mrb[0].mxu0
  %v2297 = vadd.f32 %v2224, %v2296
  %v2298 = vpop.f32.mrb[0].mxu0
  %v2299 = vadd.f32 %v2226, %v2298
  %2300 = vmatprep.mubr.bf16.mxu0 0
  %2301 = vmatmul.mubr.bf16.gmra.mrb[0].mxu0 %v2163
  %v2302 = vpop.f32.mrb[0].mxu0
  %v2303 = vadd.f32 %v2230, %v2302
  %v2304 = vpop.f32.mrb[0].mxu0
  %v2305 = vadd.f32 %v2232, %v2304
  %v2306 = vpop.f32.mrb[0].mxu0
  %v2307 = vadd.f32 %v2234, %v2306
  %v2308 = vpop.f32.mrb[0].mxu0
  %v2309 = vadd.f32 %v2236, %v2308
  %2310 = vdwg.mxu0
  %2311 = vmatprep.subr.bf16.mxu0 %v1975
  %2312 = vmatpush1.bf16.msra.mxu0 %v1974
  %2313 = vmatprep.subr.bf16.mxu0 %v1979
  %2314 = vmatpush1.bf16.msra.mxu0 %v1978
  %2315 = vmatprep.subr.bf16.mxu0 %v1983
  %2316 = vmatpush1.bf16.msra.mxu0 %v1982
  %2317 = vmatprep.subr.bf16.mxu0 %v1987
  %2318 = vmatpush1.bf16.msra.mxu0 %v1986
  %2319 = vmatprep.subr.bf16.mxu0 %v1991
  %2320 = vmatpush1.bf16.msra.mxu0 %v1990
  %2321 = vmatprep.subr.bf16.mxu0 %v1995
  %2322 = vmatpush1.bf16.msra.mxu0 %v1994
  %2323 = vmatprep.subr.bf16.mxu0 %v1999
  %2324 = vmatpush1.bf16.msra.mxu0 %v1998
  %2325 = vmatprep.subr.bf16.mxu0 %v2003
  %2326 = vmatpush1.bf16.msra.mxu0 %v2002
  %2327 = vmatprep.subr.bf16.mxu0 %v2007
  %2328 = vmatpush1.bf16.msra.mxu0 %v2006
  %2329 = vmatprep.subr.bf16.mxu0 %v2011
  %2330 = vmatpush1.bf16.msra.mxu0 %v2010
  %2331 = vmatprep.subr.bf16.mxu0 %v2015
  %2332 = vmatpush1.bf16.msra.mxu0 %v2014
  %2333 = vmatprep.subr.bf16.mxu0 %v2019
  %2334 = vmatpush1.bf16.msra.mxu0 %v2018
  %2335 = vmatprep.subr.bf16.mxu0 %v2023
  %2336 = vmatpush1.bf16.msra.mxu0 %v2022
  %2337 = vmatprep.subr.bf16.mxu0 %v2027
  %2338 = vmatpush1.bf16.msra.mxu0 %v2026
  %2339 = vmatprep.subr.bf16.mxu0 %v2031
  %2340 = vmatpush1.bf16.msra.mxu0 %v2030
  %2341 = vmatprep.subr.bf16.mxu0 %v2035
  %2342 = vmatpush1.bf16.msra.mxu0 %v2034
  %2343 = vmatprep.mubr.bf16.mxu0 %v2133
  %2344 = vmatmul.mubr.bf16.gmra.mrb[0].mxu0 %v2132
  %v2345 = vpop.f32.mrb[0].mxu0
  %v2346 = vadd.f32 %v2055, %v2345
  %v2347 = vpop.f32.mrb[0].mxu0
  %v2348 = vadd.f32 %v2055, %v2347
  %v2349 = vpop.f32.mrb[0].mxu0
  %v2350 = vadd.f32 %v2060, %v2349
  %v2351 = vpop.f32.mrb[0].mxu0
  %v2352 = vadd.f32 %v2060, %v2351
  %2353 = vmatprep.mubr.bf16.mxu0 %v2136
  %2354 = vmatmul.mubr.bf16.gmra.mrb[0].mxu0 %v2135
  %v2355 = vpop.f32.mrb[0].mxu0
  %v2356 = vadd.f32 %v2065, %v2355
  %v2357 = vpop.f32.mrb[0].mxu0
  %v2358 = vadd.f32 %v2065, %v2357
  %v2359 = vpop.f32.mrb[0].mxu0
  %v2360 = vadd.f32 %v2070, %v2359
  %v2361 = vpop.f32.mrb[0].mxu0
  %v2362 = vadd.f32 %v2070, %v2361
  %2363 = vmatprep.mubr.bf16.mxu0 %v2139
  %2364 = vmatmul.mubr.bf16.gmra.mrb[0].mxu0 %v2138
  %v2365 = vpop.f32.mrb[0].mxu0
  %v2366 = vadd.f32 %v2075, %v2365
  %v2367 = vpop.f32.mrb[0].mxu0
  %v2368 = vadd.f32 %v2075, %v2367
  %v2369 = vpop.f32.mrb[0].mxu0
  %v2370 = vadd.f32 %v2080, %v2369
  %v2371 = vpop.f32.mrb[0].mxu0
  %v2372 = vadd.f32 %v2080, %v2371
  %2373 = vmatprep.mubr.bf16.mxu0 %v2142
  %2374 = vmatmul.mubr.bf16.gmra.mrb[0].mxu0 %v2141
  %v2375 = vpop.f32.mrb[0].mxu0
  %v2376 = vadd.f32 %v2085, %v2375
  %v2377 = vpop.f32.mrb[0].mxu0
  %v2378 = vadd.f32 %v2085, %v2377
  %v2379 = vpop.f32.mrb[0].mxu0
  %v2380 = vadd.f32 %v2090, %v2379
  %v2381 = vpop.f32.mrb[0].mxu0
  %v2382 = vadd.f32 %v2090, %v2381
  %2383 = vdwg.mxu0
  %2384 = vmatprep.subr.bf16.mxu0 %v2039
  %2385 = vmatpush1.bf16.msra.mxu0 %v2038
  %2386 = vmatprep.subr.bf16.mxu0 %v2043
  %2387 = vmatpush1.bf16.msra.mxu0 %v2042
  %2388 = vmatprep.subr.bf16.mxu0 0
  %2389 = vmatpush1.bf16.msra.mxu0 0
  %2390 = vmatprep.subr.bf16.mxu0 0
  %2391 = vmatpush1.bf16.msra.mxu0 0
  %2392 = vmatprep.subr.bf16.mxu0 0
  %2393 = vmatpush1.bf16.msra.mxu0 0
  %2394 = vmatprep.subr.bf16.mxu0 0
  %2395 = vmatpush1.bf16.msra.mxu0 0
  %2396 = vmatprep.subr.bf16.mxu0 0
  %2397 = vmatpush1.bf16.msra.mxu0 0
  %2398 = vmatprep.subr.bf16.mxu0 0
  %2399 = vmatpush1.bf16.msra.mxu0 0
  %2400 = vmatprep.subr.bf16.mxu0 0
  %2401 = vmatpush1.bf16.msra.mxu0 0
  %2402 = vmatprep.subr.bf16.mxu0 0
  %2403 = vmatpush1.bf16.msra.mxu0 0
  %2404 = vmatprep.subr.bf16.mxu0 0
  %2405 = vmatpush1.bf16.msra.mxu0 0
  %2406 = vmatprep.subr.bf16.mxu0 0
  %2407 = vmatpush1.bf16.msra.mxu0 0
  %2408 = vmatprep.subr.bf16.mxu0 0
  %2409 = vmatpush1.bf16.msra.mxu0 0
  %2410 = vmatprep.subr.bf16.mxu0 0
  %2411 = vmatpush1.bf16.msra.mxu0 0
  %2412 = vmatprep.subr.bf16.mxu0 0
  %2413 = vmatpush1.bf16.msra.mxu0 0
  %2414 = vmatprep.subr.bf16.mxu0 0
  %2415 = vmatpush1.bf16.msra.mxu0 0
  %2416 = vmatprep.mubr.bf16.mxu0 0
  %2417 = vmatmul.mubr.bf16.gmra.mrb[0].mxu0 %v2154
  %v2418 = vpop.f32.mrb[0].mxu0
  %v2419 = vadd.f32 %v2346, %v2418
  %v2420 = vpop.f32.mrb[0].mxu0
  %v2421 = vadd.f32 %v2348, %v2420
  %v2422 = vpop.f32.mrb[0].mxu0
  %v2423 = vadd.f32 %v2350, %v2422
  %v2424 = vpop.f32.mrb[0].mxu0
  %v2425 = vadd.f32 %v2352, %v2424
  %2426 = vmatprep.mubr.bf16.mxu0 0
  %2427 = vmatmul.mubr.bf16.gmra.mrb[0].mxu0 %v2157
  %v2428 = vpop.f32.mrb[0].mxu0
  %v2429 = vadd.f32 %v2356, %v2428
  %v2430 = vpop.f32.mrb[0].mxu0
  %v2431 = vadd.f32 %v2358, %v2430
  %v2432 = vpop.f32.mrb[0].mxu0
  %v2433 = vadd.f32 %v2360, %v2432
  %v2434 = vpop.f32.mrb[0].mxu0
  %v2435 = vadd.f32 %v2362, %v2434
  %2436 = vmatprep.mubr.bf16.mxu0 0
  %2437 = vmatmul.mubr.bf16.gmra.mrb[0].mxu0 %v2160
  %v2438 = vpop.f32.mrb[0].mxu0
  %v2439 = vadd.f32 %v2366, %v2438
  %v2440 = vpop.f32.mrb[0].mxu0
  %v2441 = vadd.f32 %v2368, %v2440
  %v2442 = vpop.f32.mrb[0].mxu0
  %v2443 = vadd.f32 %v2370, %v2442
  %v2444 = vpop.f32.mrb[0].mxu0
  %v2445 = vadd.f32 %v2372, %v2444
  %2446 = vmatprep.mubr.bf16.mxu0 0
  %2447 = vmatmul.mubr.bf16.gmra.mrb[0].mxu0 %v2163
  %v2448 = vpop.f32.mrb[0].mxu0
  %v2449 = vadd.f32 %v2376, %v2448
  %v2450 = vpop.f32.mrb[0].mxu0
  %v2451 = vadd.f32 %v2378, %v2450
  %v2452 = vpop.f32.mrb[0].mxu0
  %v2453 = vadd.f32 %v2380, %v2452
  %v2454 = vpop.f32.mrb[0].mxu0
  %v2455 = vadd.f32 %v2382, %v2454
  %2456 = vdwg.mxu0
  %v2457 = vmax.f32 %v2273, 0.0
  %v2458 = vmax.f32 %v2275, 0.0
  %v2459 = vmax.f32 %v2419, 0.0
  %v2460 = vmax.f32 %v2421, 0.0
  %v2461 = vmax.f32 %v2277, 0.0
  %v2462 = vmax.f32 %v2279, 0.0
  %v2463 = vmax.f32 %v2423, 0.0
  %v2464 = vmax.f32 %v2425, 0.0
  %v2465 = vmax.f32 %v2283, 0.0
  %v2466 = vmax.f32 %v2285, 0.0
  %v2467 = vmax.f32 %v2429, 0.0
  %v2468 = vmax.f32 %v2431, 0.0
  %v2469 = vmax.f32 %v2287, 0.0
  %v2470 = vmax.f32 %v2289, 0.0
  %v2471 = vmax.f32 %v2433, 0.0
  %v2472 = vmax.f32 %v2435, 0.0
  %v2473 = vmax.f32 %v2293, 0.0
  %v2474 = vmax.f32 %v2295, 0.0
  %v2475 = vmax.f32 %v2439, 0.0
  %v2476 = vmax.f32 %v2441, 0.0
  %v2477 = vmax.f32 %v2297, 0.0
  %v2478 = vmax.f32 %v2299, 0.0
  %v2479 = vmax.f32 %v2443, 0.0
  %v2480 = vmax.f32 %v2445, 0.0
  %v2481 = vmax.f32 %v2303, 0.0
  %v2482 = vmax.f32 %v2305, 0.0
  %v2483 = vmax.f32 %v2449, 0.0
  %v2484 = vmax.f32 %v2451, 0.0
  %v2485 = vmax.f32 %v2307, 0.0
  %v2486 = vmax.f32 %v2309, 0.0
  %v2487 = vmax.f32 %v2453, 0.0
  %v2488 = vmax.f32 %v2455, 0.0
  %2489 = vrot.lane.b32.xlu0 %v2457, 17
  %v2490 = vpop.permute.xlu0 %2489
  %2491 = vrot.lane.b32.xlu0 %v2461, 17
  %v2492 = vpop.permute.xlu0 %2491
  %2493 = vrot.lane.b32.xlu0 %v2465, 17
  %v2494 = vpop.permute.xlu0 %2493
  %2495 = vrot.lane.b32.xlu0 %v2469, 17
  %v2496 = vpop.permute.xlu0 %2495
  %2497 = vrot.lane.b32.xlu0 %v2473, 17
  %v2498 = vpop.permute.xlu0 %2497
  %2499 = vrot.lane.b32.xlu0 %v2477, 17
  %v2500 = vpop.permute.xlu0 %2499
  %2501 = vrot.lane.b32.xlu0 %v2481, 17
  %v2502 = vpop.permute.xlu0 %2501
  %2503 = vrot.lane.b32.xlu0 %v2485, 17
  %v2504 = vpop.permute.xlu0 %2503
  %2505 = vrot.lane.b32.xlu0 %v2458, 17
  %v2506 = vpop.permute.xlu0 %2505
  %2507 = vrot.lane.b32.xlu0 %v2462, 17
  %v2508 = vpop.permute.xlu0 %2507
  %2509 = vrot.lane.b32.xlu0 %v2466, 17
  %v2510 = vpop.permute.xlu0 %2509
  %2511 = vrot.lane.b32.xlu0 %v2470, 17
  %v2512 = vpop.permute.xlu0 %2511
  %2513 = vrot.lane.b32.xlu0 %v2474, 17
  %v2514 = vpop.permute.xlu0 %2513
  %2515 = vrot.lane.b32.xlu0 %v2478, 17
  %v2516 = vpop.permute.xlu0 %2515
  %2517 = vrot.lane.b32.xlu0 %v2482, 17
  %v2518 = vpop.permute.xlu0 %2517
  %2519 = vrot.lane.b32.xlu0 %v2486, 17
  %v2520 = vpop.permute.xlu0 %2519
  %2521 = vrot.lane.b32.xlu0 %v2459, 17
  %v2522 = vpop.permute.xlu0 %2521
  %2523 = vrot.lane.b32.xlu0 %v2463, 17
  %v2524 = vpop.permute.xlu0 %2523
  %2525 = vrot.lane.b32.xlu0 %v2467, 17
  %v2526 = vpop.permute.xlu0 %2525
  %2527 = vrot.lane.b32.xlu0 %v2471, 17
  %v2528 = vpop.permute.xlu0 %2527
  %2529 = vrot.lane.b32.xlu0 %v2475, 17
  %v2530 = vpop.permute.xlu0 %2529
  %2531 = vrot.lane.b32.xlu0 %v2479, 17
  %v2532 = vpop.permute.xlu0 %2531
  %2533 = vrot.lane.b32.xlu0 %v2483, 17
  %v2534 = vpop.permute.xlu0 %2533
  %2535 = vrot.lane.b32.xlu0 %v2487, 17
  %v2536 = vpop.permute.xlu0 %2535
  %2537 = vrot.lane.b32.xlu0 %v2460, 17
  %v2538 = vpop.permute.xlu0 %2537
  %2539 = vrot.lane.b32.xlu0 %v2464, 17
  %v2540 = vpop.permute.xlu0 %2539
  %2541 = vrot.lane.b32.xlu0 %v2468, 17
  %v2542 = vpop.permute.xlu0 %2541
  %2543 = vrot.lane.b32.xlu0 %v2472, 17
  %v2544 = vpop.permute.xlu0 %2543
  %2545 = vrot.lane.b32.xlu0 %v2476, 17
  %v2546 = vpop.permute.xlu0 %2545
  %2547 = vrot.lane.b32.xlu0 %v2480, 17
  %v2548 = vpop.permute.xlu0 %2547
  %2549 = vrot.lane.b32.xlu0 %v2484, 17
  %v2550 = vpop.permute.xlu0 %2549
  %2551 = vrot.lane.b32.xlu0 %v2488, 17
  %v2552 = vpop.permute.xlu0 %2551
  %v2553 = vsel %vm99, %v2522, %v2538
  %v2554 = vsel %vm99, %v2524, %v2540
  %v2555 = vsel %vm99, %v2526, %v2542
  %v2556 = vsel %vm99, %v2528, %v2544
  %v2557 = vsel %vm99, %v2530, %v2546
  %v2558 = vsel %vm99, %v2532, %v2548
  %v2559 = vsel %vm99, %v2534, %v2550
  %v2560 = vsel %vm99, %v2536, %v2552
  %v2561 = vsel %vm99, %v2506, %v2522
  %v2562 = vsel %vm99, %v2508, %v2524
  %v2563 = vsel %vm99, %v2510, %v2526
  %v2564 = vsel %vm99, %v2512, %v2528
  %v2565 = vsel %vm99, %v2514, %v2530
  %v2566 = vsel %vm99, %v2516, %v2532
  %v2567 = vsel %vm99, %v2518, %v2534
  %v2568 = vsel %vm99, %v2520, %v2536
  %v2569 = vsel %vm99, %v2490, %v2506
  %v2570 = vsel %vm99, %v2492, %v2508
  %v2571 = vsel %vm99, %v2494, %v2510
  %v2572 = vsel %vm99, %v2496, %v2512
  %v2573 = vsel %vm99, %v2498, %v2514
  %v2574 = vsel %vm99, %v2500, %v2516
  %v2575 = vsel %vm99, %v2502, %v2518
  %v2576 = vsel %vm99, %v2504, %v2520
  %v2577 = vsel %vm99, %v2538, %v2490
  %v2578 = vsel %vm99, %v2540, %v2492
  %v2579 = vsel %vm99, %v2542, %v2494
  %v2580 = vsel %vm99, %v2544, %v2496
  %v2581 = vsel %vm99, %v2546, %v2498
  %v2582 = vsel %vm99, %v2548, %v2500
  %v2583 = vsel %vm99, %v2550, %v2502
  %v2584 = vsel %vm99, %v2552, %v2504
  %v2585 = vmul.f32 %v2577, %v108
  %v2586 = vmul.f32 %v2569, %v112
  %v2587 = vmul.f32 %v2561, %v116
  %v2588 = vmul.f32 %v2553, %v120
  %v2589 = vmul.f32 %v2578, %v108
  %v2590 = vmul.f32 %v2570, %v112
  %v2591 = vmul.f32 %v2562, %v116
  %v2592 = vmul.f32 %v2554, %v120
  %v2593 = vmul.f32 %v2579, %v108
  %v2594 = vmul.f32 %v2571, %v112
  %v2595 = vmul.f32 %v2563, %v116
  %v2596 = vmul.f32 %v2555, %v120
  %v2597 = vmul.f32 %v2580, %v108
  %v2598 = vmul.f32 %v2572, %v112
  %v2599 = vmul.f32 %v2564, %v116
  %v2600 = vmul.f32 %v2556, %v120
  %v2601 = vmul.f32 %v2581, %v108
  %v2602 = vmul.f32 %v2573, %v112
  %v2603 = vmul.f32 %v2565, %v116
  %v2604 = vmul.f32 %v2557, %v120
  %v2605 = vmul.f32 %v2582, %v108
  %v2606 = vmul.f32 %v2574, %v112
  %v2607 = vmul.f32 %v2566, %v116
  %v2608 = vmul.f32 %v2558, %v120
  %v2609 = vmul.f32 %v2583, %v108
  %v2610 = vmul.f32 %v2575, %v112
  %v2611 = vmul.f32 %v2567, %v116
  %v2612 = vmul.f32 %v2559, %v120
  %v2613 = vmul.f32 %v2584, %v108
  %v2614 = vmul.f32 %v2576, %v112
  %v2615 = vmul.f32 %v2568, %v116
  %v2616 = vmul.f32 %v2560, %v120
  %v2617 = vpack.c.bf16 %v2589, %v2585
  %v2618 = vpack.c.bf16 %v2590, %v2586
  %v2619 = vpack.c.bf16 %v2591, %v2587
  %v2620 = vpack.c.bf16 %v2592, %v2588
  %v2621 = vpack.c.bf16 %v2597, %v2593
  %v2622 = vpack.c.bf16 %v2598, %v2594
  %v2623 = vpack.c.bf16 %v2599, %v2595
  %v2624 = vpack.c.bf16 %v2600, %v2596
  %v2625 = vpack.c.bf16 %v2605, %v2601
  %v2626 = vpack.c.bf16 %v2606, %v2602
  %v2627 = vpack.c.bf16 %v2607, %v2603
  %v2628 = vpack.c.bf16 %v2608, %v2604
  %v2629 = vpack.c.bf16 %v2613, %v2609
  %v2630 = vpack.c.bf16 %v2614, %v2610
  %v2631 = vpack.c.bf16 %v2615, %v2611
  %v2632 = vpack.c.bf16 %v2616, %v2612
  %2633 = vst [vmem:[#allocation2] sm:$0xff] %v2617
  %2634 = vst [vmem:[#allocation2 + $0x8] sm:$0xff] %v2618
  %2635 = vst [vmem:[#allocation2 + $0x10] sm:$0xff] %v2619
  %2636 = vst [vmem:[#allocation2 + $0x18] sm:$0xff] %v2620
  %2637 = vst [vmem:[#allocation2 + $0x20] sm:$0xff] %v2621
  %2638 = vst [vmem:[#allocation2 + $0x28] sm:$0xff] %v2622
  %2639 = vst [vmem:[#allocation2 + $0x30] sm:$0xff] %v2623
  %2640 = vst [vmem:[#allocation2 + $0x38] sm:$0xff] %v2624
  %2641 = vst [vmem:[#allocation2 + $0x40] sm:$0xff] %v2625
  %2642 = vst [vmem:[#allocation2 + $0x48] sm:$0xff] %v2626
  %2643 = vst [vmem:[#allocation2 + $0x50] sm:$0xff] %v2627
  %2644 = vst [vmem:[#allocation2 + $0x58] sm:$0xff] %v2628
  %2645 = vst [vmem:[#allocation2 + $0x60] sm:$0xff] %v2629
  %2646 = vst [vmem:[#allocation2 + $0x68] sm:$0xff] %v2630
  %2647 = vst [vmem:[#allocation2 + $0x70] sm:$0xff] %v2631
  %2648 = vst [vmem:[#allocation2 + $0x78] sm:$0xff] %v2632
  %2649 = vrot.lane.b32.xlu0 %v2457, 16
  %v2650 = vpop.permute.xlu0 %2649
  %2651 = vrot.lane.b32.xlu0 %v2461, 16
  %v2652 = vpop.permute.xlu0 %2651
  %2653 = vrot.lane.b32.xlu0 %v2465, 16
  %v2654 = vpop.permute.xlu0 %2653
  %2655 = vrot.lane.b32.xlu0 %v2469, 16
  %v2656 = vpop.permute.xlu0 %2655
  %2657 = vrot.lane.b32.xlu0 %v2473, 16
  %v2658 = vpop.permute.xlu0 %2657
  %2659 = vrot.lane.b32.xlu0 %v2477, 16
  %v2660 = vpop.permute.xlu0 %2659
  %2661 = vrot.lane.b32.xlu0 %v2481, 16
  %v2662 = vpop.permute.xlu0 %2661
  %2663 = vrot.lane.b32.xlu0 %v2485, 16
  %v2664 = vpop.permute.xlu0 %2663
  %2665 = vrot.lane.b32.xlu0 %v2458, 16
  %v2666 = vpop.permute.xlu0 %2665
  %2667 = vrot.lane.b32.xlu0 %v2462, 16
  %v2668 = vpop.permute.xlu0 %2667
  %2669 = vrot.lane.b32.xlu0 %v2466, 16
  %v2670 = vpop.permute.xlu0 %2669
  %2671 = vrot.lane.b32.xlu0 %v2470, 16
  %v2672 = vpop.permute.xlu0 %2671
  %2673 = vrot.lane.b32.xlu0 %v2474, 16
  %v2674 = vpop.permute.xlu0 %2673
  %2675 = vrot.lane.b32.xlu0 %v2478, 16
  %v2676 = vpop.permute.xlu0 %2675
  %2677 = vrot.lane.b32.xlu0 %v2482, 16
  %v2678 = vpop.permute.xlu0 %2677
  %2679 = vrot.lane.b32.xlu0 %v2486, 16
  %v2680 = vpop.permute.xlu0 %2679
  %2681 = vrot.lane.b32.xlu0 %v2459, 16
  %v2682 = vpop.permute.xlu0 %2681
  %2683 = vrot.lane.b32.xlu0 %v2463, 16
  %v2684 = vpop.permute.xlu0 %2683
  %2685 = vrot.lane.b32.xlu0 %v2467, 16
  %v2686 = vpop.permute.xlu0 %2685
  %2687 = vrot.lane.b32.xlu0 %v2471, 16
  %v2688 = vpop.permute.xlu0 %2687
  %2689 = vrot.lane.b32.xlu0 %v2475, 16
  %v2690 = vpop.permute.xlu0 %2689
  %2691 = vrot.lane.b32.xlu0 %v2479, 16
  %v2692 = vpop.permute.xlu0 %2691
  %2693 = vrot.lane.b32.xlu0 %v2483, 16
  %v2694 = vpop.permute.xlu0 %2693
  %2695 = vrot.lane.b32.xlu0 %v2487, 16
  %v2696 = vpop.permute.xlu0 %2695
  %2697 = vrot.lane.b32.xlu0 %v2460, 16
  %v2698 = vpop.permute.xlu0 %2697
  %2699 = vrot.lane.b32.xlu0 %v2464, 16
  %v2700 = vpop.permute.xlu0 %2699
  %2701 = vrot.lane.b32.xlu0 %v2468, 16
  %v2702 = vpop.permute.xlu0 %2701
  %2703 = vrot.lane.b32.xlu0 %v2472, 16
  %v2704 = vpop.permute.xlu0 %2703
  %2705 = vrot.lane.b32.xlu0 %v2476, 16
  %v2706 = vpop.permute.xlu0 %2705
  %2707 = vrot.lane.b32.xlu0 %v2480, 16
  %v2708 = vpop.permute.xlu0 %2707
  %2709 = vrot.lane.b32.xlu0 %v2484, 16
  %v2710 = vpop.permute.xlu0 %2709
  %2711 = vrot.lane.b32.xlu0 %v2488, 16
  %v2712 = vpop.permute.xlu0 %2711
  %v2713 = vsel %vm171, %v2682, %v2698
  %v2714 = vsel %vm171, %v2684, %v2700
  %v2715 = vsel %vm171, %v2686, %v2702
  %v2716 = vsel %vm171, %v2688, %v2704
  %v2717 = vsel %vm171, %v2690, %v2706
  %v2718 = vsel %vm171, %v2692, %v2708
  %v2719 = vsel %vm171, %v2694, %v2710
  %v2720 = vsel %vm171, %v2696, %v2712
  %v2721 = vsel %vm171, %v2666, %v2682
  %v2722 = vsel %vm171, %v2668, %v2684
  %v2723 = vsel %vm171, %v2670, %v2686
  %v2724 = vsel %vm171, %v2672, %v2688
  %v2725 = vsel %vm171, %v2674, %v2690
  %v2726 = vsel %vm171, %v2676, %v2692
  %v2727 = vsel %vm171, %v2678, %v2694
  %v2728 = vsel %vm171, %v2680, %v2696
  %v2729 = vsel %vm171, %v2650, %v2666
  %v2730 = vsel %vm171, %v2652, %v2668
  %v2731 = vsel %vm171, %v2654, %v2670
  %v2732 = vsel %vm171, %v2656, %v2672
  %v2733 = vsel %vm171, %v2658, %v2674
  %v2734 = vsel %vm171, %v2660, %v2676
  %v2735 = vsel %vm171, %v2662, %v2678
  %v2736 = vsel %vm171, %v2664, %v2680
  %v2737 = vsel %vm171, %v2698, %v2650
  %v2738 = vsel %vm171, %v2700, %v2652
  %v2739 = vsel %vm171, %v2702, %v2654
  %v2740 = vsel %vm171, %v2704, %v2656
  %v2741 = vsel %vm171, %v2706, %v2658
  %v2742 = vsel %vm171, %v2708, %v2660
  %v2743 = vsel %vm171, %v2710, %v2662
  %v2744 = vsel %vm171, %v2712, %v2664
  %v2745 = vmul.f32 %v2737, %v180
  %v2746 = vmul.f32 %v2729, %v184
  %v2747 = vmul.f32 %v2721, %v188
  %v2748 = vmul.f32 %v2713, %v192
  %v2749 = vmul.f32 %v2738, %v180
  %v2750 = vmul.f32 %v2730, %v184
  %v2751 = vmul.f32 %v2722, %v188
  %v2752 = vmul.f32 %v2714, %v192
  %v2753 = vmul.f32 %v2739, %v180
  %v2754 = vmul.f32 %v2731, %v184
  %v2755 = vmul.f32 %v2723, %v188
  %v2756 = vmul.f32 %v2715, %v192
  %v2757 = vmul.f32 %v2740, %v180
  %v2758 = vmul.f32 %v2732, %v184
  %v2759 = vmul.f32 %v2724, %v188
  %v2760 = vmul.f32 %v2716, %v192
  %v2761 = vmul.f32 %v2741, %v180
  %v2762 = vmul.f32 %v2733, %v184
  %v2763 = vmul.f32 %v2725, %v188
  %v2764 = vmul.f32 %v2717, %v192
  %v2765 = vmul.f32 %v2742, %v180
  %v2766 = vmul.f32 %v2734, %v184
  %v2767 = vmul.f32 %v2726, %v188
  %v2768 = vmul.f32 %v2718, %v192
  %v2769 = vmul.f32 %v2743, %v180
  %v2770 = vmul.f32 %v2735, %v184
  %v2771 = vmul.f32 %v2727, %v188
  %v2772 = vmul.f32 %v2719, %v192
  %v2773 = vmul.f32 %v2744, %v180
  %v2774 = vmul.f32 %v2736, %v184
  %v2775 = vmul.f32 %v2728, %v188
  %v2776 = vmul.f32 %v2720, %v192
  %v2777 = vpack.c.bf16 %v2749, %v2745
  %v2778 = vpack.c.bf16 %v2750, %v2746
  %v2779 = vpack.c.bf16 %v2751, %v2747
  %v2780 = vpack.c.bf16 %v2752, %v2748
  %v2781 = vpack.c.bf16 %v2757, %v2753
  %v2782 = vpack.c.bf16 %v2758, %v2754
  %v2783 = vpack.c.bf16 %v2759, %v2755
  %v2784 = vpack.c.bf16 %v2760, %v2756
  %v2785 = vpack.c.bf16 %v2765, %v2761
  %v2786 = vpack.c.bf16 %v2766, %v2762
  %v2787 = vpack.c.bf16 %v2767, %v2763
  %v2788 = vpack.c.bf16 %v2768, %v2764
  %v2789 = vpack.c.bf16 %v2773, %v2769
  %v2790 = vpack.c.bf16 %v2774, %v2770
  %v2791 = vpack.c.bf16 %v2775, %v2771
  %v2792 = vpack.c.bf16 %v2776, %v2772
  %2793 = vst [vmem:[#allocation2 + $0x80] sm:$0xff] %v2777
  %2794 = vst [vmem:[#allocation2 + $0x88] sm:$0xff] %v2778
  %2795 = vst [vmem:[#allocation2 + $0x90] sm:$0xff] %v2779
  %2796 = vst [vmem:[#allocation2 + $0x98] sm:$0xff] %v2780
  %2797 = vst [vmem:[#allocation2 + $0xa0] sm:$0xff] %v2781
  %2798 = vst [vmem:[#allocation2 + $0xa8] sm:$0xff] %v2782
  %2799 = vst [vmem:[#allocation2 + $0xb0] sm:$0xff] %v2783
  %2800 = vst [vmem:[#allocation2 + $0xb8] sm:$0xff] %v2784
  %2801 = vst [vmem:[#allocation2 + $0xc0] sm:$0xff] %v2785
  %2802 = vst [vmem:[#allocation2 + $0xc8] sm:$0xff] %v2786
  %2803 = vst [vmem:[#allocation2 + $0xd0] sm:$0xff] %v2787
  %2804 = vst [vmem:[#allocation2 + $0xd8] sm:$0xff] %v2788
  %2805 = vst [vmem:[#allocation2 + $0xe0] sm:$0xff] %v2789
  %2806 = vst [vmem:[#allocation2 + $0xe8] sm:$0xff] %v2790
  %2807 = vst [vmem:[#allocation2 + $0xf0] sm:$0xff] %v2791
  %2808 = vst [vmem:[#allocation2 + $0xf8] sm:$0xff] %v2792
  %2809 = vrot.lane.b32.xlu0 %v2457, 15
  %v2810 = vpop.permute.xlu0 %2809
  %2811 = vrot.lane.b32.xlu0 %v2461, 15
  %v2812 = vpop.permute.xlu0 %2811
  %2813 = vrot.lane.b32.xlu0 %v2465, 15
  %v2814 = vpop.permute.xlu0 %2813
  %2815 = vrot.lane.b32.xlu0 %v2469, 15
  %v2816 = vpop.permute.xlu0 %2815
  %2817 = vrot.lane.b32.xlu0 %v2473, 15
  %v2818 = vpop.permute.xlu0 %2817
  %2819 = vrot.lane.b32.xlu0 %v2477, 15
  %v2820 = vpop.permute.xlu0 %2819
  %2821 = vrot.lane.b32.xlu0 %v2481, 15
  %v2822 = vpop.permute.xlu0 %2821
  %2823 = vrot.lane.b32.xlu0 %v2485, 15
  %v2824 = vpop.permute.xlu0 %2823
  %2825 = vrot.lane.b32.xlu0 %v2458, 15
  %v2826 = vpop.permute.xlu0 %2825
  %2827 = vrot.lane.b32.xlu0 %v2462, 15
  %v2828 = vpop.permute.xlu0 %2827
  %2829 = vrot.lane.b32.xlu0 %v2466, 15
  %v2830 = vpop.permute.xlu0 %2829
  %2831 = vrot.lane.b32.xlu0 %v2470, 15
  %v2832 = vpop.permute.xlu0 %2831
  %2833 = vrot.lane.b32.xlu0 %v2474, 15
  %v2834 = vpop.permute.xlu0 %2833
  %2835 = vrot.lane.b32.xlu0 %v2478, 15
  %v2836 = vpop.permute.xlu0 %2835
  %2837 = vrot.lane.b32.xlu0 %v2482, 15
  %v2838 = vpop.permute.xlu0 %2837
  %2839 = vrot.lane.b32.xlu0 %v2486, 15
  %v2840 = vpop.permute.xlu0 %2839
  %2841 = vrot.lane.b32.xlu0 %v2459, 15
  %v2842 = vpop.permute.xlu0 %2841
  %2843 = vrot.lane.b32.xlu0 %v2463, 15
  %v2844 = vpop.permute.xlu0 %2843
  %2845 = vrot.lane.b32.xlu0 %v2467, 15
  %v2846 = vpop.permute.xlu0 %2845
  %2847 = vrot.lane.b32.xlu0 %v2471, 15
  %v2848 = vpop.permute.xlu0 %2847
  %2849 = vrot.lane.b32.xlu0 %v2475, 15
  %v2850 = vpop.permute.xlu0 %2849
  %2851 = vrot.lane.b32.xlu0 %v2479, 15
  %v2852 = vpop.permute.xlu0 %2851
  %2853 = vrot.lane.b32.xlu0 %v2483, 15
  %v2854 = vpop.permute.xlu0 %2853
  %2855 = vrot.lane.b32.xlu0 %v2487, 15
  %v2856 = vpop.permute.xlu0 %2855
  %2857 = vrot.lane.b32.xlu0 %v2460, 15
  %v2858 = vpop.permute.xlu0 %2857
  %2859 = vrot.lane.b32.xlu0 %v2464, 15
  %v2860 = vpop.permute.xlu0 %2859
  %2861 = vrot.lane.b32.xlu0 %v2468, 15
  %v2862 = vpop.permute.xlu0 %2861
  %2863 = vrot.lane.b32.xlu0 %v2472, 15
  %v2864 = vpop.permute.xlu0 %2863
  %2865 = vrot.lane.b32.xlu0 %v2476, 15
  %v2866 = vpop.permute.xlu0 %2865
  %2867 = vrot.lane.b32.xlu0 %v2480, 15
  %v2868 = vpop.permute.xlu0 %2867
  %2869 = vrot.lane.b32.xlu0 %v2484, 15
  %v2870 = vpop.permute.xlu0 %2869
  %2871 = vrot.lane.b32.xlu0 %v2488, 15
  %v2872 = vpop.permute.xlu0 %2871
  %v2873 = vsel %vm249, %v2842, %v2858
  %v2874 = vsel %vm249, %v2844, %v2860
  %v2875 = vsel %vm249, %v2846, %v2862
  %v2876 = vsel %vm249, %v2848, %v2864
  %v2877 = vsel %vm249, %v2850, %v2866
  %v2878 = vsel %vm249, %v2852, %v2868
  %v2879 = vsel %vm249, %v2854, %v2870
  %v2880 = vsel %vm249, %v2856, %v2872
  %v2881 = vsel %vm249, %v2826, %v2842
  %v2882 = vsel %vm249, %v2828, %v2844
  %v2883 = vsel %vm249, %v2830, %v2846
  %v2884 = vsel %vm249, %v2832, %v2848
  %v2885 = vsel %vm249, %v2834, %v2850
  %v2886 = vsel %vm249, %v2836, %v2852
  %v2887 = vsel %vm249, %v2838, %v2854
  %v2888 = vsel %vm249, %v2840, %v2856
  %v2889 = vsel %vm249, %v2810, %v2826
  %v2890 = vsel %vm249, %v2812, %v2828
  %v2891 = vsel %vm249, %v2814, %v2830
  %v2892 = vsel %vm249, %v2816, %v2832
  %v2893 = vsel %vm249, %v2818, %v2834
  %v2894 = vsel %vm249, %v2820, %v2836
  %v2895 = vsel %vm249, %v2822, %v2838
  %v2896 = vsel %vm249, %v2824, %v2840
  %v2897 = vsel %vm249, %v2858, %v2810
  %v2898 = vsel %vm249, %v2860, %v2812
  %v2899 = vsel %vm249, %v2862, %v2814
  %v2900 = vsel %vm249, %v2864, %v2816
  %v2901 = vsel %vm249, %v2866, %v2818
  %v2902 = vsel %vm249, %v2868, %v2820
  %v2903 = vsel %vm249, %v2870, %v2822
  %v2904 = vsel %vm249, %v2872, %v2824
  %v2905 = vmul.f32 %v2897, %v258
  %v2906 = vmul.f32 %v2889, %v262
  %v2907 = vmul.f32 %v2881, %v266
  %v2908 = vmul.f32 %v2873, %v270
  %v2909 = vmul.f32 %v2898, %v258
  %v2910 = vmul.f32 %v2890, %v262
  %v2911 = vmul.f32 %v2882, %v266
  %v2912 = vmul.f32 %v2874, %v270
  %v2913 = vmul.f32 %v2899, %v258
  %v2914 = vmul.f32 %v2891, %v262
  %v2915 = vmul.f32 %v2883, %v266
  %v2916 = vmul.f32 %v2875, %v270
  %v2917 = vmul.f32 %v2900, %v258
  %v2918 = vmul.f32 %v2892, %v262
  %v2919 = vmul.f32 %v2884, %v266
  %v2920 = vmul.f32 %v2876, %v270
  %v2921 = vmul.f32 %v2901, %v258
  %v2922 = vmul.f32 %v2893, %v262
  %v2923 = vmul.f32 %v2885, %v266
  %v2924 = vmul.f32 %v2877, %v270
  %v2925 = vmul.f32 %v2902, %v258
  %v2926 = vmul.f32 %v2894, %v262
  %v2927 = vmul.f32 %v2886, %v266
  %v2928 = vmul.f32 %v2878, %v270
  %v2929 = vmul.f32 %v2903, %v258
  %v2930 = vmul.f32 %v2895, %v262
  %v2931 = vmul.f32 %v2887, %v266
  %v2932 = vmul.f32 %v2879, %v270
  %v2933 = vmul.f32 %v2904, %v258
  %v2934 = vmul.f32 %v2896, %v262
  %v2935 = vmul.f32 %v2888, %v266
  %v2936 = vmul.f32 %v2880, %v270
  %v2937 = vpack.c.bf16 %v2909, %v2905
  %v2938 = vpack.c.bf16 %v2910, %v2906
  %v2939 = vpack.c.bf16 %v2911, %v2907
  %v2940 = vpack.c.bf16 %v2912, %v2908
  %v2941 = vpack.c.bf16 %v2917, %v2913
  %v2942 = vpack.c.bf16 %v2918, %v2914
  %v2943 = vpack.c.bf16 %v2919, %v2915
  %v2944 = vpack.c.bf16 %v2920, %v2916
  %v2945 = vpack.c.bf16 %v2925, %v2921
  %v2946 = vpack.c.bf16 %v2926, %v2922
  %v2947 = vpack.c.bf16 %v2927, %v2923
  %v2948 = vpack.c.bf16 %v2928, %v2924
  %v2949 = vpack.c.bf16 %v2933, %v2929
  %v2950 = vpack.c.bf16 %v2934, %v2930
  %v2951 = vpack.c.bf16 %v2935, %v2931
  %v2952 = vpack.c.bf16 %v2936, %v2932
  %2953 = vst [vmem:[#allocation2 + $0x100] sm:$0xff] %v2937
  %2954 = vst [vmem:[#allocation2 + $0x108] sm:$0xff] %v2938
  %2955 = vst [vmem:[#allocation2 + $0x110] sm:$0xff] %v2939
  %2956 = vst [vmem:[#allocation2 + $0x118] sm:$0xff] %v2940
  %2957 = vst [vmem:[#allocation2 + $0x120] sm:$0xff] %v2941
  %2958 = vst [vmem:[#allocation2 + $0x128] sm:$0xff] %v2942
  %2959 = vst [vmem:[#allocation2 + $0x130] sm:$0xff] %v2943
  %2960 = vst [vmem:[#allocation2 + $0x138] sm:$0xff] %v2944
  %2961 = vst [vmem:[#allocation2 + $0x140] sm:$0xff] %v2945
  %2962 = vst [vmem:[#allocation2 + $0x148] sm:$0xff] %v2946
  %2963 = vst [vmem:[#allocation2 + $0x150] sm:$0xff] %v2947
  %2964 = vst [vmem:[#allocation2 + $0x158] sm:$0xff] %v2948
  %2965 = vst [vmem:[#allocation2 + $0x160] sm:$0xff] %v2949
  %2966 = vst [vmem:[#allocation2 + $0x168] sm:$0xff] %v2950
  %2967 = vst [vmem:[#allocation2 + $0x170] sm:$0xff] %v2951
  %2968 = vst [vmem:[#allocation2 + $0x178] sm:$0xff] %v2952
  %2969 = vrot.lane.b32.xlu0 %v2457, 1
  %v2970 = vpop.permute.xlu0 %2969
  %2971 = vrot.lane.b32.xlu0 %v2461, 1
  %v2972 = vpop.permute.xlu0 %2971
  %2973 = vrot.lane.b32.xlu0 %v2465, 1
  %v2974 = vpop.permute.xlu0 %2973
  %2975 = vrot.lane.b32.xlu0 %v2469, 1
  %v2976 = vpop.permute.xlu0 %2975
  %2977 = vrot.lane.b32.xlu0 %v2473, 1
  %v2978 = vpop.permute.xlu0 %2977
  %2979 = vrot.lane.b32.xlu0 %v2477, 1
  %v2980 = vpop.permute.xlu0 %2979
  %2981 = vrot.lane.b32.xlu0 %v2481, 1
  %v2982 = vpop.permute.xlu0 %2981
  %2983 = vrot.lane.b32.xlu0 %v2485, 1
  %v2984 = vpop.permute.xlu0 %2983
  %2985 = vrot.lane.b32.xlu0 %v2458, 1
  %v2986 = vpop.permute.xlu0 %2985
  %2987 = vrot.lane.b32.xlu0 %v2462, 1
  %v2988 = vpop.permute.xlu0 %2987
  %2989 = vrot.lane.b32.xlu0 %v2466, 1
  %v2990 = vpop.permute.xlu0 %2989
  %2991 = vrot.lane.b32.xlu0 %v2470, 1
  %v2992 = vpop.permute.xlu0 %2991
  %2993 = vrot.lane.b32.xlu0 %v2474, 1
  %v2994 = vpop.permute.xlu0 %2993
  %2995 = vrot.lane.b32.xlu0 %v2478, 1
  %v2996 = vpop.permute.xlu0 %2995
  %2997 = vrot.lane.b32.xlu0 %v2482, 1
  %v2998 = vpop.permute.xlu0 %2997
  %2999 = vrot.lane.b32.xlu0 %v2486, 1
  %v3000 = vpop.permute.xlu0 %2999
  %3001 = vrot.lane.b32.xlu0 %v2459, 1
  %v3002 = vpop.permute.xlu0 %3001
  %3003 = vrot.lane.b32.xlu0 %v2463, 1
  %v3004 = vpop.permute.xlu0 %3003
  %3005 = vrot.lane.b32.xlu0 %v2467, 1
  %v3006 = vpop.permute.xlu0 %3005
  %3007 = vrot.lane.b32.xlu0 %v2471, 1
  %v3008 = vpop.permute.xlu0 %3007
  %3009 = vrot.lane.b32.xlu0 %v2475, 1
  %v3010 = vpop.permute.xlu0 %3009
  %3011 = vrot.lane.b32.xlu0 %v2479, 1
  %v3012 = vpop.permute.xlu0 %3011
  %3013 = vrot.lane.b32.xlu0 %v2483, 1
  %v3014 = vpop.permute.xlu0 %3013
  %3015 = vrot.lane.b32.xlu0 %v2487, 1
  %v3016 = vpop.permute.xlu0 %3015
  %3017 = vrot.lane.b32.xlu0 %v2460, 1
  %v3018 = vpop.permute.xlu0 %3017
  %3019 = vrot.lane.b32.xlu0 %v2464, 1
  %v3020 = vpop.permute.xlu0 %3019
  %3021 = vrot.lane.b32.xlu0 %v2468, 1
  %v3022 = vpop.permute.xlu0 %3021
  %3023 = vrot.lane.b32.xlu0 %v2472, 1
  %v3024 = vpop.permute.xlu0 %3023
  %3025 = vrot.lane.b32.xlu0 %v2476, 1
  %v3026 = vpop.permute.xlu0 %3025
  %3027 = vrot.lane.b32.xlu0 %v2480, 1
  %v3028 = vpop.permute.xlu0 %3027
  %3029 = vrot.lane.b32.xlu0 %v2484, 1
  %v3030 = vpop.permute.xlu0 %3029
  %3031 = vrot.lane.b32.xlu0 %v2488, 1
  %v3032 = vpop.permute.xlu0 %3031
  %v3033 = vsel %vm327, %v3002, %v3018
  %v3034 = vsel %vm327, %v3004, %v3020
  %v3035 = vsel %vm327, %v3006, %v3022
  %v3036 = vsel %vm327, %v3008, %v3024
  %v3037 = vsel %vm327, %v3010, %v3026
  %v3038 = vsel %vm327, %v3012, %v3028
  %v3039 = vsel %vm327, %v3014, %v3030
  %v3040 = vsel %vm327, %v3016, %v3032
  %v3041 = vsel %vm327, %v2986, %v3002
  %v3042 = vsel %vm327, %v2988, %v3004
  %v3043 = vsel %vm327, %v2990, %v3006
  %v3044 = vsel %vm327, %v2992, %v3008
  %v3045 = vsel %vm327, %v2994, %v3010
  %v3046 = vsel %vm327, %v2996, %v3012
  %v3047 = vsel %vm327, %v2998, %v3014
  %v3048 = vsel %vm327, %v3000, %v3016
  %v3049 = vsel %vm327, %v2970, %v2986
  %v3050 = vsel %vm327, %v2972, %v2988
  %v3051 = vsel %vm327, %v2974, %v2990
  %v3052 = vsel %vm327, %v2976, %v2992
  %v3053 = vsel %vm327, %v2978, %v2994
  %v3054 = vsel %vm327, %v2980, %v2996
  %v3055 = vsel %vm327, %v2982, %v2998
  %v3056 = vsel %vm327, %v2984, %v3000
  %v3057 = vsel %vm327, %v3018, %v2970
  %v3058 = vsel %vm327, %v3020, %v2972
  %v3059 = vsel %vm327, %v3022, %v2974
  %v3060 = vsel %vm327, %v3024, %v2976
  %v3061 = vsel %vm327, %v3026, %v2978
  %v3062 = vsel %vm327, %v3028, %v2980
  %v3063 = vsel %vm327, %v3030, %v2982
  %v3064 = vsel %vm327, %v3032, %v2984
  %v3065 = vmul.f32 %v3057, %v336
  %v3066 = vmul.f32 %v3049, %v340
  %v3067 = vmul.f32 %v3041, %v344
  %v3068 = vmul.f32 %v3033, %v348
  %v3069 = vmul.f32 %v3058, %v336
  %v3070 = vmul.f32 %v3050, %v340
  %v3071 = vmul.f32 %v3042, %v344
  %v3072 = vmul.f32 %v3034, %v348
  %v3073 = vmul.f32 %v3059, %v336
  %v3074 = vmul.f32 %v3051, %v340
  %v3075 = vmul.f32 %v3043, %v344
  %v3076 = vmul.f32 %v3035, %v348
  %v3077 = vmul.f32 %v3060, %v336
  %v3078 = vmul.f32 %v3052, %v340
  %v3079 = vmul.f32 %v3044, %v344
  %v3080 = vmul.f32 %v3036, %v348
  %v3081 = vmul.f32 %v3061, %v336
  %v3082 = vmul.f32 %v3053, %v340
  %v3083 = vmul.f32 %v3045, %v344
  %v3084 = vmul.f32 %v3037, %v348
  %v3085 = vmul.f32 %v3062, %v336
  %v3086 = vmul.f32 %v3054, %v340
  %v3087 = vmul.f32 %v3046, %v344
  %v3088 = vmul.f32 %v3038, %v348
  %v3089 = vmul.f32 %v3063, %v336
  %v3090 = vmul.f32 %v3055, %v340
  %v3091 = vmul.f32 %v3047, %v344
  %v3092 = vmul.f32 %v3039, %v348
  %v3093 = vmul.f32 %v3064, %v336
  %v3094 = vmul.f32 %v3056, %v340
  %v3095 = vmul.f32 %v3048, %v344
  %v3096 = vmul.f32 %v3040, %v348
  %v3097 = vpack.c.bf16 %v3069, %v3065
  %v3098 = vpack.c.bf16 %v3070, %v3066
  %v3099 = vpack.c.bf16 %v3071, %v3067
  %v3100 = vpack.c.bf16 %v3072, %v3068
  %v3101 = vpack.c.bf16 %v3077, %v3073
  %v3102 = vpack.c.bf16 %v3078, %v3074
  %v3103 = vpack.c.bf16 %v3079, %v3075
  %v3104 = vpack.c.bf16 %v3080, %v3076
  %v3105 = vpack.c.bf16 %v3085, %v3081
  %v3106 = vpack.c.bf16 %v3086, %v3082
  %v3107 = vpack.c.bf16 %v3087, %v3083
  %v3108 = vpack.c.bf16 %v3088, %v3084
  %v3109 = vpack.c.bf16 %v3093, %v3089
  %v3110 = vpack.c.bf16 %v3094, %v3090
  %v3111 = vpack.c.bf16 %v3095, %v3091
  %v3112 = vpack.c.bf16 %v3096, %v3092
  %3113 = vst [vmem:[#allocation2 + $0x180] sm:$0xff] %v3097
  %3114 = vst [vmem:[#allocation2 + $0x188] sm:$0xff] %v3098
  %3115 = vst [vmem:[#allocation2 + $0x190] sm:$0xff] %v3099
  %3116 = vst [vmem:[#allocation2 + $0x198] sm:$0xff] %v3100
  %3117 = vst [vmem:[#allocation2 + $0x1a0] sm:$0xff] %v3101
  %3118 = vst [vmem:[#allocation2 + $0x1a8] sm:$0xff] %v3102
  %3119 = vst [vmem:[#allocation2 + $0x1b0] sm:$0xff] %v3103
  %3120 = vst [vmem:[#allocation2 + $0x1b8] sm:$0xff] %v3104
  %3121 = vst [vmem:[#allocation2 + $0x1c0] sm:$0xff] %v3105
  %3122 = vst [vmem:[#allocation2 + $0x1c8] sm:$0xff] %v3106
  %3123 = vst [vmem:[#allocation2 + $0x1d0] sm:$0xff] %v3107
  %3124 = vst [vmem:[#allocation2 + $0x1d8] sm:$0xff] %v3108
  %3125 = vst [vmem:[#allocation2 + $0x1e0] sm:$0xff] %v3109
  %3126 = vst [vmem:[#allocation2 + $0x1e8] sm:$0xff] %v3110
  %3127 = vst [vmem:[#allocation2 + $0x1f0] sm:$0xff] %v3111
  %3128 = vst [vmem:[#allocation2 + $0x1f8] sm:$0xff] %v3112
  %v3129 = vpack.c.bf16 %v2461, %v2457
  %v3130 = vpack.c.bf16 %v2462, %v2458
  %v3131 = vpack.c.bf16 %v2463, %v2459
  %v3132 = vpack.c.bf16 %v2464, %v2460
  %v3133 = vpack.c.bf16 %v2469, %v2465
  %v3134 = vpack.c.bf16 %v2470, %v2466
  %v3135 = vpack.c.bf16 %v2471, %v2467
  %v3136 = vpack.c.bf16 %v2472, %v2468
  %v3137 = vpack.c.bf16 %v2477, %v2473
  %v3138 = vpack.c.bf16 %v2478, %v2474
  %v3139 = vpack.c.bf16 %v2479, %v2475
  %v3140 = vpack.c.bf16 %v2480, %v2476
  %v3141 = vpack.c.bf16 %v2485, %v2481
  %v3142 = vpack.c.bf16 %v2486, %v2482
  %v3143 = vpack.c.bf16 %v2487, %v2483
  %v3144 = vpack.c.bf16 %v2488, %v2484
  %3145 = vst [vmem:[#allocation2 + $0x200] sm:$0xff] %v3129
  %3146 = vst [vmem:[#allocation2 + $0x208] sm:$0xff] %v3130
  %3147 = vst [vmem:[#allocation2 + $0x210] sm:$0xff] %v3131
  %3148 = vst [vmem:[#allocation2 + $0x218] sm:$0xff] %v3132
  %3149 = vst [vmem:[#allocation2 + $0x220] sm:$0xff] %v3133
  %3150 = vst [vmem:[#allocation2 + $0x228] sm:$0xff] %v3134
  %3151 = vst [vmem:[#allocation2 + $0x230] sm:$0xff] %v3135
  %3152 = vst [vmem:[#allocation2 + $0x238] sm:$0xff] %v3136
  %3153 = vst [vmem:[#allocation2 + $0x240] sm:$0xff] %v3137
  %3154 = vst [vmem:[#allocation2 + $0x248] sm:$0xff] %v3138
  %3155 = vst [vmem:[#allocation2 + $0x250] sm:$0xff] %v3139
  %3156 = vst [vmem:[#allocation2 + $0x258] sm:$0xff] %v3140
  %3157 = vst [vmem:[#allocation2 + $0x260] sm:$0xff] %v3141
  %3158 = vst [vmem:[#allocation2 + $0x268] sm:$0xff] %v3142
  %3159 = vst [vmem:[#allocation2 + $0x270] sm:$0xff] %v3143
  %3160 = vst [vmem:[#allocation2 + $0x278] sm:$0xff] %v3144
  %3161 = vrot.lane.b32.xlu0 %v2457, 127
  %v3162 = vpop.permute.xlu0 %3161
  %3163 = vrot.lane.b32.xlu0 %v2461, 127
  %v3164 = vpop.permute.xlu0 %3163
  %3165 = vrot.lane.b32.xlu0 %v2465, 127
  %v3166 = vpop.permute.xlu0 %3165
  %3167 = vrot.lane.b32.xlu0 %v2469, 127
  %v3168 = vpop.permute.xlu0 %3167
  %3169 = vrot.lane.b32.xlu0 %v2473, 127
  %v3170 = vpop.permute.xlu0 %3169
  %3171 = vrot.lane.b32.xlu0 %v2477, 127
  %v3172 = vpop.permute.xlu0 %3171
  %3173 = vrot.lane.b32.xlu0 %v2481, 127
  %v3174 = vpop.permute.xlu0 %3173
  %3175 = vrot.lane.b32.xlu0 %v2485, 127
  %v3176 = vpop.permute.xlu0 %3175
  %3177 = vrot.lane.b32.xlu0 %v2458, 127
  %v3178 = vpop.permute.xlu0 %3177
  %3179 = vrot.lane.b32.xlu0 %v2462, 127
  %v3180 = vpop.permute.xlu0 %3179
  %3181 = vrot.lane.b32.xlu0 %v2466, 127
  %v3182 = vpop.permute.xlu0 %3181
  %3183 = vrot.lane.b32.xlu0 %v2470, 127
  %v3184 = vpop.permute.xlu0 %3183
  %3185 = vrot.lane.b32.xlu0 %v2474, 127
  %v3186 = vpop.permute.xlu0 %3185
  %3187 = vrot.lane.b32.xlu0 %v2478, 127
  %v3188 = vpop.permute.xlu0 %3187
  %3189 = vrot.lane.b32.xlu0 %v2482, 127
  %v3190 = vpop.permute.xlu0 %3189
  %3191 = vrot.lane.b32.xlu0 %v2486, 127
  %v3192 = vpop.permute.xlu0 %3191
  %3193 = vrot.lane.b32.xlu0 %v2459, 127
  %v3194 = vpop.permute.xlu0 %3193
  %3195 = vrot.lane.b32.xlu0 %v2463, 127
  %v3196 = vpop.permute.xlu0 %3195
  %3197 = vrot.lane.b32.xlu0 %v2467, 127
  %v3198 = vpop.permute.xlu0 %3197
  %3199 = vrot.lane.b32.xlu0 %v2471, 127
  %v3200 = vpop.permute.xlu0 %3199
  %3201 = vrot.lane.b32.xlu0 %v2475, 127
  %v3202 = vpop.permute.xlu0 %3201
  %3203 = vrot.lane.b32.xlu0 %v2479, 127
  %v3204 = vpop.permute.xlu0 %3203
  %3205 = vrot.lane.b32.xlu0 %v2483, 127
  %v3206 = vpop.permute.xlu0 %3205
  %3207 = vrot.lane.b32.xlu0 %v2487, 127
  %v3208 = vpop.permute.xlu0 %3207
  %3209 = vrot.lane.b32.xlu0 %v2460, 127
  %v3210 = vpop.permute.xlu0 %3209
  %3211 = vrot.lane.b32.xlu0 %v2464, 127
  %v3212 = vpop.permute.xlu0 %3211
  %3213 = vrot.lane.b32.xlu0 %v2468, 127
  %v3214 = vpop.permute.xlu0 %3213
  %3215 = vrot.lane.b32.xlu0 %v2472, 127
  %v3216 = vpop.permute.xlu0 %3215
  %3217 = vrot.lane.b32.xlu0 %v2476, 127
  %v3218 = vpop.permute.xlu0 %3217
  %3219 = vrot.lane.b32.xlu0 %v2480, 127
  %v3220 = vpop.permute.xlu0 %3219
  %3221 = vrot.lane.b32.xlu0 %v2484, 127
  %v3222 = vpop.permute.xlu0 %3221
  %3223 = vrot.lane.b32.xlu0 %v2488, 127
  %v3224 = vpop.permute.xlu0 %3223
  %v3225 = vsel %vm429, %v3194, %v3210
  %v3226 = vsel %vm429, %v3196, %v3212
  %v3227 = vsel %vm429, %v3198, %v3214
  %v3228 = vsel %vm429, %v3200, %v3216
  %v3229 = vsel %vm429, %v3202, %v3218
  %v3230 = vsel %vm429, %v3204, %v3220
  %v3231 = vsel %vm429, %v3206, %v3222
  %v3232 = vsel %vm429, %v3208, %v3224
  %v3233 = vsel %vm429, %v3178, %v3194
  %v3234 = vsel %vm429, %v3180, %v3196
  %v3235 = vsel %vm429, %v3182, %v3198
  %v3236 = vsel %vm429, %v3184, %v3200
  %v3237 = vsel %vm429, %v3186, %v3202
  %v3238 = vsel %vm429, %v3188, %v3204
  %v3239 = vsel %vm429, %v3190, %v3206
  %v3240 = vsel %vm429, %v3192, %v3208
  %v3241 = vsel %vm429, %v3162, %v3178
  %v3242 = vsel %vm429, %v3164, %v3180
  %v3243 = vsel %vm429, %v3166, %v3182
  %v3244 = vsel %vm429, %v3168, %v3184
  %v3245 = vsel %vm429, %v3170, %v3186
  %v3246 = vsel %vm429, %v3172, %v3188
  %v3247 = vsel %vm429, %v3174, %v3190
  %v3248 = vsel %vm429, %v3176, %v3192
  %v3249 = vsel %vm429, %v3210, %v3162
  %v3250 = vsel %vm429, %v3212, %v3164
  %v3251 = vsel %vm429, %v3214, %v3166
  %v3252 = vsel %vm429, %v3216, %v3168
  %v3253 = vsel %vm429, %v3218, %v3170
  %v3254 = vsel %vm429, %v3220, %v3172
  %v3255 = vsel %vm429, %v3222, %v3174
  %v3256 = vsel %vm429, %v3224, %v3176
  %v3257 = vmul.f32 %v3241, %v438
  %v3258 = vmul.f32 %v3233, %v442
  %v3259 = vmul.f32 %v3225, %v446
  %v3260 = vmul.f32 %v3249, %v450
  %v3261 = vmul.f32 %v3242, %v438
  %v3262 = vmul.f32 %v3234, %v442
  %v3263 = vmul.f32 %v3226, %v446
  %v3264 = vmul.f32 %v3250, %v450
  %v3265 = vmul.f32 %v3243, %v438
  %v3266 = vmul.f32 %v3235, %v442
  %v3267 = vmul.f32 %v3227, %v446
  %v3268 = vmul.f32 %v3251, %v450
  %v3269 = vmul.f32 %v3244, %v438
  %v3270 = vmul.f32 %v3236, %v442
  %v3271 = vmul.f32 %v3228, %v446
  %v3272 = vmul.f32 %v3252, %v450
  %v3273 = vmul.f32 %v3245, %v438
  %v3274 = vmul.f32 %v3237, %v442
  %v3275 = vmul.f32 %v3229, %v446
  %v3276 = vmul.f32 %v3253, %v450
  %v3277 = vmul.f32 %v3246, %v438
  %v3278 = vmul.f32 %v3238, %v442
  %v3279 = vmul.f32 %v3230, %v446
  %v3280 = vmul.f32 %v3254, %v450
  %v3281 = vmul.f32 %v3247, %v438
  %v3282 = vmul.f32 %v3239, %v442
  %v3283 = vmul.f32 %v3231, %v446
  %v3284 = vmul.f32 %v3255, %v450
  %v3285 = vmul.f32 %v3248, %v438
  %v3286 = vmul.f32 %v3240, %v442
  %v3287 = vmul.f32 %v3232, %v446
  %v3288 = vmul.f32 %v3256, %v450
  %v3289 = vpack.c.bf16 %v3261, %v3257
  %v3290 = vpack.c.bf16 %v3262, %v3258
  %v3291 = vpack.c.bf16 %v3263, %v3259
  %v3292 = vpack.c.bf16 %v3264, %v3260
  %v3293 = vpack.c.bf16 %v3269, %v3265
  %v3294 = vpack.c.bf16 %v3270, %v3266
  %v3295 = vpack.c.bf16 %v3271, %v3267
  %v3296 = vpack.c.bf16 %v3272, %v3268
  %v3297 = vpack.c.bf16 %v3277, %v3273
  %v3298 = vpack.c.bf16 %v3278, %v3274
  %v3299 = vpack.c.bf16 %v3279, %v3275
  %v3300 = vpack.c.bf16 %v3280, %v3276
  %v3301 = vpack.c.bf16 %v3285, %v3281
  %v3302 = vpack.c.bf16 %v3286, %v3282
  %v3303 = vpack.c.bf16 %v3287, %v3283
  %v3304 = vpack.c.bf16 %v3288, %v3284
  %3305 = vst [vmem:[#allocation2 + $0x280] sm:$0xff] %v3289
  %3306 = vst [vmem:[#allocation2 + $0x288] sm:$0xff] %v3290
  %3307 = vst [vmem:[#allocation2 + $0x290] sm:$0xff] %v3291
  %3308 = vst [vmem:[#allocation2 + $0x298] sm:$0xff] %v3292
  %3309 = vst [vmem:[#allocation2 + $0x2a0] sm:$0xff] %v3293
  %3310 = vst [vmem:[#allocation2 + $0x2a8] sm:$0xff] %v3294
  %3311 = vst [vmem:[#allocation2 + $0x2b0] sm:$0xff] %v3295
  %3312 = vst [vmem:[#allocation2 + $0x2b8] sm:$0xff] %v3296
  %3313 = vst [vmem:[#allocation2 + $0x2c0] sm:$0xff] %v3297
  %3314 = vst [vmem:[#allocation2 + $0x2c8] sm:$0xff] %v3298
  %3315 = vst [vmem:[#allocation2 + $0x2d0] sm:$0xff] %v3299
  %3316 = vst [vmem:[#allocation2 + $0x2d8] sm:$0xff] %v3300
  %3317 = vst [vmem:[#allocation2 + $0x2e0] sm:$0xff] %v3301
  %3318 = vst [vmem:[#allocation2 + $0x2e8] sm:$0xff] %v3302
  %3319 = vst [vmem:[#allocation2 + $0x2f0] sm:$0xff] %v3303
  %3320 = vst [vmem:[#allocation2 + $0x2f8] sm:$0xff] %v3304
  %3321 = vrot.lane.b32.xlu0 %v2457, 113
  %v3322 = vpop.permute.xlu0 %3321
  %3323 = vrot.lane.b32.xlu0 %v2461, 113
  %v3324 = vpop.permute.xlu0 %3323
  %3325 = vrot.lane.b32.xlu0 %v2465, 113
  %v3326 = vpop.permute.xlu0 %3325
  %3327 = vrot.lane.b32.xlu0 %v2469, 113
  %v3328 = vpop.permute.xlu0 %3327
  %3329 = vrot.lane.b32.xlu0 %v2473, 113
  %v3330 = vpop.permute.xlu0 %3329
  %3331 = vrot.lane.b32.xlu0 %v2477, 113
  %v3332 = vpop.permute.xlu0 %3331
  %3333 = vrot.lane.b32.xlu0 %v2481, 113
  %v3334 = vpop.permute.xlu0 %3333
  %3335 = vrot.lane.b32.xlu0 %v2485, 113
  %v3336 = vpop.permute.xlu0 %3335
  %3337 = vrot.lane.b32.xlu0 %v2458, 113
  %v3338 = vpop.permute.xlu0 %3337
  %3339 = vrot.lane.b32.xlu0 %v2462, 113
  %v3340 = vpop.permute.xlu0 %3339
  %3341 = vrot.lane.b32.xlu0 %v2466, 113
  %v3342 = vpop.permute.xlu0 %3341
  %3343 = vrot.lane.b32.xlu0 %v2470, 113
  %v3344 = vpop.permute.xlu0 %3343
  %3345 = vrot.lane.b32.xlu0 %v2474, 113
  %v3346 = vpop.permute.xlu0 %3345
  %3347 = vrot.lane.b32.xlu0 %v2478, 113
  %v3348 = vpop.permute.xlu0 %3347
  %3349 = vrot.lane.b32.xlu0 %v2482, 113
  %v3350 = vpop.permute.xlu0 %3349
  %3351 = vrot.lane.b32.xlu0 %v2486, 113
  %v3352 = vpop.permute.xlu0 %3351
  %3353 = vrot.lane.b32.xlu0 %v2459, 113
  %v3354 = vpop.permute.xlu0 %3353
  %3355 = vrot.lane.b32.xlu0 %v2463, 113
  %v3356 = vpop.permute.xlu0 %3355
  %3357 = vrot.lane.b32.xlu0 %v2467, 113
  %v3358 = vpop.permute.xlu0 %3357
  %3359 = vrot.lane.b32.xlu0 %v2471, 113
  %v3360 = vpop.permute.xlu0 %3359
  %3361 = vrot.lane.b32.xlu0 %v2475, 113
  %v3362 = vpop.permute.xlu0 %3361
  %3363 = vrot.lane.b32.xlu0 %v2479, 113
  %v3364 = vpop.permute.xlu0 %3363
  %3365 = vrot.lane.b32.xlu0 %v2483, 113
  %v3366 = vpop.permute.xlu0 %3365
  %3367 = vrot.lane.b32.xlu0 %v2487, 113
  %v3368 = vpop.permute.xlu0 %3367
  %3369 = vrot.lane.b32.xlu0 %v2460, 113
  %v3370 = vpop.permute.xlu0 %3369
  %3371 = vrot.lane.b32.xlu0 %v2464, 113
  %v3372 = vpop.permute.xlu0 %3371
  %3373 = vrot.lane.b32.xlu0 %v2468, 113
  %v3374 = vpop.permute.xlu0 %3373
  %3375 = vrot.lane.b32.xlu0 %v2472, 113
  %v3376 = vpop.permute.xlu0 %3375
  %3377 = vrot.lane.b32.xlu0 %v2476, 113
  %v3378 = vpop.permute.xlu0 %3377
  %3379 = vrot.lane.b32.xlu0 %v2480, 113
  %v3380 = vpop.permute.xlu0 %3379
  %3381 = vrot.lane.b32.xlu0 %v2484, 113
  %v3382 = vpop.permute.xlu0 %3381
  %3383 = vrot.lane.b32.xlu0 %v2488, 113
  %v3384 = vpop.permute.xlu0 %3383
  %v3385 = vsel %vm507, %v3354, %v3370
  %v3386 = vsel %vm507, %v3356, %v3372
  %v3387 = vsel %vm507, %v3358, %v3374
  %v3388 = vsel %vm507, %v3360, %v3376
  %v3389 = vsel %vm507, %v3362, %v3378
  %v3390 = vsel %vm507, %v3364, %v3380
  %v3391 = vsel %vm507, %v3366, %v3382
  %v3392 = vsel %vm507, %v3368, %v3384
  %v3393 = vsel %vm507, %v3338, %v3354
  %v3394 = vsel %vm507, %v3340, %v3356
  %v3395 = vsel %vm507, %v3342, %v3358
  %v3396 = vsel %vm507, %v3344, %v3360
  %v3397 = vsel %vm507, %v3346, %v3362
  %v3398 = vsel %vm507, %v3348, %v3364
  %v3399 = vsel %vm507, %v3350, %v3366
  %v3400 = vsel %vm507, %v3352, %v3368
  %v3401 = vsel %vm507, %v3322, %v3338
  %v3402 = vsel %vm507, %v3324, %v3340
  %v3403 = vsel %vm507, %v3326, %v3342
  %v3404 = vsel %vm507, %v3328, %v3344
  %v3405 = vsel %vm507, %v3330, %v3346
  %v3406 = vsel %vm507, %v3332, %v3348
  %v3407 = vsel %vm507, %v3334, %v3350
  %v3408 = vsel %vm507, %v3336, %v3352
  %v3409 = vsel %vm507, %v3370, %v3322
  %v3410 = vsel %vm507, %v3372, %v3324
  %v3411 = vsel %vm507, %v3374, %v3326
  %v3412 = vsel %vm507, %v3376, %v3328
  %v3413 = vsel %vm507, %v3378, %v3330
  %v3414 = vsel %vm507, %v3380, %v3332
  %v3415 = vsel %vm507, %v3382, %v3334
  %v3416 = vsel %vm507, %v3384, %v3336
  %v3417 = vmul.f32 %v3401, %v516
  %v3418 = vmul.f32 %v3393, %v520
  %v3419 = vmul.f32 %v3385, %v524
  %v3420 = vmul.f32 %v3409, %v528
  %v3421 = vmul.f32 %v3402, %v516
  %v3422 = vmul.f32 %v3394, %v520
  %v3423 = vmul.f32 %v3386, %v524
  %v3424 = vmul.f32 %v3410, %v528
  %v3425 = vmul.f32 %v3403, %v516
  %v3426 = vmul.f32 %v3395, %v520
  %v3427 = vmul.f32 %v3387, %v524
  %v3428 = vmul.f32 %v3411, %v528
  %v3429 = vmul.f32 %v3404, %v516
  %v3430 = vmul.f32 %v3396, %v520
  %v3431 = vmul.f32 %v3388, %v524
  %v3432 = vmul.f32 %v3412, %v528
  %v3433 = vmul.f32 %v3405, %v516
  %v3434 = vmul.f32 %v3397, %v520
  %v3435 = vmul.f32 %v3389, %v524
  %v3436 = vmul.f32 %v3413, %v528
  %v3437 = vmul.f32 %v3406, %v516
  %v3438 = vmul.f32 %v3398, %v520
  %v3439 = vmul.f32 %v3390, %v524
  %v3440 = vmul.f32 %v3414, %v528
  %v3441 = vmul.f32 %v3407, %v516
  %v3442 = vmul.f32 %v3399, %v520
  %v3443 = vmul.f32 %v3391, %v524
  %v3444 = vmul.f32 %v3415, %v528
  %v3445 = vmul.f32 %v3408, %v516
  %v3446 = vmul.f32 %v3400, %v520
  %v3447 = vmul.f32 %v3392, %v524
  %v3448 = vmul.f32 %v3416, %v528
  %v3449 = vpack.c.bf16 %v3421, %v3417
  %v3450 = vpack.c.bf16 %v3422, %v3418
  %v3451 = vpack.c.bf16 %v3423, %v3419
  %v3452 = vpack.c.bf16 %v3424, %v3420
  %v3453 = vpack.c.bf16 %v3429, %v3425
  %v3454 = vpack.c.bf16 %v3430, %v3426
  %v3455 = vpack.c.bf16 %v3431, %v3427
  %v3456 = vpack.c.bf16 %v3432, %v3428
  %v3457 = vpack.c.bf16 %v3437, %v3433
  %v3458 = vpack.c.bf16 %v3438, %v3434
  %v3459 = vpack.c.bf16 %v3439, %v3435
  %v3460 = vpack.c.bf16 %v3440, %v3436
  %v3461 = vpack.c.bf16 %v3445, %v3441
  %v3462 = vpack.c.bf16 %v3446, %v3442
  %v3463 = vpack.c.bf16 %v3447, %v3443
  %v3464 = vpack.c.bf16 %v3448, %v3444
  %3465 = vst [vmem:[#allocation2 + $0x300] sm:$0xff] %v3449
  %3466 = vst [vmem:[#allocation2 + $0x308] sm:$0xff] %v3450
  %3467 = vst [vmem:[#allocation2 + $0x310] sm:$0xff] %v3451
  %3468 = vst [vmem:[#allocation2 + $0x318] sm:$0xff] %v3452
  %3469 = vst [vmem:[#allocation2 + $0x320] sm:$0xff] %v3453
  %3470 = vst [vmem:[#allocation2 + $0x328] sm:$0xff] %v3454
  %3471 = vst [vmem:[#allocation2 + $0x330] sm:$0xff] %v3455
  %3472 = vst [vmem:[#allocation2 + $0x338] sm:$0xff] %v3456
  %3473 = vst [vmem:[#allocation2 + $0x340] sm:$0xff] %v3457
  %3474 = vst [vmem:[#allocation2 + $0x348] sm:$0xff] %v3458
  %3475 = vst [vmem:[#allocation2 + $0x350] sm:$0xff] %v3459
  %3476 = vst [vmem:[#allocation2 + $0x358] sm:$0xff] %v3460
  %3477 = vst [vmem:[#allocation2 + $0x360] sm:$0xff] %v3461
  %3478 = vst [vmem:[#allocation2 + $0x368] sm:$0xff] %v3462
  %3479 = vst [vmem:[#allocation2 + $0x370] sm:$0xff] %v3463
  %3480 = vst [vmem:[#allocation2 + $0x378] sm:$0xff] %v3464
  %3481 = vrot.lane.b32.xlu0 %v2457, 112
  %v3482 = vpop.permute.xlu0 %3481
  %3483 = vrot.lane.b32.xlu0 %v2461, 112
  %v3484 = vpop.permute.xlu0 %3483
  %3485 = vrot.lane.b32.xlu0 %v2465, 112
  %v3486 = vpop.permute.xlu0 %3485
  %3487 = vrot.lane.b32.xlu0 %v2469, 112
  %v3488 = vpop.permute.xlu0 %3487
  %3489 = vrot.lane.b32.xlu0 %v2473, 112
  %v3490 = vpop.permute.xlu0 %3489
  %3491 = vrot.lane.b32.xlu0 %v2477, 112
  %v3492 = vpop.permute.xlu0 %3491
  %3493 = vrot.lane.b32.xlu0 %v2481, 112
  %v3494 = vpop.permute.xlu0 %3493
  %3495 = vrot.lane.b32.xlu0 %v2485, 112
  %v3496 = vpop.permute.xlu0 %3495
  %3497 = vrot.lane.b32.xlu0 %v2458, 112
  %v3498 = vpop.permute.xlu0 %3497
  %3499 = vrot.lane.b32.xlu0 %v2462, 112
  %v3500 = vpop.permute.xlu0 %3499
  %3501 = vrot.lane.b32.xlu0 %v2466, 112
  %v3502 = vpop.permute.xlu0 %3501
  %3503 = vrot.lane.b32.xlu0 %v2470, 112
  %v3504 = vpop.permute.xlu0 %3503
  %3505 = vrot.lane.b32.xlu0 %v2474, 112
  %v3506 = vpop.permute.xlu0 %3505
  %3507 = vrot.lane.b32.xlu0 %v2478, 112
  %v3508 = vpop.permute.xlu0 %3507
  %3509 = vrot.lane.b32.xlu0 %v2482, 112
  %v3510 = vpop.permute.xlu0 %3509
  %3511 = vrot.lane.b32.xlu0 %v2486, 112
  %v3512 = vpop.permute.xlu0 %3511
  %3513 = vrot.lane.b32.xlu0 %v2459, 112
  %v3514 = vpop.permute.xlu0 %3513
  %3515 = vrot.lane.b32.xlu0 %v2463, 112
  %v3516 = vpop.permute.xlu0 %3515
  %3517 = vrot.lane.b32.xlu0 %v2467, 112
  %v3518 = vpop.permute.xlu0 %3517
  %3519 = vrot.lane.b32.xlu0 %v2471, 112
  %v3520 = vpop.permute.xlu0 %3519
  %3521 = vrot.lane.b32.xlu0 %v2475, 112
  %v3522 = vpop.permute.xlu0 %3521
  %3523 = vrot.lane.b32.xlu0 %v2479, 112
  %v3524 = vpop.permute.xlu0 %3523
  %3525 = vrot.lane.b32.xlu0 %v2483, 112
  %v3526 = vpop.permute.xlu0 %3525
  %3527 = vrot.lane.b32.xlu0 %v2487, 112
  %v3528 = vpop.permute.xlu0 %3527
  %3529 = vrot.lane.b32.xlu0 %v2460, 112
  %v3530 = vpop.permute.xlu0 %3529
  %3531 = vrot.lane.b32.xlu0 %v2464, 112
  %v3532 = vpop.permute.xlu0 %3531
  %3533 = vrot.lane.b32.xlu0 %v2468, 112
  %v3534 = vpop.permute.xlu0 %3533
  %3535 = vrot.lane.b32.xlu0 %v2472, 112
  %v3536 = vpop.permute.xlu0 %3535
  %3537 = vrot.lane.b32.xlu0 %v2476, 112
  %v3538 = vpop.permute.xlu0 %3537
  %3539 = vrot.lane.b32.xlu0 %v2480, 112
  %v3540 = vpop.permute.xlu0 %3539
  %3541 = vrot.lane.b32.xlu0 %v2484, 112
  %v3542 = vpop.permute.xlu0 %3541
  %3543 = vrot.lane.b32.xlu0 %v2488, 112
  %v3544 = vpop.permute.xlu0 %3543
  %v3545 = vsel %vm585, %v3514, %v3530
  %v3546 = vsel %vm585, %v3516, %v3532
  %v3547 = vsel %vm585, %v3518, %v3534
  %v3548 = vsel %vm585, %v3520, %v3536
  %v3549 = vsel %vm585, %v3522, %v3538
  %v3550 = vsel %vm585, %v3524, %v3540
  %v3551 = vsel %vm585, %v3526, %v3542
  %v3552 = vsel %vm585, %v3528, %v3544
  %v3553 = vsel %vm585, %v3498, %v3514
  %v3554 = vsel %vm585, %v3500, %v3516
  %v3555 = vsel %vm585, %v3502, %v3518
  %v3556 = vsel %vm585, %v3504, %v3520
  %v3557 = vsel %vm585, %v3506, %v3522
  %v3558 = vsel %vm585, %v3508, %v3524
  %v3559 = vsel %vm585, %v3510, %v3526
  %v3560 = vsel %vm585, %v3512, %v3528
  %v3561 = vsel %vm585, %v3482, %v3498
  %v3562 = vsel %vm585, %v3484, %v3500
  %v3563 = vsel %vm585, %v3486, %v3502
  %v3564 = vsel %vm585, %v3488, %v3504
  %v3565 = vsel %vm585, %v3490, %v3506
  %v3566 = vsel %vm585, %v3492, %v3508
  %v3567 = vsel %vm585, %v3494, %v3510
  %v3568 = vsel %vm585, %v3496, %v3512
  %v3569 = vsel %vm585, %v3530, %v3482
  %v3570 = vsel %vm585, %v3532, %v3484
  %v3571 = vsel %vm585, %v3534, %v3486
  %v3572 = vsel %vm585, %v3536, %v3488
  %v3573 = vsel %vm585, %v3538, %v3490
  %v3574 = vsel %vm585, %v3540, %v3492
  %v3575 = vsel %vm585, %v3542, %v3494
  %v3576 = vsel %vm585, %v3544, %v3496
  %v3577 = vmul.f32 %v3561, %v594
  %v3578 = vmul.f32 %v3553, %v598
  %v3579 = vmul.f32 %v3545, %v602
  %v3580 = vmul.f32 %v3569, %v606
  %v3581 = vmul.f32 %v3562, %v594
  %v3582 = vmul.f32 %v3554, %v598
  %v3583 = vmul.f32 %v3546, %v602
  %v3584 = vmul.f32 %v3570, %v606
  %v3585 = vmul.f32 %v3563, %v594
  %v3586 = vmul.f32 %v3555, %v598
  %v3587 = vmul.f32 %v3547, %v602
  %v3588 = vmul.f32 %v3571, %v606
  %v3589 = vmul.f32 %v3564, %v594
  %v3590 = vmul.f32 %v3556, %v598
  %v3591 = vmul.f32 %v3548, %v602
  %v3592 = vmul.f32 %v3572, %v606
  %v3593 = vmul.f32 %v3565, %v594
  %v3594 = vmul.f32 %v3557, %v598
  %v3595 = vmul.f32 %v3549, %v602
  %v3596 = vmul.f32 %v3573, %v606
  %v3597 = vmul.f32 %v3566, %v594
  %v3598 = vmul.f32 %v3558, %v598
  %v3599 = vmul.f32 %v3550, %v602
  %v3600 = vmul.f32 %v3574, %v606
  %v3601 = vmul.f32 %v3567, %v594
  %v3602 = vmul.f32 %v3559, %v598
  %v3603 = vmul.f32 %v3551, %v602
  %v3604 = vmul.f32 %v3575, %v606
  %v3605 = vmul.f32 %v3568, %v594
  %v3606 = vmul.f32 %v3560, %v598
  %v3607 = vmul.f32 %v3552, %v602
  %v3608 = vmul.f32 %v3576, %v606
  %v3609 = vpack.c.bf16 %v3581, %v3577
  %v3610 = vpack.c.bf16 %v3582, %v3578
  %v3611 = vpack.c.bf16 %v3583, %v3579
  %v3612 = vpack.c.bf16 %v3584, %v3580
  %v3613 = vpack.c.bf16 %v3589, %v3585
  %v3614 = vpack.c.bf16 %v3590, %v3586
  %v3615 = vpack.c.bf16 %v3591, %v3587
  %v3616 = vpack.c.bf16 %v3592, %v3588
  %v3617 = vpack.c.bf16 %v3597, %v3593
  %v3618 = vpack.c.bf16 %v3598, %v3594
  %v3619 = vpack.c.bf16 %v3599, %v3595
  %v3620 = vpack.c.bf16 %v3600, %v3596
  %v3621 = vpack.c.bf16 %v3605, %v3601
  %v3622 = vpack.c.bf16 %v3606, %v3602
  %v3623 = vpack.c.bf16 %v3607, %v3603
  %v3624 = vpack.c.bf16 %v3608, %v3604
  %3625 = vst [vmem:[#allocation2 + $0x380] sm:$0xff] %v3609
  %3626 = vst [vmem:[#allocation2 + $0x388] sm:$0xff] %v3610
  %3627 = vst [vmem:[#allocation2 + $0x390] sm:$0xff] %v3611
  %3628 = vst [vmem:[#allocation2 + $0x398] sm:$0xff] %v3612
  %3629 = vst [vmem:[#allocation2 + $0x3a0] sm:$0xff] %v3613
  %3630 = vst [vmem:[#allocation2 + $0x3a8] sm:$0xff] %v3614
  %3631 = vst [vmem:[#allocation2 + $0x3b0] sm:$0xff] %v3615
  %3632 = vst [vmem:[#allocation2 + $0x3b8] sm:$0xff] %v3616
  %3633 = vst [vmem:[#allocation2 + $0x3c0] sm:$0xff] %v3617
  %3634 = vst [vmem:[#allocation2 + $0x3c8] sm:$0xff] %v3618
  %3635 = vst [vmem:[#allocation2 + $0x3d0] sm:$0xff] %v3619
  %3636 = vst [vmem:[#allocation2 + $0x3d8] sm:$0xff] %v3620
  %3637 = vst [vmem:[#allocation2 + $0x3e0] sm:$0xff] %v3621
  %3638 = vst [vmem:[#allocation2 + $0x3e8] sm:$0xff] %v3622
  %3639 = vst [vmem:[#allocation2 + $0x3f0] sm:$0xff] %v3623
  %3640 = vst [vmem:[#allocation2 + $0x3f8] sm:$0xff] %v3624
  %3641 = vrot.lane.b32.xlu0 %v2457, 111
  %v3642 = vpop.permute.xlu0 %3641
  %3643 = vrot.lane.b32.xlu0 %v2461, 111
  %v3644 = vpop.permute.xlu0 %3643
  %3645 = vrot.lane.b32.xlu0 %v2465, 111
  %v3646 = vpop.permute.xlu0 %3645
  %3647 = vrot.lane.b32.xlu0 %v2469, 111
  %v3648 = vpop.permute.xlu0 %3647
  %3649 = vrot.lane.b32.xlu0 %v2473, 111
  %v3650 = vpop.permute.xlu0 %3649
  %3651 = vrot.lane.b32.xlu0 %v2477, 111
  %v3652 = vpop.permute.xlu0 %3651
  %3653 = vrot.lane.b32.xlu0 %v2481, 111
  %v3654 = vpop.permute.xlu0 %3653
  %3655 = vrot.lane.b32.xlu0 %v2485, 111
  %v3656 = vpop.permute.xlu0 %3655
  %3657 = vrot.lane.b32.xlu0 %v2458, 111
  %v3658 = vpop.permute.xlu0 %3657
  %3659 = vrot.lane.b32.xlu0 %v2462, 111
  %v3660 = vpop.permute.xlu0 %3659
  %3661 = vrot.lane.b32.xlu0 %v2466, 111
  %v3662 = vpop.permute.xlu0 %3661
  %3663 = vrot.lane.b32.xlu0 %v2470, 111
  %v3664 = vpop.permute.xlu0 %3663
  %3665 = vrot.lane.b32.xlu0 %v2474, 111
  %v3666 = vpop.permute.xlu0 %3665
  %3667 = vrot.lane.b32.xlu0 %v2478, 111
  %v3668 = vpop.permute.xlu0 %3667
  %3669 = vrot.lane.b32.xlu0 %v2482, 111
  %v3670 = vpop.permute.xlu0 %3669
  %3671 = vrot.lane.b32.xlu0 %v2486, 111
  %v3672 = vpop.permute.xlu0 %3671
  %3673 = vrot.lane.b32.xlu0 %v2459, 111
  %v3674 = vpop.permute.xlu0 %3673
  %3675 = vrot.lane.b32.xlu0 %v2463, 111
  %v3676 = vpop.permute.xlu0 %3675
  %3677 = vrot.lane.b32.xlu0 %v2467, 111
  %v3678 = vpop.permute.xlu0 %3677
  %3679 = vrot.lane.b32.xlu0 %v2471, 111
  %v3680 = vpop.permute.xlu0 %3679
  %3681 = vrot.lane.b32.xlu0 %v2475, 111
  %v3682 = vpop.permute.xlu0 %3681
  %3683 = vrot.lane.b32.xlu0 %v2479, 111
  %v3684 = vpop.permute.xlu0 %3683
  %3685 = vrot.lane.b32.xlu0 %v2483, 111
  %v3686 = vpop.permute.xlu0 %3685
  %3687 = vrot.lane.b32.xlu0 %v2487, 111
  %v3688 = vpop.permute.xlu0 %3687
  %3689 = vrot.lane.b32.xlu0 %v2460, 111
  %v3690 = vpop.permute.xlu0 %3689
  %3691 = vrot.lane.b32.xlu0 %v2464, 111
  %v3692 = vpop.permute.xlu0 %3691
  %3693 = vrot.lane.b32.xlu0 %v2468, 111
  %v3694 = vpop.permute.xlu0 %3693
  %3695 = vrot.lane.b32.xlu0 %v2472, 111
  %v3696 = vpop.permute.xlu0 %3695
  %3697 = vrot.lane.b32.xlu0 %v2476, 111
  %v3698 = vpop.permute.xlu0 %3697
  %3699 = vrot.lane.b32.xlu0 %v2480, 111
  %v3700 = vpop.permute.xlu0 %3699
  %3701 = vrot.lane.b32.xlu0 %v2484, 111
  %v3702 = vpop.permute.xlu0 %3701
  %3703 = vrot.lane.b32.xlu0 %v2488, 111
  %v3704 = vpop.permute.xlu0 %3703
  %v3705 = vsel %vm663, %v3674, %v3690
  %v3706 = vsel %vm663, %v3676, %v3692
  %v3707 = vsel %vm663, %v3678, %v3694
  %v3708 = vsel %vm663, %v3680, %v3696
  %v3709 = vsel %vm663, %v3682, %v3698
  %v3710 = vsel %vm663, %v3684, %v3700
  %v3711 = vsel %vm663, %v3686, %v3702
  %v3712 = vsel %vm663, %v3688, %v3704
  %v3713 = vsel %vm663, %v3658, %v3674
  %v3714 = vsel %vm663, %v3660, %v3676
  %v3715 = vsel %vm663, %v3662, %v3678
  %v3716 = vsel %vm663, %v3664, %v3680
  %v3717 = vsel %vm663, %v3666, %v3682
  %v3718 = vsel %vm663, %v3668, %v3684
  %v3719 = vsel %vm663, %v3670, %v3686
  %v3720 = vsel %vm663, %v3672, %v3688
  %v3721 = vsel %vm663, %v3642, %v3658
  %v3722 = vsel %vm663, %v3644, %v3660
  %v3723 = vsel %vm663, %v3646, %v3662
  %v3724 = vsel %vm663, %v3648, %v3664
  %v3725 = vsel %vm663, %v3650, %v3666
  %v3726 = vsel %vm663, %v3652, %v3668
  %v3727 = vsel %vm663, %v3654, %v3670
  %v3728 = vsel %vm663, %v3656, %v3672
  %v3729 = vsel %vm663, %v3690, %v3642
  %v3730 = vsel %vm663, %v3692, %v3644
  %v3731 = vsel %vm663, %v3694, %v3646
  %v3732 = vsel %vm663, %v3696, %v3648
  %v3733 = vsel %vm663, %v3698, %v3650
  %v3734 = vsel %vm663, %v3700, %v3652
  %v3735 = vsel %vm663, %v3702, %v3654
  %v3736 = vsel %vm663, %v3704, %v3656
  %v3737 = vmul.f32 %v3721, %v672
  %v3738 = vmul.f32 %v3713, %v676
  %v3739 = vmul.f32 %v3705, %v680
  %v3740 = vmul.f32 %v3729, %v684
  %v3741 = vmul.f32 %v3722, %v672
  %v3742 = vmul.f32 %v3714, %v676
  %v3743 = vmul.f32 %v3706, %v680
  %v3744 = vmul.f32 %v3730, %v684
  %v3745 = vmul.f32 %v3723, %v672
  %v3746 = vmul.f32 %v3715, %v676
  %v3747 = vmul.f32 %v3707, %v680
  %v3748 = vmul.f32 %v3731, %v684
  %v3749 = vmul.f32 %v3724, %v672
  %v3750 = vmul.f32 %v3716, %v676
  %v3751 = vmul.f32 %v3708, %v680
  %v3752 = vmul.f32 %v3732, %v684
  %v3753 = vmul.f32 %v3725, %v672
  %v3754 = vmul.f32 %v3717, %v676
  %v3755 = vmul.f32 %v3709, %v680
  %v3756 = vmul.f32 %v3733, %v684
  %v3757 = vmul.f32 %v3726, %v672
  %v3758 = vmul.f32 %v3718, %v676
  %v3759 = vmul.f32 %v3710, %v680
  %v3760 = vmul.f32 %v3734, %v684
  %v3761 = vmul.f32 %v3727, %v672
  %v3762 = vmul.f32 %v3719, %v676
  %v3763 = vmul.f32 %v3711, %v680
  %v3764 = vmul.f32 %v3735, %v684
  %v3765 = vmul.f32 %v3728, %v672
  %v3766 = vmul.f32 %v3720, %v676
  %v3767 = vmul.f32 %v3712, %v680
  %v3768 = vmul.f32 %v3736, %v684
  %v3769 = vpack.c.bf16 %v3741, %v3737
  %v3770 = vpack.c.bf16 %v3742, %v3738
  %v3771 = vpack.c.bf16 %v3743, %v3739
  %v3772 = vpack.c.bf16 %v3744, %v3740
  %v3773 = vpack.c.bf16 %v3749, %v3745
  %v3774 = vpack.c.bf16 %v3750, %v3746
  %v3775 = vpack.c.bf16 %v3751, %v3747
  %v3776 = vpack.c.bf16 %v3752, %v3748
  %v3777 = vpack.c.bf16 %v3757, %v3753
  %v3778 = vpack.c.bf16 %v3758, %v3754
  %v3779 = vpack.c.bf16 %v3759, %v3755
  %v3780 = vpack.c.bf16 %v3760, %v3756
  %v3781 = vpack.c.bf16 %v3765, %v3761
  %v3782 = vpack.c.bf16 %v3766, %v3762
  %v3783 = vpack.c.bf16 %v3767, %v3763
  %v3784 = vpack.c.bf16 %v3768, %v3764
  %3785 = vst [vmem:[#allocation2 + $0x400] sm:$0xff] %v3769
  %3786 = vst [vmem:[#allocation2 + $0x408] sm:$0xff] %v3770
  %3787 = vst [vmem:[#allocation2 + $0x410] sm:$0xff] %v3771
  %3788 = vst [vmem:[#allocation2 + $0x418] sm:$0xff] %v3772
  %3789 = vst [vmem:[#allocation2 + $0x420] sm:$0xff] %v3773
  %3790 = vst [vmem:[#allocation2 + $0x428] sm:$0xff] %v3774
  %3791 = vst [vmem:[#allocation2 + $0x430] sm:$0xff] %v3775
  %3792 = vst [vmem:[#allocation2 + $0x438] sm:$0xff] %v3776
  %3793 = vst [vmem:[#allocation2 + $0x440] sm:$0xff] %v3777
  %3794 = vst [vmem:[#allocation2 + $0x448] sm:$0xff] %v3778
  %3795 = vst [vmem:[#allocation2 + $0x450] sm:$0xff] %v3779
  %3796 = vst [vmem:[#allocation2 + $0x458] sm:$0xff] %v3780
  %3797 = vst [vmem:[#allocation2 + $0x460] sm:$0xff] %v3781
  %3798 = vst [vmem:[#allocation2 + $0x468] sm:$0xff] %v3782
  %3799 = vst [vmem:[#allocation2 + $0x470] sm:$0xff] %v3783
  %3800 = vst [vmem:[#allocation2 + $0x478] sm:$0xff] %v3784
  %v3801 = vld [vmem:[%s8] sm:$0xff]
  %v3802 = vld [vmem:[%s8 + $0x8] sm:$0xff]
  %v3803 = vld [vmem:[%s8 + $0x10] sm:$0xf]
  %v3804 = vld [vmem:[%s8 + $0x14] sm:$0xff]
  %v3805 = vld [vmem:[%s8 + $0x1c] sm:$0xff]
  %v3806 = vld [vmem:[%s8 + $0x24] sm:$0xf]
  %v3807 = vld [vmem:[%s8 + $0x28] sm:$0xff]
  %v3808 = vld [vmem:[%s8 + $0x30] sm:$0xff]
  %v3809 = vld [vmem:[%s8 + $0x38] sm:$0xf]
  %v3810 = vld [vmem:[%s8 + $0x3c] sm:$0xff]
  %v3811 = vld [vmem:[%s8 + $0x44] sm:$0xff]
  %v3812 = vld [vmem:[%s8 + $0x4c] sm:$0xf]
  %v3813 = vld [vmem:[#allocation2] sm:$0xff]
  %v3814 = vld [vmem:[#allocation2 + $0x8] sm:$0xff]
  %v3815 = vld [vmem:[#allocation2 + $0x10] sm:$0xff]
  %v3816 = vld [vmem:[#allocation2 + $0x18] sm:$0xff]
  %v3817 = vld [vmem:[#allocation2 + $0x20] sm:$0xff]
  %v3818 = vld [vmem:[#allocation2 + $0x28] sm:$0xff]
  %v3819 = vld [vmem:[#allocation2 + $0x30] sm:$0xff]
  %v3820 = vld [vmem:[#allocation2 + $0x38] sm:$0xff]
  %v3821 = vld [vmem:[#allocation2 + $0x40] sm:$0xff]
  %v3822 = vld [vmem:[#allocation2 + $0x48] sm:$0xff]
  %v3823 = vld [vmem:[#allocation2 + $0x50] sm:$0xff]
  %v3824 = vld [vmem:[#allocation2 + $0x58] sm:$0xff]
  %v3825 = vld [vmem:[#allocation2 + $0x60] sm:$0xff]
  %v3826 = vld [vmem:[#allocation2 + $0x68] sm:$0xff]
  %v3827 = vld [vmem:[#allocation2 + $0x70] sm:$0xff]
  %v3828 = vld [vmem:[#allocation2 + $0x78] sm:$0xff]
  %v3829 = vld [vmem:[#allocation2 + $0x80] sm:$0xff]
  %v3830 = vld [vmem:[#allocation2 + $0x88] sm:$0xff]
  %v3831 = vld [vmem:[#allocation2 + $0x90] sm:$0xff]
  %v3832 = vld [vmem:[#allocation2 + $0x98] sm:$0xff]
  %v3833 = vld [vmem:[#allocation2 + $0xa0] sm:$0xff]
  %v3834 = vld [vmem:[#allocation2 + $0xa8] sm:$0xff]
  %v3835 = vld [vmem:[#allocation2 + $0xb0] sm:$0xff]
  %v3836 = vld [vmem:[#allocation2 + $0xb8] sm:$0xff]
  %v3837 = vld [vmem:[#allocation2 + $0xc0] sm:$0xff]
  %v3838 = vld [vmem:[#allocation2 + $0xc8] sm:$0xff]
  %v3839 = vld [vmem:[#allocation2 + $0xd0] sm:$0xff]
  %v3840 = vld [vmem:[#allocation2 + $0xd8] sm:$0xff]
  %v3841 = vld [vmem:[#allocation2 + $0xe0] sm:$0xff]
  %v3842 = vld [vmem:[#allocation2 + $0xe8] sm:$0xff]
  %v3843 = vld [vmem:[#allocation2 + $0xf0] sm:$0xff]
  %v3844 = vld [vmem:[#allocation2 + $0xf8] sm:$0xff]
  %v3845 = vld [vmem:[#allocation2 + $0x100] sm:$0xff]
  %v3846 = vld [vmem:[#allocation2 + $0x108] sm:$0xff]
  %v3847 = vld [vmem:[#allocation2 + $0x110] sm:$0xff]
  %v3848 = vld [vmem:[#allocation2 + $0x118] sm:$0xff]
  %v3849 = vld [vmem:[#allocation2 + $0x120] sm:$0xff]
  %v3850 = vld [vmem:[#allocation2 + $0x128] sm:$0xff]
  %v3851 = vld [vmem:[#allocation2 + $0x130] sm:$0xff]
  %v3852 = vld [vmem:[#allocation2 + $0x138] sm:$0xff]
  %v3853 = vld [vmem:[#allocation2 + $0x140] sm:$0xff]
  %v3854 = vld [vmem:[#allocation2 + $0x148] sm:$0xff]
  %v3855 = vld [vmem:[#allocation2 + $0x150] sm:$0xff]
  %v3856 = vld [vmem:[#allocation2 + $0x158] sm:$0xff]
  %v3857 = vld [vmem:[#allocation2 + $0x160] sm:$0xff]
  %v3858 = vld [vmem:[#allocation2 + $0x168] sm:$0xff]
  %v3859 = vld [vmem:[#allocation2 + $0x170] sm:$0xff]
  %v3860 = vld [vmem:[#allocation2 + $0x178] sm:$0xff]
  %v3861 = vld [vmem:[#allocation2 + $0x180] sm:$0xff]
  %v3862 = vld [vmem:[#allocation2 + $0x188] sm:$0xff]
  %v3863 = vld [vmem:[#allocation2 + $0x190] sm:$0xff]
  %v3864 = vld [vmem:[#allocation2 + $0x198] sm:$0xff]
  %v3865 = vld [vmem:[#allocation2 + $0x1a0] sm:$0xff]
  %v3866 = vld [vmem:[#allocation2 + $0x1a8] sm:$0xff]
  %v3867 = vld [vmem:[#allocation2 + $0x1b0] sm:$0xff]
  %v3868 = vld [vmem:[#allocation2 + $0x1b8] sm:$0xff]
  %v3869 = vld [vmem:[#allocation2 + $0x1c0] sm:$0xff]
  %v3870 = vld [vmem:[#allocation2 + $0x1c8] sm:$0xff]
  %v3871 = vld [vmem:[#allocation2 + $0x1d0] sm:$0xff]
  %v3872 = vld [vmem:[#allocation2 + $0x1d8] sm:$0xff]
  %v3873 = vld [vmem:[#allocation2 + $0x1e0] sm:$0xff]
  %v3874 = vld [vmem:[#allocation2 + $0x1e8] sm:$0xff]
  %v3875 = vld [vmem:[#allocation2 + $0x1f0] sm:$0xff]
  %v3876 = vld [vmem:[#allocation2 + $0x1f8] sm:$0xff]
  %v3877 = vld [vmem:[#allocation2 + $0x200] sm:$0xff]
  %v3878 = vld [vmem:[#allocation2 + $0x208] sm:$0xff]
  %v3879 = vld [vmem:[#allocation2 + $0x210] sm:$0xff]
  %v3880 = vld [vmem:[#allocation2 + $0x218] sm:$0xff]
  %v3881 = vld [vmem:[#allocation2 + $0x220] sm:$0xff]
  %v3882 = vld [vmem:[#allocation2 + $0x228] sm:$0xff]
  %v3883 = vld [vmem:[#allocation2 + $0x230] sm:$0xff]
  %v3884 = vld [vmem:[#allocation2 + $0x238] sm:$0xff]
  %v3885 = vld [vmem:[#allocation2 + $0x240] sm:$0xff]
  %v3886 = vld [vmem:[#allocation2 + $0x248] sm:$0xff]
  %v3887 = vld [vmem:[#allocation2 + $0x250] sm:$0xff]
  %v3888 = vld [vmem:[#allocation2 + $0x258] sm:$0xff]
  %v3889 = vld [vmem:[#allocation2 + $0x260] sm:$0xff]
  %v3890 = vld [vmem:[#allocation2 + $0x268] sm:$0xff]
  %v3891 = vld [vmem:[#allocation2 + $0x270] sm:$0xff]
  %v3892 = vld [vmem:[#allocation2 + $0x278] sm:$0xff]
  %v3893 = vld [vmem:[#allocation2 + $0x280] sm:$0xff]
  %v3894 = vld [vmem:[#allocation2 + $0x288] sm:$0xff]
  %v3895 = vld [vmem:[#allocation2 + $0x290] sm:$0xff]
  %v3896 = vld [vmem:[#allocation2 + $0x298] sm:$0xff]
  %v3897 = vld [vmem:[#allocation2 + $0x2a0] sm:$0xff]
  %v3898 = vld [vmem:[#allocation2 + $0x2a8] sm:$0xff]
  %v3899 = vld [vmem:[#allocation2 + $0x2b0] sm:$0xff]
  %v3900 = vld [vmem:[#allocation2 + $0x2b8] sm:$0xff]
  %v3901 = vld [vmem:[#allocation2 + $0x2c0] sm:$0xff]
  %v3902 = vld [vmem:[#allocation2 + $0x2c8] sm:$0xff]
  %v3903 = vld [vmem:[#allocation2 + $0x2d0] sm:$0xff]
  %v3904 = vld [vmem:[#allocation2 + $0x2d8] sm:$0xff]
  %v3905 = vld [vmem:[#allocation2 + $0x2e0] sm:$0xff]
  %v3906 = vld [vmem:[#allocation2 + $0x2e8] sm:$0xff]
  %v3907 = vld [vmem:[#allocation2 + $0x2f0] sm:$0xff]
  %v3908 = vld [vmem:[#allocation2 + $0x2f8] sm:$0xff]
  %v3909 = vld [vmem:[#allocation2 + $0x300] sm:$0xff]
  %v3910 = vld [vmem:[#allocation2 + $0x308] sm:$0xff]
  %v3911 = vld [vmem:[#allocation2 + $0x310] sm:$0xff]
  %v3912 = vld [vmem:[#allocation2 + $0x318] sm:$0xff]
  %v3913 = vld [vmem:[#allocation2 + $0x320] sm:$0xff]
  %v3914 = vld [vmem:[#allocation2 + $0x328] sm:$0xff]
  %v3915 = vld [vmem:[#allocation2 + $0x330] sm:$0xff]
  %v3916 = vld [vmem:[#allocation2 + $0x338] sm:$0xff]
  %v3917 = vld [vmem:[#allocation2 + $0x340] sm:$0xff]
  %v3918 = vld [vmem:[#allocation2 + $0x348] sm:$0xff]
  %v3919 = vld [vmem:[#allocation2 + $0x350] sm:$0xff]
  %v3920 = vld [vmem:[#allocation2 + $0x358] sm:$0xff]
  %v3921 = vld [vmem:[#allocation2 + $0x360] sm:$0xff]
  %v3922 = vld [vmem:[#allocation2 + $0x368] sm:$0xff]
  %v3923 = vld [vmem:[#allocation2 + $0x370] sm:$0xff]
  %v3924 = vld [vmem:[#allocation2 + $0x378] sm:$0xff]
  %v3925 = vld [vmem:[#allocation2 + $0x380] sm:$0xff]
  %v3926 = vld [vmem:[#allocation2 + $0x388] sm:$0xff]
  %v3927 = vld [vmem:[#allocation2 + $0x390] sm:$0xff]
  %v3928 = vld [vmem:[#allocation2 + $0x398] sm:$0xff]
  %v3929 = vld [vmem:[#allocation2 + $0x3a0] sm:$0xff]
  %v3930 = vld [vmem:[#allocation2 + $0x3a8] sm:$0xff]
  %v3931 = vld [vmem:[#allocation2 + $0x3b0] sm:$0xff]
  %v3932 = vld [vmem:[#allocation2 + $0x3b8] sm:$0xff]
  %v3933 = vld [vmem:[#allocation2 + $0x3c0] sm:$0xff]
  %v3934 = vld [vmem:[#allocation2 + $0x3c8] sm:$0xff]
  %v3935 = vld [vmem:[#allocation2 + $0x3d0] sm:$0xff]
  %v3936 = vld [vmem:[#allocation2 + $0x3d8] sm:$0xff]
  %v3937 = vld [vmem:[#allocation2 + $0x3e0] sm:$0xff]
  %v3938 = vld [vmem:[#allocation2 + $0x3e8] sm:$0xff]
  %v3939 = vld [vmem:[#allocation2 + $0x3f0] sm:$0xff]
  %v3940 = vld [vmem:[#allocation2 + $0x3f8] sm:$0xff]
  %v3941 = vld [vmem:[#allocation2 + $0x400] sm:$0xff]
  %v3942 = vld [vmem:[#allocation2 + $0x408] sm:$0xff]
  %v3943 = vld [vmem:[#allocation2 + $0x410] sm:$0xff]
  %v3944 = vld [vmem:[#allocation2 + $0x418] sm:$0xff]
  %v3945 = vld [vmem:[#allocation2 + $0x420] sm:$0xff]
  %v3946 = vld [vmem:[#allocation2 + $0x428] sm:$0xff]
  %v3947 = vld [vmem:[#allocation2 + $0x430] sm:$0xff]
  %v3948 = vld [vmem:[#allocation2 + $0x438] sm:$0xff]
  %v3949 = vld [vmem:[#allocation2 + $0x440] sm:$0xff]
  %v3950 = vld [vmem:[#allocation2 + $0x448] sm:$0xff]
  %v3951 = vld [vmem:[#allocation2 + $0x450] sm:$0xff]
  %v3952 = vld [vmem:[#allocation2 + $0x458] sm:$0xff]
  %v3953 = vld [vmem:[#allocation2 + $0x460] sm:$0xff]
  %v3954 = vld [vmem:[#allocation2 + $0x468] sm:$0xff]
  %v3955 = vld [vmem:[#allocation2 + $0x470] sm:$0xff]
  %v3956 = vld [vmem:[#allocation2 + $0x478] sm:$0xff]
  %v3957 = vld [vmem:[%s9] sm:$0xff]
  %v3958 = vld [vmem:[%s9 + $0x8] sm:$0xff]
  %v3959 = vld [vmem:[%s9 + $0x10] sm:$0xff]
  %v3960 = vld [vmem:[%s9 + $0x18] sm:$0xff]
  %3962 = vset.pattern.permute.xlu0 0
  %3963 = vperm.xlu0 %3962, %v3957
  %v3964 = vpop.permute.xlu0 %3963
  %3967 = vset.pattern.permute.xlu0 0
  %3968 = vperm.xlu0 %3967, %v3958
  %v3969 = vpop.permute.xlu0 %3968
  %3972 = vset.pattern.permute.xlu0 0
  %3973 = vperm.xlu0 %3972, %v3959
  %v3974 = vpop.permute.xlu0 %3973
  %3977 = vset.pattern.permute.xlu0 0
  %3978 = vperm.xlu0 %3977, %v3960
  %v3979 = vpop.permute.xlu0 %3978
  %v3993 = vunpack.c.l.b16 %v3801
  %v3994 = vunpack.c.h.b16 %v3801
  %v3995 = vunpack.c.l.b16 %v3802
  %v3996 = vunpack.c.h.b16 %v3802
  %v3997 = vunpack.c.l.b16 %v3803
  %v3998 = vunpack.c.l.b16 %v3804
  %v3999 = vunpack.c.h.b16 %v3804
  %v4000 = vunpack.c.l.b16 %v3805
  %v4001 = vunpack.c.h.b16 %v3805
  %v4002 = vunpack.c.l.b16 %v3806
  %v4003 = vunpack.c.l.b16 %v3807
  %v4004 = vunpack.c.h.b16 %v3807
  %v4005 = vunpack.c.l.b16 %v3808
  %v4006 = vunpack.c.h.b16 %v3808
  %v4007 = vunpack.c.l.b16 %v3809
  %v4008 = vunpack.c.l.b16 %v3810
  %v4009 = vunpack.c.h.b16 %v3810
  %v4010 = vunpack.c.l.b16 %v3811
  %v4011 = vunpack.c.h.b16 %v3811
  %v4012 = vunpack.c.l.b16 %v3812
  %v4013 = vpack.c.b16 %v3998, %v3993
  %v4014 = vpack.c.b16 %v3999, %v3994
  %v4015 = vpack.c.b16 %v4000, %v3995
  %v4016 = vpack.c.b16 %v4001, %v3996
  %v4017 = vpack.c.b16 %v4002, %v3997
  %v4018 = vpack.c.b16 %v4008, %v4003
  %v4019 = vpack.c.b16 %v4009, %v4004
  %v4020 = vpack.c.b16 %v4010, %v4005
  %v4021 = vpack.c.b16 %v4011, %v4006
  %v4022 = vpack.c.b16 %v4012, %v4007
  %vm4031 = vcmask 523264
  %v4033 = vsel %vm4031, %v4017, 0
  %v4036 = vsel %vm4031, %v4022, 0
  %4038 = vmatprep.subr.bf16.mxu0 %v3814
  %4039 = vmatpush1.bf16.msra.mxu0 %v3813
  %4040 = vmatprep.subr.bf16.mxu0 %v3818
  %4041 = vmatpush1.bf16.msra.mxu0 %v3817
  %4042 = vmatprep.subr.bf16.mxu0 %v3822
  %4043 = vmatpush1.bf16.msra.mxu0 %v3821
  %4044 = vmatprep.subr.bf16.mxu0 %v3826
  %4045 = vmatpush1.bf16.msra.mxu0 %v3825
  %4046 = vmatprep.subr.bf16.mxu0 %v3830
  %4047 = vmatpush1.bf16.msra.mxu0 %v3829
  %4048 = vmatprep.subr.bf16.mxu0 %v3834
  %4049 = vmatpush1.bf16.msra.mxu0 %v3833
  %4050 = vmatprep.subr.bf16.mxu0 %v3838
  %4051 = vmatpush1.bf16.msra.mxu0 %v3837
  %4052 = vmatprep.subr.bf16.mxu0 %v3842
  %4053 = vmatpush1.bf16.msra.mxu0 %v3841
  %4054 = vmatprep.subr.bf16.mxu0 %v3846
  %4055 = vmatpush1.bf16.msra.mxu0 %v3845
  %4056 = vmatprep.subr.bf16.mxu0 %v3850
  %4057 = vmatpush1.bf16.msra.mxu0 %v3849
  %4058 = vmatprep.subr.bf16.mxu0 %v3854
  %4059 = vmatpush1.bf16.msra.mxu0 %v3853
  %4060 = vmatprep.subr.bf16.mxu0 %v3858
  %4061 = vmatpush1.bf16.msra.mxu0 %v3857
  %4062 = vmatprep.subr.bf16.mxu0 %v3862
  %4063 = vmatpush1.bf16.msra.mxu0 %v3861
  %4064 = vmatprep.subr.bf16.mxu0 %v3866
  %4065 = vmatpush1.bf16.msra.mxu0 %v3865
  %4066 = vmatprep.subr.bf16.mxu0 %v3870
  %4067 = vmatpush1.bf16.msra.mxu0 %v3869
  %4068 = vmatprep.subr.bf16.mxu0 %v3874
  %4069 = vmatpush1.bf16.msra.mxu0 %v3873
  %4070 = vmatprep.mubr.bf16.mxu0 %v4014
  %4071 = vmatmul.mubr.bf16.gmra.mrb[0].mxu0 %v4013
  %v4072 = vpop.f32.mrb[0].mxu0
  %v4073 = vadd.f32 %v3964, %v4072
  %v4074 = vpop.f32.mrb[0].mxu0
  %v4075 = vadd.f32 %v3964, %v4074
  %v4076 = vpop.f32.mrb[0].mxu0
  %v4077 = vadd.f32 %v3969, %v4076
  %v4078 = vpop.f32.mrb[0].mxu0
  %v4079 = vadd.f32 %v3969, %v4078
  %4080 = vmatprep.mubr.bf16.mxu0 %v4019
  %4081 = vmatmul.mubr.bf16.gmra.mrb[0].mxu0 %v4018
  %v4082 = vpop.f32.mrb[0].mxu0
  %v4083 = vadd.f32 %v3974, %v4082
  %v4084 = vpop.f32.mrb[0].mxu0
  %v4085 = vadd.f32 %v3974, %v4084
  %v4086 = vpop.f32.mrb[0].mxu0
  %v4087 = vadd.f32 %v3979, %v4086
  %v4088 = vpop.f32.mrb[0].mxu0
  %v4089 = vadd.f32 %v3979, %v4088
  %4090 = vdwg.mxu0
  %4091 = vmatprep.subr.bf16.mxu0 %v3878
  %4092 = vmatpush1.bf16.msra.mxu0 %v3877
  %4093 = vmatprep.subr.bf16.mxu0 %v3882
  %4094 = vmatpush1.bf16.msra.mxu0 %v3881
  %4095 = vmatprep.subr.bf16.mxu0 %v3886
  %4096 = vmatpush1.bf16.msra.mxu0 %v3885
  %4097 = vmatprep.subr.bf16.mxu0 %v3890
  %4098 = vmatpush1.bf16.msra.mxu0 %v3889
  %4099 = vmatprep.subr.bf16.mxu0 %v3894
  %4100 = vmatpush1.bf16.msra.mxu0 %v3893
  %4101 = vmatprep.subr.bf16.mxu0 %v3898
  %4102 = vmatpush1.bf16.msra.mxu0 %v3897
  %4103 = vmatprep.subr.bf16.mxu0 %v3902
  %4104 = vmatpush1.bf16.msra.mxu0 %v3901
  %4105 = vmatprep.subr.bf16.mxu0 %v3906
  %4106 = vmatpush1.bf16.msra.mxu0 %v3905
  %4107 = vmatprep.subr.bf16.mxu0 %v3910
  %4108 = vmatpush1.bf16.msra.mxu0 %v3909
  %4109 = vmatprep.subr.bf16.mxu0 %v3914
  %4110 = vmatpush1.bf16.msra.mxu0 %v3913
  %4111 = vmatprep.subr.bf16.mxu0 %v3918
  %4112 = vmatpush1.bf16.msra.mxu0 %v3917
  %4113 = vmatprep.subr.bf16.mxu0 %v3922
  %4114 = vmatpush1.bf16.msra.mxu0 %v3921
  %4115 = vmatprep.subr.bf16.mxu0 %v3926
  %4116 = vmatpush1.bf16.msra.mxu0 %v3925
  %4117 = vmatprep.subr.bf16.mxu0 %v3930
  %4118 = vmatpush1.bf16.msra.mxu0 %v3929
  %4119 = vmatprep.subr.bf16.mxu0 %v3934
  %4120 = vmatpush1.bf16.msra.mxu0 %v3933
  %4121 = vmatprep.subr.bf16.mxu0 %v3938
  %4122 = vmatpush1.bf16.msra.mxu0 %v3937
  %4123 = vmatprep.mubr.bf16.mxu0 %v4016
  %4124 = vmatmul.mubr.bf16.gmra.mrb[0].mxu0 %v4015
  %v4125 = vpop.f32.mrb[0].mxu0
  %v4126 = vadd.f32 %v4073, %v4125
  %v4127 = vpop.f32.mrb[0].mxu0
  %v4128 = vadd.f32 %v4075, %v4127
  %v4129 = vpop.f32.mrb[0].mxu0
  %v4130 = vadd.f32 %v4077, %v4129
  %v4131 = vpop.f32.mrb[0].mxu0
  %v4132 = vadd.f32 %v4079, %v4131
  %4133 = vmatprep.mubr.bf16.mxu0 %v4021
  %4134 = vmatmul.mubr.bf16.gmra.mrb[0].mxu0 %v4020
  %v4135 = vpop.f32.mrb[0].mxu0
  %v4136 = vadd.f32 %v4083, %v4135
  %v4137 = vpop.f32.mrb[0].mxu0
  %v4138 = vadd.f32 %v4085, %v4137
  %v4139 = vpop.f32.mrb[0].mxu0
  %v4140 = vadd.f32 %v4087, %v4139
  %v4141 = vpop.f32.mrb[0].mxu0
  %v4142 = vadd.f32 %v4089, %v4141
  %4143 = vdwg.mxu0
  %4144 = vmatprep.subr.bf16.mxu0 %v3942
  %4145 = vmatpush1.bf16.msra.mxu0 %v3941
  %4146 = vmatprep.subr.bf16.mxu0 %v3946
  %4147 = vmatpush1.bf16.msra.mxu0 %v3945
  %4148 = vmatprep.subr.bf16.mxu0 %v3950
  %4149 = vmatpush1.bf16.msra.mxu0 %v3949
  %4150 = vmatprep.subr.bf16.mxu0 %v3954
  %4151 = vmatpush1.bf16.msra.mxu0 %v3953
  %4152 = vmatprep.subr.bf16.mxu0 0
  %4153 = vmatpush1.bf16.msra.mxu0 0
  %4154 = vmatprep.subr.bf16.mxu0 0
  %4155 = vmatpush1.bf16.msra.mxu0 0
  %4156 = vmatprep.subr.bf16.mxu0 0
  %4157 = vmatpush1.bf16.msra.mxu0 0
  %4158 = vmatprep.subr.bf16.mxu0 0
  %4159 = vmatpush1.bf16.msra.mxu0 0
  %4160 = vmatprep.subr.bf16.mxu0 0
  %4161 = vmatpush1.bf16.msra.mxu0 0
  %4162 = vmatprep.subr.bf16.mxu0 0
  %4163 = vmatpush1.bf16.msra.mxu0 0
  %4164 = vmatprep.subr.bf16.mxu0 0
  %4165 = vmatpush1.bf16.msra.mxu0 0
  %4166 = vmatprep.subr.bf16.mxu0 0
  %4167 = vmatpush1.bf16.msra.mxu0 0
  %4168 = vmatprep.subr.bf16.mxu0 0
  %4169 = vmatpush1.bf16.msra.mxu0 0
  %4170 = vmatprep.subr.bf16.mxu0 0
  %4171 = vmatpush1.bf16.msra.mxu0 0
  %4172 = vmatprep.subr.bf16.mxu0 0
  %4173 = vmatpush1.bf16.msra.mxu0 0
  %4174 = vmatprep.subr.bf16.mxu0 0
  %4175 = vmatpush1.bf16.msra.mxu0 0
  %4176 = vmatprep.mubr.bf16.mxu0 0
  %4177 = vmatmul.mubr.bf16.gmra.mrb[0].mxu0 %v4033
  %v4178 = vpop.f32.mrb[0].mxu0
  %v4179 = vadd.f32 %v4126, %v4178
  %v4180 = vpop.f32.mrb[0].mxu0
  %v4181 = vadd.f32 %v4128, %v4180
  %v4182 = vpop.f32.mrb[0].mxu0
  %v4183 = vadd.f32 %v4130, %v4182
  %v4184 = vpop.f32.mrb[0].mxu0
  %v4185 = vadd.f32 %v4132, %v4184
  %4186 = vmatprep.mubr.bf16.mxu0 0
  %4187 = vmatmul.mubr.bf16.gmra.mrb[0].mxu0 %v4036
  %v4188 = vpop.f32.mrb[0].mxu0
  %v4189 = vadd.f32 %v4136, %v4188
  %v4190 = vpop.f32.mrb[0].mxu0
  %v4191 = vadd.f32 %v4138, %v4190
  %v4192 = vpop.f32.mrb[0].mxu0
  %v4193 = vadd.f32 %v4140, %v4192
  %v4194 = vpop.f32.mrb[0].mxu0
  %v4195 = vadd.f32 %v4142, %v4194
  %4196 = vdwg.mxu0
  %4197 = vmatprep.subr.bf16.mxu0 %v3816
  %4198 = vmatpush1.bf16.msra.mxu0 %v3815
  %4199 = vmatprep.subr.bf16.mxu0 %v3820
  %4200 = vmatpush1.bf16.msra.mxu0 %v3819
  %4201 = vmatprep.subr.bf16.mxu0 %v3824
  %4202 = vmatpush1.bf16.msra.mxu0 %v3823
  %4203 = vmatprep.subr.bf16.mxu0 %v3828
  %4204 = vmatpush1.bf16.msra.mxu0 %v3827
  %4205 = vmatprep.subr.bf16.mxu0 %v3832
  %4206 = vmatpush1.bf16.msra.mxu0 %v3831
  %4207 = vmatprep.subr.bf16.mxu0 %v3836
  %4208 = vmatpush1.bf16.msra.mxu0 %v3835
  %4209 = vmatprep.subr.bf16.mxu0 %v3840
  %4210 = vmatpush1.bf16.msra.mxu0 %v3839
  %4211 = vmatprep.subr.bf16.mxu0 %v3844
  %4212 = vmatpush1.bf16.msra.mxu0 %v3843
  %4213 = vmatprep.subr.bf16.mxu0 %v3848
  %4214 = vmatpush1.bf16.msra.mxu0 %v3847
  %4215 = vmatprep.subr.bf16.mxu0 %v3852
  %4216 = vmatpush1.bf16.msra.mxu0 %v3851
  %4217 = vmatprep.subr.bf16.mxu0 %v3856
  %4218 = vmatpush1.bf16.msra.mxu0 %v3855
  %4219 = vmatprep.subr.bf16.mxu0 %v3860
  %4220 = vmatpush1.bf16.msra.mxu0 %v3859
  %4221 = vmatprep.subr.bf16.mxu0 %v3864
  %4222 = vmatpush1.bf16.msra.mxu0 %v3863
  %4223 = vmatprep.subr.bf16.mxu0 %v3868
  %4224 = vmatpush1.bf16.msra.mxu0 %v3867
  %4225 = vmatprep.subr.bf16.mxu0 %v3872
  %4226 = vmatpush1.bf16.msra.mxu0 %v3871
  %4227 = vmatprep.subr.bf16.mxu0 %v3876
  %4228 = vmatpush1.bf16.msra.mxu0 %v3875
  %4229 = vmatprep.mubr.bf16.mxu0 %v4014
  %4230 = vmatmul.mubr.bf16.gmra.mrb[0].mxu0 %v4013
  %v4231 = vpop.f32.mrb[0].mxu0
  %v4232 = vadd.f32 %v3964, %v4231
  %v4233 = vpop.f32.mrb[0].mxu0
  %v4234 = vadd.f32 %v3964, %v4233
  %v4235 = vpop.f32.mrb[0].mxu0
  %v4236 = vadd.f32 %v3969, %v4235
  %v4237 = vpop.f32.mrb[0].mxu0
  %v4238 = vadd.f32 %v3969, %v4237
  %4239 = vmatprep.mubr.bf16.mxu0 %v4019
  %4240 = vmatmul.mubr.bf16.gmra.mrb[0].mxu0 %v4018
  %v4241 = vpop.f32.mrb[0].mxu0
  %v4242 = vadd.f32 %v3974, %v4241
  %v4243 = vpop.f32.mrb[0].mxu0
  %v4244 = vadd.f32 %v3974, %v4243
  %v4245 = vpop.f32.mrb[0].mxu0
  %v4246 = vadd.f32 %v3979, %v4245
  %v4247 = vpop.f32.mrb[0].mxu0
  %v4248 = vadd.f32 %v3979, %v4247
  %4249 = vdwg.mxu0
  %4250 = vmatprep.subr.bf16.mxu0 %v3880
  %4251 = vmatpush1.bf16.msra.mxu0 %v3879
  %4252 = vmatprep.subr.bf16.mxu0 %v3884
  %4253 = vmatpush1.bf16.msra.mxu0 %v3883
  %4254 = vmatprep.subr.bf16.mxu0 %v3888
  %4255 = vmatpush1.bf16.msra.mxu0 %v3887
  %4256 = vmatprep.subr.bf16.mxu0 %v3892
  %4257 = vmatpush1.bf16.msra.mxu0 %v3891
  %4258 = vmatprep.subr.bf16.mxu0 %v3896
  %4259 = vmatpush1.bf16.msra.mxu0 %v3895
  %4260 = vmatprep.subr.bf16.mxu0 %v3900
  %4261 = vmatpush1.bf16.msra.mxu0 %v3899
  %4262 = vmatprep.subr.bf16.mxu0 %v3904
  %4263 = vmatpush1.bf16.msra.mxu0 %v3903
  %4264 = vmatprep.subr.bf16.mxu0 %v3908
  %4265 = vmatpush1.bf16.msra.mxu0 %v3907
  %4266 = vmatprep.subr.bf16.mxu0 %v3912
  %4267 = vmatpush1.bf16.msra.mxu0 %v3911
  %4268 = vmatprep.subr.bf16.mxu0 %v3916
  %4269 = vmatpush1.bf16.msra.mxu0 %v3915
  %4270 = vmatprep.subr.bf16.mxu0 %v3920
  %4271 = vmatpush1.bf16.msra.mxu0 %v3919
  %4272 = vmatprep.subr.bf16.mxu0 %v3924
  %4273 = vmatpush1.bf16.msra.mxu0 %v3923
  %4274 = vmatprep.subr.bf16.mxu0 %v3928
  %4275 = vmatpush1.bf16.msra.mxu0 %v3927
  %4276 = vmatprep.subr.bf16.mxu0 %v3932
  %4277 = vmatpush1.bf16.msra.mxu0 %v3931
  %4278 = vmatprep.subr.bf16.mxu0 %v3936
  %4279 = vmatpush1.bf16.msra.mxu0 %v3935
  %4280 = vmatprep.subr.bf16.mxu0 %v3940
  %4281 = vmatpush1.bf16.msra.mxu0 %v3939
  %4282 = vmatprep.mubr.bf16.mxu0 %v4016
  %4283 = vmatmul.mubr.bf16.gmra.mrb[0].mxu0 %v4015
  %v4284 = vpop.f32.mrb[0].mxu0
  %v4285 = vadd.f32 %v4232, %v4284
  %v4286 = vpop.f32.mrb[0].mxu0
  %v4287 = vadd.f32 %v4234, %v4286
  %v4288 = vpop.f32.mrb[0].mxu0
  %v4289 = vadd.f32 %v4236, %v4288
  %v4290 = vpop.f32.mrb[0].mxu0
  %v4291 = vadd.f32 %v4238, %v4290
  %4292 = vmatprep.mubr.bf16.mxu0 %v4021
  %4293 = vmatmul.mubr.bf16.gmra.mrb[0].mxu0 %v4020
  %v4294 = vpop.f32.mrb[0].mxu0
  %v4295 = vadd.f32 %v4242, %v4294
  %v4296 = vpop.f32.mrb[0].mxu0
  %v4297 = vadd.f32 %v4244, %v4296
  %v4298 = vpop.f32.mrb[0].mxu0
  %v4299 = vadd.f32 %v4246, %v4298
  %v4300 = vpop.f32.mrb[0].mxu0
  %v4301 = vadd.f32 %v4248, %v4300
  %4302 = vdwg.mxu0
  %4303 = vmatprep.subr.bf16.mxu0 %v3944
  %4304 = vmatpush1.bf16.msra.mxu0 %v3943
  %4305 = vmatprep.subr.bf16.mxu0 %v3948
  %4306 = vmatpush1.bf16.msra.mxu0 %v3947
  %4307 = vmatprep.subr.bf16.mxu0 %v3952
  %4308 = vmatpush1.bf16.msra.mxu0 %v3951
  %4309 = vmatprep.subr.bf16.mxu0 %v3956
  %4310 = vmatpush1.bf16.msra.mxu0 %v3955
  %4311 = vmatprep.subr.bf16.mxu0 0
  %4312 = vmatpush1.bf16.msra.mxu0 0
  %4313 = vmatprep.subr.bf16.mxu0 0
  %4314 = vmatpush1.bf16.msra.mxu0 0
  %4315 = vmatprep.subr.bf16.mxu0 0
  %4316 = vmatpush1.bf16.msra.mxu0 0
  %4317 = vmatprep.subr.bf16.mxu0 0
  %4318 = vmatpush1.bf16.msra.mxu0 0
  %4319 = vmatprep.subr.bf16.mxu0 0
  %4320 = vmatpush1.bf16.msra.mxu0 0
  %4321 = vmatprep.subr.bf16.mxu0 0
  %4322 = vmatpush1.bf16.msra.mxu0 0
  %4323 = vmatprep.subr.bf16.mxu0 0
  %4324 = vmatpush1.bf16.msra.mxu0 0
  %4325 = vmatprep.subr.bf16.mxu0 0
  %4326 = vmatpush1.bf16.msra.mxu0 0
  %4327 = vmatprep.subr.bf16.mxu0 0
  %4328 = vmatpush1.bf16.msra.mxu0 0
  %4329 = vmatprep.subr.bf16.mxu0 0
  %4330 = vmatpush1.bf16.msra.mxu0 0
  %4331 = vmatprep.subr.bf16.mxu0 0
  %4332 = vmatpush1.bf16.msra.mxu0 0
  %4333 = vmatprep.subr.bf16.mxu0 0
  %4334 = vmatpush1.bf16.msra.mxu0 0
  %4335 = vmatprep.mubr.bf16.mxu0 0
  %4336 = vmatmul.mubr.bf16.gmra.mrb[0].mxu0 %v4033
  %v4337 = vpop.f32.mrb[0].mxu0
  %v4338 = vadd.f32 %v4285, %v4337
  %v4339 = vpop.f32.mrb[0].mxu0
  %v4340 = vadd.f32 %v4287, %v4339
  %v4341 = vpop.f32.mrb[0].mxu0
  %v4342 = vadd.f32 %v4289, %v4341
  %v4343 = vpop.f32.mrb[0].mxu0
  %v4344 = vadd.f32 %v4291, %v4343
  %4345 = vmatprep.mubr.bf16.mxu0 0
  %4346 = vmatmul.mubr.bf16.gmra.mrb[0].mxu0 %v4036
  %v4347 = vpop.f32.mrb[0].mxu0
  %v4348 = vadd.f32 %v4295, %v4347
  %v4349 = vpop.f32.mrb[0].mxu0
  %v4350 = vadd.f32 %v4297, %v4349
  %v4351 = vpop.f32.mrb[0].mxu0
  %v4352 = vadd.f32 %v4299, %v4351
  %v4353 = vpop.f32.mrb[0].mxu0
  %v4354 = vadd.f32 %v4301, %v4353
  %4355 = vdwg.mxu0
  %v4356 = vmax.f32 %v4179, 0.0
  %v4357 = vmax.f32 %v4181, 0.0
  %v4358 = vmax.f32 %v4338, 0.0
  %v4359 = vmax.f32 %v4340, 0.0
  %v4360 = vmax.f32 %v4183, 0.0
  %v4361 = vmax.f32 %v4185, 0.0
  %v4362 = vmax.f32 %v4342, 0.0
  %v4363 = vmax.f32 %v4344, 0.0
  %v4364 = vmax.f32 %v4189, 0.0
  %v4365 = vmax.f32 %v4191, 0.0
  %v4366 = vmax.f32 %v4348, 0.0
  %v4367 = vmax.f32 %v4350, 0.0
  %v4368 = vmax.f32 %v4193, 0.0
  %v4369 = vmax.f32 %v4195, 0.0
  %v4370 = vmax.f32 %v4352, 0.0
  %v4371 = vmax.f32 %v4354, 0.0
  %4372 = vrot.lane.b32.xlu0 %v4356, 17
  %v4373 = vpop.permute.xlu0 %4372
  %4374 = vrot.lane.b32.xlu0 %v4360, 17
  %v4375 = vpop.permute.xlu0 %4374
  %4376 = vrot.lane.b32.xlu0 %v4364, 17
  %v4377 = vpop.permute.xlu0 %4376
  %4378 = vrot.lane.b32.xlu0 %v4368, 17
  %v4379 = vpop.permute.xlu0 %4378
  %4380 = vrot.lane.b32.xlu0 %v4357, 17
  %v4381 = vpop.permute.xlu0 %4380
  %4382 = vrot.lane.b32.xlu0 %v4361, 17
  %v4383 = vpop.permute.xlu0 %4382
  %4384 = vrot.lane.b32.xlu0 %v4365, 17
  %v4385 = vpop.permute.xlu0 %4384
  %4386 = vrot.lane.b32.xlu0 %v4369, 17
  %v4387 = vpop.permute.xlu0 %4386
  %4388 = vrot.lane.b32.xlu0 %v4358, 17
  %v4389 = vpop.permute.xlu0 %4388
  %4390 = vrot.lane.b32.xlu0 %v4362, 17
  %v4391 = vpop.permute.xlu0 %4390
  %4392 = vrot.lane.b32.xlu0 %v4366, 17
  %v4393 = vpop.permute.xlu0 %4392
  %4394 = vrot.lane.b32.xlu0 %v4370, 17
  %v4395 = vpop.permute.xlu0 %4394
  %4396 = vrot.lane.b32.xlu0 %v4359, 17
  %v4397 = vpop.permute.xlu0 %4396
  %4398 = vrot.lane.b32.xlu0 %v4363, 17
  %v4399 = vpop.permute.xlu0 %4398
  %4400 = vrot.lane.b32.xlu0 %v4367, 17
  %v4401 = vpop.permute.xlu0 %4400
  %4402 = vrot.lane.b32.xlu0 %v4371, 17
  %v4403 = vpop.permute.xlu0 %4402
  %v4404 = vsel %vm99, %v4389, %v4397
  %v4405 = vsel %vm99, %v4391, %v4399
  %v4406 = vsel %vm99, %v4393, %v4401
  %v4407 = vsel %vm99, %v4395, %v4403
  %v4408 = vsel %vm99, %v4381, %v4389
  %v4409 = vsel %vm99, %v4383, %v4391
  %v4410 = vsel %vm99, %v4385, %v4393
  %v4411 = vsel %vm99, %v4387, %v4395
  %v4412 = vsel %vm99, %v4373, %v4381
  %v4413 = vsel %vm99, %v4375, %v4383
  %v4414 = vsel %vm99, %v4377, %v4385
  %v4415 = vsel %vm99, %v4379, %v4387
  %v4416 = vsel %vm99, %v4397, %v4373
  %v4417 = vsel %vm99, %v4399, %v4375
  %v4418 = vsel %vm99, %v4401, %v4377
  %v4419 = vsel %vm99, %v4403, %v4379
  %v4420 = vmul.f32 %v4416, %v108
  %v4421 = vmul.f32 %v4412, %v112
  %v4422 = vmul.f32 %v4408, %v116
  %v4423 = vmul.f32 %v4404, %v120
  %v4424 = vmul.f32 %v4417, %v108
  %v4425 = vmul.f32 %v4413, %v112
  %v4426 = vmul.f32 %v4409, %v116
  %v4427 = vmul.f32 %v4405, %v120
  %v4428 = vmul.f32 %v4418, %v108
  %v4429 = vmul.f32 %v4414, %v112
  %v4430 = vmul.f32 %v4410, %v116
  %v4431 = vmul.f32 %v4406, %v120
  %v4432 = vmul.f32 %v4419, %v108
  %v4433 = vmul.f32 %v4415, %v112
  %v4434 = vmul.f32 %v4411, %v116
  %v4435 = vmul.f32 %v4407, %v120
  %v4436 = vpack.c.bf16 %v4424, %v4420
  %v4437 = vpack.c.bf16 %v4425, %v4421
  %v4438 = vpack.c.bf16 %v4426, %v4422
  %v4439 = vpack.c.bf16 %v4427, %v4423
  %v4440 = vpack.c.bf16 %v4432, %v4428
  %v4441 = vpack.c.bf16 %v4433, %v4429
  %v4442 = vpack.c.bf16 %v4434, %v4430
  %v4443 = vpack.c.bf16 %v4435, %v4431
  %4444 = vst [vmem:[#allocation2] sm:$0xff] %v4436
  %4445 = vst [vmem:[#allocation2 + $0x8] sm:$0xff] %v4437
  %4446 = vst [vmem:[#allocation2 + $0x10] sm:$0xff] %v4438
  %4447 = vst [vmem:[#allocation2 + $0x18] sm:$0xff] %v4439
  %4448 = vst [vmem:[#allocation2 + $0x20] sm:$0xff] %v4440
  %4449 = vst [vmem:[#allocation2 + $0x28] sm:$0xff] %v4441
  %4450 = vst [vmem:[#allocation2 + $0x30] sm:$0xff] %v4442
  %4451 = vst [vmem:[#allocation2 + $0x38] sm:$0xff] %v4443
  %4452 = vrot.lane.b32.xlu0 %v4356, 16
  %v4453 = vpop.permute.xlu0 %4452
  %4454 = vrot.lane.b32.xlu0 %v4360, 16
  %v4455 = vpop.permute.xlu0 %4454
  %4456 = vrot.lane.b32.xlu0 %v4364, 16
  %v4457 = vpop.permute.xlu0 %4456
  %4458 = vrot.lane.b32.xlu0 %v4368, 16
  %v4459 = vpop.permute.xlu0 %4458
  %4460 = vrot.lane.b32.xlu0 %v4357, 16
  %v4461 = vpop.permute.xlu0 %4460
  %4462 = vrot.lane.b32.xlu0 %v4361, 16
  %v4463 = vpop.permute.xlu0 %4462
  %4464 = vrot.lane.b32.xlu0 %v4365, 16
  %v4465 = vpop.permute.xlu0 %4464
  %4466 = vrot.lane.b32.xlu0 %v4369, 16
  %v4467 = vpop.permute.xlu0 %4466
  %4468 = vrot.lane.b32.xlu0 %v4358, 16
  %v4469 = vpop.permute.xlu0 %4468
  %4470 = vrot.lane.b32.xlu0 %v4362, 16
  %v4471 = vpop.permute.xlu0 %4470
  %4472 = vrot.lane.b32.xlu0 %v4366, 16
  %v4473 = vpop.permute.xlu0 %4472
  %4474 = vrot.lane.b32.xlu0 %v4370, 16
  %v4475 = vpop.permute.xlu0 %4474
  %4476 = vrot.lane.b32.xlu0 %v4359, 16
  %v4477 = vpop.permute.xlu0 %4476
  %4478 = vrot.lane.b32.xlu0 %v4363, 16
  %v4479 = vpop.permute.xlu0 %4478
  %4480 = vrot.lane.b32.xlu0 %v4367, 16
  %v4481 = vpop.permute.xlu0 %4480
  %4482 = vrot.lane.b32.xlu0 %v4371, 16
  %v4483 = vpop.permute.xlu0 %4482
  %v4484 = vsel %vm171, %v4469, %v4477
  %v4485 = vsel %vm171, %v4471, %v4479
  %v4486 = vsel %vm171, %v4473, %v4481
  %v4487 = vsel %vm171, %v4475, %v4483
  %v4488 = vsel %vm171, %v4461, %v4469
  %v4489 = vsel %vm171, %v4463, %v4471
  %v4490 = vsel %vm171, %v4465, %v4473
  %v4491 = vsel %vm171, %v4467, %v4475
  %v4492 = vsel %vm171, %v4453, %v4461
  %v4493 = vsel %vm171, %v4455, %v4463
  %v4494 = vsel %vm171, %v4457, %v4465
  %v4495 = vsel %vm171, %v4459, %v4467
  %v4496 = vsel %vm171, %v4477, %v4453
  %v4497 = vsel %vm171, %v4479, %v4455
  %v4498 = vsel %vm171, %v4481, %v4457
  %v4499 = vsel %vm171, %v4483, %v4459
  %v4500 = vmul.f32 %v4496, %v180
  %v4501 = vmul.f32 %v4492, %v184
  %v4502 = vmul.f32 %v4488, %v188
  %v4503 = vmul.f32 %v4484, %v192
  %v4504 = vmul.f32 %v4497, %v180
  %v4505 = vmul.f32 %v4493, %v184
  %v4506 = vmul.f32 %v4489, %v188
  %v4507 = vmul.f32 %v4485, %v192
  %v4508 = vmul.f32 %v4498, %v180
  %v4509 = vmul.f32 %v4494, %v184
  %v4510 = vmul.f32 %v4490, %v188
  %v4511 = vmul.f32 %v4486, %v192
  %v4512 = vmul.f32 %v4499, %v180
  %v4513 = vmul.f32 %v4495, %v184
  %v4514 = vmul.f32 %v4491, %v188
  %v4515 = vmul.f32 %v4487, %v192
  %v4516 = vpack.c.bf16 %v4504, %v4500
  %v4517 = vpack.c.bf16 %v4505, %v4501
  %v4518 = vpack.c.bf16 %v4506, %v4502
  %v4519 = vpack.c.bf16 %v4507, %v4503
  %v4520 = vpack.c.bf16 %v4512, %v4508
  %v4521 = vpack.c.bf16 %v4513, %v4509
  %v4522 = vpack.c.bf16 %v4514, %v4510
  %v4523 = vpack.c.bf16 %v4515, %v4511
  %4524 = vst [vmem:[#allocation2 + $0x40] sm:$0xff] %v4516
  %4525 = vst [vmem:[#allocation2 + $0x48] sm:$0xff] %v4517
  %4526 = vst [vmem:[#allocation2 + $0x50] sm:$0xff] %v4518
  %4527 = vst [vmem:[#allocation2 + $0x58] sm:$0xff] %v4519
  %4528 = vst [vmem:[#allocation2 + $0x60] sm:$0xff] %v4520
  %4529 = vst [vmem:[#allocation2 + $0x68] sm:$0xff] %v4521
  %4530 = vst [vmem:[#allocation2 + $0x70] sm:$0xff] %v4522
  %4531 = vst [vmem:[#allocation2 + $0x78] sm:$0xff] %v4523
  %4532 = vrot.lane.b32.xlu0 %v4356, 15
  %v4533 = vpop.permute.xlu0 %4532
  %4534 = vrot.lane.b32.xlu0 %v4360, 15
  %v4535 = vpop.permute.xlu0 %4534
  %4536 = vrot.lane.b32.xlu0 %v4364, 15
  %v4537 = vpop.permute.xlu0 %4536
  %4538 = vrot.lane.b32.xlu0 %v4368, 15
  %v4539 = vpop.permute.xlu0 %4538
  %4540 = vrot.lane.b32.xlu0 %v4357, 15
  %v4541 = vpop.permute.xlu0 %4540
  %4542 = vrot.lane.b32.xlu0 %v4361, 15
  %v4543 = vpop.permute.xlu0 %4542
  %4544 = vrot.lane.b32.xlu0 %v4365, 15
  %v4545 = vpop.permute.xlu0 %4544
  %4546 = vrot.lane.b32.xlu0 %v4369, 15
  %v4547 = vpop.permute.xlu0 %4546
  %4548 = vrot.lane.b32.xlu0 %v4358, 15
  %v4549 = vpop.permute.xlu0 %4548
  %4550 = vrot.lane.b32.xlu0 %v4362, 15
  %v4551 = vpop.permute.xlu0 %4550
  %4552 = vrot.lane.b32.xlu0 %v4366, 15
  %v4553 = vpop.permute.xlu0 %4552
  %4554 = vrot.lane.b32.xlu0 %v4370, 15
  %v4555 = vpop.permute.xlu0 %4554
  %4556 = vrot.lane.b32.xlu0 %v4359, 15
  %v4557 = vpop.permute.xlu0 %4556
  %4558 = vrot.lane.b32.xlu0 %v4363, 15
  %v4559 = vpop.permute.xlu0 %4558
  %4560 = vrot.lane.b32.xlu0 %v4367, 15
  %v4561 = vpop.permute.xlu0 %4560
  %4562 = vrot.lane.b32.xlu0 %v4371, 15
  %v4563 = vpop.permute.xlu0 %4562
  %v4564 = vsel %vm249, %v4549, %v4557
  %v4565 = vsel %vm249, %v4551, %v4559
  %v4566 = vsel %vm249, %v4553, %v4561
  %v4567 = vsel %vm249, %v4555, %v4563
  %v4568 = vsel %vm249, %v4541, %v4549
  %v4569 = vsel %vm249, %v4543, %v4551
  %v4570 = vsel %vm249, %v4545, %v4553
  %v4571 = vsel %vm249, %v4547, %v4555
  %v4572 = vsel %vm249, %v4533, %v4541
  %v4573 = vsel %vm249, %v4535, %v4543
  %v4574 = vsel %vm249, %v4537, %v4545
  %v4575 = vsel %vm249, %v4539, %v4547
  %v4576 = vsel %vm249, %v4557, %v4533
  %v4577 = vsel %vm249, %v4559, %v4535
  %v4578 = vsel %vm249, %v4561, %v4537
  %v4579 = vsel %vm249, %v4563, %v4539
  %v4580 = vmul.f32 %v4576, %v258
  %v4581 = vmul.f32 %v4572, %v262
  %v4582 = vmul.f32 %v4568, %v266
  %v4583 = vmul.f32 %v4564, %v270
  %v4584 = vmul.f32 %v4577, %v258
  %v4585 = vmul.f32 %v4573, %v262
  %v4586 = vmul.f32 %v4569, %v266
  %v4587 = vmul.f32 %v4565, %v270
  %v4588 = vmul.f32 %v4578, %v258
  %v4589 = vmul.f32 %v4574, %v262
  %v4590 = vmul.f32 %v4570, %v266
  %v4591 = vmul.f32 %v4566, %v270
  %v4592 = vmul.f32 %v4579, %v258
  %v4593 = vmul.f32 %v4575, %v262
  %v4594 = vmul.f32 %v4571, %v266
  %v4595 = vmul.f32 %v4567, %v270
  %v4596 = vpack.c.bf16 %v4584, %v4580
  %v4597 = vpack.c.bf16 %v4585, %v4581
  %v4598 = vpack.c.bf16 %v4586, %v4582
  %v4599 = vpack.c.bf16 %v4587, %v4583
  %v4600 = vpack.c.bf16 %v4592, %v4588
  %v4601 = vpack.c.bf16 %v4593, %v4589
  %v4602 = vpack.c.bf16 %v4594, %v4590
  %v4603 = vpack.c.bf16 %v4595, %v4591
  %4604 = vst [vmem:[#allocation2 + $0x80] sm:$0xff] %v4596
  %4605 = vst [vmem:[#allocation2 + $0x88] sm:$0xff] %v4597
  %4606 = vst [vmem:[#allocation2 + $0x90] sm:$0xff] %v4598
  %4607 = vst [vmem:[#allocation2 + $0x98] sm:$0xff] %v4599
  %4608 = vst [vmem:[#allocation2 + $0xa0] sm:$0xff] %v4600
  %4609 = vst [vmem:[#allocation2 + $0xa8] sm:$0xff] %v4601
  %4610 = vst [vmem:[#allocation2 + $0xb0] sm:$0xff] %v4602
  %4611 = vst [vmem:[#allocation2 + $0xb8] sm:$0xff] %v4603
  %4612 = vrot.lane.b32.xlu0 %v4356, 1
  %v4613 = vpop.permute.xlu0 %4612
  %4614 = vrot.lane.b32.xlu0 %v4360, 1
  %v4615 = vpop.permute.xlu0 %4614
  %4616 = vrot.lane.b32.xlu0 %v4364, 1
  %v4617 = vpop.permute.xlu0 %4616
  %4618 = vrot.lane.b32.xlu0 %v4368, 1
  %v4619 = vpop.permute.xlu0 %4618
  %4620 = vrot.lane.b32.xlu0 %v4357, 1
  %v4621 = vpop.permute.xlu0 %4620
  %4622 = vrot.lane.b32.xlu0 %v4361, 1
  %v4623 = vpop.permute.xlu0 %4622
  %4624 = vrot.lane.b32.xlu0 %v4365, 1
  %v4625 = vpop.permute.xlu0 %4624
  %4626 = vrot.lane.b32.xlu0 %v4369, 1
  %v4627 = vpop.permute.xlu0 %4626
  %4628 = vrot.lane.b32.xlu0 %v4358, 1
  %v4629 = vpop.permute.xlu0 %4628
  %4630 = vrot.lane.b32.xlu0 %v4362, 1
  %v4631 = vpop.permute.xlu0 %4630
  %4632 = vrot.lane.b32.xlu0 %v4366, 1
  %v4633 = vpop.permute.xlu0 %4632
  %4634 = vrot.lane.b32.xlu0 %v4370, 1
  %v4635 = vpop.permute.xlu0 %4634
  %4636 = vrot.lane.b32.xlu0 %v4359, 1
  %v4637 = vpop.permute.xlu0 %4636
  %4638 = vrot.lane.b32.xlu0 %v4363, 1
  %v4639 = vpop.permute.xlu0 %4638
  %4640 = vrot.lane.b32.xlu0 %v4367, 1
  %v4641 = vpop.permute.xlu0 %4640
  %4642 = vrot.lane.b32.xlu0 %v4371, 1
  %v4643 = vpop.permute.xlu0 %4642
  %v4644 = vsel %vm327, %v4629, %v4637
  %v4645 = vsel %vm327, %v4631, %v4639
  %v4646 = vsel %vm327, %v4633, %v4641
  %v4647 = vsel %vm327, %v4635, %v4643
  %v4648 = vsel %vm327, %v4621, %v4629
  %v4649 = vsel %vm327, %v4623, %v4631
  %v4650 = vsel %vm327, %v4625, %v4633
  %v4651 = vsel %vm327, %v4627, %v4635
  %v4652 = vsel %vm327, %v4613, %v4621
  %v4653 = vsel %vm327, %v4615, %v4623
  %v4654 = vsel %vm327, %v4617, %v4625
  %v4655 = vsel %vm327, %v4619, %v4627
  %v4656 = vsel %vm327, %v4637, %v4613
  %v4657 = vsel %vm327, %v4639, %v4615
  %v4658 = vsel %vm327, %v4641, %v4617
  %v4659 = vsel %vm327, %v4643, %v4619
  %v4660 = vmul.f32 %v4656, %v336
  %v4661 = vmul.f32 %v4652, %v340
  %v4662 = vmul.f32 %v4648, %v344
  %v4663 = vmul.f32 %v4644, %v348
  %v4664 = vmul.f32 %v4657, %v336
  %v4665 = vmul.f32 %v4653, %v340
  %v4666 = vmul.f32 %v4649, %v344
  %v4667 = vmul.f32 %v4645, %v348
  %v4668 = vmul.f32 %v4658, %v336
  %v4669 = vmul.f32 %v4654, %v340
  %v4670 = vmul.f32 %v4650, %v344
  %v4671 = vmul.f32 %v4646, %v348
  %v4672 = vmul.f32 %v4659, %v336
  %v4673 = vmul.f32 %v4655, %v340
  %v4674 = vmul.f32 %v4651, %v344
  %v4675 = vmul.f32 %v4647, %v348
  %v4676 = vpack.c.bf16 %v4664, %v4660
  %v4677 = vpack.c.bf16 %v4665, %v4661
  %v4678 = vpack.c.bf16 %v4666, %v4662
  %v4679 = vpack.c.bf16 %v4667, %v4663
  %v4680 = vpack.c.bf16 %v4672, %v4668
  %v4681 = vpack.c.bf16 %v4673, %v4669
  %v4682 = vpack.c.bf16 %v4674, %v4670
  %v4683 = vpack.c.bf16 %v4675, %v4671
  %4684 = vst [vmem:[#allocation2 + $0xc0] sm:$0xff] %v4676
  %4685 = vst [vmem:[#allocation2 + $0xc8] sm:$0xff] %v4677
  %4686 = vst [vmem:[#allocation2 + $0xd0] sm:$0xff] %v4678
  %4687 = vst [vmem:[#allocation2 + $0xd8] sm:$0xff] %v4679
  %4688 = vst [vmem:[#allocation2 + $0xe0] sm:$0xff] %v4680
  %4689 = vst [vmem:[#allocation2 + $0xe8] sm:$0xff] %v4681
  %4690 = vst [vmem:[#allocation2 + $0xf0] sm:$0xff] %v4682
  %4691 = vst [vmem:[#allocation2 + $0xf8] sm:$0xff] %v4683
  %v4692 = vpack.c.bf16 %v4360, %v4356
  %v4693 = vpack.c.bf16 %v4361, %v4357
  %v4694 = vpack.c.bf16 %v4362, %v4358
  %v4695 = vpack.c.bf16 %v4363, %v4359
  %v4696 = vpack.c.bf16 %v4368, %v4364
  %v4697 = vpack.c.bf16 %v4369, %v4365
  %v4698 = vpack.c.bf16 %v4370, %v4366
  %v4699 = vpack.c.bf16 %v4371, %v4367
  %4700 = vst [vmem:[#allocation2 + $0x100] sm:$0xff] %v4692
  %4701 = vst [vmem:[#allocation2 + $0x108] sm:$0xff] %v4693
  %4702 = vst [vmem:[#allocation2 + $0x110] sm:$0xff] %v4694
  %4703 = vst [vmem:[#allocation2 + $0x118] sm:$0xff] %v4695
  %4704 = vst [vmem:[#allocation2 + $0x120] sm:$0xff] %v4696
  %4705 = vst [vmem:[#allocation2 + $0x128] sm:$0xff] %v4697
  %4706 = vst [vmem:[#allocation2 + $0x130] sm:$0xff] %v4698
  %4707 = vst [vmem:[#allocation2 + $0x138] sm:$0xff] %v4699
  %4708 = vrot.lane.b32.xlu0 %v4356, 127
  %v4709 = vpop.permute.xlu0 %4708
  %4710 = vrot.lane.b32.xlu0 %v4360, 127
  %v4711 = vpop.permute.xlu0 %4710
  %4712 = vrot.lane.b32.xlu0 %v4364, 127
  %v4713 = vpop.permute.xlu0 %4712
  %4714 = vrot.lane.b32.xlu0 %v4368, 127
  %v4715 = vpop.permute.xlu0 %4714
  %4716 = vrot.lane.b32.xlu0 %v4357, 127
  %v4717 = vpop.permute.xlu0 %4716
  %4718 = vrot.lane.b32.xlu0 %v4361, 127
  %v4719 = vpop.permute.xlu0 %4718
  %4720 = vrot.lane.b32.xlu0 %v4365, 127
  %v4721 = vpop.permute.xlu0 %4720
  %4722 = vrot.lane.b32.xlu0 %v4369, 127
  %v4723 = vpop.permute.xlu0 %4722
  %4724 = vrot.lane.b32.xlu0 %v4358, 127
  %v4725 = vpop.permute.xlu0 %4724
  %4726 = vrot.lane.b32.xlu0 %v4362, 127
  %v4727 = vpop.permute.xlu0 %4726
  %4728 = vrot.lane.b32.xlu0 %v4366, 127
  %v4729 = vpop.permute.xlu0 %4728
  %4730 = vrot.lane.b32.xlu0 %v4370, 127
  %v4731 = vpop.permute.xlu0 %4730
  %4732 = vrot.lane.b32.xlu0 %v4359, 127
  %v4733 = vpop.permute.xlu0 %4732
  %4734 = vrot.lane.b32.xlu0 %v4363, 127
  %v4735 = vpop.permute.xlu0 %4734
  %4736 = vrot.lane.b32.xlu0 %v4367, 127
  %v4737 = vpop.permute.xlu0 %4736
  %4738 = vrot.lane.b32.xlu0 %v4371, 127
  %v4739 = vpop.permute.xlu0 %4738
  %v4740 = vsel %vm429, %v4725, %v4733
  %v4741 = vsel %vm429, %v4727, %v4735
  %v4742 = vsel %vm429, %v4729, %v4737
  %v4743 = vsel %vm429, %v4731, %v4739
  %v4744 = vsel %vm429, %v4717, %v4725
  %v4745 = vsel %vm429, %v4719, %v4727
  %v4746 = vsel %vm429, %v4721, %v4729
  %v4747 = vsel %vm429, %v4723, %v4731
  %v4748 = vsel %vm429, %v4709, %v4717
  %v4749 = vsel %vm429, %v4711, %v4719
  %v4750 = vsel %vm429, %v4713, %v4721
  %v4751 = vsel %vm429, %v4715, %v4723
  %v4752 = vsel %vm429, %v4733, %v4709
  %v4753 = vsel %vm429, %v4735, %v4711
  %v4754 = vsel %vm429, %v4737, %v4713
  %v4755 = vsel %vm429, %v4739, %v4715
  %v4756 = vmul.f32 %v4748, %v438
  %v4757 = vmul.f32 %v4744, %v442
  %v4758 = vmul.f32 %v4740, %v446
  %v4759 = vmul.f32 %v4752, %v450
  %v4760 = vmul.f32 %v4749, %v438
  %v4761 = vmul.f32 %v4745, %v442
  %v4762 = vmul.f32 %v4741, %v446
  %v4763 = vmul.f32 %v4753, %v450
  %v4764 = vmul.f32 %v4750, %v438
  %v4765 = vmul.f32 %v4746, %v442
  %v4766 = vmul.f32 %v4742, %v446
  %v4767 = vmul.f32 %v4754, %v450
  %v4768 = vmul.f32 %v4751, %v438
  %v4769 = vmul.f32 %v4747, %v442
  %v4770 = vmul.f32 %v4743, %v446
  %v4771 = vmul.f32 %v4755, %v450
  %v4772 = vpack.c.bf16 %v4760, %v4756
  %v4773 = vpack.c.bf16 %v4761, %v4757
  %v4774 = vpack.c.bf16 %v4762, %v4758
  %v4775 = vpack.c.bf16 %v4763, %v4759
  %v4776 = vpack.c.bf16 %v4768, %v4764
  %v4777 = vpack.c.bf16 %v4769, %v4765
  %v4778 = vpack.c.bf16 %v4770, %v4766
  %v4779 = vpack.c.bf16 %v4771, %v4767
  %4780 = vst [vmem:[#allocation2 + $0x140] sm:$0xff] %v4772
  %4781 = vst [vmem:[#allocation2 + $0x148] sm:$0xff] %v4773
  %4782 = vst [vmem:[#allocation2 + $0x150] sm:$0xff] %v4774
  %4783 = vst [vmem:[#allocation2 + $0x158] sm:$0xff] %v4775
  %4784 = vst [vmem:[#allocation2 + $0x160] sm:$0xff] %v4776
  %4785 = vst [vmem:[#allocation2 + $0x168] sm:$0xff] %v4777
  %4786 = vst [vmem:[#allocation2 + $0x170] sm:$0xff] %v4778
  %4787 = vst [vmem:[#allocation2 + $0x178] sm:$0xff] %v4779
  %4788 = vrot.lane.b32.xlu0 %v4356, 113
  %v4789 = vpop.permute.xlu0 %4788
  %4790 = vrot.lane.b32.xlu0 %v4360, 113
  %v4791 = vpop.permute.xlu0 %4790
  %4792 = vrot.lane.b32.xlu0 %v4364, 113
  %v4793 = vpop.permute.xlu0 %4792
  %4794 = vrot.lane.b32.xlu0 %v4368, 113
  %v4795 = vpop.permute.xlu0 %4794
  %4796 = vrot.lane.b32.xlu0 %v4357, 113
  %v4797 = vpop.permute.xlu0 %4796
  %4798 = vrot.lane.b32.xlu0 %v4361, 113
  %v4799 = vpop.permute.xlu0 %4798
  %4800 = vrot.lane.b32.xlu0 %v4365, 113
  %v4801 = vpop.permute.xlu0 %4800
  %4802 = vrot.lane.b32.xlu0 %v4369, 113
  %v4803 = vpop.permute.xlu0 %4802
  %4804 = vrot.lane.b32.xlu0 %v4358, 113
  %v4805 = vpop.permute.xlu0 %4804
  %4806 = vrot.lane.b32.xlu0 %v4362, 113
  %v4807 = vpop.permute.xlu0 %4806
  %4808 = vrot.lane.b32.xlu0 %v4366, 113
  %v4809 = vpop.permute.xlu0 %4808
  %4810 = vrot.lane.b32.xlu0 %v4370, 113
  %v4811 = vpop.permute.xlu0 %4810
  %4812 = vrot.lane.b32.xlu0 %v4359, 113
  %v4813 = vpop.permute.xlu0 %4812
  %4814 = vrot.lane.b32.xlu0 %v4363, 113
  %v4815 = vpop.permute.xlu0 %4814
  %4816 = vrot.lane.b32.xlu0 %v4367, 113
  %v4817 = vpop.permute.xlu0 %4816
  %4818 = vrot.lane.b32.xlu0 %v4371, 113
  %v4819 = vpop.permute.xlu0 %4818
  %v4820 = vsel %vm507, %v4805, %v4813
  %v4821 = vsel %vm507, %v4807, %v4815
  %v4822 = vsel %vm507, %v4809, %v4817
  %v4823 = vsel %vm507, %v4811, %v4819
  %v4824 = vsel %vm507, %v4797, %v4805
  %v4825 = vsel %vm507, %v4799, %v4807
  %v4826 = vsel %vm507, %v4801, %v4809
  %v4827 = vsel %vm507, %v4803, %v4811
  %v4828 = vsel %vm507, %v4789, %v4797
  %v4829 = vsel %vm507, %v4791, %v4799
  %v4830 = vsel %vm507, %v4793, %v4801
  %v4831 = vsel %vm507, %v4795, %v4803
  %v4832 = vsel %vm507, %v4813, %v4789
  %v4833 = vsel %vm507, %v4815, %v4791
  %v4834 = vsel %vm507, %v4817, %v4793
  %v4835 = vsel %vm507, %v4819, %v4795
  %v4836 = vmul.f32 %v4828, %v516
  %v4837 = vmul.f32 %v4824, %v520
  %v4838 = vmul.f32 %v4820, %v524
  %v4839 = vmul.f32 %v4832, %v528
  %v4840 = vmul.f32 %v4829, %v516
  %v4841 = vmul.f32 %v4825, %v520
  %v4842 = vmul.f32 %v4821, %v524
  %v4843 = vmul.f32 %v4833, %v528
  %v4844 = vmul.f32 %v4830, %v516
  %v4845 = vmul.f32 %v4826, %v520
  %v4846 = vmul.f32 %v4822, %v524
  %v4847 = vmul.f32 %v4834, %v528
  %v4848 = vmul.f32 %v4831, %v516
  %v4849 = vmul.f32 %v4827, %v520
  %v4850 = vmul.f32 %v4823, %v524
  %v4851 = vmul.f32 %v4835, %v528
  %v4852 = vpack.c.bf16 %v4840, %v4836
  %v4853 = vpack.c.bf16 %v4841, %v4837
  %v4854 = vpack.c.bf16 %v4842, %v4838
  %v4855 = vpack.c.bf16 %v4843, %v4839
  %v4856 = vpack.c.bf16 %v4848, %v4844
  %v4857 = vpack.c.bf16 %v4849, %v4845
  %v4858 = vpack.c.bf16 %v4850, %v4846
  %v4859 = vpack.c.bf16 %v4851, %v4847
  %4860 = vst [vmem:[#allocation2 + $0x180] sm:$0xff] %v4852
  %4861 = vst [vmem:[#allocation2 + $0x188] sm:$0xff] %v4853
  %4862 = vst [vmem:[#allocation2 + $0x190] sm:$0xff] %v4854
  %4863 = vst [vmem:[#allocation2 + $0x198] sm:$0xff] %v4855
  %4864 = vst [vmem:[#allocation2 + $0x1a0] sm:$0xff] %v4856
  %4865 = vst [vmem:[#allocation2 + $0x1a8] sm:$0xff] %v4857
  %4866 = vst [vmem:[#allocation2 + $0x1b0] sm:$0xff] %v4858
  %4867 = vst [vmem:[#allocation2 + $0x1b8] sm:$0xff] %v4859
  %4868 = vrot.lane.b32.xlu0 %v4356, 112
  %v4869 = vpop.permute.xlu0 %4868
  %4870 = vrot.lane.b32.xlu0 %v4360, 112
  %v4871 = vpop.permute.xlu0 %4870
  %4872 = vrot.lane.b32.xlu0 %v4364, 112
  %v4873 = vpop.permute.xlu0 %4872
  %4874 = vrot.lane.b32.xlu0 %v4368, 112
  %v4875 = vpop.permute.xlu0 %4874
  %4876 = vrot.lane.b32.xlu0 %v4357, 112
  %v4877 = vpop.permute.xlu0 %4876
  %4878 = vrot.lane.b32.xlu0 %v4361, 112
  %v4879 = vpop.permute.xlu0 %4878
  %4880 = vrot.lane.b32.xlu0 %v4365, 112
  %v4881 = vpop.permute.xlu0 %4880
  %4882 = vrot.lane.b32.xlu0 %v4369, 112
  %v4883 = vpop.permute.xlu0 %4882
  %4884 = vrot.lane.b32.xlu0 %v4358, 112
  %v4885 = vpop.permute.xlu0 %4884
  %4886 = vrot.lane.b32.xlu0 %v4362, 112
  %v4887 = vpop.permute.xlu0 %4886
  %4888 = vrot.lane.b32.xlu0 %v4366, 112
  %v4889 = vpop.permute.xlu0 %4888
  %4890 = vrot.lane.b32.xlu0 %v4370, 112
  %v4891 = vpop.permute.xlu0 %4890
  %4892 = vrot.lane.b32.xlu0 %v4359, 112
  %v4893 = vpop.permute.xlu0 %4892
  %4894 = vrot.lane.b32.xlu0 %v4363, 112
  %v4895 = vpop.permute.xlu0 %4894
  %4896 = vrot.lane.b32.xlu0 %v4367, 112
  %v4897 = vpop.permute.xlu0 %4896
  %4898 = vrot.lane.b32.xlu0 %v4371, 112
  %v4899 = vpop.permute.xlu0 %4898
  %v4900 = vsel %vm585, %v4885, %v4893
  %v4901 = vsel %vm585, %v4887, %v4895
  %v4902 = vsel %vm585, %v4889, %v4897
  %v4903 = vsel %vm585, %v4891, %v4899
  %v4904 = vsel %vm585, %v4877, %v4885
  %v4905 = vsel %vm585, %v4879, %v4887
  %v4906 = vsel %vm585, %v4881, %v4889
  %v4907 = vsel %vm585, %v4883, %v4891
  %v4908 = vsel %vm585, %v4869, %v4877
  %v4909 = vsel %vm585, %v4871, %v4879
  %v4910 = vsel %vm585, %v4873, %v4881
  %v4911 = vsel %vm585, %v4875, %v4883
  %v4912 = vsel %vm585, %v4893, %v4869
  %v4913 = vsel %vm585, %v4895, %v4871
  %v4914 = vsel %vm585, %v4897, %v4873
  %v4915 = vsel %vm585, %v4899, %v4875
  %v4916 = vmul.f32 %v4908, %v594
  %v4917 = vmul.f32 %v4904, %v598
  %v4918 = vmul.f32 %v4900, %v602
  %v4919 = vmul.f32 %v4912, %v606
  %v4920 = vmul.f32 %v4909, %v594
  %v4921 = vmul.f32 %v4905, %v598
  %v4922 = vmul.f32 %v4901, %v602
  %v4923 = vmul.f32 %v4913, %v606
  %v4924 = vmul.f32 %v4910, %v594
  %v4925 = vmul.f32 %v4906, %v598
  %v4926 = vmul.f32 %v4902, %v602
  %v4927 = vmul.f32 %v4914, %v606
  %v4928 = vmul.f32 %v4911, %v594
  %v4929 = vmul.f32 %v4907, %v598
  %v4930 = vmul.f32 %v4903, %v602
  %v4931 = vmul.f32 %v4915, %v606
  %v4932 = vpack.c.bf16 %v4920, %v4916
  %v4933 = vpack.c.bf16 %v4921, %v4917
  %v4934 = vpack.c.bf16 %v4922, %v4918
  %v4935 = vpack.c.bf16 %v4923, %v4919
  %v4936 = vpack.c.bf16 %v4928, %v4924
  %v4937 = vpack.c.bf16 %v4929, %v4925
  %v4938 = vpack.c.bf16 %v4930, %v4926
  %v4939 = vpack.c.bf16 %v4931, %v4927
  %4940 = vst [vmem:[#allocation2 + $0x1c0] sm:$0xff] %v4932
  %4941 = vst [vmem:[#allocation2 + $0x1c8] sm:$0xff] %v4933
  %4942 = vst [vmem:[#allocation2 + $0x1d0] sm:$0xff] %v4934
  %4943 = vst [vmem:[#allocation2 + $0x1d8] sm:$0xff] %v4935
  %4944 = vst [vmem:[#allocation2 + $0x1e0] sm:$0xff] %v4936
  %4945 = vst [vmem:[#allocation2 + $0x1e8] sm:$0xff] %v4937
  %4946 = vst [vmem:[#allocation2 + $0x1f0] sm:$0xff] %v4938
  %4947 = vst [vmem:[#allocation2 + $0x1f8] sm:$0xff] %v4939
  %4948 = vrot.lane.b32.xlu0 %v4356, 111
  %v4949 = vpop.permute.xlu0 %4948
  %4950 = vrot.lane.b32.xlu0 %v4360, 111
  %v4951 = vpop.permute.xlu0 %4950
  %4952 = vrot.lane.b32.xlu0 %v4364, 111
  %v4953 = vpop.permute.xlu0 %4952
  %4954 = vrot.lane.b32.xlu0 %v4368, 111
  %v4955 = vpop.permute.xlu0 %4954
  %4956 = vrot.lane.b32.xlu0 %v4357, 111
  %v4957 = vpop.permute.xlu0 %4956
  %4958 = vrot.lane.b32.xlu0 %v4361, 111
  %v4959 = vpop.permute.xlu0 %4958
  %4960 = vrot.lane.b32.xlu0 %v4365, 111
  %v4961 = vpop.permute.xlu0 %4960
  %4962 = vrot.lane.b32.xlu0 %v4369, 111
  %v4963 = vpop.permute.xlu0 %4962
  %4964 = vrot.lane.b32.xlu0 %v4358, 111
  %v4965 = vpop.permute.xlu0 %4964
  %4966 = vrot.lane.b32.xlu0 %v4362, 111
  %v4967 = vpop.permute.xlu0 %4966
  %4968 = vrot.lane.b32.xlu0 %v4366, 111
  %v4969 = vpop.permute.xlu0 %4968
  %4970 = vrot.lane.b32.xlu0 %v4370, 111
  %v4971 = vpop.permute.xlu0 %4970
  %4972 = vrot.lane.b32.xlu0 %v4359, 111
  %v4973 = vpop.permute.xlu0 %4972
  %4974 = vrot.lane.b32.xlu0 %v4363, 111
  %v4975 = vpop.permute.xlu0 %4974
  %4976 = vrot.lane.b32.xlu0 %v4367, 111
  %v4977 = vpop.permute.xlu0 %4976
  %4978 = vrot.lane.b32.xlu0 %v4371, 111
  %v4979 = vpop.permute.xlu0 %4978
  %v4980 = vsel %vm663, %v4965, %v4973
  %v4981 = vsel %vm663, %v4967, %v4975
  %v4982 = vsel %vm663, %v4969, %v4977
  %v4983 = vsel %vm663, %v4971, %v4979
  %v4984 = vsel %vm663, %v4957, %v4965
  %v4985 = vsel %vm663, %v4959, %v4967
  %v4986 = vsel %vm663, %v4961, %v4969
  %v4987 = vsel %vm663, %v4963, %v4971
  %v4988 = vsel %vm663, %v4949, %v4957
  %v4989 = vsel %vm663, %v4951, %v4959
  %v4990 = vsel %vm663, %v4953, %v4961
  %v4991 = vsel %vm663, %v4955, %v4963
  %v4992 = vsel %vm663, %v4973, %v4949
  %v4993 = vsel %vm663, %v4975, %v4951
  %v4994 = vsel %vm663, %v4977, %v4953
  %v4995 = vsel %vm663, %v4979, %v4955
  %v4996 = vmul.f32 %v4988, %v672
  %v4997 = vmul.f32 %v4984, %v676
  %v4998 = vmul.f32 %v4980, %v680
  %v4999 = vmul.f32 %v4992, %v684
  %v5000 = vmul.f32 %v4989, %v672
  %v5001 = vmul.f32 %v4985, %v676
  %v5002 = vmul.f32 %v4981, %v680
  %v5003 = vmul.f32 %v4993, %v684
  %v5004 = vmul.f32 %v4990, %v672
  %v5005 = vmul.f32 %v4986, %v676
  %v5006 = vmul.f32 %v4982, %v680
  %v5007 = vmul.f32 %v4994, %v684
  %v5008 = vmul.f32 %v4991, %v672
  %v5009 = vmul.f32 %v4987, %v676
  %v5010 = vmul.f32 %v4983, %v680
  %v5011 = vmul.f32 %v4995, %v684
  %v5012 = vpack.c.bf16 %v5000, %v4996
  %v5013 = vpack.c.bf16 %v5001, %v4997
  %v5014 = vpack.c.bf16 %v5002, %v4998
  %v5015 = vpack.c.bf16 %v5003, %v4999
  %v5016 = vpack.c.bf16 %v5008, %v5004
  %v5017 = vpack.c.bf16 %v5009, %v5005
  %v5018 = vpack.c.bf16 %v5010, %v5006
  %v5019 = vpack.c.bf16 %v5011, %v5007
  %5020 = vst [vmem:[#allocation2 + $0x200] sm:$0xff] %v5012
  %5021 = vst [vmem:[#allocation2 + $0x208] sm:$0xff] %v5013
  %5022 = vst [vmem:[#allocation2 + $0x210] sm:$0xff] %v5014
  %5023 = vst [vmem:[#allocation2 + $0x218] sm:$0xff] %v5015
  %5024 = vst [vmem:[#allocation2 + $0x220] sm:$0xff] %v5016
  %5025 = vst [vmem:[#allocation2 + $0x228] sm:$0xff] %v5017
  %5026 = vst [vmem:[#allocation2 + $0x230] sm:$0xff] %v5018
  %5027 = vst [vmem:[#allocation2 + $0x238] sm:$0xff] %v5019
  %v5028 = vld [vmem:[%s10] sm:$0xff]
  %v5029 = vld [vmem:[%s10 + $0x8] sm:$0xf]
  %v5030 = vld [vmem:[%s10 + $0xc] sm:$0xff]
  %v5031 = vld [vmem:[%s10 + $0x14] sm:$0xf]
  %v5032 = vld [vmem:[#allocation2] sm:$0xff]
  %v5033 = vld [vmem:[#allocation2 + $0x8] sm:$0xff]
  %v5034 = vld [vmem:[#allocation2 + $0x10] sm:$0xff]
  %v5035 = vld [vmem:[#allocation2 + $0x18] sm:$0xff]
  %v5036 = vld [vmem:[#allocation2 + $0x20] sm:$0xff]
  %v5037 = vld [vmem:[#allocation2 + $0x28] sm:$0xff]
  %v5038 = vld [vmem:[#allocation2 + $0x30] sm:$0xff]
  %v5039 = vld [vmem:[#allocation2 + $0x38] sm:$0xff]
  %v5040 = vld [vmem:[#allocation2 + $0x40] sm:$0xff]
  %v5041 = vld [vmem:[#allocation2 + $0x48] sm:$0xff]
  %v5042 = vld [vmem:[#allocation2 + $0x50] sm:$0xff]
  %v5043 = vld [vmem:[#allocation2 + $0x58] sm:$0xff]
  %v5044 = vld [vmem:[#allocation2 + $0x60] sm:$0xff]
  %v5045 = vld [vmem:[#allocation2 + $0x68] sm:$0xff]
  %v5046 = vld [vmem:[#allocation2 + $0x70] sm:$0xff]
  %v5047 = vld [vmem:[#allocation2 + $0x78] sm:$0xff]
  %v5048 = vld [vmem:[#allocation2 + $0x80] sm:$0xff]
  %v5049 = vld [vmem:[#allocation2 + $0x88] sm:$0xff]
  %v5050 = vld [vmem:[#allocation2 + $0x90] sm:$0xff]
  %v5051 = vld [vmem:[#allocation2 + $0x98] sm:$0xff]
  %v5052 = vld [vmem:[#allocation2 + $0xa0] sm:$0xff]
  %v5053 = vld [vmem:[#allocation2 + $0xa8] sm:$0xff]
  %v5054 = vld [vmem:[#allocation2 + $0xb0] sm:$0xff]
  %v5055 = vld [vmem:[#allocation2 + $0xb8] sm:$0xff]
  %v5056 = vld [vmem:[#allocation2 + $0xc0] sm:$0xff]
  %v5057 = vld [vmem:[#allocation2 + $0xc8] sm:$0xff]
  %v5058 = vld [vmem:[#allocation2 + $0xd0] sm:$0xff]
  %v5059 = vld [vmem:[#allocation2 + $0xd8] sm:$0xff]
  %v5060 = vld [vmem:[#allocation2 + $0xe0] sm:$0xff]
  %v5061 = vld [vmem:[#allocation2 + $0xe8] sm:$0xff]
  %v5062 = vld [vmem:[#allocation2 + $0xf0] sm:$0xff]
  %v5063 = vld [vmem:[#allocation2 + $0xf8] sm:$0xff]
  %v5064 = vld [vmem:[#allocation2 + $0x100] sm:$0xff]
  %v5065 = vld [vmem:[#allocation2 + $0x108] sm:$0xff]
  %v5066 = vld [vmem:[#allocation2 + $0x110] sm:$0xff]
  %v5067 = vld [vmem:[#allocation2 + $0x118] sm:$0xff]
  %v5068 = vld [vmem:[#allocation2 + $0x120] sm:$0xff]
  %v5069 = vld [vmem:[#allocation2 + $0x128] sm:$0xff]
  %v5070 = vld [vmem:[#allocation2 + $0x130] sm:$0xff]
  %v5071 = vld [vmem:[#allocation2 + $0x138] sm:$0xff]
  %v5072 = vld [vmem:[#allocation2 + $0x140] sm:$0xff]
  %v5073 = vld [vmem:[#allocation2 + $0x148] sm:$0xff]
  %v5074 = vld [vmem:[#allocation2 + $0x150] sm:$0xff]
  %v5075 = vld [vmem:[#allocation2 + $0x158] sm:$0xff]
  %v5076 = vld [vmem:[#allocation2 + $0x160] sm:$0xff]
  %v5077 = vld [vmem:[#allocation2 + $0x168] sm:$0xff]
  %v5078 = vld [vmem:[#allocation2 + $0x170] sm:$0xff]
  %v5079 = vld [vmem:[#allocation2 + $0x178] sm:$0xff]
  %v5080 = vld [vmem:[#allocation2 + $0x180] sm:$0xff]
  %v5081 = vld [vmem:[#allocation2 + $0x188] sm:$0xff]
  %v5082 = vld [vmem:[#allocation2 + $0x190] sm:$0xff]
  %v5083 = vld [vmem:[#allocation2 + $0x198] sm:$0xff]
  %v5084 = vld [vmem:[#allocation2 + $0x1a0] sm:$0xff]
  %v5085 = vld [vmem:[#allocation2 + $0x1a8] sm:$0xff]
  %v5086 = vld [vmem:[#allocation2 + $0x1b0] sm:$0xff]
  %v5087 = vld [vmem:[#allocation2 + $0x1b8] sm:$0xff]
  %v5088 = vld [vmem:[#allocation2 + $0x1c0] sm:$0xff]
  %v5089 = vld [vmem:[#allocation2 + $0x1c8] sm:$0xff]
  %v5090 = vld [vmem:[#allocation2 + $0x1d0] sm:$0xff]
  %v5091 = vld [vmem:[#allocation2 + $0x1d8] sm:$0xff]
  %v5092 = vld [vmem:[#allocation2 + $0x1e0] sm:$0xff]
  %v5093 = vld [vmem:[#allocation2 + $0x1e8] sm:$0xff]
  %v5094 = vld [vmem:[#allocation2 + $0x1f0] sm:$0xff]
  %v5095 = vld [vmem:[#allocation2 + $0x1f8] sm:$0xff]
  %v5096 = vld [vmem:[#allocation2 + $0x200] sm:$0xff]
  %v5097 = vld [vmem:[#allocation2 + $0x208] sm:$0xff]
  %v5098 = vld [vmem:[#allocation2 + $0x210] sm:$0xff]
  %v5099 = vld [vmem:[#allocation2 + $0x218] sm:$0xff]
  %v5100 = vld [vmem:[#allocation2 + $0x220] sm:$0xff]
  %v5101 = vld [vmem:[#allocation2 + $0x228] sm:$0xff]
  %v5102 = vld [vmem:[#allocation2 + $0x230] sm:$0xff]
  %v5103 = vld [vmem:[#allocation2 + $0x238] sm:$0xff]
  %v5104 = vld [vmem:[%s11] sm:$0xff]
  %v5105 = vld [vmem:[%s11 + $0x8] sm:$0xff]
  %5107 = vset.pattern.permute.xlu0 0
  %5108 = vperm.xlu0 %5107, %v5104
  %v5109 = vpop.permute.xlu0 %5108
  %5112 = vset.pattern.permute.xlu0 0
  %5113 = vperm.xlu0 %5112, %v5105
  %v5114 = vpop.permute.xlu0 %5113
  %v5120 = vunpack.c.l.b16 %v5028
  %v5121 = vunpack.c.h.b16 %v5028
  %v5122 = vunpack.c.l.b16 %v5029
  %v5123 = vunpack.c.l.b16 %v5030
  %v5124 = vunpack.c.h.b16 %v5030
  %v5125 = vunpack.c.l.b16 %v5031
  %v5126 = vpack.c.b16 %v5123, %v5120
  %v5127 = vpack.c.b16 %v5124, %v5121
  %v5128 = vpack.c.b16 %v5125, %v5122
  %v5132 = vsel %vm2152, %v5128, 0
  %5134 = vmatprep.subr.bf16.mxu0 %v5033
  %5135 = vmatpush1.bf16.msra.mxu0 %v5032
  %5136 = vmatprep.subr.bf16.mxu0 %v5037
  %5137 = vmatpush1.bf16.msra.mxu0 %v5036
  %5138 = vmatprep.subr.bf16.mxu0 %v5041
  %5139 = vmatpush1.bf16.msra.mxu0 %v5040
  %5140 = vmatprep.subr.bf16.mxu0 %v5045
  %5141 = vmatpush1.bf16.msra.mxu0 %v5044
  %5142 = vmatprep.subr.bf16.mxu0 %v5049
  %5143 = vmatpush1.bf16.msra.mxu0 %v5048
  %5144 = vmatprep.subr.bf16.mxu0 %v5053
  %5145 = vmatpush1.bf16.msra.mxu0 %v5052
  %5146 = vmatprep.subr.bf16.mxu0 %v5057
  %5147 = vmatpush1.bf16.msra.mxu0 %v5056
  %5148 = vmatprep.subr.bf16.mxu0 %v5061
  %5149 = vmatpush1.bf16.msra.mxu0 %v5060
  %5150 = vmatprep.subr.bf16.mxu0 %v5065
  %5151 = vmatpush1.bf16.msra.mxu0 %v5064
  %5152 = vmatprep.subr.bf16.mxu0 %v5069
  %5153 = vmatpush1.bf16.msra.mxu0 %v5068
  %5154 = vmatprep.subr.bf16.mxu0 %v5073
  %5155 = vmatpush1.bf16.msra.mxu0 %v5072
  %5156 = vmatprep.subr.bf16.mxu0 %v5077
  %5157 = vmatpush1.bf16.msra.mxu0 %v5076
  %5158 = vmatprep.subr.bf16.mxu0 %v5081
  %5159 = vmatpush1.bf16.msra.mxu0 %v5080
  %5160 = vmatprep.subr.bf16.mxu0 %v5085
  %5161 = vmatpush1.bf16.msra.mxu0 %v5084
  %5162 = vmatprep.subr.bf16.mxu0 %v5089
  %5163 = vmatpush1.bf16.msra.mxu0 %v5088
  %5164 = vmatprep.subr.bf16.mxu0 %v5093
  %5165 = vmatpush1.bf16.msra.mxu0 %v5092
  %5166 = vmatprep.mubr.bf16.mxu0 %v5127
  %5167 = vmatmul.mubr.bf16.gmra.mrb[0].mxu0 %v5126
  %v5168 = vpop.f32.mrb[0].mxu0
  %v5169 = vadd.f32 %v5109, %v5168
  %v5170 = vpop.f32.mrb[0].mxu0
  %v5171 = vadd.f32 %v5109, %v5170
  %v5172 = vpop.f32.mrb[0].mxu0
  %v5173 = vadd.f32 %v5114, %v5172
  %v5174 = vpop.f32.mrb[0].mxu0
  %v5175 = vadd.f32 %v5114, %v5174
  %5176 = vdwg.mxu0
  %5177 = vmatprep.subr.bf16.mxu0 %v5097
  %5178 = vmatpush1.bf16.msra.mxu0 %v5096
  %5179 = vmatprep.subr.bf16.mxu0 %v5101
  %5180 = vmatpush1.bf16.msra.mxu0 %v5100
  %5181 = vmatprep.subr.bf16.mxu0 0
  %5182 = vmatpush1.bf16.msra.mxu0 0
  %5183 = vmatprep.subr.bf16.mxu0 0
  %5184 = vmatpush1.bf16.msra.mxu0 0
  %5185 = vmatprep.subr.bf16.mxu0 0
  %5186 = vmatpush1.bf16.msra.mxu0 0
  %5187 = vmatprep.subr.bf16.mxu0 0
  %5188 = vmatpush1.bf16.msra.mxu0 0
  %5189 = vmatprep.subr.bf16.mxu0 0
  %5190 = vmatpush1.bf16.msra.mxu0 0
  %5191 = vmatprep.subr.bf16.mxu0 0
  %5192 = vmatpush1.bf16.msra.mxu0 0
  %5193 = vmatprep.subr.bf16.mxu0 0
  %5194 = vmatpush1.bf16.msra.mxu0 0
  %5195 = vmatprep.subr.bf16.mxu0 0
  %5196 = vmatpush1.bf16.msra.mxu0 0
  %5197 = vmatprep.subr.bf16.mxu0 0
  %5198 = vmatpush1.bf16.msra.mxu0 0
  %5199 = vmatprep.subr.bf16.mxu0 0
  %5200 = vmatpush1.bf16.msra.mxu0 0
  %5201 = vmatprep.subr.bf16.mxu0 0
  %5202 = vmatpush1.bf16.msra.mxu0 0
  %5203 = vmatprep.subr.bf16.mxu0 0
  %5204 = vmatpush1.bf16.msra.mxu0 0
  %5205 = vmatprep.subr.bf16.mxu0 0
  %5206 = vmatpush1.bf16.msra.mxu0 0
  %5207 = vmatprep.subr.bf16.mxu0 0
  %5208 = vmatpush1.bf16.msra.mxu0 0
  %5209 = vmatprep.mubr.bf16.mxu0 0
  %5210 = vmatmul.mubr.bf16.gmra.mrb[0].mxu0 %v5132
  %v5211 = vpop.f32.mrb[0].mxu0
  %v5212 = vadd.f32 %v5169, %v5211
  %v5213 = vpop.f32.mrb[0].mxu0
  %v5214 = vadd.f32 %v5171, %v5213
  %v5215 = vpop.f32.mrb[0].mxu0
  %v5216 = vadd.f32 %v5173, %v5215
  %v5217 = vpop.f32.mrb[0].mxu0
  %v5218 = vadd.f32 %v5175, %v5217
  %5219 = vdwg.mxu0
  %5220 = vmatprep.subr.bf16.mxu0 %v5035
  %5221 = vmatpush1.bf16.msra.mxu0 %v5034
  %5222 = vmatprep.subr.bf16.mxu0 %v5039
  %5223 = vmatpush1.bf16.msra.mxu0 %v5038
  %5224 = vmatprep.subr.bf16.mxu0 %v5043
  %5225 = vmatpush1.bf16.msra.mxu0 %v5042
  %5226 = vmatprep.subr.bf16.mxu0 %v5047
  %5227 = vmatpush1.bf16.msra.mxu0 %v5046
  %5228 = vmatprep.subr.bf16.mxu0 %v5051
  %5229 = vmatpush1.bf16.msra.mxu0 %v5050
  %5230 = vmatprep.subr.bf16.mxu0 %v5055
  %5231 = vmatpush1.bf16.msra.mxu0 %v5054
  %5232 = vmatprep.subr.bf16.mxu0 %v5059
  %5233 = vmatpush1.bf16.msra.mxu0 %v5058
  %5234 = vmatprep.subr.bf16.mxu0 %v5063
  %5235 = vmatpush1.bf16.msra.mxu0 %v5062
  %5236 = vmatprep.subr.bf16.mxu0 %v5067
  %5237 = vmatpush1.bf16.msra.mxu0 %v5066
  %5238 = vmatprep.subr.bf16.mxu0 %v5071
  %5239 = vmatpush1.bf16.msra.mxu0 %v5070
  %5240 = vmatprep.subr.bf16.mxu0 %v5075
  %5241 = vmatpush1.bf16.msra.mxu0 %v5074
  %5242 = vmatprep.subr.bf16.mxu0 %v5079
  %5243 = vmatpush1.bf16.msra.mxu0 %v5078
  %5244 = vmatprep.subr.bf16.mxu0 %v5083
  %5245 = vmatpush1.bf16.msra.mxu0 %v5082
  %5246 = vmatprep.subr.bf16.mxu0 %v5087
  %5247 = vmatpush1.bf16.msra.mxu0 %v5086
  %5248 = vmatprep.subr.bf16.mxu0 %v5091
  %5249 = vmatpush1.bf16.msra.mxu0 %v5090
  %5250 = vmatprep.subr.bf16.mxu0 %v5095
  %5251 = vmatpush1.bf16.msra.mxu0 %v5094
  %5252 = vmatprep.mubr.bf16.mxu0 %v5127
  %5253 = vmatmul.mubr.bf16.gmra.mrb[0].mxu0 %v5126
  %v5254 = vpop.f32.mrb[0].mxu0
  %v5255 = vadd.f32 %v5109, %v5254
  %v5256 = vpop.f32.mrb[0].mxu0
  %v5257 = vadd.f32 %v5109, %v5256
  %v5258 = vpop.f32.mrb[0].mxu0
  %v5259 = vadd.f32 %v5114, %v5258
  %v5260 = vpop.f32.mrb[0].mxu0
  %v5261 = vadd.f32 %v5114, %v5260
  %5262 = vdwg.mxu0
  %5263 = vmatprep.subr.bf16.mxu0 %v5099
  %5264 = vmatpush1.bf16.msra.mxu0 %v5098
  %5265 = vmatprep.subr.bf16.mxu0 %v5103
  %5266 = vmatpush1.bf16.msra.mxu0 %v5102
  %5267 = vmatprep.subr.bf16.mxu0 0
  %5268 = vmatpush1.bf16.msra.mxu0 0
  %5269 = vmatprep.subr.bf16.mxu0 0
  %5270 = vmatpush1.bf16.msra.mxu0 0
  %5271 = vmatprep.subr.bf16.mxu0 0
  %5272 = vmatpush1.bf16.msra.mxu0 0
  %5273 = vmatprep.subr.bf16.mxu0 0
  %5274 = vmatpush1.bf16.msra.mxu0 0
  %5275 = vmatprep.subr.bf16.mxu0 0
  %5276 = vmatpush1.bf16.msra.mxu0 0
  %5277 = vmatprep.subr.bf16.mxu0 0
  %5278 = vmatpush1.bf16.msra.mxu0 0
  %5279 = vmatprep.subr.bf16.mxu0 0
  %5280 = vmatpush1.bf16.msra.mxu0 0
  %5281 = vmatprep.subr.bf16.mxu0 0
  %5282 = vmatpush1.bf16.msra.mxu0 0
  %5283 = vmatprep.subr.bf16.mxu0 0
  %5284 = vmatpush1.bf16.msra.mxu0 0
  %5285 = vmatprep.subr.bf16.mxu0 0
  %5286 = vmatpush1.bf16.msra.mxu0 0
  %5287 = vmatprep.subr.bf16.mxu0 0
  %5288 = vmatpush1.bf16.msra.mxu0 0
  %5289 = vmatprep.subr.bf16.mxu0 0
  %5290 = vmatpush1.bf16.msra.mxu0 0
  %5291 = vmatprep.subr.bf16.mxu0 0
  %5292 = vmatpush1.bf16.msra.mxu0 0
  %5293 = vmatprep.subr.bf16.mxu0 0
  %5294 = vmatpush1.bf16.msra.mxu0 0
  %5295 = vmatprep.mubr.bf16.mxu0 0
  %5296 = vmatmul.mubr.bf16.gmra.mrb[0].mxu0 %v5132
  %v5297 = vpop.f32.mrb[0].mxu0
  %v5298 = vadd.f32 %v5255, %v5297
  %v5299 = vpop.f32.mrb[0].mxu0
  %v5300 = vadd.f32 %v5257, %v5299
  %v5301 = vpop.f32.mrb[0].mxu0
  %v5302 = vadd.f32 %v5259, %v5301
  %v5303 = vpop.f32.mrb[0].mxu0
  %v5304 = vadd.f32 %v5261, %v5303
  %5305 = vdwg.mxu0
  %v5306 = vmax.f32 %v5212, 0.0
  %v5307 = vmax.f32 %v5214, 0.0
  %v5308 = vmax.f32 %v5298, 0.0
  %v5309 = vmax.f32 %v5300, 0.0
  %v5310 = vmax.f32 %v5216, 0.0
  %v5311 = vmax.f32 %v5218, 0.0
  %v5312 = vmax.f32 %v5302, 0.0
  %v5313 = vmax.f32 %v5304, 0.0
  %v5314 = vld [vmem:[%s12] sm:$0xff]
  %v5315 = vld [vmem:[%s12 + $0x8] sm:$0xff]
  %5316 = vrot.lane.b32.xlu0 %v5306, 17
  %v5317 = vpop.permute.xlu0 %5316
  %5318 = vrot.lane.b32.xlu0 %v5310, 17
  %v5319 = vpop.permute.xlu0 %5318
  %5320 = vrot.lane.b32.xlu0 %v5307, 17
  %v5321 = vpop.permute.xlu0 %5320
  %5322 = vrot.lane.b32.xlu0 %v5311, 17
  %v5323 = vpop.permute.xlu0 %5322
  %5324 = vrot.lane.b32.xlu0 %v5308, 17
  %v5325 = vpop.permute.xlu0 %5324
  %5326 = vrot.lane.b32.xlu0 %v5312, 17
  %v5327 = vpop.permute.xlu0 %5326
  %5328 = vrot.lane.b32.xlu0 %v5309, 17
  %v5329 = vpop.permute.xlu0 %5328
  %5330 = vrot.lane.b32.xlu0 %v5313, 17
  %v5331 = vpop.permute.xlu0 %5330
  %v5332 = vsel %vm99, %v5325, %v5329
  %v5333 = vsel %vm99, %v5327, %v5331
  %v5334 = vsel %vm99, %v5321, %v5325
  %v5335 = vsel %vm99, %v5323, %v5327
  %v5336 = vsel %vm99, %v5317, %v5321
  %v5337 = vsel %vm99, %v5319, %v5323
  %v5338 = vsel %vm99, %v5329, %v5317
  %v5339 = vsel %vm99, %v5331, %v5319
  %v5340 = vmul.f32 %v5338, %v108
  %v5341 = vmul.f32 %v5336, %v112
  %v5342 = vmul.f32 %v5334, %v116
  %v5343 = vmul.f32 %v5332, %v120
  %v5344 = vmul.f32 %v5339, %v108
  %v5345 = vmul.f32 %v5337, %v112
  %v5346 = vmul.f32 %v5335, %v116
  %v5347 = vmul.f32 %v5333, %v120
  %5349 = vset.pattern.permute.xlu0 0
  %5350 = vperm.xlu0 %5349, %v5314
  %v5351 = vpop.permute.xlu0 %5350
  %5354 = vset.pattern.permute.xlu0 0
  %5355 = vperm.xlu0 %5354, %v5315
  %v5356 = vpop.permute.xlu0 %5355
  %v5358 = vmul.f32 %v5351, %v5340
  %v5359 = vmul.f32 %v5351, %v5341
  %v5360 = vmul.f32 %v5351, %v5342
  %v5361 = vmul.f32 %v5351, %v5343
  %v5362 = vmul.f32 %v5356, %v5344
  %v5363 = vmul.f32 %v5356, %v5345
  %v5364 = vmul.f32 %v5356, %v5346
  %v5365 = vmul.f32 %v5356, %v5347
  %5366 = vrot.lane.b32.xlu0 %v5306, 16
  %v5367 = vpop.permute.xlu0 %5366
  %5368 = vrot.lane.b32.xlu0 %v5310, 16
  %v5369 = vpop.permute.xlu0 %5368
  %5370 = vrot.lane.b32.xlu0 %v5307, 16
  %v5371 = vpop.permute.xlu0 %5370
  %5372 = vrot.lane.b32.xlu0 %v5311, 16
  %v5373 = vpop.permute.xlu0 %5372
  %5374 = vrot.lane.b32.xlu0 %v5308, 16
  %v5375 = vpop.permute.xlu0 %5374
  %5376 = vrot.lane.b32.xlu0 %v5312, 16
  %v5377 = vpop.permute.xlu0 %5376
  %5378 = vrot.lane.b32.xlu0 %v5309, 16
  %v5379 = vpop.permute.xlu0 %5378
  %5380 = vrot.lane.b32.xlu0 %v5313, 16
  %v5381 = vpop.permute.xlu0 %5380
  %v5382 = vsel %vm171, %v5375, %v5379
  %v5383 = vsel %vm171, %v5377, %v5381
  %v5384 = vsel %vm171, %v5371, %v5375
  %v5385 = vsel %vm171, %v5373, %v5377
  %v5386 = vsel %vm171, %v5367, %v5371
  %v5387 = vsel %vm171, %v5369, %v5373
  %v5388 = vsel %vm171, %v5379, %v5367
  %v5389 = vsel %vm171, %v5381, %v5369
  %v5390 = vmul.f32 %v5388, %v180
  %v5391 = vmul.f32 %v5386, %v184
  %v5392 = vmul.f32 %v5384, %v188
  %v5393 = vmul.f32 %v5382, %v192
  %v5394 = vmul.f32 %v5389, %v180
  %v5395 = vmul.f32 %v5387, %v184
  %v5396 = vmul.f32 %v5385, %v188
  %v5397 = vmul.f32 %v5383, %v192
  %5398 = vset.pattern.permute.xlu0 1
  %5399 = vperm.xlu0 %5398, %v5314
  %v5400 = vpop.permute.xlu0 %5399
  %5402 = vset.pattern.permute.xlu0 1
  %5403 = vperm.xlu0 %5402, %v5315
  %v5404 = vpop.permute.xlu0 %5403
  %v5406 = vmul.f32 %v5400, %v5390
  %v5407 = vmul.f32 %v5400, %v5391
  %v5408 = vmul.f32 %v5400, %v5392
  %v5409 = vmul.f32 %v5400, %v5393
  %v5410 = vmul.f32 %v5404, %v5394
  %v5411 = vmul.f32 %v5404, %v5395
  %v5412 = vmul.f32 %v5404, %v5396
  %v5413 = vmul.f32 %v5404, %v5397
  %v5414 = vadd.f32 %v5358, %v5406
  %v5415 = vadd.f32 %v5359, %v5407
  %v5416 = vadd.f32 %v5360, %v5408
  %v5417 = vadd.f32 %v5361, %v5409
  %v5418 = vadd.f32 %v5362, %v5410
  %v5419 = vadd.f32 %v5363, %v5411
  %v5420 = vadd.f32 %v5364, %v5412
  %v5421 = vadd.f32 %v5365, %v5413
  %5422 = vrot.lane.b32.xlu0 %v5306, 15
  %v5423 = vpop.permute.xlu0 %5422
  %5424 = vrot.lane.b32.xlu0 %v5310, 15
  %v5425 = vpop.permute.xlu0 %5424
  %5426 = vrot.lane.b32.xlu0 %v5307, 15
  %v5427 = vpop.permute.xlu0 %5426
  %5428 = vrot.lane.b32.xlu0 %v5311, 15
  %v5429 = vpop.permute.xlu0 %5428
  %5430 = vrot.lane.b32.xlu0 %v5308, 15
  %v5431 = vpop.permute.xlu0 %5430
  %5432 = vrot.lane.b32.xlu0 %v5312, 15
  %v5433 = vpop.permute.xlu0 %5432
  %5434 = vrot.lane.b32.xlu0 %v5309, 15
  %v5435 = vpop.permute.xlu0 %5434
  %5436 = vrot.lane.b32.xlu0 %v5313, 15
  %v5437 = vpop.permute.xlu0 %5436
  %v5438 = vsel %vm249, %v5431, %v5435
  %v5439 = vsel %vm249, %v5433, %v5437
  %v5440 = vsel %vm249, %v5427, %v5431
  %v5441 = vsel %vm249, %v5429, %v5433
  %v5442 = vsel %vm249, %v5423, %v5427
  %v5443 = vsel %vm249, %v5425, %v5429
  %v5444 = vsel %vm249, %v5435, %v5423
  %v5445 = vsel %vm249, %v5437, %v5425
  %v5446 = vmul.f32 %v5444, %v258
  %v5447 = vmul.f32 %v5442, %v262
  %v5448 = vmul.f32 %v5440, %v266
  %v5449 = vmul.f32 %v5438, %v270
  %v5450 = vmul.f32 %v5445, %v258
  %v5451 = vmul.f32 %v5443, %v262
  %v5452 = vmul.f32 %v5441, %v266
  %v5453 = vmul.f32 %v5439, %v270
  %5454 = vset.pattern.permute.xlu0 2
  %5455 = vperm.xlu0 %5454, %v5314
  %v5456 = vpop.permute.xlu0 %5455
  %5458 = vset.pattern.permute.xlu0 2
  %5459 = vperm.xlu0 %5458, %v5315
  %v5460 = vpop.permute.xlu0 %5459
  %v5462 = vmul.f32 %v5456, %v5446
  %v5463 = vmul.f32 %v5456, %v5447
  %v5464 = vmul.f32 %v5456, %v5448
  %v5465 = vmul.f32 %v5456, %v5449
  %v5466 = vmul.f32 %v5460, %v5450
  %v5467 = vmul.f32 %v5460, %v5451
  %v5468 = vmul.f32 %v5460, %v5452
  %v5469 = vmul.f32 %v5460, %v5453
  %v5470 = vadd.f32 %v5414, %v5462
  %v5471 = vadd.f32 %v5415, %v5463
  %v5472 = vadd.f32 %v5416, %v5464
  %v5473 = vadd.f32 %v5417, %v5465
  %v5474 = vadd.f32 %v5418, %v5466
  %v5475 = vadd.f32 %v5419, %v5467
  %v5476 = vadd.f32 %v5420, %v5468
  %v5477 = vadd.f32 %v5421, %v5469
  %5478 = vrot.lane.b32.xlu0 %v5306, 1
  %v5479 = vpop.permute.xlu0 %5478
  %5480 = vrot.lane.b32.xlu0 %v5310, 1
  %v5481 = vpop.permute.xlu0 %5480
  %5482 = vrot.lane.b32.xlu0 %v5307, 1
  %v5483 = vpop.permute.xlu0 %5482
  %5484 = vrot.lane.b32.xlu0 %v5311, 1
  %v5485 = vpop.permute.xlu0 %5484
  %5486 = vrot.lane.b32.xlu0 %v5308, 1
  %v5487 = vpop.permute.xlu0 %5486
  %5488 = vrot.lane.b32.xlu0 %v5312, 1
  %v5489 = vpop.permute.xlu0 %5488
  %5490 = vrot.lane.b32.xlu0 %v5309, 1
  %v5491 = vpop.permute.xlu0 %5490
  %5492 = vrot.lane.b32.xlu0 %v5313, 1
  %v5493 = vpop.permute.xlu0 %5492
  %v5494 = vsel %vm327, %v5487, %v5491
  %v5495 = vsel %vm327, %v5489, %v5493
  %v5496 = vsel %vm327, %v5483, %v5487
  %v5497 = vsel %vm327, %v5485, %v5489
  %v5498 = vsel %vm327, %v5479, %v5483
  %v5499 = vsel %vm327, %v5481, %v5485
  %v5500 = vsel %vm327, %v5491, %v5479
  %v5501 = vsel %vm327, %v5493, %v5481
  %v5502 = vmul.f32 %v5500, %v336
  %v5503 = vmul.f32 %v5498, %v340
  %v5504 = vmul.f32 %v5496, %v344
  %v5505 = vmul.f32 %v5494, %v348
  %v5506 = vmul.f32 %v5501, %v336
  %v5507 = vmul.f32 %v5499, %v340
  %v5508 = vmul.f32 %v5497, %v344
  %v5509 = vmul.f32 %v5495, %v348
  %5510 = vset.pattern.permute.xlu0 3
  %5511 = vperm.xlu0 %5510, %v5314
  %v5512 = vpop.permute.xlu0 %5511
  %5514 = vset.pattern.permute.xlu0 3
  %5515 = vperm.xlu0 %5514, %v5315
  %v5516 = vpop.permute.xlu0 %5515
  %v5518 = vmul.f32 %v5512, %v5502
  %v5519 = vmul.f32 %v5512, %v5503
  %v5520 = vmul.f32 %v5512, %v5504
  %v5521 = vmul.f32 %v5512, %v5505
  %v5522 = vmul.f32 %v5516, %v5506
  %v5523 = vmul.f32 %v5516, %v5507
  %v5524 = vmul.f32 %v5516, %v5508
  %v5525 = vmul.f32 %v5516, %v5509
  %v5526 = vadd.f32 %v5470, %v5518
  %v5527 = vadd.f32 %v5471, %v5519
  %v5528 = vadd.f32 %v5472, %v5520
  %v5529 = vadd.f32 %v5473, %v5521
  %v5530 = vadd.f32 %v5474, %v5522
  %v5531 = vadd.f32 %v5475, %v5523
  %v5532 = vadd.f32 %v5476, %v5524
  %v5533 = vadd.f32 %v5477, %v5525
  %5534 = vset.pattern.permute.xlu0 4
  %5535 = vperm.xlu0 %5534, %v5314
  %v5536 = vpop.permute.xlu0 %5535
  %5538 = vset.pattern.permute.xlu0 4
  %5539 = vperm.xlu0 %5538, %v5315
  %v5540 = vpop.permute.xlu0 %5539
  %v5542 = vmul.f32 %v5536, %v5306
  %v5543 = vmul.f32 %v5536, %v5307
  %v5544 = vmul.f32 %v5536, %v5308
  %v5545 = vmul.f32 %v5536, %v5309
  %v5546 = vmul.f32 %v5540, %v5310
  %v5547 = vmul.f32 %v5540, %v5311
  %v5548 = vmul.f32 %v5540, %v5312
  %v5549 = vmul.f32 %v5540, %v5313
  %v5550 = vadd.f32 %v5526, %v5542
  %v5551 = vadd.f32 %v5527, %v5543
  %v5552 = vadd.f32 %v5528, %v5544
  %v5553 = vadd.f32 %v5529, %v5545
  %v5554 = vadd.f32 %v5530, %v5546
  %v5555 = vadd.f32 %v5531, %v5547
  %v5556 = vadd.f32 %v5532, %v5548
  %v5557 = vadd.f32 %v5533, %v5549
  %5558 = vrot.lane.b32.xlu0 %v5306, 127
  %v5559 = vpop.permute.xlu0 %5558
  %5560 = vrot.lane.b32.xlu0 %v5310, 127
  %v5561 = vpop.permute.xlu0 %5560
  %5562 = vrot.lane.b32.xlu0 %v5307, 127
  %v5563 = vpop.permute.xlu0 %5562
  %5564 = vrot.lane.b32.xlu0 %v5311, 127
  %v5565 = vpop.permute.xlu0 %5564
  %5566 = vrot.lane.b32.xlu0 %v5308, 127
  %v5567 = vpop.permute.xlu0 %5566
  %5568 = vrot.lane.b32.xlu0 %v5312, 127
  %v5569 = vpop.permute.xlu0 %5568
  %5570 = vrot.lane.b32.xlu0 %v5309, 127
  %v5571 = vpop.permute.xlu0 %5570
  %5572 = vrot.lane.b32.xlu0 %v5313, 127
  %v5573 = vpop.permute.xlu0 %5572
  %v5574 = vsel %vm429, %v5567, %v5571
  %v5575 = vsel %vm429, %v5569, %v5573
  %v5576 = vsel %vm429, %v5563, %v5567
  %v5577 = vsel %vm429, %v5565, %v5569
  %v5578 = vsel %vm429, %v5559, %v5563
  %v5579 = vsel %vm429, %v5561, %v5565
  %v5580 = vsel %vm429, %v5571, %v5559
  %v5581 = vsel %vm429, %v5573, %v5561
  %v5582 = vmul.f32 %v5578, %v438
  %v5583 = vmul.f32 %v5576, %v442
  %v5584 = vmul.f32 %v5574, %v446
  %v5585 = vmul.f32 %v5580, %v450
  %v5586 = vmul.f32 %v5579, %v438
  %v5587 = vmul.f32 %v5577, %v442
  %v5588 = vmul.f32 %v5575, %v446
  %v5589 = vmul.f32 %v5581, %v450
  %5590 = vset.pattern.permute.xlu0 5
  %5591 = vperm.xlu0 %5590, %v5314
  %v5592 = vpop.permute.xlu0 %5591
  %5594 = vset.pattern.permute.xlu0 5
  %5595 = vperm.xlu0 %5594, %v5315
  %v5596 = vpop.permute.xlu0 %5595
  %v5598 = vmul.f32 %v5592, %v5582
  %v5599 = vmul.f32 %v5592, %v5583
  %v5600 = vmul.f32 %v5592, %v5584
  %v5601 = vmul.f32 %v5592, %v5585
  %v5602 = vmul.f32 %v5596, %v5586
  %v5603 = vmul.f32 %v5596, %v5587
  %v5604 = vmul.f32 %v5596, %v5588
  %v5605 = vmul.f32 %v5596, %v5589
  %v5606 = vadd.f32 %v5550, %v5598
  %v5607 = vadd.f32 %v5551, %v5599
  %v5608 = vadd.f32 %v5552, %v5600
  %v5609 = vadd.f32 %v5553, %v5601
  %v5610 = vadd.f32 %v5554, %v5602
  %v5611 = vadd.f32 %v5555, %v5603
  %v5612 = vadd.f32 %v5556, %v5604
  %v5613 = vadd.f32 %v5557, %v5605
  %5614 = vrot.lane.b32.xlu0 %v5306, 113
  %v5615 = vpop.permute.xlu0 %5614
  %5616 = vrot.lane.b32.xlu0 %v5310, 113
  %v5617 = vpop.permute.xlu0 %5616
  %5618 = vrot.lane.b32.xlu0 %v5307, 113
  %v5619 = vpop.permute.xlu0 %5618
  %5620 = vrot.lane.b32.xlu0 %v5311, 113
  %v5621 = vpop.permute.xlu0 %5620
  %5622 = vrot.lane.b32.xlu0 %v5308, 113
  %v5623 = vpop.permute.xlu0 %5622
  %5624 = vrot.lane.b32.xlu0 %v5312, 113
  %v5625 = vpop.permute.xlu0 %5624
  %5626 = vrot.lane.b32.xlu0 %v5309, 113
  %v5627 = vpop.permute.xlu0 %5626
  %5628 = vrot.lane.b32.xlu0 %v5313, 113
  %v5629 = vpop.permute.xlu0 %5628
  %v5630 = vsel %vm507, %v5623, %v5627
  %v5631 = vsel %vm507, %v5625, %v5629
  %v5632 = vsel %vm507, %v5619, %v5623
  %v5633 = vsel %vm507, %v5621, %v5625
  %v5634 = vsel %vm507, %v5615, %v5619
  %v5635 = vsel %vm507, %v5617, %v5621
  %v5636 = vsel %vm507, %v5627, %v5615
  %v5637 = vsel %vm507, %v5629, %v5617
  %v5638 = vmul.f32 %v5634, %v516
  %v5639 = vmul.f32 %v5632, %v520
  %v5640 = vmul.f32 %v5630, %v524
  %v5641 = vmul.f32 %v5636, %v528
  %v5642 = vmul.f32 %v5635, %v516
  %v5643 = vmul.f32 %v5633, %v520
  %v5644 = vmul.f32 %v5631, %v524
  %v5645 = vmul.f32 %v5637, %v528
  %5646 = vset.pattern.permute.xlu0 6
  %5647 = vperm.xlu0 %5646, %v5314
  %v5648 = vpop.permute.xlu0 %5647
  %5650 = vset.pattern.permute.xlu0 6
  %5651 = vperm.xlu0 %5650, %v5315
  %v5652 = vpop.permute.xlu0 %5651
  %v5654 = vmul.f32 %v5648, %v5638
  %v5655 = vmul.f32 %v5648, %v5639
  %v5656 = vmul.f32 %v5648, %v5640
  %v5657 = vmul.f32 %v5648, %v5641
  %v5658 = vmul.f32 %v5652, %v5642
  %v5659 = vmul.f32 %v5652, %v5643
  %v5660 = vmul.f32 %v5652, %v5644
  %v5661 = vmul.f32 %v5652, %v5645
  %v5662 = vadd.f32 %v5606, %v5654
  %v5663 = vadd.f32 %v5607, %v5655
  %v5664 = vadd.f32 %v5608, %v5656
  %v5665 = vadd.f32 %v5609, %v5657
  %v5666 = vadd.f32 %v5610, %v5658
  %v5667 = vadd.f32 %v5611, %v5659
  %v5668 = vadd.f32 %v5612, %v5660
  %v5669 = vadd.f32 %v5613, %v5661
  %5670 = vrot.lane.b32.xlu0 %v5306, 112
  %v5671 = vpop.permute.xlu0 %5670
  %5672 = vrot.lane.b32.xlu0 %v5310, 112
  %v5673 = vpop.permute.xlu0 %5672
  %5674 = vrot.lane.b32.xlu0 %v5307, 112
  %v5675 = vpop.permute.xlu0 %5674
  %5676 = vrot.lane.b32.xlu0 %v5311, 112
  %v5677 = vpop.permute.xlu0 %5676
  %5678 = vrot.lane.b32.xlu0 %v5308, 112
  %v5679 = vpop.permute.xlu0 %5678
  %5680 = vrot.lane.b32.xlu0 %v5312, 112
  %v5681 = vpop.permute.xlu0 %5680
  %5682 = vrot.lane.b32.xlu0 %v5309, 112
  %v5683 = vpop.permute.xlu0 %5682
  %5684 = vrot.lane.b32.xlu0 %v5313, 112
  %v5685 = vpop.permute.xlu0 %5684
  %v5686 = vsel %vm585, %v5679, %v5683
  %v5687 = vsel %vm585, %v5681, %v5685
  %v5688 = vsel %vm585, %v5675, %v5679
  %v5689 = vsel %vm585, %v5677, %v5681
  %v5690 = vsel %vm585, %v5671, %v5675
  %v5691 = vsel %vm585, %v5673, %v5677
  %v5692 = vsel %vm585, %v5683, %v5671
  %v5693 = vsel %vm585, %v5685, %v5673
  %v5694 = vmul.f32 %v5690, %v594
  %v5695 = vmul.f32 %v5688, %v598
  %v5696 = vmul.f32 %v5686, %v602
  %v5697 = vmul.f32 %v5692, %v606
  %v5698 = vmul.f32 %v5691, %v594
  %v5699 = vmul.f32 %v5689, %v598
  %v5700 = vmul.f32 %v5687, %v602
  %v5701 = vmul.f32 %v5693, %v606
  %5702 = vset.pattern.permute.xlu0 7
  %5703 = vperm.xlu0 %5702, %v5314
  %v5704 = vpop.permute.xlu0 %5703
  %5706 = vset.pattern.permute.xlu0 7
  %5707 = vperm.xlu0 %5706, %v5315
  %v5708 = vpop.permute.xlu0 %5707
  %v5710 = vmul.f32 %v5704, %v5694
  %v5711 = vmul.f32 %v5704, %v5695
  %v5712 = vmul.f32 %v5704, %v5696
  %v5713 = vmul.f32 %v5704, %v5697
  %v5714 = vmul.f32 %v5708, %v5698
  %v5715 = vmul.f32 %v5708, %v5699
  %v5716 = vmul.f32 %v5708, %v5700
  %v5717 = vmul.f32 %v5708, %v5701
  %v5718 = vadd.f32 %v5662, %v5710
  %v5719 = vadd.f32 %v5663, %v5711
  %v5720 = vadd.f32 %v5664, %v5712
  %v5721 = vadd.f32 %v5665, %v5713
  %v5722 = vadd.f32 %v5666, %v5714
  %v5723 = vadd.f32 %v5667, %v5715
  %v5724 = vadd.f32 %v5668, %v5716
  %v5725 = vadd.f32 %v5669, %v5717
  %5726 = vrot.lane.b32.xlu0 %v5306, 111
  %v5727 = vpop.permute.xlu0 %5726
  %5728 = vrot.lane.b32.xlu0 %v5310, 111
  %v5729 = vpop.permute.xlu0 %5728
  %5730 = vrot.lane.b32.xlu0 %v5307, 111
  %v5731 = vpop.permute.xlu0 %5730
  %5732 = vrot.lane.b32.xlu0 %v5311, 111
  %v5733 = vpop.permute.xlu0 %5732
  %5734 = vrot.lane.b32.xlu0 %v5308, 111
  %v5735 = vpop.permute.xlu0 %5734
  %5736 = vrot.lane.b32.xlu0 %v5312, 111
  %v5737 = vpop.permute.xlu0 %5736
  %5738 = vrot.lane.b32.xlu0 %v5309, 111
  %v5739 = vpop.permute.xlu0 %5738
  %5740 = vrot.lane.b32.xlu0 %v5313, 111
  %v5741 = vpop.permute.xlu0 %5740
  %v5742 = vsel %vm663, %v5735, %v5739
  %v5743 = vsel %vm663, %v5737, %v5741
  %v5744 = vsel %vm663, %v5731, %v5735
  %v5745 = vsel %vm663, %v5733, %v5737
  %v5746 = vsel %vm663, %v5727, %v5731
  %v5747 = vsel %vm663, %v5729, %v5733
  %v5748 = vsel %vm663, %v5739, %v5727
  %v5749 = vsel %vm663, %v5741, %v5729
  %v5750 = vmul.f32 %v5746, %v672
  %v5751 = vmul.f32 %v5744, %v676
  %v5752 = vmul.f32 %v5742, %v680
  %v5753 = vmul.f32 %v5748, %v684
  %v5754 = vmul.f32 %v5747, %v672
  %v5755 = vmul.f32 %v5745, %v676
  %v5756 = vmul.f32 %v5743, %v680
  %v5757 = vmul.f32 %v5749, %v684
  %5758 = vset.pattern.permute.xlu0 8
  %5759 = vperm.xlu0 %5758, %v5314
  %v5760 = vpop.permute.xlu0 %5759
  %5762 = vset.pattern.permute.xlu0 8
  %5763 = vperm.xlu0 %5762, %v5315
  %v5764 = vpop.permute.xlu0 %5763
  %v5766 = vmul.f32 %v5760, %v5750
  %v5767 = vmul.f32 %v5760, %v5751
  %v5768 = vmul.f32 %v5760, %v5752
  %v5769 = vmul.f32 %v5760, %v5753
  %v5770 = vmul.f32 %v5764, %v5754
  %v5771 = vmul.f32 %v5764, %v5755
  %v5772 = vmul.f32 %v5764, %v5756
  %v5773 = vmul.f32 %v5764, %v5757
  %v5774 = vadd.f32 %v5718, %v5766
  %v5775 = vadd.f32 %v5719, %v5767
  %v5776 = vadd.f32 %v5720, %v5768
  %v5777 = vadd.f32 %v5721, %v5769
  %v5778 = vadd.f32 %v5722, %v5770
  %v5779 = vadd.f32 %v5723, %v5771
  %v5780 = vadd.f32 %v5724, %v5772
  %v5781 = vadd.f32 %v5725, %v5773
  %v5782 = vadd.f32 %v5774, %v5778
  %v5783 = vrot.slane %v5782, 4
  %v5784 = vadd.f32 %v5782, %v5783
  %v5785 = vrot.slane %v5784, 2
  %v5786 = vadd.f32 %v5784, %v5785
  %v5787 = vrot.slane %v5786, 1
  %v5788 = vadd.f32 %v5786, %v5787
  %v5789 = vadd.f32 %v5775, %v5779
  %v5790 = vrot.slane %v5789, 4
  %v5791 = vadd.f32 %v5789, %v5790
  %v5792 = vrot.slane %v5791, 2
  %v5793 = vadd.f32 %v5791, %v5792
  %v5794 = vrot.slane %v5793, 1
  %v5795 = vadd.f32 %v5793, %v5794
  %v5796 = vadd.f32 %v5776, %v5780
  %v5797 = vrot.slane %v5796, 4
  %v5798 = vadd.f32 %v5796, %v5797
  %v5799 = vrot.slane %v5798, 2
  %v5800 = vadd.f32 %v5798, %v5799
  %v5801 = vrot.slane %v5800, 1
  %v5802 = vadd.f32 %v5800, %v5801
  %v5803 = vadd.f32 %v5777, %v5781
  %v5804 = vrot.slane %v5803, 4
  %v5805 = vadd.f32 %v5803, %v5804
  %v5806 = vrot.slane %v5805, 2
  %v5807 = vadd.f32 %v5805, %v5806
  %v5808 = vrot.slane %v5807, 1
  %v5809 = vadd.f32 %v5807, %v5808
  %v5810 = vld [vmem:[#allocation3] sm:$0x1]
  %5812 = vset.pattern.permute.xlu0 0
  %5813 = vperm.xlu0 %5812, %v5810
  %v5814 = vpop.permute.xlu0 %5813
  %v5816 = vlaneseq
  %v5817 = vshrl.u32 %v5816, 7
  %v5818 = vsub.s32 0, %v5817
  %v5819 = vrot.slane %v5814, %v5818
  %v5820 = vadd.f32 %v5788, %v5819
  %v5821 = vadd.f32 %v5795, %v5819
  %v5822 = vadd.f32 %v5802, %v5819
  %v5823 = vadd.f32 %v5809, %v5819
  %v5828 = vcombine.low %v5820, %v5821
  %v5829 = vcombine.low %v5822, %v5823
  %v5831 = vunpack.c.l.s4 1966171168
  %v5832 = vunpack.c.0.s8 %v5831
  %v5833 = vlaneseq
  %v5834 = vshrl.u32 %v5833, 7
  %v5835 = vsub.s32 %v5832, %v5834
  %v5836 = vrot.slane %v5828, %v5835
  %v5838 = vunpack.c.l.s4 1966171168
  %v5839 = vunpack.c.0.s8 %v5838
  %v5840 = vlaneseq
  %v5841 = vshrl.u32 %v5840, 7
  %v5842 = vsub.s32 %v5839, %v5841
  %v5843 = vrot.slane %v5829, %v5842
  %v5844 = vcombine.low %v5836, %v5843
  %v5846 = vunpack.c.l.s4 1966171168
  %v5847 = vunpack.c.0.s8 %v5846
  %v5848 = vlaneseq
  %v5849 = vshrl.u32 %v5848, 7
  %v5850 = vsub.s32 %v5847, %v5849
  %v5851 = vrot.slane %v5844, %v5850
  %v5853 = vlaneseq
  %vm5854 = vcmp.ge.s32.totalorder %v5853, 0
  %vm5855 = vcmp.lt.s32.totalorder %v5853, 512
  %vm5856 = vmand %vm5854, %vm5855
  %5857 = vst.msk [vmem:[%s14] sm:$0xf] %vm5856, %v5851
  // Predicated region
  $region58: #{noise_reduction_cnn_forward.1} parent=0 // pred_check
    _
  $region59: #{noise_reduction_cnn_forward.1} parent=0 // pred_check_branch
    %5859 = sbr.rel (0) target = $region61
  $region60: #{noise_reduction_cnn_forward.1} parent=0 // pred_region
    _
  $region61: #{noise_reduction_cnn_forward.1} parent=0 // pred_fallthru
    _
  // Predicated region
  $region62: #{noise_reduction_cnn_forward.1} parent=0 // pred_check
    _
  $region63: #{noise_reduction_cnn_forward.1} parent=0 // pred_check_branch
    %5861 = sbr.rel (0) target = $region65
  $region64: #{noise_reduction_cnn_forward.1} parent=0 // pred_region
    _
  $region65: #{noise_reduction_cnn_forward.1} parent=0 // pred_fallthru
    _

</llo_original>
